<compile_context>
chip_gen: v7x
topology: tpu7x:2x2x1
jax: 0.10.0
libtpu: 0.0.40
codegen_flags: <defaults>
</compile_context>

<pallas_src>
import math
from functools import partial

import numpy as np
import jax
import jax.numpy as jnp
from jax.experimental import pallas as pl
from jax.experimental.pallas import tpu as pltpu


# ----------------------------------------------------------------------------
# small helpers
# ----------------------------------------------------------------------------
def _full(shape):
    """BlockSpec covering the whole array regardless of grid rank."""
    n = len(shape)
    return pl.BlockSpec(shape, lambda *ids, _n=n: (0,) * _n)


def _stacked(shape):
    """BlockSpec selecting slice `l` along a leading per-layer (depth) axis."""
    n = len(shape)
    return pl.BlockSpec((1,) + tuple(shape[1:]),
                        lambda l, _n=n: (l,) + (0,) * (_n - 1))


def _ln(x, w, b, eps=1e-5):
    """nn.LayerNorm semantics (biased variance, eps=1e-5) over the last dim."""
    mu = jnp.mean(x, axis=-1, keepdims=True)
    var = jnp.mean((x - mu) ** 2, axis=-1, keepdims=True)
    return (x - mu) * jax.lax.rsqrt(var + eps) * w + b


# ----------------------------------------------------------------------------
# Kernel 1: patch-embed + conv_norm + CPC encode/anchor/Wk predictions
# ----------------------------------------------------------------------------
def _embed_cpc_kernel(x_ref, pew_ref, peb_ref, cnw_ref, cnb_ref,
                      sel_ref, avg_ref, wkw_ref, wkb_ref,
                      xno_ref, enc_ref, pred_ref):
    x = x_ref[...]                                                    # (B*Np, Cin)
    x_en = jnp.dot(x, pew_ref[...],
                   preferred_element_type=jnp.float32) + peb_ref[...]  # (B*Np, C)

    xn = _ln(x_en, cnw_ref[...], cnb_ref[...])                        # conv_norm
    xno_ref[...] = xn.astype(xno_ref.dtype)

    # encode_samples = x_en[:, :T, :] gathered via a static 0/1 selection matmul
    enc_ref[...] = jnp.dot(sel_ref[...], x_en,
                           preferred_element_type=jnp.float32).astype(enc_ref.dtype)

    # per-batch anchor mean over tokens (matmul against a block-averaging matrix)
    anchor = jnp.dot(avg_ref[...], xn, preferred_element_type=jnp.float32)  # (B, C)
    # all timestep Wk predictions in one lane-dense matmul
    pred = jnp.dot(anchor, wkw_ref[...],
                   preferred_element_type=jnp.float32) + wkb_ref[...]        # (B, T*C)
    pred_ref[...] = pred.astype(pred_ref.dtype)


def embed_cpc_call(x_tok, sel, avg, p, *, B, T):
    M, Cin = x_tok.shape
    C = p["pe_w"].shape[1]
    return pl.pallas_call(
        _embed_cpc_kernel,
        out_shape=(jax.ShapeDtypeStruct((M, C), jnp.float32),       # conv_norm(x_en)
                   jax.ShapeDtypeStruct((B * T, C), jnp.float32),   # encode_samples
                   jax.ShapeDtypeStruct((B, T * C), jnp.float32)),  # Wk predictions
        grid=(1,),
        in_specs=[_full((M, Cin)), _full((Cin, C)), _full((1, C)),
                  _full((1, C)), _full((1, C)),
                  _full((B * T, M)), _full((B, M)),
                  _full((C, T * C)), _full((1, T * C))],
        out_specs=(_full((M, C)), _full((B * T, C)), _full((B, T * C))),
    )(x_tok, p["pe_w"], p["pe_b"], p["cn_w"], p["cn_b"], sel, avg,
      p["wk_w"], p["wk_b"])


# ----------------------------------------------------------------------------
# Kernel 2: full transformer stack (grid over depth) + final LayerNorm
# ----------------------------------------------------------------------------
def _stack_kernel(x_ref, ln1w_ref, ln1b_ref, wq_ref, wk_ref, wv_ref, wo_ref, bo_ref,
                  ln2w_ref, ln2b_ref, w1_ref, b1_ref, w2_ref, b2_ref,
                  nw_ref, nb_ref, o_ref, *, B, N, H):
    """One pre-norm ViT Block per grid step (qkv_bias=False, no layer-scale,
    all drop rates 0) on a (B*N, C) token slab held resident in o_ref.
    Per-head q/k/v/proj weights are pre-split on the host, so there is no lane
    slicing, no weight transpose and no head concat here.  On the last grid
    step the final encoder LayerNorm is fused in."""
    l = pl.program_id(0)
    last = pl.num_programs(0) - 1

    @pl.when(l == 0)
    def _():
        o_ref[...] = x_ref[...]

    x = o_ref[...]                                                    # (B*N, C) f32
    M, C = x.shape
    hd = C // H
    scale = hd ** -0.5

    # --- attention branch ---
    xn = _ln(x, ln1w_ref[0], ln1b_ref[0])
    xb = xn.astype(jnp.bfloat16)
    attn = None
    for hh in range(H):                                               # static head loop
        q = jnp.dot(xb, wq_ref[0, hh],
                    preferred_element_type=jnp.float32).reshape(B, N, hd) * scale
        k = jnp.dot(xb, wk_ref[0, hh],
                    preferred_element_type=jnp.float32).reshape(B, N, hd)
        v = jnp.dot(xb, wv_ref[0, hh],
                    preferred_element_type=jnp.float32).reshape(B, N, hd)
        s = jnp.einsum('bnd,bmd->bnm', q, k, preferred_element_type=jnp.float32)
        s = s - jnp.max(s, axis=-1, keepdims=True)
        p = jnp.exp(s)
        p = p / jnp.sum(p, axis=-1, keepdims=True)                    # exact softmax
        o = jnp.einsum('bnm,bmd->bnd', p, v, preferred_element_type=jnp.float32)
        contrib = jnp.dot(o.reshape(M, hd).astype(jnp.bfloat16), wo_ref[0, hh],
                          preferred_element_type=jnp.float32)         # (M, C)
        attn = contrib if attn is None else attn + contrib
    x = x + attn + bo_ref[0]

    # --- MLP branch ---
    xn2 = _ln(x, ln2w_ref[0], ln2b_ref[0])
    h1 = jnp.dot(xn2.astype(jnp.bfloat16), w1_ref[0],
                 preferred_element_type=jnp.float32) + b1_ref[0]
    # TODO(synk): reference Mlp uses exact erf-GELU (nn.GELU()); tanh-approx GELU
    # used here since erf has no guaranteed Pallas-TPU lowering.
    h1 = jax.nn.gelu(h1, approximate=True)
    h2 = jnp.dot(h1.astype(jnp.bfloat16), w2_ref[0],
                 preferred_element_type=jnp.float32) + b2_ref[0]
    y = x + h2

    @pl.when(l == last)
    def _():
        o_ref[...] = _ln(y, nw_ref[...], nb_ref[...]).astype(o_ref.dtype)

    @pl.when(l < last)
    def _():
        o_ref[...] = y.astype(o_ref.dtype)


def transformer_stack(x2d, sp, norm_w, norm_b, *, depth, B, N, H):
    M, C = x2d.shape
    hd = C // H
    Hm = sp["w1"].shape[2]
    in_specs = [
        _full((M, C)),
        _stacked((depth, 1, C)), _stacked((depth, 1, C)),             # ln1 w/b
        _stacked((depth, H, C, hd)), _stacked((depth, H, C, hd)),     # wq, wk
        _stacked((depth, H, C, hd)),                                  # wv
        _stacked((depth, H, hd, C)), _stacked((depth, 1, C)),         # wo, bo
        _stacked((depth, 1, C)), _stacked((depth, 1, C)),             # ln2 w/b
        _stacked((depth, C, Hm)), _stacked((depth, 1, Hm)),           # fc1 w/b
        _stacked((depth, Hm, C)), _stacked((depth, 1, C)),            # fc2 w/b
        _full((1, C)), _full((1, C)),                                 # final norm w/b
    ]
    return pl.pallas_call(
        partial(_stack_kernel, B=B, N=N, H=H),
        out_shape=jax.ShapeDtypeStruct((M, C), jnp.float32),
        grid=(depth,),
        in_specs=in_specs,
        out_specs=_full((M, C)),
        compiler_params=pltpu.CompilerParams(dimension_semantics=("arbitrary",)),
    )(x2d, sp["ln1_w"], sp["ln1_b"], sp["wq"], sp["wk"], sp["wv"],
      sp["wo"], sp["bo"], sp["ln2_w"], sp["ln2_b"],
      sp["w1"], sp["b1"], sp["w2"], sp["b2"], norm_w, norm_b)


# ----------------------------------------------------------------------------
# Reconstructed helpers (not shipped with the reference file)
# ----------------------------------------------------------------------------
def get_sinusoid_encoding_table(n_position, d_hid):
    # TODO(synk): original helper not provided; standard sinusoid table reconstruction.
    pos = np.arange(n_position, dtype=np.float64)[:, None]
    i = np.arange(d_hid, dtype=np.float64)[None, :]
    angle = pos / np.power(10000.0, 2.0 * (i // 2) / d_hid)
    table = np.zeros((n_position, d_hid), dtype=np.float64)
    table[:, 0::2] = np.sin(angle[:, 0::2])
    table[:, 1::2] = np.cos(angle[:, 1::2])
    return jnp.asarray(table[None], dtype=jnp.float32)                # (1, Np, C)


def generate_gaussian_kernel(k, sigma):
    # TODO(synk): original generate_gaussian_kernel not provided; use a centered
    # k x k Gaussian flattened to length k*k (== timestep).
    ax = np.arange(k, dtype=np.float64) - (k - 1) / 2.0
    xx, yy = np.meshgrid(ax, ax)
    g = np.exp(-(xx ** 2 + yy ** 2) / (2.0 * sigma ** 2))
    return g.reshape(-1)


# ----------------------------------------------------------------------------
# Parameter init (mirrors _init_weights: xavier_uniform weights, zero bias, LN 1/0),
# producing kernel-ready layouts (pre-transposed, per-head split, bf16 matmul
# weights, per-layer weights stacked along a leading depth axis).
# ----------------------------------------------------------------------------
def _xavier(key, out_f, in_f):
    a = math.sqrt(6.0 / (in_f + out_f))
    return jax.random.uniform(key, (out_f, in_f), jnp.float32, -a, a)


def init_block_params(key, dim, num_heads, mlp_ratio):
    hidden = int(dim * mlp_ratio)
    hd = dim // num_heads
    ks = jax.random.split(key, 4)
    qkv_w = _xavier(ks[0], 3 * dim, dim)       # torch layout (3C, C), qkv_bias=False
    proj_w = _xavier(ks[1], dim, dim)          # (C, C)
    fc1_w = _xavier(ks[2], hidden, dim)        # (Hm, C)
    fc2_w = _xavier(ks[3], dim, hidden)        # (C, Hm)

    def head_split_t(w):                       # (C, C) torch -> (H, C_in, hd) kernel-ready
        return jnp.stack([w[h * hd:(h + 1) * hd, :].T for h in range(num_heads)])

    return {
        "ln1_w": jnp.ones((1, dim), jnp.float32), "ln1_b": jnp.zeros((1, dim), jnp.float32),
        "wq": head_split_t(qkv_w[0:dim]).astype(jnp.bfloat16),
        "wk": head_split_t(qkv_w[dim:2 * dim]).astype(jnp.bfloat16),
        "wv": head_split_t(qkv_w[2 * dim:3 * dim]).astype(jnp.bfloat16),
        "wo": jnp.stack([proj_w[:, h * hd:(h + 1) * hd].T
                         for h in range(num_heads)]).astype(jnp.bfloat16),   # (H, hd, C)
        "bo": jnp.zeros((1, dim), jnp.float32),
        "ln2_w": jnp.ones((1, dim), jnp.float32), "ln2_b": jnp.zeros((1, dim), jnp.float32),
        "w1": fc1_w.T.astype(jnp.bfloat16), "b1": jnp.zeros((1, hidden), jnp.float32),
        "w2": fc2_w.T.astype(jnp.bfloat16), "b2": jnp.zeros((1, dim), jnp.float32),
    }


def init_encoder_params(key, *, patch_size, in_chans, embed_dim, depth,
                        num_heads, mlp_ratio, sigma):
    num_patches = patch_size * patch_size
    k = (patch_size - 1) // 2
    timestep = k * k
    keys = jax.random.split(key, 3)
    # TODO(synk): PatchEmbed implementation not provided; modeled as a per-pixel
    # (1x1-conv) projection in_chans -> dim_control (= embed_dim) with
    # num_patches = patch_size**2, returning (x, x_en) = (tokens, tokens).
    pe_w = _xavier(keys[0], embed_dim, in_chans)
    wk_list = [_xavier(kk, embed_dim, embed_dim)
               for kk in jax.random.split(keys[1], timestep)]
    g = generate_gaussian_kernel(k, sigma)
    blocks = [init_block_params(bk, embed_dim, num_heads, mlp_ratio)
              for bk in jax.random.split(keys[2], depth)]
    stacked = {kname: jnp.stack([b[kname] for b in blocks]) for kname in blocks[0]}
    return {
        "pe_w": pe_w.T,                                          # (Cin, C)
        "pe_b": jnp.zeros((1, embed_dim), jnp.float32),
        "cn_w": jnp.ones((1, embed_dim), jnp.float32),
        "cn_b": jnp.zeros((1, embed_dim), jnp.float32),
        "pos": get_sinusoid_encoding_table(num_patches, embed_dim),
        "wk_w": jnp.concatenate([w.T for w in wk_list], axis=1),  # (C, T*C) batched Wk
        "wk_b": jnp.zeros((1, timestep * embed_dim), jnp.float32),
        "val_gauss": jnp.asarray(g * (1.0 / g.max()), jnp.float32),
        "blocks": stacked,                                        # depth-stacked layouts
        "norm_w": jnp.ones((1, embed_dim), jnp.float32),
        "norm_b": jnp.zeros((1, embed_dim), jnp.float32),
    }


# ----------------------------------------------------------------------------
# Forward pass (use_model == 'neicot_pre', num_classes == 0 -> head = Identity)
# ----------------------------------------------------------------------------
def encoder_forward(params, x, vis_idx, *, timestep, num_heads, depth):
    B, Cin, P, _ = x.shape
    Np = P * P
    C = params["pe_w"].shape[1]
    T = timestep

    # tokens-last-channel layout, flattened to a (B*Np, Cin) slab
    x_tok = jnp.transpose(x, (0, 2, 3, 1)).reshape(B * Np, Cin)

    # static selection / averaging matrices so the kernel does matmuls only
    sel_np = np.zeros((B * T, B * Np), np.float32)                 # encode_samples gather
    for b in range(B):
        sel_np[b * T:(b + 1) * T, b * Np:b * Np + T] = np.eye(T, dtype=np.float32)
    sel = jnp.asarray(sel_np)
    avg = jnp.asarray(np.kron(np.eye(B, dtype=np.float32),
                              np.full((1, Np), 1.0 / Np, np.float32)))  # per-batch mean

    x_norm, enc2d, pred = embed_cpc_call(x_tok, sel, avg, params, B=B, T=T)

    # --- CPC contrastive branch: BxB logits / softmax / argmax / diag in plain JAX ---
    enc = enc2d.reshape(B, T, C)                                   # encode_samples
    predr = pred.reshape(B, T, C)
    totals = jnp.einsum('btc,dtc->tbd', enc, predr)                # (T, B, B)
    sm = jax.nn.softmax(totals, axis=2)                            # nn.Softmax() -> dim=1 of (B,B)
    lsm = jax.nn.log_softmax(totals, axis=2)
    # NB: the reference overwrites `correct` each timestep -> only the last one counts.
    correct = jnp.sum(jnp.argmax(sm[T - 1], axis=0) == jnp.arange(B))
    nce = jnp.sum(jnp.sum(jnp.diagonal(lsm, axis1=1, axis2=2), axis=1) * params["val_gauss"])
    nce = nce / (-1.0 * B * T)
    acc = correct.astype(jnp.float32) / B

    # --- main path: pos embed + visible-token gather + transformer stack ---
    xt = x_norm.reshape(B, Np, C) + params["pos"].astype(x_norm.dtype)
    x_vis = jnp.take_along_axis(xt, vis_idx[:, :, None], axis=1)   # x[~mask].reshape(B,-1,C)
    Nvis = vis_idx.shape[1]
    h = transformer_stack(x_vis.reshape(B * Nvis, C), params["blocks"],
                          params["norm_w"], params["norm_b"],
                          depth=depth, B=B, N=Nvis, H=num_heads)
    # head: num_classes == 0 -> Identity
    return h.reshape(B, Nvis, C), nce, acc


# ----------------------------------------------------------------------------
if __name__ == "__main__":
    # small config consistent with the module structure (lane-dense dims)
    B = 2
    patch_size = 5            # -> num_patches = 25, k = 2, timestep = 4
    in_chans = 8              # spectral channels of the input cube
    embed_dim = 128           # dim_control (multiple of 128 -> lane-dense)
    depth = 2
    num_heads = 4
    mlp_ratio = 4.0
    sigma = 1.0
    # num_classes = 0 -> head is Identity (reference default)

    num_patches = patch_size * patch_size
    k = (patch_size - 1) // 2
    timestep = k * k

    key = jax.random.PRNGKey(0)
    kp, kx = jax.random.split(key)
    params = init_encoder_params(
        kp, patch_size=patch_size, in_chans=in_chans, embed_dim=embed_dim,
        depth=depth, num_heads=num_heads, mlp_ratio=mlp_ratio, sigma=sigma)

    # deterministic boolean mask with a fixed number of masked tokens per row
    # (required by x[~mask].reshape(B, -1, C) in the reference model)
    rng = np.random.default_rng(0)
    n_mask_tok = 9                               # -> 16 visible tokens, B*Nvis = 32
    mask_np = np.zeros((B, num_patches), dtype=bool)
    for b in range(B):
        mask_np[b, rng.permutation(num_patches)[:n_mask_tok]] = True
    vis_idx = jnp.asarray(
        np.stack([np.nonzero(~mask_np[b])[0] for b in range(B)]), jnp.int32)

    x = jax.random.normal(kx, (B, in_chans, patch_size, patch_size), jnp.float32)

    fwd = jax.jit(partial(encoder_forward, timestep=timestep,
                          num_heads=num_heads, depth=depth))
    out, nce, acc = fwd(params, x, vis_idx)
    jax.block_until_ready((out, nce, acc))

    assert out.shape == (B, num_patches - n_mask_tok, embed_dim)
    assert bool(jnp.isfinite(out).all()) and bool(jnp.isfinite(nce)) and bool(jnp.isfinite(acc))
    print("KERNEL_OK")
</pallas_src>

<mosaic_0001>
module attributes {stable_mosaic.version = 11 : i64} {
  func.func @_embed_cpc_kernel(%arg0: i32, %arg1: memref<50x8xf32, #tpu.memory_space<vmem>>, %arg2: memref<8x128xf32, #tpu.memory_space<vmem>>, %arg3: memref<1x128xf32, #tpu.memory_space<vmem>>, %arg4: memref<1x128xf32, #tpu.memory_space<vmem>>, %arg5: memref<1x128xf32, #tpu.memory_space<vmem>>, %arg6: memref<8x50xf32, #tpu.memory_space<vmem>>, %arg7: memref<2x50xf32, #tpu.memory_space<vmem>>, %arg8: memref<128x512xf32, #tpu.memory_space<vmem>>, %arg9: memref<1x512xf32, #tpu.memory_space<vmem>>, %arg10: memref<50x128xf32, #tpu.memory_space<vmem>>, %arg11: memref<8x128xf32, #tpu.memory_space<vmem>>, %arg12: memref<2x512xf32, #tpu.memory_space<vmem>>) attributes {dimension_semantics = [#tpu.dimension_semantics<arbitrary>], iteration_bounds = array<i64: 1>, scalar_prefetch = 0 : i64, scratch_operands = 0 : i64, tpu.core_type = #tpu.core_type<tc>, window_params = [{pipeline_mode = #tpu.pipeline_mode<synchronous>, transform_indices = @transform_0, window_bounds = array<i64: 50, 8>}, {pipeline_mode = #tpu.pipeline_mode<synchronous>, transform_indices = @transform_1, window_bounds = array<i64: 8, 128>}, {pipeline_mode = #tpu.pipeline_mode<synchronous>, transform_indices = @transform_2, window_bounds = array<i64: 1, 128>}, {pipeline_mode = #tpu.pipeline_mode<synchronous>, transform_indices = @transform_3, window_bounds = array<i64: 1, 128>}, {pipeline_mode = #tpu.pipeline_mode<synchronous>, transform_indices = @transform_4, window_bounds = array<i64: 1, 128>}, {pipeline_mode = #tpu.pipeline_mode<synchronous>, transform_indices = @transform_5, window_bounds = array<i64: 8, 50>}, {pipeline_mode = #tpu.pipeline_mode<synchronous>, transform_indices = @transform_6, window_bounds = array<i64: 2, 50>}, {pipeline_mode = #tpu.pipeline_mode<synchronous>, transform_indices = @transform_7, window_bounds = array<i64: 128, 512>}, {pipeline_mode = #tpu.pipeline_mode<synchronous>, transform_indices = @transform_8, window_bounds = array<i64: 1, 512>}, {pipeline_mode = #tpu.pipeline_mode<synchronous>, transform_indices = @transform_9, window_bounds = array<i64: 50, 128>}, {pipeline_mode = #tpu.pipeline_mode<synchronous>, transform_indices = @transform_10, window_bounds = array<i64: 8, 128>}, {pipeline_mode = #tpu.pipeline_mode<synchronous>, transform_indices = @transform_11, window_bounds = array<i64: 2, 512>}]} {
    %c0 = arith.constant 0 : index
    %c0_0 = arith.constant 0 : index
    %0 = vector.load %arg1[%c0, %c0_0] : memref<50x8xf32, #tpu.memory_space<vmem>>, vector<50x8xf32>
    %c0_1 = arith.constant 0 : index
    %c0_2 = arith.constant 0 : index
    %1 = vector.load %arg2[%c0_1, %c0_2] : memref<8x128xf32, #tpu.memory_space<vmem>>, vector<8x128xf32>
    %cst = arith.constant dense<0.000000e+00> : vector<50x128xf32>
    %2 = tpu.matmul %0, %1, %cst {dimension_numbers = #tpu.dot_dimension_numbers<[1], [0], [0], [1], [0, 0, 1, 1], [], []>} : vector<50x8xf32>, vector<8x128xf32>, vector<50x128xf32> -> vector<50x128xf32>
    %c0_3 = arith.constant 0 : index
    %c0_4 = arith.constant 0 : index
    %3 = vector.load %arg3[%c0_3, %c0_4] : memref<1x128xf32, #tpu.memory_space<vmem>>, vector<1x128xf32>
    %4 = vector.broadcast %3 : vector<1x128xf32> to vector<50x128xf32>
    %5 = arith.addf %2, %4 : vector<50x128xf32>
    %c0_5 = arith.constant 0 : index
    %c0_6 = arith.constant 0 : index
    %6 = vector.load %arg4[%c0_5, %c0_6] : memref<1x128xf32, #tpu.memory_space<vmem>>, vector<1x128xf32>
    %c0_7 = arith.constant 0 : index
    %c0_8 = arith.constant 0 : index
    %7 = vector.load %arg5[%c0_7, %c0_8] : memref<1x128xf32, #tpu.memory_space<vmem>>, vector<1x128xf32>
    %cst_9 = arith.constant dense<0.000000e+00> : vector<50xf32>
    %8 = vector.multi_reduction <add>, %5, %cst_9 [1] : vector<50x128xf32> to vector<50xf32>
    %9 = vector.shape_cast %8 : vector<50xf32> to vector<50x1xf32>
    %cst_10 = arith.constant 1.280000e+02 : f32
    %10 = vector.broadcast %cst_10 : f32 to vector<50x1xf32>
    %11 = arith.divf %9, %10 : vector<50x1xf32>
    %12 = vector.broadcast %11 : vector<50x1xf32> to vector<50x128xf32>
    %13 = arith.subf %5, %12 : vector<50x128xf32>
    %14 = arith.mulf %13, %13 : vector<50x128xf32>
    %cst_11 = arith.constant dense<0.000000e+00> : vector<50xf32>
    %15 = vector.multi_reduction <add>, %14, %cst_11 [1] : vector<50x128xf32> to vector<50xf32>
    %16 = vector.shape_cast %15 : vector<50xf32> to vector<50x1xf32>
    %cst_12 = arith.constant 1.280000e+02 : f32
    %17 = vector.broadcast %cst_12 : f32 to vector<50x1xf32>
    %18 = arith.divf %16, %17 : vector<50x1xf32>
    %19 = vector.broadcast %11 : vector<50x1xf32> to vector<50x128xf32>
    %20 = arith.subf %5, %19 : vector<50x128xf32>
    %cst_13 = arith.constant 9.99999974E-6 : f32
    %21 = vector.broadcast %cst_13 : f32 to vector<50x1xf32>
    %22 = arith.addf %18, %21 : vector<50x1xf32>
    %23 = math.rsqrt %22 : vector<50x1xf32>
    %24 = vector.broadcast %23 : vector<50x1xf32> to vector<50x128xf32>
    %25 = arith.mulf %20, %24 : vector<50x128xf32>
    %26 = vector.broadcast %6 : vector<1x128xf32> to vector<50x128xf32>
    %27 = arith.mulf %25, %26 : vector<50x128xf32>
    %28 = vector.broadcast %7 : vector<1x128xf32> to vector<50x128xf32>
    %29 = arith.addf %27, %28 : vector<50x128xf32>
    %c0_14 = arith.constant 0 : index
    %c0_15 = arith.constant 0 : index
    %30 = vector.load %arg10[%c0_14, %c0_15] : memref<50x128xf32, #tpu.memory_space<vmem>>, vector<50x128xf32>
    tpu.vector_store %arg10[%c0_14, %c0_15], %29 {strides = array<i32>} : memref<50x128xf32, #tpu.memory_space<vmem>>, vector<50x128xf32>,
    %c0_16 = arith.constant 0 : index
    %c0_17 = arith.constant 0 : index
    %31 = vector.load %arg6[%c0_16, %c0_17] : memref<8x50xf32, #tpu.memory_space<vmem>>, vector<8x50xf32>
    %cst_18 = arith.constant dense<0.000000e+00> : vector<8x128xf32>
    %32 = tpu.matmul %31, %5, %cst_18 {dimension_numbers = #tpu.dot_dimension_numbers<[1], [0], [0], [1], [0, 0, 1, 1], [], []>} : vector<8x50xf32>, vector<50x128xf32>, vector<8x128xf32> -> vector<8x128xf32>
    %c0_19 = arith.constant 0 : index
    %c0_20 = arith.constant 0 : index
    %33 = vector.load %arg11[%c0_19, %c0_20] : memref<8x128xf32, #tpu.memory_space<vmem>>, vector<8x128xf32>
    tpu.vector_store %arg11[%c0_19, %c0_20], %32 {strides = array<i32>} : memref<8x128xf32, #tpu.memory_space<vmem>>, vector<8x128xf32>,
    %c0_21 = arith.constant 0 : index
    %c0_22 = arith.constant 0 : index
    %34 = vector.load %arg7[%c0_21, %c0_22] : memref<2x50xf32, #tpu.memory_space<vmem>>, vector<2x50xf32>
    %cst_23 = arith.constant dense<0.000000e+00> : vector<2x128xf32>
    %35 = tpu.matmul %34, %29, %cst_23 {dimension_numbers = #tpu.dot_dimension_numbers<[1], [0], [0], [1], [0, 0, 1, 1], [], []>} : vector<2x50xf32>, vector<50x128xf32>, vector<2x128xf32> -> vector<2x128xf32>
    %c0_24 = arith.constant 0 : index
    %c0_25 = arith.constant 0 : index
    %36 = vector.load %arg8[%c0_24, %c0_25] : memref<128x512xf32, #tpu.memory_space<vmem>>, vector<128x512xf32>
    %cst_26 = arith.constant dense<0.000000e+00> : vector<2x512xf32>
    %37 = tpu.matmul %35, %36, %cst_26 {dimension_numbers = #tpu.dot_dimension_numbers<[1], [0], [0], [1], [0, 0, 1, 1], [], []>} : vector<2x128xf32>, vector<128x512xf32>, vector<2x512xf32> -> vector<2x512xf32>
    %c0_27 = arith.constant 0 : index
    %c0_28 = arith.constant 0 : index
    %38 = vector.load %arg9[%c0_27, %c0_28] : memref<1x512xf32, #tpu.memory_space<vmem>>, vector<1x512xf32>
    %39 = vector.broadcast %38 : vector<1x512xf32> to vector<2x512xf32>
    %40 = arith.addf %37, %39 : vector<2x512xf32>
    %c0_29 = arith.constant 0 : index
    %c0_30 = arith.constant 0 : index
    %41 = vector.load %arg12[%c0_29, %c0_30] : memref<2x512xf32, #tpu.memory_space<vmem>>, vector<2x512xf32>
    tpu.vector_store %arg12[%c0_29, %c0_30], %40 {strides = array<i32>} : memref<2x512xf32, #tpu.memory_space<vmem>>, vector<2x512xf32>,
    return
  }
  func.func @transform_0(%arg0: i32) -> (i32, i32) {
    %c0_i32 = arith.constant 0 : i32
    %c0_i32_0 = arith.constant 0 : i32
    %c0_i32_1 = arith.constant 0 : i32
    return %c0_i32, %c0_i32_0 : i32, i32
  }
  func.func @transform_1(%arg0: i32) -> (i32, i32) {
    %c0_i32 = arith.constant 0 : i32
    %c0_i32_0 = arith.constant 0 : i32
    %c0_i32_1 = arith.constant 0 : i32
    return %c0_i32, %c0_i32_0 : i32, i32
  }
  func.func @transform_2(%arg0: i32) -> (i32, i32) {
    %c0_i32 = arith.constant 0 : i32
    %c0_i32_0 = arith.constant 0 : i32
    %c0_i32_1 = arith.constant 0 : i32
    return %c0_i32, %c0_i32_0 : i32, i32
  }
  func.func @transform_3(%arg0: i32) -> (i32, i32) {
    %c0_i32 = arith.constant 0 : i32
    %c0_i32_0 = arith.constant 0 : i32
    %c0_i32_1 = arith.constant 0 : i32
    return %c0_i32, %c0_i32_0 : i32, i32
  }
  func.func @transform_4(%arg0: i32) -> (i32, i32) {
    %c0_i32 = arith.constant 0 : i32
    %c0_i32_0 = arith.constant 0 : i32
    %c0_i32_1 = arith.constant 0 : i32
    return %c0_i32, %c0_i32_0 : i32, i32
  }
  func.func @transform_5(%arg0: i32) -> (i32, i32) {
    %c0_i32 = arith.constant 0 : i32
    %c0_i32_0 = arith.constant 0 : i32
    %c0_i32_1 = arith.constant 0 : i32
    return %c0_i32, %c0_i32_0 : i32, i32
  }
  func.func @transform_6(%arg0: i32) -> (i32, i32) {
    %c0_i32 = arith.constant 0 : i32
    %c0_i32_0 = arith.constant 0 : i32
    %c0_i32_1 = arith.constant 0 : i32
    return %c0_i32, %c0_i32_0 : i32, i32
  }
  func.func @transform_7(%arg0: i32) -> (i32, i32) {
    %c0_i32 = arith.constant 0 : i32
    %c0_i32_0 = arith.constant 0 : i32
    %c0_i32_1 = arith.constant 0 : i32
    return %c0_i32, %c0_i32_0 : i32, i32
  }
  func.func @transform_8(%arg0: i32) -> (i32, i32) {
    %c0_i32 = arith.constant 0 : i32
    %c0_i32_0 = arith.constant 0 : i32
    %c0_i32_1 = arith.constant 0 : i32
    return %c0_i32, %c0_i32_0 : i32, i32
  }
  func.func @transform_9(%arg0: i32) -> (i32, i32) {
    %c0_i32 = arith.constant 0 : i32
    %c0_i32_0 = arith.constant 0 : i32
    %c0_i32_1 = arith.constant 0 : i32
    return %c0_i32, %c0_i32_0 : i32, i32
  }
  func.func @transform_10(%arg0: i32) -> (i32, i32) {
    %c0_i32 = arith.constant 0 : i32
    %c0_i32_0 = arith.constant 0 : i32
    %c0_i32_1 = arith.constant 0 : i32
    return %c0_i32, %c0_i32_0 : i32, i32
  }
  func.func @transform_11(%arg0: i32) -> (i32, i32) {
    %c0_i32 = arith.constant 0 : i32
    %c0_i32_0 = arith.constant 0 : i32
    %c0_i32_1 = arith.constant 0 : i32
    return %c0_i32, %c0_i32_0 : i32, i32
  }
}

module attributes {stable_mosaic.version = 11 : i64} {
  func.func @_stack_kernel(%arg0: i32, %arg1: memref<32x128xf32, #tpu.memory_space<vmem>>, %arg2: memref<1x1x128xf32, #tpu.memory_space<vmem>>, %arg3: memref<1x1x128xf32, #tpu.memory_space<vmem>>, %arg4: memref<1x4x128x32xbf16, #tpu.memory_space<vmem>>, %arg5: memref<1x4x128x32xbf16, #tpu.memory_space<vmem>>, %arg6: memref<1x4x128x32xbf16, #tpu.memory_space<vmem>>, %arg7: memref<1x4x32x128xbf16, #tpu.memory_space<vmem>>, %arg8: memref<1x1x128xf32, #tpu.memory_space<vmem>>, %arg9: memref<1x1x128xf32, #tpu.memory_space<vmem>>, %arg10: memref<1x1x128xf32, #tpu.memory_space<vmem>>, %arg11: memref<1x128x512xbf16, #tpu.memory_space<vmem>>, %arg12: memref<1x1x512xf32, #tpu.memory_space<vmem>>, %arg13: memref<1x512x128xbf16, #tpu.memory_space<vmem>>, %arg14: memref<1x1x128xf32, #tpu.memory_space<vmem>>, %arg15: memref<1x128xf32, #tpu.memory_space<vmem>>, %arg16: memref<1x128xf32, #tpu.memory_space<vmem>>, %arg17: memref<32x128xf32, #tpu.memory_space<vmem>>) attributes {dimension_semantics = [#tpu.dimension_semantics<arbitrary>], iteration_bounds = array<i64: 2>, scalar_prefetch = 0 : i64, scratch_operands = 0 : i64, tpu.core_type = #tpu.core_type<tc>, window_params = [{pipeline_mode = #tpu.pipeline_mode<synchronous>, transform_indices = @transform_0, window_bounds = array<i64: 32, 128>}, {transform_indices = @transform_1, window_bounds = array<i64: 1, 1, 128>}, {transform_indices = @transform_2, window_bounds = array<i64: 1, 1, 128>}, {transform_indices = @transform_3, window_bounds = array<i64: 1, 4, 128, 32>}, {transform_indices = @transform_4, window_bounds = array<i64: 1, 4, 128, 32>}, {transform_indices = @transform_5, window_bounds = array<i64: 1, 4, 128, 32>}, {transform_indices = @transform_6, window_bounds = array<i64: 1, 4, 32, 128>}, {transform_indices = @transform_7, window_bounds = array<i64: 1, 1, 128>}, {transform_indices = @transform_8, window_bounds = array<i64: 1, 1, 128>}, {transform_indices = @transform_9, window_bounds = array<i64: 1, 1, 128>}, {transform_indices = @transform_10, window_bounds = array<i64: 1, 128, 512>}, {transform_indices = @transform_11, window_bounds = array<i64: 1, 1, 512>}, {transform_indices = @transform_12, window_bounds = array<i64: 1, 512, 128>}, {transform_indices = @transform_13, window_bounds = array<i64: 1, 1, 128>}, {pipeline_mode = #tpu.pipeline_mode<synchronous>, transform_indices = @transform_14, window_bounds = array<i64: 1, 128>}, {pipeline_mode = #tpu.pipeline_mode<synchronous>, transform_indices = @transform_15, window_bounds = array<i64: 1, 128>}, {pipeline_mode = #tpu.pipeline_mode<synchronous>, transform_indices = @transform_16, window_bounds = array<i64: 32, 128>}]} {
    %c0_i32 = arith.constant 0 : i32
    %0 = arith.cmpi eq, %arg0, %c0_i32 : i32
    %1 = arith.extui %0 : i1 to i32
    %c0_i32_0 = arith.constant 0 : i32
    %2 = arith.cmpi ne, %1, %c0_i32_0 : i32
    scf.if %2 {
      %c0_144 = arith.constant 0 : index
      %c0_145 = arith.constant 0 : index
      %221 = vector.load %arg1[%c0_144, %c0_145] : memref<32x128xf32, #tpu.memory_space<vmem>>, vector<32x128xf32>
      %c0_146 = arith.constant 0 : index
      %c0_147 = arith.constant 0 : index
      %222 = vector.load %arg17[%c0_146, %c0_147] : memref<32x128xf32, #tpu.memory_space<vmem>>, vector<32x128xf32>
      tpu.vector_store %arg17[%c0_146, %c0_147], %221 {strides = array<i32>} : memref<32x128xf32, #tpu.memory_space<vmem>>, vector<32x128xf32>,
    } else {
    }
    %c0 = arith.constant 0 : index
    %c0_1 = arith.constant 0 : index
    %3 = vector.load %arg17[%c0, %c0_1] : memref<32x128xf32, #tpu.memory_space<vmem>>, vector<32x128xf32>
    %c0_2 = arith.constant 0 : index
    %c0_3 = arith.constant 0 : index
    %c0_4 = arith.constant 0 : index
    %4 = vector.load %arg2[%c0_2, %c0_3, %c0_4] : memref<1x1x128xf32, #tpu.memory_space<vmem>>, vector<1x1x128xf32>
    %5 = vector.shape_cast %4 : vector<1x1x128xf32> to vector<1x128xf32>
    %c0_5 = arith.constant 0 : index
    %c0_6 = arith.constant 0 : index
    %c0_7 = arith.constant 0 : index
    %6 = vector.load %arg3[%c0_5, %c0_6, %c0_7] : memref<1x1x128xf32, #tpu.memory_space<vmem>>, vector<1x1x128xf32>
    %7 = vector.shape_cast %6 : vector<1x1x128xf32> to vector<1x128xf32>
    %cst = arith.constant dense<0.000000e+00> : vector<32xf32>
    %8 = vector.multi_reduction <add>, %3, %cst [1] : vector<32x128xf32> to vector<32xf32>
    %9 = vector.shape_cast %8 : vector<32xf32> to vector<32x1xf32>
    %cst_8 = arith.constant 1.280000e+02 : f32
    %10 = vector.broadcast %cst_8 : f32 to vector<32x1xf32>
    %11 = arith.divf %9, %10 : vector<32x1xf32>
    %12 = vector.broadcast %11 : vector<32x1xf32> to vector<32x128xf32>
    %13 = arith.subf %3, %12 : vector<32x128xf32>
    %14 = arith.mulf %13, %13 : vector<32x128xf32>
    %cst_9 = arith.constant dense<0.000000e+00> : vector<32xf32>
    %15 = vector.multi_reduction <add>, %14, %cst_9 [1] : vector<32x128xf32> to vector<32xf32>
    %16 = vector.shape_cast %15 : vector<32xf32> to vector<32x1xf32>
    %cst_10 = arith.constant 1.280000e+02 : f32
    %17 = vector.broadcast %cst_10 : f32 to vector<32x1xf32>
    %18 = arith.divf %16, %17 : vector<32x1xf32>
    %19 = vector.broadcast %11 : vector<32x1xf32> to vector<32x128xf32>
    %20 = arith.subf %3, %19 : vector<32x128xf32>
    %cst_11 = arith.constant 9.99999974E-6 : f32
    %21 = vector.broadcast %cst_11 : f32 to vector<32x1xf32>
    %22 = arith.addf %18, %21 : vector<32x1xf32>
    %23 = math.rsqrt %22 : vector<32x1xf32>
    %24 = vector.broadcast %23 : vector<32x1xf32> to vector<32x128xf32>
    %25 = arith.mulf %20, %24 : vector<32x128xf32>
    %26 = vector.broadcast %5 : vector<1x128xf32> to vector<32x128xf32>
    %27 = arith.mulf %25, %26 : vector<32x128xf32>
    %28 = vector.broadcast %7 : vector<1x128xf32> to vector<32x128xf32>
    %29 = arith.addf %27, %28 : vector<32x128xf32>
    %30 = arith.truncf %29 : vector<32x128xf32> to vector<32x128xbf16>
    %c0_12 = arith.constant 0 : index
    %c0_13 = arith.constant 0 : index
    %c0_14 = arith.constant 0 : index
    %c0_15 = arith.constant 0 : index
    %31 = vector.load %arg4[%c0_12, %c0_13, %c0_14, %c0_15] : memref<1x4x128x32xbf16, #tpu.memory_space<vmem>>, vector<1x1x128x32xbf16>
    %32 = vector.shape_cast %31 : vector<1x1x128x32xbf16> to vector<128x32xbf16>
    %cst_16 = arith.constant dense<0.000000e+00> : vector<32x32xf32>
    %33 = tpu.matmul %30, %32, %cst_16 {dimension_numbers = #tpu.dot_dimension_numbers<[1], [0], [0], [1], [0, 0, 1, 1], [], []>} : vector<32x128xbf16>, vector<128x32xbf16>, vector<32x32xf32> -> vector<32x32xf32>
    %34 = vector.shape_cast %33 : vector<32x32xf32> to vector<2x16x32xf32>
    %cst_17 = arith.constant 0.176776692 : f32
    %35 = vector.broadcast %cst_17 : f32 to vector<2x16x32xf32>
    %36 = arith.mulf %34, %35 : vector<2x16x32xf32>
    %c0_18 = arith.constant 0 : index
    %c0_19 = arith.constant 0 : index
    %c0_20 = arith.constant 0 : index
    %c0_21 = arith.constant 0 : index
    %37 = vector.load %arg5[%c0_18, %c0_19, %c0_20, %c0_21] : memref<1x4x128x32xbf16, #tpu.memory_space<vmem>>, vector<1x1x128x32xbf16>
    %38 = vector.shape_cast %37 : vector<1x1x128x32xbf16> to vector<128x32xbf16>
    %cst_22 = arith.constant dense<0.000000e+00> : vector<32x32xf32>
    %39 = tpu.matmul %30, %38, %cst_22 {dimension_numbers = #tpu.dot_dimension_numbers<[1], [0], [0], [1], [0, 0, 1, 1], [], []>} : vector<32x128xbf16>, vector<128x32xbf16>, vector<32x32xf32> -> vector<32x32xf32>
    %40 = vector.shape_cast %39 : vector<32x32xf32> to vector<2x16x32xf32>
    %c0_23 = arith.constant 0 : index
    %c0_24 = arith.constant 0 : index
    %c0_25 = arith.constant 0 : index
    %c0_26 = arith.constant 0 : index
    %41 = vector.load %arg6[%c0_23, %c0_24, %c0_25, %c0_26] : memref<1x4x128x32xbf16, #tpu.memory_space<vmem>>, vector<1x1x128x32xbf16>
    %42 = vector.shape_cast %41 : vector<1x1x128x32xbf16> to vector<128x32xbf16>
    %cst_27 = arith.constant dense<0.000000e+00> : vector<32x32xf32>
    %43 = tpu.matmul %30, %42, %cst_27 {dimension_numbers = #tpu.dot_dimension_numbers<[1], [0], [0], [1], [0, 0, 1, 1], [], []>} : vector<32x128xbf16>, vector<128x32xbf16>, vector<32x32xf32> -> vector<32x32xf32>
    %44 = vector.shape_cast %43 : vector<32x32xf32> to vector<2x16x32xf32>
    "tpu.trace_start"() <{level = 10 : i32, message = "bnd,bmd->bnm"}> : () -> ()
    %cst_28 = arith.constant dense<0.000000e+00> : vector<2x16x16xf32>
    %45 = tpu.matmul %36, %40, %cst_28 {dimension_numbers = #tpu.dot_dimension_numbers<[2], [2], [1], [1], [0, 0, 0, 1, 1, 1], [0], [0]>} : vector<2x16x32xf32>, vector<2x16x32xf32>, vector<2x16x16xf32> -> vector<2x16x16xf32>
    "tpu.trace_stop"() : () -> ()
    %cst_29 = arith.constant dense<0xFF800000> : vector<2x16xf32>
    %46 = vector.multi_reduction <maximumf>, %45, %cst_29 [2] : vector<2x16x16xf32> to vector<2x16xf32>
    %47 = vector.shape_cast %46 : vector<2x16xf32> to vector<2x16x1xf32>
    %48 = vector.broadcast %47 : vector<2x16x1xf32> to vector<2x16x16xf32>
    %49 = arith.subf %45, %48 : vector<2x16x16xf32>
    %50 = math.exp %49 : vector<2x16x16xf32>
    %cst_30 = arith.constant dense<0.000000e+00> : vector<2x16xf32>
    %51 = vector.multi_reduction <add>, %50, %cst_30 [2] : vector<2x16x16xf32> to vector<2x16xf32>
    %52 = vector.shape_cast %51 : vector<2x16xf32> to vector<2x16x1xf32>
    %53 = vector.broadcast %52 : vector<2x16x1xf32> to vector<2x16x16xf32>
    %54 = arith.divf %50, %53 : vector<2x16x16xf32>
    "tpu.trace_start"() <{level = 10 : i32, message = "bnm,bmd->bnd"}> : () -> ()
    %cst_31 = arith.constant dense<0.000000e+00> : vector<2x16x32xf32>
    %55 = tpu.matmul %54, %44, %cst_31 {dimension_numbers = #tpu.dot_dimension_numbers<[2], [1], [1], [2], [0, 0, 0, 1, 1, 2], [0], [0]>} : vector<2x16x16xf32>, vector<2x16x32xf32>, vector<2x16x32xf32> -> vector<2x16x32xf32>
    "tpu.trace_stop"() : () -> ()
    %56 = vector.shape_cast %55 : vector<2x16x32xf32> to vector<32x32xf32>
    %57 = arith.truncf %56 : vector<32x32xf32> to vector<32x32xbf16>
    %c0_32 = arith.constant 0 : index
    %c0_33 = arith.constant 0 : index
    %c0_34 = arith.constant 0 : index
    %c0_35 = arith.constant 0 : index
    %58 = vector.load %arg7[%c0_32, %c0_33, %c0_34, %c0_35] : memref<1x4x32x128xbf16, #tpu.memory_space<vmem>>, vector<1x1x32x128xbf16>
    %59 = vector.shape_cast %58 : vector<1x1x32x128xbf16> to vector<32x128xbf16>
    %cst_36 = arith.constant dense<0.000000e+00> : vector<32x128xf32>
    %60 = tpu.matmul %57, %59, %cst_36 {dimension_numbers = #tpu.dot_dimension_numbers<[1], [0], [0], [1], [0, 0, 1, 1], [], []>} : vector<32x32xbf16>, vector<32x128xbf16>, vector<32x128xf32> -> vector<32x128xf32>
    %c0_37 = arith.constant 0 : index
    %c1 = arith.constant 1 : index
    %c0_38 = arith.constant 0 : index
    %c0_39 = arith.constant 0 : index
    %61 = vector.load %arg4[%c0_37, %c1, %c0_38, %c0_39] : memref<1x4x128x32xbf16, #tpu.memory_space<vmem>>, vector<1x1x128x32xbf16>
    %62 = vector.shape_cast %61 : vector<1x1x128x32xbf16> to vector<128x32xbf16>
    %cst_40 = arith.constant dense<0.000000e+00> : vector<32x32xf32>
    %63 = tpu.matmul %30, %62, %cst_40 {dimension_numbers = #tpu.dot_dimension_numbers<[1], [0], [0], [1], [0, 0, 1, 1], [], []>} : vector<32x128xbf16>, vector<128x32xbf16>, vector<32x32xf32> -> vector<32x32xf32>
    %64 = vector.shape_cast %63 : vector<32x32xf32> to vector<2x16x32xf32>
    %cst_41 = arith.constant 0.176776692 : f32
    %65 = vector.broadcast %cst_41 : f32 to vector<2x16x32xf32>
    %66 = arith.mulf %64, %65 : vector<2x16x32xf32>
    %c0_42 = arith.constant 0 : index
    %c1_43 = arith.constant 1 : index
    %c0_44 = arith.constant 0 : index
    %c0_45 = arith.constant 0 : index
    %67 = vector.load %arg5[%c0_42, %c1_43, %c0_44, %c0_45] : memref<1x4x128x32xbf16, #tpu.memory_space<vmem>>, vector<1x1x128x32xbf16>
    %68 = vector.shape_cast %67 : vector<1x1x128x32xbf16> to vector<128x32xbf16>
    %cst_46 = arith.constant dense<0.000000e+00> : vector<32x32xf32>
    %69 = tpu.matmul %30, %68, %cst_46 {dimension_numbers = #tpu.dot_dimension_numbers<[1], [0], [0], [1], [0, 0, 1, 1], [], []>} : vector<32x128xbf16>, vector<128x32xbf16>, vector<32x32xf32> -> vector<32x32xf32>
    %70 = vector.shape_cast %69 : vector<32x32xf32> to vector<2x16x32xf32>
    %c0_47 = arith.constant 0 : index
    %c1_48 = arith.constant 1 : index
    %c0_49 = arith.constant 0 : index
    %c0_50 = arith.constant 0 : index
    %71 = vector.load %arg6[%c0_47, %c1_48, %c0_49, %c0_50] : memref<1x4x128x32xbf16, #tpu.memory_space<vmem>>, vector<1x1x128x32xbf16>
    %72 = vector.shape_cast %71 : vector<1x1x128x32xbf16> to vector<128x32xbf16>
    %cst_51 = arith.constant dense<0.000000e+00> : vector<32x32xf32>
    %73 = tpu.matmul %30, %72, %cst_51 {dimension_numbers = #tpu.dot_dimension_numbers<[1], [0], [0], [1], [0, 0, 1, 1], [], []>} : vector<32x128xbf16>, vector<128x32xbf16>, vector<32x32xf32> -> vector<32x32xf32>
    %74 = vector.shape_cast %73 : vector<32x32xf32> to vector<2x16x32xf32>
    "tpu.trace_start"() <{level = 10 : i32, message = "bnd,bmd->bnm"}> : () -> ()
    %cst_52 = arith.constant dense<0.000000e+00> : vector<2x16x16xf32>
    %75 = tpu.matmul %66, %70, %cst_52 {dimension_numbers = #tpu.dot_dimension_numbers<[2], [2], [1], [1], [0, 0, 0, 1, 1, 1], [0], [0]>} : vector<2x16x32xf32>, vector<2x16x32xf32>, vector<2x16x16xf32> -> vector<2x16x16xf32>
    "tpu.trace_stop"() : () -> ()
    %cst_53 = arith.constant dense<0xFF800000> : vector<2x16xf32>
    %76 = vector.multi_reduction <maximumf>, %75, %cst_53 [2] : vector<2x16x16xf32> to vector<2x16xf32>
    %77 = vector.shape_cast %76 : vector<2x16xf32> to vector<2x16x1xf32>
    %78 = vector.broadcast %77 : vector<2x16x1xf32> to vector<2x16x16xf32>
    %79 = arith.subf %75, %78 : vector<2x16x16xf32>
    %80 = math.exp %79 : vector<2x16x16xf32>
    %cst_54 = arith.constant dense<0.000000e+00> : vector<2x16xf32>
    %81 = vector.multi_reduction <add>, %80, %cst_54 [2] : vector<2x16x16xf32> to vector<2x16xf32>
    %82 = vector.shape_cast %81 : vector<2x16xf32> to vector<2x16x1xf32>
    %83 = vector.broadcast %82 : vector<2x16x1xf32> to vector<2x16x16xf32>
    %84 = arith.divf %80, %83 : vector<2x16x16xf32>
    "tpu.trace_start"() <{level = 10 : i32, message = "bnm,bmd->bnd"}> : () -> ()
    %cst_55 = arith.constant dense<0.000000e+00> : vector<2x16x32xf32>
    %85 = tpu.matmul %84, %74, %cst_55 {dimension_numbers = #tpu.dot_dimension_numbers<[2], [1], [1], [2], [0, 0, 0, 1, 1, 2], [0], [0]>} : vector<2x16x16xf32>, vector<2x16x32xf32>, vector<2x16x32xf32> -> vector<2x16x32xf32>
    "tpu.trace_stop"() : () -> ()
    %86 = vector.shape_cast %85 : vector<2x16x32xf32> to vector<32x32xf32>
    %87 = arith.truncf %86 : vector<32x32xf32> to vector<32x32xbf16>
    %c0_56 = arith.constant 0 : index
    %c1_57 = arith.constant 1 : index
    %c0_58 = arith.constant 0 : index
    %c0_59 = arith.constant 0 : index
    %88 = vector.load %arg7[%c0_56, %c1_57, %c0_58, %c0_59] : memref<1x4x32x128xbf16, #tpu.memory_space<vmem>>, vector<1x1x32x128xbf16>
    %89 = vector.shape_cast %88 : vector<1x1x32x128xbf16> to vector<32x128xbf16>
    %cst_60 = arith.constant dense<0.000000e+00> : vector<32x128xf32>
    %90 = tpu.matmul %87, %89, %cst_60 {dimension_numbers = #tpu.dot_dimension_numbers<[1], [0], [0], [1], [0, 0, 1, 1], [], []>} : vector<32x32xbf16>, vector<32x128xbf16>, vector<32x128xf32> -> vector<32x128xf32>
    %91 = arith.addf %60, %90 : vector<32x128xf32>
    %c0_61 = arith.constant 0 : index
    %c2 = arith.constant 2 : index
    %c0_62 = arith.constant 0 : index
    %c0_63 = arith.constant 0 : index
    %92 = vector.load %arg4[%c0_61, %c2, %c0_62, %c0_63] : memref<1x4x128x32xbf16, #tpu.memory_space<vmem>>, vector<1x1x128x32xbf16>
    %93 = vector.shape_cast %92 : vector<1x1x128x32xbf16> to vector<128x32xbf16>
    %cst_64 = arith.constant dense<0.000000e+00> : vector<32x32xf32>
    %94 = tpu.matmul %30, %93, %cst_64 {dimension_numbers = #tpu.dot_dimension_numbers<[1], [0], [0], [1], [0, 0, 1, 1], [], []>} : vector<32x128xbf16>, vector<128x32xbf16>, vector<32x32xf32> -> vector<32x32xf32>
    %95 = vector.shape_cast %94 : vector<32x32xf32> to vector<2x16x32xf32>
    %cst_65 = arith.constant 0.176776692 : f32
    %96 = vector.broadcast %cst_65 : f32 to vector<2x16x32xf32>
    %97 = arith.mulf %95, %96 : vector<2x16x32xf32>
    %c0_66 = arith.constant 0 : index
    %c2_67 = arith.constant 2 : index
    %c0_68 = arith.constant 0 : index
    %c0_69 = arith.constant 0 : index
    %98 = vector.load %arg5[%c0_66, %c2_67, %c0_68, %c0_69] : memref<1x4x128x32xbf16, #tpu.memory_space<vmem>>, vector<1x1x128x32xbf16>
    %99 = vector.shape_cast %98 : vector<1x1x128x32xbf16> to vector<128x32xbf16>
    %cst_70 = arith.constant dense<0.000000e+00> : vector<32x32xf32>
    %100 = tpu.matmul %30, %99, %cst_70 {dimension_numbers = #tpu.dot_dimension_numbers<[1], [0], [0], [1], [0, 0, 1, 1], [], []>} : vector<32x128xbf16>, vector<128x32xbf16>, vector<32x32xf32> -> vector<32x32xf32>
    %101 = vector.shape_cast %100 : vector<32x32xf32> to vector<2x16x32xf32>
    %c0_71 = arith.constant 0 : index
    %c2_72 = arith.constant 2 : index
    %c0_73 = arith.constant 0 : index
    %c0_74 = arith.constant 0 : index
    %102 = vector.load %arg6[%c0_71, %c2_72, %c0_73, %c0_74] : memref<1x4x128x32xbf16, #tpu.memory_space<vmem>>, vector<1x1x128x32xbf16>
    %103 = vector.shape_cast %102 : vector<1x1x128x32xbf16> to vector<128x32xbf16>
    %cst_75 = arith.constant dense<0.000000e+00> : vector<32x32xf32>
    %104 = tpu.matmul %30, %103, %cst_75 {dimension_numbers = #tpu.dot_dimension_numbers<[1], [0], [0], [1], [0, 0, 1, 1], [], []>} : vector<32x128xbf16>, vector<128x32xbf16>, vector<32x32xf32> -> vector<32x32xf32>
    %105 = vector.shape_cast %104 : vector<32x32xf32> to vector<2x16x32xf32>
    "tpu.trace_start"() <{level = 10 : i32, message = "bnd,bmd->bnm"}> : () -> ()
    %cst_76 = arith.constant dense<0.000000e+00> : vector<2x16x16xf32>
    %106 = tpu.matmul %97, %101, %cst_76 {dimension_numbers = #tpu.dot_dimension_numbers<[2], [2], [1], [1], [0, 0, 0, 1, 1, 1], [0], [0]>} : vector<2x16x32xf32>, vector<2x16x32xf32>, vector<2x16x16xf32> -> vector<2x16x16xf32>
    "tpu.trace_stop"() : () -> ()
    %cst_77 = arith.constant dense<0xFF800000> : vector<2x16xf32>
    %107 = vector.multi_reduction <maximumf>, %106, %cst_77 [2] : vector<2x16x16xf32> to vector<2x16xf32>
    %108 = vector.shape_cast %107 : vector<2x16xf32> to vector<2x16x1xf32>
    %109 = vector.broadcast %108 : vector<2x16x1xf32> to vector<2x16x16xf32>
    %110 = arith.subf %106, %109 : vector<2x16x16xf32>
    %111 = math.exp %110 : vector<2x16x16xf32>
    %cst_78 = arith.constant dense<0.000000e+00> : vector<2x16xf32>
    %112 = vector.multi_reduction <add>, %111, %cst_78 [2] : vector<2x16x16xf32> to vector<2x16xf32>
    %113 = vector.shape_cast %112 : vector<2x16xf32> to vector<2x16x1xf32>
    %114 = vector.broadcast %113 : vector<2x16x1xf32> to vector<2x16x16xf32>
    %115 = arith.divf %111, %114 : vector<2x16x16xf32>
    "tpu.trace_start"() <{level = 10 : i32, message = "bnm,bmd->bnd"}> : () -> ()
    %cst_79 = arith.constant dense<0.000000e+00> : vector<2x16x32xf32>
    %116 = tpu.matmul %115, %105, %cst_79 {dimension_numbers = #tpu.dot_dimension_numbers<[2], [1], [1], [2], [0, 0, 0, 1, 1, 2], [0], [0]>} : vector<2x16x16xf32>, vector<2x16x32xf32>, vector<2x16x32xf32> -> vector<2x16x32xf32>
    "tpu.trace_stop"() : () -> ()
    %117 = vector.shape_cast %116 : vector<2x16x32xf32> to vector<32x32xf32>
    %118 = arith.truncf %117 : vector<32x32xf32> to vector<32x32xbf16>
    %c0_80 = arith.constant 0 : index
    %c2_81 = arith.constant 2 : index
    %c0_82 = arith.constant 0 : index
    %c0_83 = arith.constant 0 : index
    %119 = vector.load %arg7[%c0_80, %c2_81, %c0_82, %c0_83] : memref<1x4x32x128xbf16, #tpu.memory_space<vmem>>, vector<1x1x32x128xbf16>
    %120 = vector.shape_cast %119 : vector<1x1x32x128xbf16> to vector<32x128xbf16>
    %cst_84 = arith.constant dense<0.000000e+00> : vector<32x128xf32>
    %121 = tpu.matmul %118, %120, %cst_84 {dimension_numbers = #tpu.dot_dimension_numbers<[1], [0], [0], [1], [0, 0, 1, 1], [], []>} : vector<32x32xbf16>, vector<32x128xbf16>, vector<32x128xf32> -> vector<32x128xf32>
    %122 = arith.addf %91, %121 : vector<32x128xf32>
    %c0_85 = arith.constant 0 : index
    %c3 = arith.constant 3 : index
    %c0_86 = arith.constant 0 : index
    %c0_87 = arith.constant 0 : index
    %123 = vector.load %arg4[%c0_85, %c3, %c0_86, %c0_87] : memref<1x4x128x32xbf16, #tpu.memory_space<vmem>>, vector<1x1x128x32xbf16>
    %124 = vector.shape_cast %123 : vector<1x1x128x32xbf16> to vector<128x32xbf16>
    %cst_88 = arith.constant dense<0.000000e+00> : vector<32x32xf32>
    %125 = tpu.matmul %30, %124, %cst_88 {dimension_numbers = #tpu.dot_dimension_numbers<[1], [0], [0], [1], [0, 0, 1, 1], [], []>} : vector<32x128xbf16>, vector<128x32xbf16>, vector<32x32xf32> -> vector<32x32xf32>
    %126 = vector.shape_cast %125 : vector<32x32xf32> to vector<2x16x32xf32>
    %cst_89 = arith.constant 0.176776692 : f32
    %127 = vector.broadcast %cst_89 : f32 to vector<2x16x32xf32>
    %128 = arith.mulf %126, %127 : vector<2x16x32xf32>
    %c0_90 = arith.constant 0 : index
    %c3_91 = arith.constant 3 : index
    %c0_92 = arith.constant 0 : index
    %c0_93 = arith.constant 0 : index
    %129 = vector.load %arg5[%c0_90, %c3_91, %c0_92, %c0_93] : memref<1x4x128x32xbf16, #tpu.memory_space<vmem>>, vector<1x1x128x32xbf16>
    %130 = vector.shape_cast %129 : vector<1x1x128x32xbf16> to vector<128x32xbf16>
    %cst_94 = arith.constant dense<0.000000e+00> : vector<32x32xf32>
    %131 = tpu.matmul %30, %130, %cst_94 {dimension_numbers = #tpu.dot_dimension_numbers<[1], [0], [0], [1], [0, 0, 1, 1], [], []>} : vector<32x128xbf16>, vector<128x32xbf16>, vector<32x32xf32> -> vector<32x32xf32>
    %132 = vector.shape_cast %131 : vector<32x32xf32> to vector<2x16x32xf32>
    %c0_95 = arith.constant 0 : index
    %c3_96 = arith.constant 3 : index
    %c0_97 = arith.constant 0 : index
    %c0_98 = arith.constant 0 : index
    %133 = vector.load %arg6[%c0_95, %c3_96, %c0_97, %c0_98] : memref<1x4x128x32xbf16, #tpu.memory_space<vmem>>, vector<1x1x128x32xbf16>
    %134 = vector.shape_cast %133 : vector<1x1x128x32xbf16> to vector<128x32xbf16>
    %cst_99 = arith.constant dense<0.000000e+00> : vector<32x32xf32>
    %135 = tpu.matmul %30, %134, %cst_99 {dimension_numbers = #tpu.dot_dimension_numbers<[1], [0], [0], [1], [0, 0, 1, 1], [], []>} : vector<32x128xbf16>, vector<128x32xbf16>, vector<32x32xf32> -> vector<32x32xf32>
    %136 = vector.shape_cast %135 : vector<32x32xf32> to vector<2x16x32xf32>
    "tpu.trace_start"() <{level = 10 : i32, message = "bnd,bmd->bnm"}> : () -> ()
    %cst_100 = arith.constant dense<0.000000e+00> : vector<2x16x16xf32>
    %137 = tpu.matmul %128, %132, %cst_100 {dimension_numbers = #tpu.dot_dimension_numbers<[2], [2], [1], [1], [0, 0, 0, 1, 1, 1], [0], [0]>} : vector<2x16x32xf32>, vector<2x16x32xf32>, vector<2x16x16xf32> -> vector<2x16x16xf32>
    "tpu.trace_stop"() : () -> ()
    %cst_101 = arith.constant dense<0xFF800000> : vector<2x16xf32>
    %138 = vector.multi_reduction <maximumf>, %137, %cst_101 [2] : vector<2x16x16xf32> to vector<2x16xf32>
    %139 = vector.shape_cast %138 : vector<2x16xf32> to vector<2x16x1xf32>
    %140 = vector.broadcast %139 : vector<2x16x1xf32> to vector<2x16x16xf32>
    %141 = arith.subf %137, %140 : vector<2x16x16xf32>
    %142 = math.exp %141 : vector<2x16x16xf32>
    %cst_102 = arith.constant dense<0.000000e+00> : vector<2x16xf32>
    %143 = vector.multi_reduction <add>, %142, %cst_102 [2] : vector<2x16x16xf32> to vector<2x16xf32>
    %144 = vector.shape_cast %143 : vector<2x16xf32> to vector<2x16x1xf32>
    %145 = vector.broadcast %144 : vector<2x16x1xf32> to vector<2x16x16xf32>
    %146 = arith.divf %142, %145 : vector<2x16x16xf32>
    "tpu.trace_start"() <{level = 10 : i32, message = "bnm,bmd->bnd"}> : () -> ()
    %cst_103 = arith.constant dense<0.000000e+00> : vector<2x16x32xf32>
    %147 = tpu.matmul %146, %136, %cst_103 {dimension_numbers = #tpu.dot_dimension_numbers<[2], [1], [1], [2], [0, 0, 0, 1, 1, 2], [0], [0]>} : vector<2x16x16xf32>, vector<2x16x32xf32>, vector<2x16x32xf32> -> vector<2x16x32xf32>
    "tpu.trace_stop"() : () -> ()
    %148 = vector.shape_cast %147 : vector<2x16x32xf32> to vector<32x32xf32>
    %149 = arith.truncf %148 : vector<32x32xf32> to vector<32x32xbf16>
    %c0_104 = arith.constant 0 : index
    %c3_105 = arith.constant 3 : index
    %c0_106 = arith.constant 0 : index
    %c0_107 = arith.constant 0 : index
    %150 = vector.load %arg7[%c0_104, %c3_105, %c0_106, %c0_107] : memref<1x4x32x128xbf16, #tpu.memory_space<vmem>>, vector<1x1x32x128xbf16>
    %151 = vector.shape_cast %150 : vector<1x1x32x128xbf16> to vector<32x128xbf16>
    %cst_108 = arith.constant dense<0.000000e+00> : vector<32x128xf32>
    %152 = tpu.matmul %149, %151, %cst_108 {dimension_numbers = #tpu.dot_dimension_numbers<[1], [0], [0], [1], [0, 0, 1, 1], [], []>} : vector<32x32xbf16>, vector<32x128xbf16>, vector<32x128xf32> -> vector<32x128xf32>
    %153 = arith.addf %122, %152 : vector<32x128xf32>
    %154 = arith.addf %3, %153 : vector<32x128xf32>
    %c0_109 = arith.constant 0 : index
    %c0_110 = arith.constant 0 : index
    %c0_111 = arith.constant 0 : index
    %155 = vector.load %arg8[%c0_109, %c0_110, %c0_111] : memref<1x1x128xf32, #tpu.memory_space<vmem>>, vector<1x1x128xf32>
    %156 = vector.shape_cast %155 : vector<1x1x128xf32> to vector<1x128xf32>
    %157 = vector.broadcast %156 : vector<1x128xf32> to vector<32x128xf32>
    %158 = arith.addf %154, %157 : vector<32x128xf32>
    %c0_112 = arith.constant 0 : index
    %c0_113 = arith.constant 0 : index
    %c0_114 = arith.constant 0 : index
    %159 = vector.load %arg9[%c0_112, %c0_113, %c0_114] : memref<1x1x128xf32, #tpu.memory_space<vmem>>, vector<1x1x128xf32>
    %160 = vector.shape_cast %159 : vector<1x1x128xf32> to vector<1x128xf32>
    %c0_115 = arith.constant 0 : index
    %c0_116 = arith.constant 0 : index
    %c0_117 = arith.constant 0 : index
    %161 = vector.load %arg10[%c0_115, %c0_116, %c0_117] : memref<1x1x128xf32, #tpu.memory_space<vmem>>, vector<1x1x128xf32>
    %162 = vector.shape_cast %161 : vector<1x1x128xf32> to vector<1x128xf32>
    %cst_118 = arith.constant dense<0.000000e+00> : vector<32xf32>
    %163 = vector.multi_reduction <add>, %158, %cst_118 [1] : vector<32x128xf32> to vector<32xf32>
    %164 = vector.shape_cast %163 : vector<32xf32> to vector<32x1xf32>
    %cst_119 = arith.constant 1.280000e+02 : f32
    %165 = vector.broadcast %cst_119 : f32 to vector<32x1xf32>
    %166 = arith.divf %164, %165 : vector<32x1xf32>
    %167 = vector.broadcast %166 : vector<32x1xf32> to vector<32x128xf32>
    %168 = arith.subf %158, %167 : vector<32x128xf32>
    %169 = arith.mulf %168, %168 : vector<32x128xf32>
    %cst_120 = arith.constant dense<0.000000e+00> : vector<32xf32>
    %170 = vector.multi_reduction <add>, %169, %cst_120 [1] : vector<32x128xf32> to vector<32xf32>
    %171 = vector.shape_cast %170 : vector<32xf32> to vector<32x1xf32>
    %cst_121 = arith.constant 1.280000e+02 : f32
    %172 = vector.broadcast %cst_121 : f32 to vector<32x1xf32>
    %173 = arith.divf %171, %172 : vector<32x1xf32>
    %174 = vector.broadcast %166 : vector<32x1xf32> to vector<32x128xf32>
    %175 = arith.subf %158, %174 : vector<32x128xf32>
    %cst_122 = arith.constant 9.99999974E-6 : f32
    %176 = vector.broadcast %cst_122 : f32 to vector<32x1xf32>
    %177 = arith.addf %173, %176 : vector<32x1xf32>
    %178 = math.rsqrt %177 : vector<32x1xf32>
    %179 = vector.broadcast %178 : vector<32x1xf32> to vector<32x128xf32>
    %180 = arith.mulf %175, %179 : vector<32x128xf32>
    %181 = vector.broadcast %160 : vector<1x128xf32> to vector<32x128xf32>
    %182 = arith.mulf %180, %181 : vector<32x128xf32>
    %183 = vector.broadcast %162 : vector<1x128xf32> to vector<32x128xf32>
    %184 = arith.addf %182, %183 : vector<32x128xf32>
    %185 = arith.truncf %184 : vector<32x128xf32> to vector<32x128xbf16>
    %c0_123 = arith.constant 0 : index
    %c0_124 = arith.constant 0 : index
    %c0_125 = arith.constant 0 : index
    %186 = vector.load %arg11[%c0_123, %c0_124, %c0_125] : memref<1x128x512xbf16, #tpu.memory_space<vmem>>, vector<1x128x512xbf16>
    %187 = vector.shape_cast %186 : vector<1x128x512xbf16> to vector<128x512xbf16>
    %cst_126 = arith.constant dense<0.000000e+00> : vector<32x512xf32>
    %188 = tpu.matmul %185, %187, %cst_126 {dimension_numbers = #tpu.dot_dimension_numbers<[1], [0], [0], [1], [0, 0, 1, 1], [], []>} : vector<32x128xbf16>, vector<128x512xbf16>, vector<32x512xf32> -> vector<32x512xf32>
    %c0_127 = arith.constant 0 : index
    %c0_128 = arith.constant 0 : index
    %c0_129 = arith.constant 0 : index
    %189 = vector.load %arg12[%c0_127, %c0_128, %c0_129] : memref<1x1x512xf32, #tpu.memory_space<vmem>>, vector<1x1x512xf32>
    %190 = vector.shape_cast %189 : vector<1x1x512xf32> to vector<1x512xf32>
    %191 = vector.broadcast %190 : vector<1x512xf32> to vector<32x512xf32>
    %192 = arith.addf %188, %191 : vector<32x512xf32>
    %193 = arith.mulf %192, %192 : vector<32x512xf32>
    %194 = arith.mulf %192, %193 : vector<32x512xf32>
    %cst_130 = arith.constant 4.471500e-02 : f32
    %195 = vector.broadcast %cst_130 : f32 to vector<32x512xf32>
    %196 = arith.mulf %195, %194 : vector<32x512xf32>
    %197 = arith.addf %192, %196 : vector<32x512xf32>
    %cst_131 = arith.constant 0.797884583 : f32
    %198 = vector.broadcast %cst_131 : f32 to vector<32x512xf32>
    %199 = arith.mulf %198, %197 : vector<32x512xf32>
    %200 = math.tanh %199 : vector<32x512xf32>
    %cst_132 = arith.constant 1.000000e+00 : f32
    %201 = vector.broadcast %cst_132 : f32 to vector<32x512xf32>
    %202 = arith.addf %201, %200 : vector<32x512xf32>
    %cst_133 = arith.constant 5.000000e-01 : f32
    %203 = vector.broadcast %cst_133 : f32 to vector<32x512xf32>
    %204 = arith.mulf %203, %202 : vector<32x512xf32>
    %205 = arith.mulf %192, %204 : vector<32x512xf32>
    %206 = arith.truncf %205 : vector<32x512xf32> to vector<32x512xbf16>
    %c0_134 = arith.constant 0 : index
    %c0_135 = arith.constant 0 : index
    %c0_136 = arith.constant 0 : index
    %207 = vector.load %arg13[%c0_134, %c0_135, %c0_136] : memref<1x512x128xbf16, #tpu.memory_space<vmem>>, vector<1x512x128xbf16>
    %208 = vector.shape_cast %207 : vector<1x512x128xbf16> to vector<512x128xbf16>
    %cst_137 = arith.constant dense<0.000000e+00> : vector<32x128xf32>
    %209 = tpu.matmul %206, %208, %cst_137 {dimension_numbers = #tpu.dot_dimension_numbers<[1], [0], [0], [1], [0, 0, 1, 1], [], []>} : vector<32x512xbf16>, vector<512x128xbf16>, vector<32x128xf32> -> vector<32x128xf32>
    %c0_138 = arith.constant 0 : index
    %c0_139 = arith.constant 0 : index
    %c0_140 = arith.constant 0 : index
    %210 = vector.load %arg14[%c0_138, %c0_139, %c0_140] : memref<1x1x128xf32, #tpu.memory_space<vmem>>, vector<1x1x128xf32>
    %211 = vector.shape_cast %210 : vector<1x1x128xf32> to vector<1x128xf32>
    %212 = vector.broadcast %211 : vector<1x128xf32> to vector<32x128xf32>
    %213 = arith.addf %209, %212 : vector<32x128xf32>
    %214 = arith.addf %158, %213 : vector<32x128xf32>
    %c1_i32 = arith.constant 1 : i32
    %215 = arith.cmpi eq, %arg0, %c1_i32 : i32
    %216 = arith.extui %215 : i1 to i32
    %c0_i32_141 = arith.constant 0 : i32
    %217 = arith.cmpi ne, %216, %c0_i32_141 : i32
    scf.if %217 {
      %c0_144 = arith.constant 0 : index
      %c0_145 = arith.constant 0 : index
      %221 = vector.load %arg15[%c0_144, %c0_145] : memref<1x128xf32, #tpu.memory_space<vmem>>, vector<1x128xf32>
      %c0_146 = arith.constant 0 : index
      %c0_147 = arith.constant 0 : index
      %222 = vector.load %arg16[%c0_146, %c0_147] : memref<1x128xf32, #tpu.memory_space<vmem>>, vector<1x128xf32>
      %cst_148 = arith.constant dense<0.000000e+00> : vector<32xf32>
      %223 = vector.multi_reduction <add>, %214, %cst_148 [1] : vector<32x128xf32> to vector<32xf32>
      %224 = vector.shape_cast %223 : vector<32xf32> to vector<32x1xf32>
      %cst_149 = arith.constant 1.280000e+02 : f32
      %225 = vector.broadcast %cst_149 : f32 to vector<32x1xf32>
      %226 = arith.divf %224, %225 : vector<32x1xf32>
      %227 = vector.broadcast %226 : vector<32x1xf32> to vector<32x128xf32>
      %228 = arith.subf %214, %227 : vector<32x128xf32>
      %229 = arith.mulf %228, %228 : vector<32x128xf32>
      %cst_150 = arith.constant dense<0.000000e+00> : vector<32xf32>
      %230 = vector.multi_reduction <add>, %229, %cst_150 [1] : vector<32x128xf32> to vector<32xf32>
      %231 = vector.shape_cast %230 : vector<32xf32> to vector<32x1xf32>
      %cst_151 = arith.constant 1.280000e+02 : f32
      %232 = vector.broadcast %cst_151 : f32 to vector<32x1xf32>
      %233 = arith.divf %231, %232 : vector<32x1xf32>
      %234 = vector.broadcast %226 : vector<32x1xf32> to vector<32x128xf32>
      %235 = arith.subf %214, %234 : vector<32x128xf32>
      %cst_152 = arith.constant 9.99999974E-6 : f32
      %236 = vector.broadcast %cst_152 : f32 to vector<32x1xf32>
      %237 = arith.addf %233, %236 : vector<32x1xf32>
      %238 = math.rsqrt %237 : vector<32x1xf32>
      %239 = vector.broadcast %238 : vector<32x1xf32> to vector<32x128xf32>
      %240 = arith.mulf %235, %239 : vector<32x128xf32>
      %241 = vector.broadcast %221 : vector<1x128xf32> to vector<32x128xf32>
      %242 = arith.mulf %240, %241 : vector<32x128xf32>
      %243 = vector.broadcast %222 : vector<1x128xf32> to vector<32x128xf32>
      %244 = arith.addf %242, %243 : vector<32x128xf32>
      %c0_153 = arith.constant 0 : index
      %c0_154 = arith.constant 0 : index
      %245 = vector.load %arg17[%c0_153, %c0_154] : memref<32x128xf32, #tpu.memory_space<vmem>>, vector<32x128xf32>
      tpu.vector_store %arg17[%c0_153, %c0_154], %244 {strides = array<i32>} : memref<32x128xf32, #tpu.memory_space<vmem>>, vector<32x128xf32>,
    } else {
    }
    %c1_i32_142 = arith.constant 1 : i32
    %218 = arith.cmpi slt, %arg0, %c1_i32_142 : i32
    %219 = arith.extui %218 : i1 to i32
    %c0_i32_143 = arith.constant 0 : i32
    %220 = arith.cmpi ne, %219, %c0_i32_143 : i32
    scf.if %220 {
      %c0_144 = arith.constant 0 : index
      %c0_145 = arith.constant 0 : index
      %221 = vector.load %arg17[%c0_144, %c0_145] : memref<32x128xf32, #tpu.memory_space<vmem>>, vector<32x128xf32>
      tpu.vector_store %arg17[%c0_144, %c0_145], %214 {strides = array<i32>} : memref<32x128xf32, #tpu.memory_space<vmem>>, vector<32x128xf32>,
    } else {
    }
    return
  }
  func.func @transform_0(%arg0: i32) -> (i32, i32) {
    %c0_i32 = arith.constant 0 : i32
    %c0_i32_0 = arith.constant 0 : i32
    %c0_i32_1 = arith.constant 0 : i32
    return %c0_i32, %c0_i32_0 : i32, i32
  }
  func.func @transform_1(%arg0: i32) -> (i32, i32, i32) {
    %c0_i32 = arith.constant 0 : i32
    %c0_i32_0 = arith.constant 0 : i32
    %c0_i32_1 = arith.constant 0 : i32
    return %arg0, %c0_i32, %c0_i32_0 : i32, i32, i32
  }
  func.func @transform_2(%arg0: i32) -> (i32, i32, i32) {
    %c0_i32 = arith.constant 0 : i32
    %c0_i32_0 = arith.constant 0 : i32
    %c0_i32_1 = arith.constant 0 : i32
    return %arg0, %c0_i32, %c0_i32_0 : i32, i32, i32
  }
  func.func @transform_3(%arg0: i32) -> (i32, i32, i32, i32) {
    %c0_i32 = arith.constant 0 : i32
    %c0_i32_0 = arith.constant 0 : i32
    %c0_i32_1 = arith.constant 0 : i32
    %c0_i32_2 = arith.constant 0 : i32
    return %arg0, %c0_i32, %c0_i32_0, %c0_i32_1 : i32, i32, i32, i32
  }
  func.func @transform_4(%arg0: i32) -> (i32, i32, i32, i32) {
    %c0_i32 = arith.constant 0 : i32
    %c0_i32_0 = arith.constant 0 : i32
    %c0_i32_1 = arith.constant 0 : i32
    %c0_i32_2 = arith.constant 0 : i32
    return %arg0, %c0_i32, %c0_i32_0, %c0_i32_1 : i32, i32, i32, i32
  }
  func.func @transform_5(%arg0: i32) -> (i32, i32, i32, i32) {
    %c0_i32 = arith.constant 0 : i32
    %c0_i32_0 = arith.constant 0 : i32
    %c0_i32_1 = arith.constant 0 : i32
    %c0_i32_2 = arith.constant 0 : i32
    return %arg0, %c0_i32, %c0_i32_0, %c0_i32_1 : i32, i32, i32, i32
  }
  func.func @transform_6(%arg0: i32) -> (i32, i32, i32, i32) {
    %c0_i32 = arith.constant 0 : i32
    %c0_i32_0 = arith.constant 0 : i32
    %c0_i32_1 = arith.constant 0 : i32
    %c0_i32_2 = arith.constant 0 : i32
    return %arg0, %c0_i32, %c0_i32_0, %c0_i32_1 : i32, i32, i32, i32
  }
  func.func @transform_7(%arg0: i32) -> (i32, i32, i32) {
    %c0_i32 = arith.constant 0 : i32
    %c0_i32_0 = arith.constant 0 : i32
    %c0_i32_1 = arith.constant 0 : i32
    return %arg0, %c0_i32, %c0_i32_0 : i32, i32, i32
  }
  func.func @transform_8(%arg0: i32) -> (i32, i32, i32) {
    %c0_i32 = arith.constant 0 : i32
    %c0_i32_0 = arith.constant 0 : i32
    %c0_i32_1 = arith.constant 0 : i32
    return %arg0, %c0_i32, %c0_i32_0 : i32, i32, i32
  }
  func.func @transform_9(%arg0: i32) -> (i32, i32, i32) {
    %c0_i32 = arith.constant 0 : i32
    %c0_i32_0 = arith.constant 0 : i32
    %c0_i32_1 = arith.constant 0 : i32
    return %arg0, %c0_i32, %c0_i32_0 : i32, i32, i32
  }
  func.func @transform_10(%arg0: i32) -> (i32, i32, i32) {
    %c0_i32 = arith.constant 0 : i32
    %c0_i32_0 = arith.constant 0 : i32
    %c0_i32_1 = arith.constant 0 : i32
    return %arg0, %c0_i32, %c0_i32_0 : i32, i32, i32
  }
  func.func @transform_11(%arg0: i32) -> (i32, i32, i32) {
    %c0_i32 = arith.constant 0 : i32
    %c0_i32_0 = arith.constant 0 : i32
    %c0_i32_1 = arith.constant 0 : i32
    return %arg0, %c0_i32, %c0_i32_0 : i32, i32, i32
  }
  func.func @transform_12(%arg0: i32) -> (i32, i32, i32) {
    %c0_i32 = arith.constant 0 : i32
    %c0_i32_0 = arith.constant 0 : i32
    %c0_i32_1 = arith.constant 0 : i32
    return %arg0, %c0_i32, %c0_i32_0 : i32, i32, i32
  }
  func.func @transform_13(%arg0: i32) -> (i32, i32, i32) {
    %c0_i32 = arith.constant 0 : i32
    %c0_i32_0 = arith.constant 0 : i32
    %c0_i32_1 = arith.constant 0 : i32
    return %arg0, %c0_i32, %c0_i32_0 : i32, i32, i32
  }
  func.func @transform_14(%arg0: i32) -> (i32, i32) {
    %c0_i32 = arith.constant 0 : i32
    %c0_i32_0 = arith.constant 0 : i32
    %c0_i32_1 = arith.constant 0 : i32
    return %c0_i32, %c0_i32_0 : i32, i32
  }
  func.func @transform_15(%arg0: i32) -> (i32, i32) {
    %c0_i32 = arith.constant 0 : i32
    %c0_i32_0 = arith.constant 0 : i32
    %c0_i32_1 = arith.constant 0 : i32
    return %c0_i32, %c0_i32_0 : i32, i32
  }
  func.func @transform_16(%arg0: i32) -> (i32, i32) {
    %c0_i32 = arith.constant 0 : i32
    %c0_i32_0 = arith.constant 0 : i32
    %c0_i32_1 = arith.constant 0 : i32
    return %c0_i32, %c0_i32_0 : i32, i32
  }
}

</mosaic_0001>

<llo_original>
// kernel: encoder_forward.2
$region0: #{encoder_forward.2}
  #allocation0 [shape = 'u32[]', space=smem, size = 0x4, offset = 0x4, fixed_abs, tag = 'smem constant byte address 0x4 - core index']
  #allocation1 [shape = 'u32[144,128]{1,0:T(1,128)}', space=vmem, size = 0x12000, scoped, tag = 'internal scratch']
  %s0 = inlined_call_operand.vmem [shape: f32[50,8], index: 0, kind: input, shape index: {}]
  %s1 = inlined_call_operand.vmem [shape: f32[8,128], index: 1, kind: input, shape index: {}]
  %s2 = inlined_call_operand.vmem [shape: f32[1,128], index: 2, kind: input, shape index: {}]
  %s3 = inlined_call_operand.vmem [shape: f32[1,128], index: 3, kind: input, shape index: {}]
  %s4 = inlined_call_operand.vmem [shape: f32[1,128], index: 4, kind: input, shape index: {}]
  %s5 = inlined_call_operand.vmem [shape: f32[8,50], index: 5, kind: input, shape index: {}]
  %s6 = inlined_call_operand.vmem [shape: f32[2,50], index: 6, kind: input, shape index: {}]
  %s7 = inlined_call_operand.hbm [shape: f32[128,512], index: 7, kind: input, shape index: {}]
  %s8 = inlined_call_operand.vmem [shape: f32[1,512], index: 8, kind: input, shape index: {}]
  %s9 = inlined_call_operand.vmem [shape: f32[50,128], index: 9, kind: output, shape index: {0}]
  %s10 = inlined_call_operand.vmem [shape: f32[8,128], index: 10, kind: output, shape index: {1}]
  %s11 = inlined_call_operand.vmem [shape: f32[2,512], index: 11, kind: output, shape index: {2}]
  %12 = xla_tuple %s9, %s10, %s11
  %s13 = sld [smem:[#allocation0]]
  $region66: #{encoder_forward.2} parent=0
    _
  %s15 = ssub.s32 1, %s13
  %s16 = scalar_select 0, %s15, %s13
  $region1: #{encoder_forward.2} parent=0
    #allocation2 [shape = 'u8[262144]{0}', space=vmem, size = 0x40000, scoped, tag = 'input window, operand 7, single buffered']
    #allocation3 [shape = 's32[1]{0}', space=sflag, size = 0x4, scoped, tag = 'scoped memory for encoder_forward.2']
    %17 = vsyncpa [#allocation3], 0
    // Predicated region
    $region2: #{encoder_forward.2} parent=1 // pred_check
      _
    $region3: #{encoder_forward.2} parent=1 // pred_check_branch
      %19 = sbr.rel (0) target = $region5
    $region4: #{encoder_forward.2} parent=1 // pred_region
      _
    $region5: #{encoder_forward.2} parent=1 // pred_fallthru
      _
    // Predicated region
    $region6: #{encoder_forward.2} parent=1 // pred_check
      _
    $region7: #{encoder_forward.2} parent=1 // pred_check_branch
      %21 = sbr.rel (0) target = $region9
    $region8: #{encoder_forward.2} parent=1 // pred_region
      _
    $region9: #{encoder_forward.2} parent=1 // pred_fallthru
      _
    // Predicated region
    $region10: #{encoder_forward.2} parent=1 // pred_check
      _
    $region11: #{encoder_forward.2} parent=1 // pred_check_branch
      %23 = sbr.rel (0) target = $region13
    $region12: #{encoder_forward.2} parent=1 // pred_region
      _
    $region13: #{encoder_forward.2} parent=1 // pred_fallthru
      _
    // Predicated region
    $region14: #{encoder_forward.2} parent=1 // pred_check
      _
    $region15: #{encoder_forward.2} parent=1 // pred_check_branch
      %25 = sbr.rel (0) target = $region17
    $region16: #{encoder_forward.2} parent=1 // pred_region
      _
    $region17: #{encoder_forward.2} parent=1 // pred_fallthru
      _
    // Predicated region
    $region18: #{encoder_forward.2} parent=1 // pred_check
      _
    $region19: #{encoder_forward.2} parent=1 // pred_check_branch
      %27 = sbr.rel (0) target = $region21
    $region20: #{encoder_forward.2} parent=1 // pred_region
      _
    $region21: #{encoder_forward.2} parent=1 // pred_fallthru
      _
    // Predicated region
    $region22: #{encoder_forward.2} parent=1 // pred_check
      _
    $region23: #{encoder_forward.2} parent=1 // pred_check_branch
      %29 = sbr.rel (0) target = $region25
    $region24: #{encoder_forward.2} parent=1 // pred_region
      _
    $region25: #{encoder_forward.2} parent=1 // pred_fallthru
      _
    // Predicated region
    $region26: #{encoder_forward.2} parent=1 // pred_check
      _
    $region27: #{encoder_forward.2} parent=1 // pred_check_branch
      %31 = sbr.rel (0) target = $region29
    $region28: #{encoder_forward.2} parent=1 // pred_region
      _
    $region29: #{encoder_forward.2} parent=1 // pred_fallthru
      _
    // Predicated region
    $region30: #{encoder_forward.2} parent=1 // pred_check
      _
    $region31: #{encoder_forward.2} parent=1 // pred_check_branch
      %33 = sbr.rel (0) target = $region33
    $region32: #{encoder_forward.2} parent=1 // pred_region
      %s35 = ssub.s32 8192, 8192
      %36 = vsyncadd [#allocation3], %s35
      %s37 = sshll.u32 [#allocation2], 4
      %s38 = int_to_ptr.vmem [resolvable:$true] %s37
      %43 = dma.hbm_to_vmem [thread:$0]  %s7, 8192, %s38, [#allocation3], 512, 512, 32
    $region33: #{encoder_forward.2} parent=1 // pred_fallthru
      _
    // Predicated region
    $region34: #{encoder_forward.2} parent=1 // pred_check
      _
    $region35: #{encoder_forward.2} parent=1 // pred_check_branch
      %45 = sbr.rel (0) target = $region37
    $region36: #{encoder_forward.2} parent=1 // pred_region
      _
    $region37: #{encoder_forward.2} parent=1 // pred_fallthru
      _
    // Predicated region
    $region38: #{encoder_forward.2} parent=1 // pred_check
      _
    $region39: #{encoder_forward.2} parent=1 // pred_check_branch
      %47 = sbr.rel (0) target = $region41
    $region40: #{encoder_forward.2} parent=1 // pred_region
      %48 = dma.done [#allocation3], 8192
    $region41: #{encoder_forward.2} parent=1 // pred_fallthru
      _
    %v49 = vld [vmem:[%s0] sm:$0xff]
    %v50 = vld [vmem:[%s0 + $0x8] sm:$0xff]
    %v51 = vld [vmem:[%s0 + $0x10] sm:$0xff]
    %v52 = vld [vmem:[%s0 + $0x18] sm:$0xff]
    %v53 = vld [vmem:[%s0 + $0x20] sm:$0xff]
    %v54 = vld [vmem:[%s0 + $0x28] sm:$0xff]
    %v55 = vld [vmem:[%s0 + $0x30] sm:$0x3]
    %v56 = vld [vmem:[%s1] sm:$0xff]
    %v57 = vld [vmem:[%s2] sm:$0x1]
    %v59 = vlaneseq
    %v60 = vshrl.u32 %v59, 7
    %v61 = vsub.s32 0, %v60
    %v62 = vrot.slane %v57, %v61
    %vm64 = vcmask 64512
    %v66 = vsel %vm64, %v49, 0
    %v69 = vsel %vm64, %v50, 0
    %v72 = vsel %vm64, %v51, 0
    %v75 = vsel %vm64, %v52, 0
    %v78 = vsel %vm64, %v53, 0
    %v81 = vsel %vm64, %v54, 0
    %v84 = vsel %vm64, %v55, 0
    %86 = vmatprep.subr.mxu0 0.0
    %87 = vmatpush1.msra.mxu0 %v56
    %88 = vmatprep.subr.mxu0 0.0
    %89 = vmatpush1.msra.mxu0 0.0
    %90 = vmatprep.subr.mxu0 0.0
    %91 = vmatpush1.msra.mxu0 0.0
    %92 = vmatprep.subr.mxu0 0.0
    %93 = vmatpush1.msra.mxu0 0.0
    %94 = vmatprep.subr.mxu0 0.0
    %95 = vmatpush1.msra.mxu0 0.0
    %96 = vmatprep.subr.mxu0 0.0
    %97 = vmatpush1.msra.mxu0 0.0
    %98 = vmatprep.subr.mxu0 0.0
    %99 = vmatpush1.msra.mxu0 0.0
    %100 = vmatprep.subr.mxu0 0.0
    %101 = vmatpush1.msra.mxu0 0.0
    %102 = vmatprep.subr.mxu0 0.0
    %103 = vmatpush1.msra.mxu0 0.0
    %104 = vmatprep.subr.mxu0 0.0
    %105 = vmatpush1.msra.mxu0 0.0
    %106 = vmatprep.subr.mxu0 0.0
    %107 = vmatpush1.msra.mxu0 0.0
    %108 = vmatprep.subr.mxu0 0.0
    %109 = vmatpush1.msra.mxu0 0.0
    %110 = vmatprep.subr.mxu0 0.0
    %111 = vmatpush1.msra.mxu0 0.0
    %112 = vmatprep.subr.mxu0 0.0
    %113 = vmatpush1.msra.mxu0 0.0
    %114 = vmatprep.subr.mxu0 0.0
    %115 = vmatpush1.msra.mxu0 0.0
    %116 = vmatprep.subr.mxu0 0.0
    %117 = vmatpush1.msra.mxu0 0.0
    %118 = vmatprep.subr.mxu0 0.0
    %119 = vmatpush1.msra.mxu0 0.0
    %120 = vmatprep.subr.mxu0 0.0
    %121 = vmatpush1.msra.mxu0 0.0
    %122 = vmatprep.subr.mxu0 0.0
    %123 = vmatpush1.msra.mxu0 0.0
    %124 = vmatprep.subr.mxu0 0.0
    %125 = vmatpush1.msra.mxu0 0.0
    %126 = vmatprep.subr.mxu0 0.0
    %127 = vmatpush1.msra.mxu0 0.0
    %128 = vmatprep.subr.mxu0 0.0
    %129 = vmatpush1.msra.mxu0 0.0
    %130 = vmatprep.subr.mxu0 0.0
    %131 = vmatpush1.msra.mxu0 0.0
    %132 = vmatprep.subr.mxu0 0.0
    %133 = vmatpush1.msra.mxu0 0.0
    %134 = vmatprep.subr.mxu0 0.0
    %135 = vmatpush1.msra.mxu0 0.0
    %136 = vmatprep.subr.mxu0 0.0
    %137 = vmatpush1.msra.mxu0 0.0
    %138 = vmatprep.subr.mxu0 0.0
    %139 = vmatpush1.msra.mxu0 0.0
    %140 = vmatprep.subr.mxu0 0.0
    %141 = vmatpush1.msra.mxu0 0.0
    %142 = vmatprep.subr.mxu0 0.0
    %143 = vmatpush1.msra.mxu0 0.0
    %144 = vmatprep.subr.mxu0 0.0
    %145 = vmatpush1.msra.mxu0 0.0
    %146 = vmatprep.subr.mxu0 0.0
    %147 = vmatpush1.msra.mxu0 0.0
    %148 = vmatprep.subr.mxu0 0.0
    %149 = vmatpush1.msra.mxu0 0.0
    %150 = vmatprep.mubr.f32.mxu0 0.0
    %151 = vmatmul.mubr.f32.gmra.mrb[0].mxu0 %v66
    %v152 = vpop.f32.mrb[0].mxu0
    %v153 = vadd.f32 %v62, %v152
    %v154 = vpop.f32.mrb[0].mxu0
    %155 = vmatprep.mubr.f32.mxu0 0.0
    %156 = vmatmul.mubr.f32.gmra.mrb[0].mxu0 %v69
    %v157 = vpop.f32.mrb[0].mxu0
    %v158 = vadd.f32 %v62, %v157
    %v159 = vpop.f32.mrb[0].mxu0
    %160 = vmatprep.mubr.f32.mxu0 0.0
    %161 = vmatmul.mubr.f32.gmra.mrb[0].mxu0 %v72
    %v162 = vpop.f32.mrb[0].mxu0
    %v163 = vadd.f32 %v62, %v162
    %v164 = vpop.f32.mrb[0].mxu0
    %165 = vmatprep.mubr.f32.mxu0 0.0
    %166 = vmatmul.mubr.f32.gmra.mrb[0].mxu0 %v75
    %v167 = vpop.f32.mrb[0].mxu0
    %v168 = vadd.f32 %v62, %v167
    %v169 = vpop.f32.mrb[0].mxu0
    %170 = vmatprep.mubr.f32.mxu0 0.0
    %171 = vmatmul.mubr.f32.gmra.mrb[0].mxu0 %v78
    %v172 = vpop.f32.mrb[0].mxu0
    %v173 = vadd.f32 %v62, %v172
    %v174 = vpop.f32.mrb[0].mxu0
    %175 = vmatprep.mubr.f32.mxu0 0.0
    %176 = vmatmul.mubr.f32.gmra.mrb[0].mxu0 %v81
    %v177 = vpop.f32.mrb[0].mxu0
    %v178 = vadd.f32 %v62, %v177
    %v179 = vpop.f32.mrb[0].mxu0
    %180 = vmatprep.mubr.f32.mxu0 0.0
    %181 = vmatmul.mubr.f32.gmra.mrb[0].mxu0 %v84
    %v182 = vpop.f32.mrb[0].mxu0
    %v183 = vadd.f32 %v62, %v182
    %v184 = vpop.f32.mrb[0].mxu0
    %185 = vdwg.mxu0
    %v186 = vld [vmem:[%s3] sm:$0x1]
    %v187 = vld [vmem:[%s4] sm:$0x1]
    %188 = vadd.xlane.f32.xlu0 %v153
    %v189 = vpop.xlane.xlu0 %188
    %190 = vadd.xlane.f32.xlu0 %v158
    %v191 = vpop.xlane.xlu0 %190
    %192 = vadd.xlane.f32.xlu0 %v163
    %v193 = vpop.xlane.xlu0 %192
    %194 = vadd.xlane.f32.xlu0 %v168
    %v195 = vpop.xlane.xlu0 %194
    %196 = vadd.xlane.f32.xlu0 %v173
    %v197 = vpop.xlane.xlu0 %196
    %198 = vadd.xlane.f32.xlu0 %v178
    %v199 = vpop.xlane.xlu0 %198
    %vm200 = vcmask 1041408
    %v201 = vsel %vm200, %v183, 0.0
    %202 = vadd.xlane.f32.xlu0 %v201
    %v203 = vpop.xlane.xlu0 %202
    %v204 = vrcp.pop 128.0
    %v205 = vmul.f32 %v189, %v204
    %v206 = vmul.f32 %v191, %v204
    %v207 = vmul.f32 %v193, %v204
    %v208 = vmul.f32 %v195, %v204
    %v209 = vmul.f32 %v197, %v204
    %v210 = vmul.f32 %v199, %v204
    %v211 = vmul.f32 %v203, %v204
    %v212 = vsub.f32 %v153, %v205
    %v213 = vsub.f32 %v158, %v206
    %v214 = vsub.f32 %v163, %v207
    %v215 = vsub.f32 %v168, %v208
    %v216 = vsub.f32 %v173, %v209
    %v217 = vsub.f32 %v178, %v210
    %v218 = vsub.f32 %v183, %v211
    %v219 = vmul.f32 %v212, %v212
    %v220 = vmul.f32 %v213, %v213
    %v221 = vmul.f32 %v214, %v214
    %v222 = vmul.f32 %v215, %v215
    %v223 = vmul.f32 %v216, %v216
    %v224 = vmul.f32 %v217, %v217
    %v225 = vmul.f32 %v218, %v218
    %226 = vadd.xlane.f32.xlu0 %v219
    %v227 = vpop.xlane.xlu0 %226
    %228 = vadd.xlane.f32.xlu0 %v220
    %v229 = vpop.xlane.xlu0 %228
    %230 = vadd.xlane.f32.xlu0 %v221
    %v231 = vpop.xlane.xlu0 %230
    %232 = vadd.xlane.f32.xlu0 %v222
    %v233 = vpop.xlane.xlu0 %232
    %234 = vadd.xlane.f32.xlu0 %v223
    %v235 = vpop.xlane.xlu0 %234
    %236 = vadd.xlane.f32.xlu0 %v224
    %v237 = vpop.xlane.xlu0 %236
    %v238 = vsel %vm200, %v225, 0.0
    %239 = vadd.xlane.f32.xlu0 %v238
    %v240 = vpop.xlane.xlu0 %239
    %v241 = vmul.f32 %v227, %v204
    %v242 = vmul.f32 %v229, %v204
    %v243 = vmul.f32 %v231, %v204
    %v244 = vmul.f32 %v233, %v204
    %v245 = vmul.f32 %v235, %v204
    %v246 = vmul.f32 %v237, %v204
    %v247 = vmul.f32 %v240, %v204
    %v248 = vadd.f32 %v241, 1e-05
    %v249 = vadd.f32 %v242, 1e-05
    %v250 = vadd.f32 %v243, 1e-05
    %v251 = vadd.f32 %v244, 1e-05
    %v252 = vadd.f32 %v245, 1e-05
    %v253 = vadd.f32 %v246, 1e-05
    %v254 = vadd.f32 %v247, 1e-05
    %v255 = vrsqrt.pop %v248
    %v256 = vrsqrt.pop %v249
    %v257 = vrsqrt.pop %v250
    %v258 = vrsqrt.pop %v251
    %v259 = vrsqrt.pop %v252
    %v260 = vrsqrt.pop %v253
    %v261 = vrsqrt.pop %v254
    %v262 = vmul.f32 %v212, %v255
    %v263 = vmul.f32 %v213, %v256
    %v264 = vmul.f32 %v214, %v257
    %v265 = vmul.f32 %v215, %v258
    %v266 = vmul.f32 %v216, %v259
    %v267 = vmul.f32 %v217, %v260
    %v268 = vmul.f32 %v218, %v261
    %v270 = vlaneseq
    %v271 = vshrl.u32 %v270, 7
    %v272 = vsub.s32 0, %v271
    %v273 = vrot.slane %v186, %v272
    %v275 = vmul.f32 %v262, %v273
    %v276 = vmul.f32 %v263, %v273
    %v277 = vmul.f32 %v264, %v273
    %v278 = vmul.f32 %v265, %v273
    %v279 = vmul.f32 %v266, %v273
    %v280 = vmul.f32 %v267, %v273
    %v281 = vmul.f32 %v268, %v273
    %v283 = vlaneseq
    %v284 = vshrl.u32 %v283, 7
    %v285 = vsub.s32 0, %v284
    %v286 = vrot.slane %v187, %v285
    %v288 = vadd.f32 %v275, %v286
    %v289 = vadd.f32 %v276, %v286
    %v290 = vadd.f32 %v277, %v286
    %v291 = vadd.f32 %v278, %v286
    %v292 = vadd.f32 %v279, %v286
    %v293 = vadd.f32 %v280, %v286
    %v294 = vadd.f32 %v281, %v286
    %295 = vst [vmem:[%s9] sm:$0xff] %v288
    %296 = vst [vmem:[%s9 + $0x8] sm:$0xff] %v289
    %297 = vst [vmem:[%s9 + $0x10] sm:$0xff] %v290
    %298 = vst [vmem:[%s9 + $0x18] sm:$0xff] %v291
    %299 = vst [vmem:[%s9 + $0x20] sm:$0xff] %v292
    %300 = vst [vmem:[%s9 + $0x28] sm:$0xff] %v293
    %301 = vst [vmem:[%s9 + $0x30] sm:$0x3] %v294
    %v302 = vld [vmem:[%s5] sm:$0xff]
    %vm303 = vcmask 408576
    %v305 = vsel %vm303, %v302, 0
    %v308 = vsel %vm200, %v183, 0
    %310 = vmatprep.subr.mxu0 0.0
    %311 = vmatpush1.msra.mxu0 %v153
    %312 = vmatprep.subr.mxu0 0.0
    %313 = vmatpush1.msra.mxu0 %v158
    %314 = vmatprep.subr.mxu0 0.0
    %315 = vmatpush1.msra.mxu0 %v163
    %316 = vmatprep.subr.mxu0 0.0
    %317 = vmatpush1.msra.mxu0 %v168
    %318 = vmatprep.subr.mxu0 0.0
    %319 = vmatpush1.msra.mxu0 %v173
    %320 = vmatprep.subr.mxu0 0.0
    %321 = vmatpush1.msra.mxu0 %v178
    %322 = vmatprep.subr.mxu0 0.0
    %323 = vmatpush1.msra.mxu0 %v308
    %324 = vmatprep.subr.mxu0 0.0
    %325 = vmatpush1.msra.mxu0 0.0
    %326 = vmatprep.subr.mxu0 0.0
    %327 = vmatpush1.msra.mxu0 0.0
    %328 = vmatprep.subr.mxu0 0.0
    %329 = vmatpush1.msra.mxu0 0.0
    %330 = vmatprep.subr.mxu0 0.0
    %331 = vmatpush1.msra.mxu0 0.0
    %332 = vmatprep.subr.mxu0 0.0
    %333 = vmatpush1.msra.mxu0 0.0
    %334 = vmatprep.subr.mxu0 0.0
    %335 = vmatpush1.msra.mxu0 0.0
    %336 = vmatprep.subr.mxu0 0.0
    %337 = vmatpush1.msra.mxu0 0.0
    %338 = vmatprep.subr.mxu0 0.0
    %339 = vmatpush1.msra.mxu0 0.0
    %340 = vmatprep.subr.mxu0 0.0
    %341 = vmatpush1.msra.mxu0 0.0
    %342 = vmatprep.subr.mxu0 0.0
    %343 = vmatpush1.msra.mxu0 0.0
    %344 = vmatprep.subr.mxu0 0.0
    %345 = vmatpush1.msra.mxu0 0.0
    %346 = vmatprep.subr.mxu0 0.0
    %347 = vmatpush1.msra.mxu0 0.0
    %348 = vmatprep.subr.mxu0 0.0
    %349 = vmatpush1.msra.mxu0 0.0
    %350 = vmatprep.subr.mxu0 0.0
    %351 = vmatpush1.msra.mxu0 0.0
    %352 = vmatprep.subr.mxu0 0.0
    %353 = vmatpush1.msra.mxu0 0.0
    %354 = vmatprep.subr.mxu0 0.0
    %355 = vmatpush1.msra.mxu0 0.0
    %356 = vmatprep.subr.mxu0 0.0
    %357 = vmatpush1.msra.mxu0 0.0
    %358 = vmatprep.subr.mxu0 0.0
    %359 = vmatpush1.msra.mxu0 0.0
    %360 = vmatprep.subr.mxu0 0.0
    %361 = vmatpush1.msra.mxu0 0.0
    %362 = vmatprep.subr.mxu0 0.0
    %363 = vmatpush1.msra.mxu0 0.0
    %364 = vmatprep.subr.mxu0 0.0
    %365 = vmatpush1.msra.mxu0 0.0
    %366 = vmatprep.subr.mxu0 0.0
    %367 = vmatpush1.msra.mxu0 0.0
    %368 = vmatprep.subr.mxu0 0.0
    %369 = vmatpush1.msra.mxu0 0.0
    %370 = vmatprep.subr.mxu0 0.0
    %371 = vmatpush1.msra.mxu0 0.0
    %372 = vmatprep.subr.mxu0 0.0
    %373 = vmatpush1.msra.mxu0 0.0
    %374 = vmatprep.mubr.f32.mxu0 0.0
    %375 = vmatmul.mubr.f32.gmra.mrb[0].mxu0 %v305
    %v376 = vpop.f32.mrb[0].mxu0
    %v377 = vadd.f32 0.0, %v376
    %v378 = vpop.f32.mrb[0].mxu0
    %379 = vdwg.mxu0
    %380 = vst [vmem:[%s10] sm:$0xff] %v377
    %v381 = vld [vmem:[%s6] sm:$0x3]
    %v383 = vsel %vm303, %v381, 0
    %v386 = vsel %vm200, %v294, 0
    %388 = vmatprep.subr.mxu0 0.0
    %389 = vmatpush1.msra.mxu0 %v288
    %390 = vmatprep.subr.mxu0 0.0
    %391 = vmatpush1.msra.mxu0 %v289
    %392 = vmatprep.subr.mxu0 0.0
    %393 = vmatpush1.msra.mxu0 %v290
    %394 = vmatprep.subr.mxu0 0.0
    %395 = vmatpush1.msra.mxu0 %v291
    %396 = vmatprep.subr.mxu0 0.0
    %397 = vmatpush1.msra.mxu0 %v292
    %398 = vmatprep.subr.mxu0 0.0
    %399 = vmatpush1.msra.mxu0 %v293
    %400 = vmatprep.subr.mxu0 0.0
    %401 = vmatpush1.msra.mxu0 %v386
    %402 = vmatprep.subr.mxu0 0.0
    %403 = vmatpush1.msra.mxu0 0.0
    %404 = vmatprep.subr.mxu0 0.0
    %405 = vmatpush1.msra.mxu0 0.0
    %406 = vmatprep.subr.mxu0 0.0
    %407 = vmatpush1.msra.mxu0 0.0
    %408 = vmatprep.subr.mxu0 0.0
    %409 = vmatpush1.msra.mxu0 0.0
    %410 = vmatprep.subr.mxu0 0.0
    %411 = vmatpush1.msra.mxu0 0.0
    %412 = vmatprep.subr.mxu0 0.0
    %413 = vmatpush1.msra.mxu0 0.0
    %414 = vmatprep.subr.mxu0 0.0
    %415 = vmatpush1.msra.mxu0 0.0
    %416 = vmatprep.subr.mxu0 0.0
    %417 = vmatpush1.msra.mxu0 0.0
    %418 = vmatprep.subr.mxu0 0.0
    %419 = vmatpush1.msra.mxu0 0.0
    %420 = vmatprep.subr.mxu0 0.0
    %421 = vmatpush1.msra.mxu0 0.0
    %422 = vmatprep.subr.mxu0 0.0
    %423 = vmatpush1.msra.mxu0 0.0
    %424 = vmatprep.subr.mxu0 0.0
    %425 = vmatpush1.msra.mxu0 0.0
    %426 = vmatprep.subr.mxu0 0.0
    %427 = vmatpush1.msra.mxu0 0.0
    %428 = vmatprep.subr.mxu0 0.0
    %429 = vmatpush1.msra.mxu0 0.0
    %430 = vmatprep.subr.mxu0 0.0
    %431 = vmatpush1.msra.mxu0 0.0
    %432 = vmatprep.subr.mxu0 0.0
    %433 = vmatpush1.msra.mxu0 0.0
    %434 = vmatprep.subr.mxu0 0.0
    %435 = vmatpush1.msra.mxu0 0.0
    %436 = vmatprep.subr.mxu0 0.0
    %437 = vmatpush1.msra.mxu0 0.0
    %438 = vmatprep.subr.mxu0 0.0
    %439 = vmatpush1.msra.mxu0 0.0
    %440 = vmatprep.subr.mxu0 0.0
    %441 = vmatpush1.msra.mxu0 0.0
    %442 = vmatprep.subr.mxu0 0.0
    %443 = vmatpush1.msra.mxu0 0.0
    %444 = vmatprep.subr.mxu0 0.0
    %445 = vmatpush1.msra.mxu0 0.0
    %446 = vmatprep.subr.mxu0 0.0
    %447 = vmatpush1.msra.mxu0 0.0
    %448 = vmatprep.subr.mxu0 0.0
    %449 = vmatpush1.msra.mxu0 0.0
    %450 = vmatprep.subr.mxu0 0.0
    %451 = vmatpush1.msra.mxu0 0.0
    %452 = vmatprep.mubr.f32.mxu0 0.0
    %453 = vmatmul.mubr.f32.gmra.mrb[0].mxu0 %v383
    %v454 = vpop.f32.mrb[0].mxu0
    %v455 = vadd.f32 0.0, %v454
    %v456 = vpop.f32.mrb[0].mxu0
    %457 = vdwg.mxu0
    %v458 = vld [vmem:[#allocation2] sm:$0xff]
    %v459 = vld [vmem:[#allocation2 + $0x8] sm:$0xff]
    %v460 = vld [vmem:[#allocation2 + $0x10] sm:$0xff]
    %v461 = vld [vmem:[#allocation2 + $0x18] sm:$0xff]
    %v462 = vld [vmem:[#allocation2 + $0x20] sm:$0xff]
    %v463 = vld [vmem:[#allocation2 + $0x28] sm:$0xff]
    %v464 = vld [vmem:[#allocation2 + $0x30] sm:$0xff]
    %v465 = vld [vmem:[#allocation2 + $0x38] sm:$0xff]
    %v466 = vld [vmem:[#allocation2 + $0x40] sm:$0xff]
    %v467 = vld [vmem:[#allocation2 + $0x48] sm:$0xff]
    %v468 = vld [vmem:[#allocation2 + $0x50] sm:$0xff]
    %v469 = vld [vmem:[#allocation2 + $0x58] sm:$0xff]
    %v470 = vld [vmem:[#allocation2 + $0x60] sm:$0xff]
    %v471 = vld [vmem:[#allocation2 + $0x68] sm:$0xff]
    %v472 = vld [vmem:[#allocation2 + $0x70] sm:$0xff]
    %v473 = vld [vmem:[#allocation2 + $0x78] sm:$0xff]
    %v474 = vld [vmem:[#allocation2 + $0x80] sm:$0xff]
    %v475 = vld [vmem:[#allocation2 + $0x88] sm:$0xff]
    %v476 = vld [vmem:[#allocation2 + $0x90] sm:$0xff]
    %v477 = vld [vmem:[#allocation2 + $0x98] sm:$0xff]
    %v478 = vld [vmem:[#allocation2 + $0xa0] sm:$0xff]
    %v479 = vld [vmem:[#allocation2 + $0xa8] sm:$0xff]
    %v480 = vld [vmem:[#allocation2 + $0xb0] sm:$0xff]
    %v481 = vld [vmem:[#allocation2 + $0xb8] sm:$0xff]
    %v482 = vld [vmem:[#allocation2 + $0xc0] sm:$0xff]
    %v483 = vld [vmem:[#allocation2 + $0xc8] sm:$0xff]
    %v484 = vld [vmem:[#allocation2 + $0xd0] sm:$0xff]
    %v485 = vld [vmem:[#allocation2 + $0xd8] sm:$0xff]
    %v486 = vld [vmem:[#allocation2 + $0xe0] sm:$0xff]
    %v487 = vld [vmem:[#allocation2 + $0xe8] sm:$0xff]
    %v488 = vld [vmem:[#allocation2 + $0xf0] sm:$0xff]
    %v489 = vld [vmem:[#allocation2 + $0xf8] sm:$0xff]
    %v490 = vld [vmem:[#allocation2 + $0x100] sm:$0xff]
    %v491 = vld [vmem:[#allocation2 + $0x108] sm:$0xff]
    %v492 = vld [vmem:[#allocation2 + $0x110] sm:$0xff]
    %v493 = vld [vmem:[#allocation2 + $0x118] sm:$0xff]
    %v494 = vld [vmem:[#allocation2 + $0x120] sm:$0xff]
    %v495 = vld [vmem:[#allocation2 + $0x128] sm:$0xff]
    %v496 = vld [vmem:[#allocation2 + $0x130] sm:$0xff]
    %v497 = vld [vmem:[#allocation2 + $0x138] sm:$0xff]
    %v498 = vld [vmem:[#allocation2 + $0x140] sm:$0xff]
    %v499 = vld [vmem:[#allocation2 + $0x148] sm:$0xff]
    %v500 = vld [vmem:[#allocation2 + $0x150] sm:$0xff]
    %v501 = vld [vmem:[#allocation2 + $0x158] sm:$0xff]
    %v502 = vld [vmem:[#allocation2 + $0x160] sm:$0xff]
    %v503 = vld [vmem:[#allocation2 + $0x168] sm:$0xff]
    %v504 = vld [vmem:[#allocation2 + $0x170] sm:$0xff]
    %v505 = vld [vmem:[#allocation2 + $0x178] sm:$0xff]
    %v506 = vld [vmem:[#allocation2 + $0x180] sm:$0xff]
    %v507 = vld [vmem:[#allocation2 + $0x188] sm:$0xff]
    %v508 = vld [vmem:[#allocation2 + $0x190] sm:$0xff]
    %v509 = vld [vmem:[#allocation2 + $0x198] sm:$0xff]
    %v510 = vld [vmem:[#allocation2 + $0x1a0] sm:$0xff]
    %v511 = vld [vmem:[#allocation2 + $0x1a8] sm:$0xff]
    %v512 = vld [vmem:[#allocation2 + $0x1b0] sm:$0xff]
    %v513 = vld [vmem:[#allocation2 + $0x1b8] sm:$0xff]
    %v514 = vld [vmem:[#allocation2 + $0x1c0] sm:$0xff]
    %v515 = vld [vmem:[#allocation2 + $0x1c8] sm:$0xff]
    %v516 = vld [vmem:[#allocation2 + $0x1d0] sm:$0xff]
    %v517 = vld [vmem:[#allocation2 + $0x1d8] sm:$0xff]
    %v518 = vld [vmem:[#allocation2 + $0x1e0] sm:$0xff]
    %v519 = vld [vmem:[#allocation2 + $0x1e8] sm:$0xff]
    %v520 = vld [vmem:[#allocation2 + $0x1f0] sm:$0xff]
    %v521 = vld [vmem:[#allocation2 + $0x1f8] sm:$0xff]
    %v522 = vld [vmem:[%s8] sm:$0xf]
    %v524 = vlaneseq
    %v525 = vshrl.u32 %v524, 7
    %v526 = vsub.s32 0, %v525
    %v527 = vrot.slane %v522, %v526
    %v528 = vlaneseq
    %v529 = vshrl.u32 %v528, 7
    %v530 = vsub.s32 1, %v529
    %v531 = vrot.slane %v522, %v530
    %v532 = vlaneseq
    %v533 = vshrl.u32 %v532, 7
    %v534 = vsub.s32 2, %v533
    %v535 = vrot.slane %v522, %v534
    %v536 = vlaneseq
    %v537 = vshrl.u32 %v536, 7
    %v538 = vsub.s32 3, %v537
    %v539 = vrot.slane %v522, %v538
    %544 = vmatprep.subr.mxu0 %v459
    %545 = vmatpush1.msra.mxu0 %v458
    %546 = vmatprep.subr.mxu0 %v463
    %547 = vmatpush1.msra.mxu0 %v462
    %548 = vmatprep.subr.mxu0 %v467
    %549 = vmatpush1.msra.mxu0 %v466
    %550 = vmatprep.subr.mxu0 %v471
    %551 = vmatpush1.msra.mxu0 %v470
    %552 = vmatprep.subr.mxu0 %v475
    %553 = vmatpush1.msra.mxu0 %v474
    %554 = vmatprep.subr.mxu0 %v479
    %555 = vmatpush1.msra.mxu0 %v478
    %556 = vmatprep.subr.mxu0 %v483
    %557 = vmatpush1.msra.mxu0 %v482
    %558 = vmatprep.subr.mxu0 %v487
    %559 = vmatpush1.msra.mxu0 %v486
    %560 = vmatprep.subr.mxu0 %v491
    %561 = vmatpush1.msra.mxu0 %v490
    %562 = vmatprep.subr.mxu0 %v495
    %563 = vmatpush1.msra.mxu0 %v494
    %564 = vmatprep.subr.mxu0 %v499
    %565 = vmatpush1.msra.mxu0 %v498
    %566 = vmatprep.subr.mxu0 %v503
    %567 = vmatpush1.msra.mxu0 %v502
    %568 = vmatprep.subr.mxu0 %v507
    %569 = vmatpush1.msra.mxu0 %v506
    %570 = vmatprep.subr.mxu0 %v511
    %571 = vmatpush1.msra.mxu0 %v510
    %572 = vmatprep.subr.mxu0 %v515
    %573 = vmatpush1.msra.mxu0 %v514
    %574 = vmatprep.subr.mxu0 %v519
    %575 = vmatpush1.msra.mxu0 %v518
    %576 = vmatprep.subr.mxu0 0.0
    %577 = vmatpush1.msra.mxu0 0.0
    %578 = vmatprep.subr.mxu0 0.0
    %579 = vmatpush1.msra.mxu0 0.0
    %580 = vmatprep.subr.mxu0 0.0
    %581 = vmatpush1.msra.mxu0 0.0
    %582 = vmatprep.subr.mxu0 0.0
    %583 = vmatpush1.msra.mxu0 0.0
    %584 = vmatprep.subr.mxu0 0.0
    %585 = vmatpush1.msra.mxu0 0.0
    %586 = vmatprep.subr.mxu0 0.0
    %587 = vmatpush1.msra.mxu0 0.0
    %588 = vmatprep.subr.mxu0 0.0
    %589 = vmatpush1.msra.mxu0 0.0
    %590 = vmatprep.subr.mxu0 0.0
    %591 = vmatpush1.msra.mxu0 0.0
    %592 = vmatprep.subr.mxu0 0.0
    %593 = vmatpush1.msra.mxu0 0.0
    %594 = vmatprep.subr.mxu0 0.0
    %595 = vmatpush1.msra.mxu0 0.0
    %596 = vmatprep.subr.mxu0 0.0
    %597 = vmatpush1.msra.mxu0 0.0
    %598 = vmatprep.subr.mxu0 0.0
    %599 = vmatpush1.msra.mxu0 0.0
    %600 = vmatprep.subr.mxu0 0.0
    %601 = vmatpush1.msra.mxu0 0.0
    %602 = vmatprep.subr.mxu0 0.0
    %603 = vmatpush1.msra.mxu0 0.0
    %604 = vmatprep.subr.mxu0 0.0
    %605 = vmatpush1.msra.mxu0 0.0
    %606 = vmatprep.subr.mxu0 0.0
    %607 = vmatpush1.msra.mxu0 0.0
    %608 = vmatprep.mubr.f32.mxu0 0.0
    %609 = vmatmul.mubr.f32.gmra.mrb[0].mxu0 %v455
    %v610 = vpop.f32.mrb[0].mxu0
    %v611 = vadd.f32 %v527, %v610
    %v612 = vpop.f32.mrb[0].mxu0
    %v613 = vadd.f32 %v531, %v612
    %614 = vdwg.mxu0
    %615 = vmatprep.subr.mxu0 %v461
    %616 = vmatpush1.msra.mxu0 %v460
    %617 = vmatprep.subr.mxu0 %v465
    %618 = vmatpush1.msra.mxu0 %v464
    %619 = vmatprep.subr.mxu0 %v469
    %620 = vmatpush1.msra.mxu0 %v468
    %621 = vmatprep.subr.mxu0 %v473
    %622 = vmatpush1.msra.mxu0 %v472
    %623 = vmatprep.subr.mxu0 %v477
    %624 = vmatpush1.msra.mxu0 %v476
    %625 = vmatprep.subr.mxu0 %v481
    %626 = vmatpush1.msra.mxu0 %v480
    %627 = vmatprep.subr.mxu0 %v485
    %628 = vmatpush1.msra.mxu0 %v484
    %629 = vmatprep.subr.mxu0 %v489
    %630 = vmatpush1.msra.mxu0 %v488
    %631 = vmatprep.subr.mxu0 %v493
    %632 = vmatpush1.msra.mxu0 %v492
    %633 = vmatprep.subr.mxu0 %v497
    %634 = vmatpush1.msra.mxu0 %v496
    %635 = vmatprep.subr.mxu0 %v501
    %636 = vmatpush1.msra.mxu0 %v500
    %637 = vmatprep.subr.mxu0 %v505
    %638 = vmatpush1.msra.mxu0 %v504
    %639 = vmatprep.subr.mxu0 %v509
    %640 = vmatpush1.msra.mxu0 %v508
    %641 = vmatprep.subr.mxu0 %v513
    %642 = vmatpush1.msra.mxu0 %v512
    %643 = vmatprep.subr.mxu0 %v517
    %644 = vmatpush1.msra.mxu0 %v516
    %645 = vmatprep.subr.mxu0 %v521
    %646 = vmatpush1.msra.mxu0 %v520
    %647 = vmatprep.subr.mxu0 0.0
    %648 = vmatpush1.msra.mxu0 0.0
    %649 = vmatprep.subr.mxu0 0.0
    %650 = vmatpush1.msra.mxu0 0.0
    %651 = vmatprep.subr.mxu0 0.0
    %652 = vmatpush1.msra.mxu0 0.0
    %653 = vmatprep.subr.mxu0 0.0
    %654 = vmatpush1.msra.mxu0 0.0
    %655 = vmatprep.subr.mxu0 0.0
    %656 = vmatpush1.msra.mxu0 0.0
    %657 = vmatprep.subr.mxu0 0.0
    %658 = vmatpush1.msra.mxu0 0.0
    %659 = vmatprep.subr.mxu0 0.0
    %660 = vmatpush1.msra.mxu0 0.0
    %661 = vmatprep.subr.mxu0 0.0
    %662 = vmatpush1.msra.mxu0 0.0
    %663 = vmatprep.subr.mxu0 0.0
    %664 = vmatpush1.msra.mxu0 0.0
    %665 = vmatprep.subr.mxu0 0.0
    %666 = vmatpush1.msra.mxu0 0.0
    %667 = vmatprep.subr.mxu0 0.0
    %668 = vmatpush1.msra.mxu0 0.0
    %669 = vmatprep.subr.mxu0 0.0
    %670 = vmatpush1.msra.mxu0 0.0
    %671 = vmatprep.subr.mxu0 0.0
    %672 = vmatpush1.msra.mxu0 0.0
    %673 = vmatprep.subr.mxu0 0.0
    %674 = vmatpush1.msra.mxu0 0.0
    %675 = vmatprep.subr.mxu0 0.0
    %676 = vmatpush1.msra.mxu0 0.0
    %677 = vmatprep.subr.mxu0 0.0
    %678 = vmatpush1.msra.mxu0 0.0
    %679 = vmatprep.mubr.f32.mxu0 0.0
    %680 = vmatmul.mubr.f32.gmra.mrb[0].mxu0 %v455
    %v681 = vpop.f32.mrb[0].mxu0
    %v682 = vadd.f32 %v535, %v681
    %v683 = vpop.f32.mrb[0].mxu0
    %v684 = vadd.f32 %v539, %v683
    %685 = vdwg.mxu0
    %v690 = vcombine.low %v611, %v613
    %v691 = vcombine.low %v682, %v684
    %v693 = vunpack.c.l.s4 1983009808
    %v694 = vunpack.c.0.s8 %v693
    %v695 = vlaneseq
    %v696 = vshrl.u32 %v695, 7
    %v697 = vsub.s32 %v694, %v696
    %v698 = vrot.slane %v690, %v697
    %v700 = vunpack.c.l.s4 1983009808
    %v701 = vunpack.c.0.s8 %v700
    %v702 = vlaneseq
    %v703 = vshrl.u32 %v702, 7
    %v704 = vsub.s32 %v701, %v703
    %v705 = vrot.slane %v691, %v704
    %v706 = vcombine.low %v698, %v705
    %708 = vst [vmem:[%s11] sm:$0xff] %v706
    // Predicated region
    $region42: #{encoder_forward.2} parent=1 // pred_check
      _
    $region43: #{encoder_forward.2} parent=1 // pred_check_branch
      %710 = sbr.rel (0) target = $region45
    $region44: #{encoder_forward.2} parent=1 // pred_region
      _
    $region45: #{encoder_forward.2} parent=1 // pred_fallthru
      _
    // Predicated region
    $region46: #{encoder_forward.2} parent=1 // pred_check
      _
    $region47: #{encoder_forward.2} parent=1 // pred_check_branch
      %712 = sbr.rel (0) target = $region49
    $region48: #{encoder_forward.2} parent=1 // pred_region
      _
    $region49: #{encoder_forward.2} parent=1 // pred_fallthru
      _
    // Predicated region
    $region50: #{encoder_forward.2} parent=1 // pred_check
      _
    $region51: #{encoder_forward.2} parent=1 // pred_check_branch
      %714 = sbr.rel (0) target = $region53
    $region52: #{encoder_forward.2} parent=1 // pred_region
      _
    $region53: #{encoder_forward.2} parent=1 // pred_fallthru
      _
    // Predicated region
    $region54: #{encoder_forward.2} parent=1 // pred_check
      _
    $region55: #{encoder_forward.2} parent=1 // pred_check_branch
      %716 = sbr.rel (0) target = $region57
    $region56: #{encoder_forward.2} parent=1 // pred_region
      _
    $region57: #{encoder_forward.2} parent=1 // pred_fallthru
      _
    // Predicated region
    $region58: #{encoder_forward.2} parent=1 // pred_check
      _
    $region59: #{encoder_forward.2} parent=1 // pred_check_branch
      %718 = sbr.rel (0) target = $region61
    $region60: #{encoder_forward.2} parent=1 // pred_region
      _
    $region61: #{encoder_forward.2} parent=1 // pred_fallthru
      _
    // Predicated region
    $region62: #{encoder_forward.2} parent=1 // pred_check
      _
    $region63: #{encoder_forward.2} parent=1 // pred_check_branch
      %720 = sbr.rel (0) target = $region65
    $region64: #{encoder_forward.2} parent=1 // pred_region
      _
    $region65: #{encoder_forward.2} parent=1 // pred_fallthru
      _
    %721 = vsyncpa [#allocation3], 1

// kernel: encoder_forward.3
$region0: #{encoder_forward.3}
  #allocation0 [shape = 'u32[]', space=smem, size = 0x4, offset = 0x4, fixed_abs, tag = 'smem constant byte address 0x4 - core index']
  #allocation1 [shape = 'u32[144,128]{1,0:T(1,128)}', space=vmem, size = 0x12000, scoped, tag = 'internal scratch']
  %s0 = inlined_call_operand.vmem [shape: f32[32,128], index: 0, kind: input, shape index: {}]
  %s1 = inlined_call_operand.vmem [shape: f32[2,1,128], index: 1, kind: input, shape index: {}]
  %s2 = inlined_call_operand.vmem [shape: f32[2,1,128], index: 2, kind: input, shape index: {}]
  %s3 = inlined_call_operand.vmem [shape: bf16[2,4,128,32], index: 3, kind: input, shape index: {}]
  %s4 = inlined_call_operand.vmem [shape: bf16[2,4,128,32], index: 4, kind: input, shape index: {}]
  %s5 = inlined_call_operand.vmem [shape: bf16[2,4,128,32], index: 5, kind: input, shape index: {}]
  %s6 = inlined_call_operand.vmem [shape: bf16[2,4,32,128], index: 6, kind: input, shape index: {}]
  %s7 = inlined_call_operand.vmem [shape: f32[2,1,128], index: 7, kind: input, shape index: {}]
  %s8 = inlined_call_operand.vmem [shape: f32[2,1,128], index: 8, kind: input, shape index: {}]
  %s9 = inlined_call_operand.vmem [shape: f32[2,1,128], index: 9, kind: input, shape index: {}]
  %s10 = inlined_call_operand.vmem [shape: bf16[2,128,512], index: 10, kind: input, shape index: {}]
  %s11 = inlined_call_operand.vmem [shape: f32[2,1,512], index: 11, kind: input, shape index: {}]
  %s12 = inlined_call_operand.vmem [shape: bf16[2,512,128], index: 12, kind: input, shape index: {}]
  %s13 = inlined_call_operand.vmem [shape: f32[2,1,128], index: 13, kind: input, shape index: {}]
  %s14 = inlined_call_operand.vmem [shape: f32[1,128], index: 14, kind: input, shape index: {}]
  %s15 = inlined_call_operand.vmem [shape: f32[1,128], index: 15, kind: input, shape index: {}]
  %s16 = inlined_call_operand.hbm [shape: f32[32,128], index: 16, kind: output, shape index: {}]
  %s17 = sld [smem:[#allocation0]]
  $region109: #{encoder_forward.3} parent=0
    _
  %s19 = ssub.s32 1, %s17
  %s20 = scalar_select 0, %s19, %s17
  $region1: #{encoder_forward.3} parent=0
    #allocation2 [shape = 'u8[16384]{0}', space=vmem, size = 0x4000, scoped, tag = 'output window, operand 0, single buffered']
    #allocation3 [shape = 's32[2]{0}', space=sflag, size = 0x8, scoped, tag = 'scoped memory for encoder_forward.3']
    %21 = vsyncpa [#allocation3], 0
    loop: start=0, step=1, limit=4
    $region2: #{encoder_forward.3} parent=1 // loop_pre_header
      _
    $region3: #{encoder_forward.3} parent=1 // loop_header
      %s23 = sphi 0, %s27
      %p24 = scmp.ge.s32.totalorder %s23, 4
      %s31 = sphi 0, %s31
      %s33 = sphi 0, %s31
      %s34 = sphi 0, %s33
      %s48 = sphi 0, %s34
      %s54 = sphi 0, %s56
      %s57 = sphi 0, %s54
      %s58 = sphi 0, %s57
      %s74 = sphi 0, %s58
      %s80 = sphi 0, %s82
      %s83 = sphi 0, %s80
      %s84 = sphi 0, %s83
      %s100 = sphi 0, %s84
      %s106 = sphi 0, %s108
      %s109 = sphi 0, %s106
      %s110 = sphi 0, %s109
      %s126 = sphi 0, %s110
      %s132 = sphi 0, %s134
      %s135 = sphi 0, %s132
      %s136 = sphi 0, %s135
      %s152 = sphi 0, %s136
      %s158 = sphi 0, %s160
      %s161 = sphi 0, %s158
      %s162 = sphi 0, %s161
      %s178 = sphi 0, %s162
      %s184 = sphi 0, %s186
      %s187 = sphi 0, %s184
      %s188 = sphi 0, %s187
      %s204 = sphi 0, %s188
      %s210 = sphi 0, %s212
      %s213 = sphi 0, %s210
      %s214 = sphi 0, %s213
      %s230 = sphi 0, %s214
      %s236 = sphi 0, %s238
      %s239 = sphi 0, %s236
      %s240 = sphi 0, %s239
      %s256 = sphi 0, %s240
      %s262 = sphi 0, %s264
      %s265 = sphi 0, %s262
      %s266 = sphi 0, %s265
      %s282 = sphi 0, %s266
      %s288 = sphi 0, %s290
      %s291 = sphi 0, %s288
      %s292 = sphi 0, %s291
      %s308 = sphi 0, %s292
      %s314 = sphi 0, %s316
      %s317 = sphi 0, %s314
      %s318 = sphi 0, %s317
      %s334 = sphi 0, %s318
      %s340 = sphi 0, %s342
      %s343 = sphi 0, %s340
      %s344 = sphi 0, %s343
      %s360 = sphi 0, %s344
      %s366 = sphi 0, %s368
      %s369 = sphi 0, %s366
      %s370 = sphi 0, %s369
      %s386 = sphi 0, %s370
      %s390 = sphi 0, %s390
      %s392 = sphi 0, %s390
      %s393 = sphi 0, %s392
      %s407 = sphi 0, %s393
      %s411 = sphi 0, %s411
      %s413 = sphi 0, %s411
      %s414 = sphi 0, %s413
      %s428 = sphi 0, %s414
      %s432 = sphi 0, %s432
      %s434 = sphi 0, %s432
      %s435 = sphi 0, %s434
      %s449 = sphi 0, %s435
    $region4: #{encoder_forward.3} parent=1 // loop_header_branch
      %26 = sbr.rel (%p24) target = $region8
    $region5: #{encoder_forward.3} parent=1 // loop_body
      %s28 = ssub.s32 %s23, 1
      %s29 = ssub.s32 %s23, 2
      %s30 = sadd.s32 %s23, 1
      %s32 = sadd.s32 %s31, 1
      %p35 = scmp.eq.s32.totalorder %s23, 1
      %p36 = scmp.ne.s32.totalorder %s31, %s33
      %p37 = scmp.eq.s32.totalorder %s23, 0
      %p38 = por %p36, %p37
      %p39 = scmp.ne.s32.totalorder %s31, %s33
      %p40 = scmp.eq.s32.totalorder %s28, 1
      %p41 = por %p39, %p40
      %p42 = scmp.ne.s32.totalorder %s33, %s34
      %p43 = scmp.eq.s32.totalorder %s28, 0
      %p44 = por %p42, %p43
      %p45 = scmp.ne.s32.totalorder %s33, %s34
      %p46 = scmp.eq.s32.totalorder %s29, 1
      %p47 = por %p45, %p46
      %p49 = scmp.ne.s32.totalorder %s34, %s48
      %p50 = scmp.eq.s32.totalorder %s29, 0
      %p51 = por %p49, %p50
      %s52 = ssub.s32 %s23, %s30
      %p53 = scmp.eq.s32.totalorder %s52, 0
      %s55 = sadd.s32 %s54, 1
      %s56 = scalar_select %p53, %s54, %s55
      %p59 = pneg %p53
      %p60 = scmp.eq.s32.totalorder %s23, 1
      %p61 = por %p59, %p60
      %p62 = scmp.ne.s32.totalorder %s54, %s57
      %p63 = scmp.eq.s32.totalorder %s23, 0
      %p64 = por %p62, %p63
      %p65 = scmp.ne.s32.totalorder %s54, %s57
      %p66 = scmp.eq.s32.totalorder %s28, 1
      %p67 = por %p65, %p66
      %p68 = scmp.ne.s32.totalorder %s57, %s58
      %p69 = scmp.eq.s32.totalorder %s28, 0
      %p70 = por %p68, %p69
      %p71 = scmp.ne.s32.totalorder %s57, %s58
      %p72 = scmp.eq.s32.totalorder %s29, 1
      %p73 = por %p71, %p72
      %p75 = scmp.ne.s32.totalorder %s58, %s74
      %p76 = scmp.eq.s32.totalorder %s29, 0
      %p77 = por %p75, %p76
      %s78 = ssub.s32 %s23, %s30
      %p79 = scmp.eq.s32.totalorder %s78, 0
      %s81 = sadd.s32 %s80, 1
      %s82 = scalar_select %p79, %s80, %s81
      %p85 = pneg %p79
      %p86 = scmp.eq.s32.totalorder %s23, 1
      %p87 = por %p85, %p86
      %p88 = scmp.ne.s32.totalorder %s80, %s83
      %p89 = scmp.eq.s32.totalorder %s23, 0
      %p90 = por %p88, %p89
      %p91 = scmp.ne.s32.totalorder %s80, %s83
      %p92 = scmp.eq.s32.totalorder %s28, 1
      %p93 = por %p91, %p92
      %p94 = scmp.ne.s32.totalorder %s83, %s84
      %p95 = scmp.eq.s32.totalorder %s28, 0
      %p96 = por %p94, %p95
      %p97 = scmp.ne.s32.totalorder %s83, %s84
      %p98 = scmp.eq.s32.totalorder %s29, 1
      %p99 = por %p97, %p98
      %p101 = scmp.ne.s32.totalorder %s84, %s100
      %p102 = scmp.eq.s32.totalorder %s29, 0
      %p103 = por %p101, %p102
      %s104 = ssub.s32 %s23, %s30
      %p105 = scmp.eq.s32.totalorder %s104, 0
      %s107 = sadd.s32 %s106, 1
      %s108 = scalar_select %p105, %s106, %s107
      %p111 = pneg %p105
      %p112 = scmp.eq.s32.totalorder %s23, 1
      %p113 = por %p111, %p112
      %p114 = scmp.ne.s32.totalorder %s106, %s109
      %p115 = scmp.eq.s32.totalorder %s23, 0
      %p116 = por %p114, %p115
      %p117 = scmp.ne.s32.totalorder %s106, %s109
      %p118 = scmp.eq.s32.totalorder %s28, 1
      %p119 = por %p117, %p118
      %p120 = scmp.ne.s32.totalorder %s109, %s110
      %p121 = scmp.eq.s32.totalorder %s28, 0
      %p122 = por %p120, %p121
      %p123 = scmp.ne.s32.totalorder %s109, %s110
      %p124 = scmp.eq.s32.totalorder %s29, 1
      %p125 = por %p123, %p124
      %p127 = scmp.ne.s32.totalorder %s110, %s126
      %p128 = scmp.eq.s32.totalorder %s29, 0
      %p129 = por %p127, %p128
      %s130 = ssub.s32 %s23, %s30
      %p131 = scmp.eq.s32.totalorder %s130, 0
      %s133 = sadd.s32 %s132, 1
      %s134 = scalar_select %p131, %s132, %s133
      %p137 = pneg %p131
      %p138 = scmp.eq.s32.totalorder %s23, 1
      %p139 = por %p137, %p138
      %p140 = scmp.ne.s32.totalorder %s132, %s135
      %p141 = scmp.eq.s32.totalorder %s23, 0
      %p142 = por %p140, %p141
      %p143 = scmp.ne.s32.totalorder %s132, %s135
      %p144 = scmp.eq.s32.totalorder %s28, 1
      %p145 = por %p143, %p144
      %p146 = scmp.ne.s32.totalorder %s135, %s136
      %p147 = scmp.eq.s32.totalorder %s28, 0
      %p148 = por %p146, %p147
      %p149 = scmp.ne.s32.totalorder %s135, %s136
      %p150 = scmp.eq.s32.totalorder %s29, 1
      %p151 = por %p149, %p150
      %p153 = scmp.ne.s32.totalorder %s136, %s152
      %p154 = scmp.eq.s32.totalorder %s29, 0
      %p155 = por %p153, %p154
      %s156 = ssub.s32 %s23, %s30
      %p157 = scmp.eq.s32.totalorder %s156, 0
      %s159 = sadd.s32 %s158, 1
      %s160 = scalar_select %p157, %s158, %s159
      %p163 = pneg %p157
      %p164 = scmp.eq.s32.totalorder %s23, 1
      %p165 = por %p163, %p164
      %p166 = scmp.ne.s32.totalorder %s158, %s161
      %p167 = scmp.eq.s32.totalorder %s23, 0
      %p168 = por %p166, %p167
      %p169 = scmp.ne.s32.totalorder %s158, %s161
      %p170 = scmp.eq.s32.totalorder %s28, 1
      %p171 = por %p169, %p170
      %p172 = scmp.ne.s32.totalorder %s161, %s162
      %p173 = scmp.eq.s32.totalorder %s28, 0
      %p174 = por %p172, %p173
      %p175 = scmp.ne.s32.totalorder %s161, %s162
      %p176 = scmp.eq.s32.totalorder %s29, 1
      %p177 = por %p175, %p176
      %p179 = scmp.ne.s32.totalorder %s162, %s178
      %p180 = scmp.eq.s32.totalorder %s29, 0
      %p181 = por %p179, %p180
      %s182 = ssub.s32 %s23, %s30
      %p183 = scmp.eq.s32.totalorder %s182, 0
      %s185 = sadd.s32 %s184, 1
      %s186 = scalar_select %p183, %s184, %s185
      %p189 = pneg %p183
      %p190 = scmp.eq.s32.totalorder %s23, 1
      %p191 = por %p189, %p190
      %p192 = scmp.ne.s32.totalorder %s184, %s187
      %p193 = scmp.eq.s32.totalorder %s23, 0
      %p194 = por %p192, %p193
      %p195 = scmp.ne.s32.totalorder %s184, %s187
      %p196 = scmp.eq.s32.totalorder %s28, 1
      %p197 = por %p195, %p196
      %p198 = scmp.ne.s32.totalorder %s187, %s188
      %p199 = scmp.eq.s32.totalorder %s28, 0
      %p200 = por %p198, %p199
      %p201 = scmp.ne.s32.totalorder %s187, %s188
      %p202 = scmp.eq.s32.totalorder %s29, 1
      %p203 = por %p201, %p202
      %p205 = scmp.ne.s32.totalorder %s188, %s204
      %p206 = scmp.eq.s32.totalorder %s29, 0
      %p207 = por %p205, %p206
      %s208 = ssub.s32 %s23, %s30
      %p209 = scmp.eq.s32.totalorder %s208, 0
      %s211 = sadd.s32 %s210, 1
      %s212 = scalar_select %p209, %s210, %s211
      %p215 = pneg %p209
      %p216 = scmp.eq.s32.totalorder %s23, 1
      %p217 = por %p215, %p216
      %p218 = scmp.ne.s32.totalorder %s210, %s213
      %p219 = scmp.eq.s32.totalorder %s23, 0
      %p220 = por %p218, %p219
      %p221 = scmp.ne.s32.totalorder %s210, %s213
      %p222 = scmp.eq.s32.totalorder %s28, 1
      %p223 = por %p221, %p222
      %p224 = scmp.ne.s32.totalorder %s213, %s214
      %p225 = scmp.eq.s32.totalorder %s28, 0
      %p226 = por %p224, %p225
      %p227 = scmp.ne.s32.totalorder %s213, %s214
      %p228 = scmp.eq.s32.totalorder %s29, 1
      %p229 = por %p227, %p228
      %p231 = scmp.ne.s32.totalorder %s214, %s230
      %p232 = scmp.eq.s32.totalorder %s29, 0
      %p233 = por %p231, %p232
      %s234 = ssub.s32 %s23, %s30
      %p235 = scmp.eq.s32.totalorder %s234, 0
      %s237 = sadd.s32 %s236, 1
      %s238 = scalar_select %p235, %s236, %s237
      %p241 = pneg %p235
      %p242 = scmp.eq.s32.totalorder %s23, 1
      %p243 = por %p241, %p242
      %p244 = scmp.ne.s32.totalorder %s236, %s239
      %p245 = scmp.eq.s32.totalorder %s23, 0
      %p246 = por %p244, %p245
      %p247 = scmp.ne.s32.totalorder %s236, %s239
      %p248 = scmp.eq.s32.totalorder %s28, 1
      %p249 = por %p247, %p248
      %p250 = scmp.ne.s32.totalorder %s239, %s240
      %p251 = scmp.eq.s32.totalorder %s28, 0
      %p252 = por %p250, %p251
      %p253 = scmp.ne.s32.totalorder %s239, %s240
      %p254 = scmp.eq.s32.totalorder %s29, 1
      %p255 = por %p253, %p254
      %p257 = scmp.ne.s32.totalorder %s240, %s256
      %p258 = scmp.eq.s32.totalorder %s29, 0
      %p259 = por %p257, %p258
      %s260 = ssub.s32 %s23, %s30
      %p261 = scmp.eq.s32.totalorder %s260, 0
      %s263 = sadd.s32 %s262, 1
      %s264 = scalar_select %p261, %s262, %s263
      %p267 = pneg %p261
      %p268 = scmp.eq.s32.totalorder %s23, 1
      %p269 = por %p267, %p268
      %p270 = scmp.ne.s32.totalorder %s262, %s265
      %p271 = scmp.eq.s32.totalorder %s23, 0
      %p272 = por %p270, %p271
      %p273 = scmp.ne.s32.totalorder %s262, %s265
      %p274 = scmp.eq.s32.totalorder %s28, 1
      %p275 = por %p273, %p274
      %p276 = scmp.ne.s32.totalorder %s265, %s266
      %p277 = scmp.eq.s32.totalorder %s28, 0
      %p278 = por %p276, %p277
      %p279 = scmp.ne.s32.totalorder %s265, %s266
      %p280 = scmp.eq.s32.totalorder %s29, 1
      %p281 = por %p279, %p280
      %p283 = scmp.ne.s32.totalorder %s266, %s282
      %p284 = scmp.eq.s32.totalorder %s29, 0
      %p285 = por %p283, %p284
      %s286 = ssub.s32 %s23, %s30
      %p287 = scmp.eq.s32.totalorder %s286, 0
      %s289 = sadd.s32 %s288, 1
      %s290 = scalar_select %p287, %s288, %s289
      %p293 = pneg %p287
      %p294 = scmp.eq.s32.totalorder %s23, 1
      %p295 = por %p293, %p294
      %p296 = scmp.ne.s32.totalorder %s288, %s291
      %p297 = scmp.eq.s32.totalorder %s23, 0
      %p298 = por %p296, %p297
      %p299 = scmp.ne.s32.totalorder %s288, %s291
      %p300 = scmp.eq.s32.totalorder %s28, 1
      %p301 = por %p299, %p300
      %p302 = scmp.ne.s32.totalorder %s291, %s292
      %p303 = scmp.eq.s32.totalorder %s28, 0
      %p304 = por %p302, %p303
      %p305 = scmp.ne.s32.totalorder %s291, %s292
      %p306 = scmp.eq.s32.totalorder %s29, 1
      %p307 = por %p305, %p306
      %p309 = scmp.ne.s32.totalorder %s292, %s308
      %p310 = scmp.eq.s32.totalorder %s29, 0
      %p311 = por %p309, %p310
      %s312 = ssub.s32 %s23, %s30
      %p313 = scmp.eq.s32.totalorder %s312, 0
      %s315 = sadd.s32 %s314, 1
      %s316 = scalar_select %p313, %s314, %s315
      %p319 = pneg %p313
      %p320 = scmp.eq.s32.totalorder %s23, 1
      %p321 = por %p319, %p320
      %p322 = scmp.ne.s32.totalorder %s314, %s317
      %p323 = scmp.eq.s32.totalorder %s23, 0
      %p324 = por %p322, %p323
      %p325 = scmp.ne.s32.totalorder %s314, %s317
      %p326 = scmp.eq.s32.totalorder %s28, 1
      %p327 = por %p325, %p326
      %p328 = scmp.ne.s32.totalorder %s317, %s318
      %p329 = scmp.eq.s32.totalorder %s28, 0
      %p330 = por %p328, %p329
      %p331 = scmp.ne.s32.totalorder %s317, %s318
      %p332 = scmp.eq.s32.totalorder %s29, 1
      %p333 = por %p331, %p332
      %p335 = scmp.ne.s32.totalorder %s318, %s334
      %p336 = scmp.eq.s32.totalorder %s29, 0
      %p337 = por %p335, %p336
      %s338 = ssub.s32 %s23, %s30
      %p339 = scmp.eq.s32.totalorder %s338, 0
      %s341 = sadd.s32 %s340, 1
      %s342 = scalar_select %p339, %s340, %s341
      %p345 = pneg %p339
      %p346 = scmp.eq.s32.totalorder %s23, 1
      %p347 = por %p345, %p346
      %p348 = scmp.ne.s32.totalorder %s340, %s343
      %p349 = scmp.eq.s32.totalorder %s23, 0
      %p350 = por %p348, %p349
      %p351 = scmp.ne.s32.totalorder %s340, %s343
      %p352 = scmp.eq.s32.totalorder %s28, 1
      %p353 = por %p351, %p352
      %p354 = scmp.ne.s32.totalorder %s343, %s344
      %p355 = scmp.eq.s32.totalorder %s28, 0
      %p356 = por %p354, %p355
      %p357 = scmp.ne.s32.totalorder %s343, %s344
      %p358 = scmp.eq.s32.totalorder %s29, 1
      %p359 = por %p357, %p358
      %p361 = scmp.ne.s32.totalorder %s344, %s360
      %p362 = scmp.eq.s32.totalorder %s29, 0
      %p363 = por %p361, %p362
      %s364 = ssub.s32 %s23, %s30
      %p365 = scmp.eq.s32.totalorder %s364, 0
      %s367 = sadd.s32 %s366, 1
      %s368 = scalar_select %p365, %s366, %s367
      %p371 = pneg %p365
      %p372 = scmp.eq.s32.totalorder %s23, 1
      %p373 = por %p371, %p372
      %p374 = scmp.ne.s32.totalorder %s366, %s369
      %p375 = scmp.eq.s32.totalorder %s23, 0
      %p376 = por %p374, %p375
      %p377 = scmp.ne.s32.totalorder %s366, %s369
      %p378 = scmp.eq.s32.totalorder %s28, 1
      %p379 = por %p377, %p378
      %p380 = scmp.ne.s32.totalorder %s369, %s370
      %p381 = scmp.eq.s32.totalorder %s28, 0
      %p382 = por %p380, %p381
      %p383 = scmp.ne.s32.totalorder %s369, %s370
      %p384 = scmp.eq.s32.totalorder %s29, 1
      %p385 = por %p383, %p384
      %p387 = scmp.ne.s32.totalorder %s370, %s386
      %p388 = scmp.eq.s32.totalorder %s29, 0
      %p389 = por %p387, %p388
      %s391 = sadd.s32 %s390, 1
      %p394 = scmp.eq.s32.totalorder %s23, 1
      %p395 = scmp.ne.s32.totalorder %s390, %s392
      %p396 = scmp.eq.s32.totalorder %s23, 0
      %p397 = por %p395, %p396
      %p398 = scmp.ne.s32.totalorder %s390, %s392
      %p399 = scmp.eq.s32.totalorder %s28, 1
      %p400 = por %p398, %p399
      %p401 = scmp.ne.s32.totalorder %s392, %s393
      %p402 = scmp.eq.s32.totalorder %s28, 0
      %p403 = por %p401, %p402
      %p404 = scmp.ne.s32.totalorder %s392, %s393
      %p405 = scmp.eq.s32.totalorder %s29, 1
      %p406 = por %p404, %p405
      %p408 = scmp.ne.s32.totalorder %s393, %s407
      %p409 = scmp.eq.s32.totalorder %s29, 0
      %p410 = por %p408, %p409
      %s412 = sadd.s32 %s411, 1
      %p415 = scmp.eq.s32.totalorder %s23, 1
      %p416 = scmp.ne.s32.totalorder %s411, %s413
      %p417 = scmp.eq.s32.totalorder %s23, 0
      %p418 = por %p416, %p417
      %p419 = scmp.ne.s32.totalorder %s411, %s413
      %p420 = scmp.eq.s32.totalorder %s28, 1
      %p421 = por %p419, %p420
      %p422 = scmp.ne.s32.totalorder %s413, %s414
      %p423 = scmp.eq.s32.totalorder %s28, 0
      %p424 = por %p422, %p423
      %p425 = scmp.ne.s32.totalorder %s413, %s414
      %p426 = scmp.eq.s32.totalorder %s29, 1
      %p427 = por %p425, %p426
      %p429 = scmp.ne.s32.totalorder %s414, %s428
      %p430 = scmp.eq.s32.totalorder %s29, 0
      %p431 = por %p429, %p430
      %s433 = sadd.s32 %s432, 1
      %p436 = scmp.eq.s32.totalorder %s23, 1
      %p437 = scmp.ne.s32.totalorder %s432, %s434
      %p438 = scmp.eq.s32.totalorder %s23, 0
      %p439 = por %p437, %p438
      %p440 = scmp.ne.s32.totalorder %s432, %s434
      %p441 = scmp.eq.s32.totalorder %s28, 1
      %p442 = por %p440, %p441
      %p443 = scmp.ne.s32.totalorder %s434, %s435
      %p444 = scmp.eq.s32.totalorder %s28, 0
      %p445 = por %p443, %p444
      %p446 = scmp.ne.s32.totalorder %s434, %s435
      %p447 = scmp.eq.s32.totalorder %s29, 1
      %p448 = por %p446, %p447
      %p450 = scmp.ne.s32.totalorder %s435, %s449
      %p451 = scmp.eq.s32.totalorder %s29, 0
      %p452 = por %p450, %p451
      %p453 = scmp.le.s32.totalorder 1, %s23
      %p454 = scmp.lt.s32.totalorder %s23, 3
      %p455 = pnand %p453, %p454
      %p456 = pneg %p455
      // Predicated region
      $region9: #{encoder_forward.3} parent=5 // pred_check
        _
      $region10: #{encoder_forward.3} parent=5 // pred_check_branch
        %458 = sbr.rel (%p455) target = $region12
      $region11: #{encoder_forward.3} parent=5 // pred_region
        %s459 = ssub.s32 %s23, 1
        // Predicated region
        $region13: #{encoder_forward.3} parent=11 // pred_check
          %p460 = pneg %p44
        $region14: #{encoder_forward.3} parent=11 // pred_check_branch
          %462 = sbr.rel (%p460) target = $region16
        $region15: #{encoder_forward.3} parent=11 // pred_region
          _
        $region16: #{encoder_forward.3} parent=11 // pred_fallthru
          _
        // Predicated region
        $region17: #{encoder_forward.3} parent=11 // pred_check
          %p463 = pneg %p403
        $region18: #{encoder_forward.3} parent=11 // pred_check_branch
          %465 = sbr.rel (%p463) target = $region20
        $region19: #{encoder_forward.3} parent=11 // pred_region
          _
        $region20: #{encoder_forward.3} parent=11 // pred_fallthru
          _
        // Predicated region
        $region21: #{encoder_forward.3} parent=11 // pred_check
          %p466 = pneg %p424
        $region22: #{encoder_forward.3} parent=11 // pred_check_branch
          %468 = sbr.rel (%p466) target = $region24
        $region23: #{encoder_forward.3} parent=11 // pred_region
          _
        $region24: #{encoder_forward.3} parent=11 // pred_fallthru
          _
      $region12: #{encoder_forward.3} parent=5 // pred_fallthru
        _
      %p469 = scmp.lt.s32.totalorder %s23, 2
      // Predicated region
      $region25: #{encoder_forward.3} parent=5 // pred_check
        %p470 = pneg %p469
      $region26: #{encoder_forward.3} parent=5 // pred_check_branch
        %472 = sbr.rel (%p470) target = $region28
      $region27: #{encoder_forward.3} parent=5 // pred_region
        // Predicated region
        $region29: #{encoder_forward.3} parent=27 // pred_check
          %p473 = pneg %p64
        $region30: #{encoder_forward.3} parent=27 // pred_check_branch
          %475 = sbr.rel (%p473) target = $region32
        $region31: #{encoder_forward.3} parent=27 // pred_region
          %p476 = scmp.lt.s32.totalorder %s23, 1
          %s477 = scalar_select %p476, %s23, 1
          %s478 = scalar_lea.vmem %s1, %s477
        $region32: #{encoder_forward.3} parent=27 // pred_fallthru
          _
        // Predicated region
        $region33: #{encoder_forward.3} parent=27 // pred_check
          %p479 = pneg %p90
        $region34: #{encoder_forward.3} parent=27 // pred_check_branch
          %481 = sbr.rel (%p479) target = $region36
        $region35: #{encoder_forward.3} parent=27 // pred_region
          %p482 = scmp.lt.s32.totalorder %s23, 1
          %s483 = scalar_select %p482, %s23, 1
          %s484 = scalar_lea.vmem %s2, %s483
        $region36: #{encoder_forward.3} parent=27 // pred_fallthru
          _
        // Predicated region
        $region37: #{encoder_forward.3} parent=27 // pred_check
          %p485 = pneg %p116
        $region38: #{encoder_forward.3} parent=27 // pred_check_branch
          %487 = sbr.rel (%p485) target = $region40
        $region39: #{encoder_forward.3} parent=27 // pred_region
          %p488 = scmp.lt.s32.totalorder %s23, 1
          %s489 = scalar_select %p488, %s23, 1
          %s490 = smul.addr %s489, 64
          %s491 = smul.addr %s490, 4
          %s492 = scalar_lea.vmem %s3, %s491
        $region40: #{encoder_forward.3} parent=27 // pred_fallthru
          _
        // Predicated region
        $region41: #{encoder_forward.3} parent=27 // pred_check
          %p493 = pneg %p142
        $region42: #{encoder_forward.3} parent=27 // pred_check_branch
          %495 = sbr.rel (%p493) target = $region44
        $region43: #{encoder_forward.3} parent=27 // pred_region
          %p496 = scmp.lt.s32.totalorder %s23, 1
          %s497 = scalar_select %p496, %s23, 1
          %s498 = smul.addr %s497, 64
          %s499 = smul.addr %s498, 4
          %s500 = scalar_lea.vmem %s4, %s499
        $region44: #{encoder_forward.3} parent=27 // pred_fallthru
          _
        // Predicated region
        $region45: #{encoder_forward.3} parent=27 // pred_check
          %p501 = pneg %p168
        $region46: #{encoder_forward.3} parent=27 // pred_check_branch
          %503 = sbr.rel (%p501) target = $region48
        $region47: #{encoder_forward.3} parent=27 // pred_region
          %p504 = scmp.lt.s32.totalorder %s23, 1
          %s505 = scalar_select %p504, %s23, 1
          %s506 = smul.addr %s505, 64
          %s507 = smul.addr %s506, 4
          %s508 = scalar_lea.vmem %s5, %s507
        $region48: #{encoder_forward.3} parent=27 // pred_fallthru
          _
        // Predicated region
        $region49: #{encoder_forward.3} parent=27 // pred_check
          %p509 = pneg %p194
        $region50: #{encoder_forward.3} parent=27 // pred_check_branch
          %511 = sbr.rel (%p509) target = $region52
        $region51: #{encoder_forward.3} parent=27 // pred_region
          %p512 = scmp.lt.s32.totalorder %s23, 1
          %s513 = scalar_select %p512, %s23, 1
          %s514 = smul.addr %s513, 16
          %s515 = smul.addr %s514, 4
          %s516 = scalar_lea.vmem %s6, %s515
        $region52: #{encoder_forward.3} parent=27 // pred_fallthru
          _
        // Predicated region
        $region53: #{encoder_forward.3} parent=27 // pred_check
          %p517 = pneg %p220
        $region54: #{encoder_forward.3} parent=27 // pred_check_branch
          %519 = sbr.rel (%p517) target = $region56
        $region55: #{encoder_forward.3} parent=27 // pred_region
          %p520 = scmp.lt.s32.totalorder %s23, 1
          %s521 = scalar_select %p520, %s23, 1
          %s522 = scalar_lea.vmem %s7, %s521
        $region56: #{encoder_forward.3} parent=27 // pred_fallthru
          _
        // Predicated region
        $region57: #{encoder_forward.3} parent=27 // pred_check
          %p523 = pneg %p246
        $region58: #{encoder_forward.3} parent=27 // pred_check_branch
          %525 = sbr.rel (%p523) target = $region60
        $region59: #{encoder_forward.3} parent=27 // pred_region
          %p526 = scmp.lt.s32.totalorder %s23, 1
          %s527 = scalar_select %p526, %s23, 1
          %s528 = scalar_lea.vmem %s8, %s527
        $region60: #{encoder_forward.3} parent=27 // pred_fallthru
          _
        // Predicated region
        $region61: #{encoder_forward.3} parent=27 // pred_check
          %p529 = pneg %p272
        $region62: #{encoder_forward.3} parent=27 // pred_check_branch
          %531 = sbr.rel (%p529) target = $region64
        $region63: #{encoder_forward.3} parent=27 // pred_region
          %p532 = scmp.lt.s32.totalorder %s23, 1
          %s533 = scalar_select %p532, %s23, 1
          %s534 = scalar_lea.vmem %s9, %s533
        $region64: #{encoder_forward.3} parent=27 // pred_fallthru
          _
        // Predicated region
        $region65: #{encoder_forward.3} parent=27 // pred_check
          %p535 = pneg %p298
        $region66: #{encoder_forward.3} parent=27 // pred_check_branch
          %537 = sbr.rel (%p535) target = $region68
        $region67: #{encoder_forward.3} parent=27 // pred_region
          %p538 = scmp.lt.s32.totalorder %s23, 1
          %s539 = scalar_select %p538, %s23, 1
          %s540 = smul.addr %s539, 64
          %s541 = smul.addr %s540, 4
          %s542 = scalar_lea.vmem %s10, %s541
        $region68: #{encoder_forward.3} parent=27 // pred_fallthru
          _
        // Predicated region
        $region69: #{encoder_forward.3} parent=27 // pred_check
          %p543 = pneg %p324
        $region70: #{encoder_forward.3} parent=27 // pred_check_branch
          %545 = sbr.rel (%p543) target = $region72
        $region71: #{encoder_forward.3} parent=27 // pred_region
          %p546 = scmp.lt.s32.totalorder %s23, 1
          %s547 = scalar_select %p546, %s23, 1
          %s548 = smul.addr %s547, 4
          %s549 = scalar_lea.vmem %s11, %s548
        $region72: #{encoder_forward.3} parent=27 // pred_fallthru
          _
        // Predicated region
        $region73: #{encoder_forward.3} parent=27 // pred_check
          %p550 = pneg %p350
        $region74: #{encoder_forward.3} parent=27 // pred_check_branch
          %552 = sbr.rel (%p550) target = $region76
        $region75: #{encoder_forward.3} parent=27 // pred_region
          %p553 = scmp.lt.s32.totalorder %s23, 1
          %s554 = scalar_select %p553, %s23, 1
          %s555 = smul.addr %s554, 64
          %s556 = smul.addr %s555, 4
          %s557 = scalar_lea.vmem %s12, %s556
        $region76: #{encoder_forward.3} parent=27 // pred_fallthru
          _
        // Predicated region
        $region77: #{encoder_forward.3} parent=27 // pred_check
          %p558 = pneg %p376
        $region78: #{encoder_forward.3} parent=27 // pred_check_branch
          %560 = sbr.rel (%p558) target = $region80
        $region79: #{encoder_forward.3} parent=27 // pred_region
          %p561 = scmp.lt.s32.totalorder %s23, 1
          %s562 = scalar_select %p561, %s23, 1
          %s563 = scalar_lea.vmem %s13, %s562
        $region80: #{encoder_forward.3} parent=27 // pred_fallthru
          _
      $region28: #{encoder_forward.3} parent=5 // pred_fallthru
        _
      %p564 = scmp.le.s32.totalorder 1, %s23
      %p565 = scmp.lt.s32.totalorder %s23, 3
      %p566 = pnand %p564, %p565
      %p567 = pneg %p566
      // Predicated region
      $region81: #{encoder_forward.3} parent=5 // pred_check
        _
      $region82: #{encoder_forward.3} parent=5 // pred_check_branch
        %569 = sbr.rel (%p566) target = $region84
      $region83: #{encoder_forward.3} parent=5 // pred_region
        %s570 = ssub.s32 %s23, 1
        %p571 = pneg %p44
        %p572 = pneg %p41
        %p573 = scmp.lt.s32.totalorder %s28, 1
        %s574 = scalar_select %p573, %s28, 1
        %s575 = scalar_lea.vmem %s1, %s574
        %p576 = pneg %p70
        %p577 = pneg %p67
        %p578 = scmp.lt.s32.totalorder %s28, 1
        %s579 = scalar_select %p578, %s28, 1
        %s580 = scalar_lea.vmem %s2, %s579
        %p581 = pneg %p96
        %p582 = pneg %p93
        %p583 = scmp.lt.s32.totalorder %s28, 1
        %s584 = scalar_select %p583, %s28, 1
        %s585 = smul.addr %s584, 64
        %s586 = smul.addr %s585, 4
        %s587 = scalar_lea.vmem %s3, %s586
        %p588 = pneg %p122
        %p589 = pneg %p119
        %p590 = scmp.lt.s32.totalorder %s28, 1
        %s591 = scalar_select %p590, %s28, 1
        %s592 = smul.addr %s591, 64
        %s593 = smul.addr %s592, 4
        %s594 = scalar_lea.vmem %s4, %s593
        %p595 = pneg %p148
        %p596 = pneg %p145
        %p597 = scmp.lt.s32.totalorder %s28, 1
        %s598 = scalar_select %p597, %s28, 1
        %s599 = smul.addr %s598, 64
        %s600 = smul.addr %s599, 4
        %s601 = scalar_lea.vmem %s5, %s600
        %p602 = pneg %p174
        %p603 = pneg %p171
        %p604 = scmp.lt.s32.totalorder %s28, 1
        %s605 = scalar_select %p604, %s28, 1
        %s606 = smul.addr %s605, 16
        %s607 = smul.addr %s606, 4
        %s608 = scalar_lea.vmem %s6, %s607
        %p609 = pneg %p200
        %p610 = pneg %p197
        %p611 = scmp.lt.s32.totalorder %s28, 1
        %s612 = scalar_select %p611, %s28, 1
        %s613 = scalar_lea.vmem %s7, %s612
        %p614 = pneg %p226
        %p615 = pneg %p223
        %p616 = scmp.lt.s32.totalorder %s28, 1
        %s617 = scalar_select %p616, %s28, 1
        %s618 = scalar_lea.vmem %s8, %s617
        %p619 = pneg %p252
        %p620 = pneg %p249
        %p621 = scmp.lt.s32.totalorder %s28, 1
        %s622 = scalar_select %p621, %s28, 1
        %s623 = scalar_lea.vmem %s9, %s622
        %p624 = pneg %p278
        %p625 = pneg %p275
        %p626 = scmp.lt.s32.totalorder %s28, 1
        %s627 = scalar_select %p626, %s28, 1
        %s628 = smul.addr %s627, 64
        %s629 = smul.addr %s628, 4
        %s630 = scalar_lea.vmem %s10, %s629
        %p631 = pneg %p304
        %p632 = pneg %p301
        %p633 = scmp.lt.s32.totalorder %s28, 1
        %s634 = scalar_select %p633, %s28, 1
        %s635 = smul.addr %s634, 4
        %s636 = scalar_lea.vmem %s11, %s635
        %p637 = pneg %p330
        %p638 = pneg %p327
        %p639 = scmp.lt.s32.totalorder %s28, 1
        %s640 = scalar_select %p639, %s28, 1
        %s641 = smul.addr %s640, 64
        %s642 = smul.addr %s641, 4
        %s643 = scalar_lea.vmem %s12, %s642
        %p644 = pneg %p356
        %p645 = pneg %p353
        %p646 = scmp.lt.s32.totalorder %s28, 1
        %s647 = scalar_select %p646, %s28, 1
        %s648 = scalar_lea.vmem %s13, %s647
        %p649 = pneg %p382
        %p650 = pneg %p379
        %p651 = pneg %p403
        %p652 = pneg %p400
        %p653 = pneg %p424
        %p654 = pneg %p421
        %p655 = pneg %p445
        %p656 = pneg %p442
        %p657 = scmp.lt.s32.totalorder %s28, 1
        %s658 = scalar_select %p657, %s28, 1
        %s659 = scalar_lea.vmem %s1, %s658
        %p660 = scmp.lt.s32.totalorder %s28, 1
        %s661 = scalar_select %p660, %s28, 1
        %s662 = scalar_lea.vmem %s2, %s661
        %p663 = scmp.lt.s32.totalorder %s28, 1
        %s664 = scalar_select %p663, %s28, 1
        %s665 = smul.addr %s664, 64
        %s666 = smul.addr %s665, 4
        %s667 = scalar_lea.vmem %s3, %s666
        %p668 = scmp.lt.s32.totalorder %s28, 1
        %s669 = scalar_select %p668, %s28, 1
        %s670 = smul.addr %s669, 64
        %s671 = smul.addr %s670, 4
        %s672 = scalar_lea.vmem %s4, %s671
        %p673 = scmp.lt.s32.totalorder %s28, 1
        %s674 = scalar_select %p673, %s28, 1
        %s675 = smul.addr %s674, 64
        %s676 = smul.addr %s675, 4
        %s677 = scalar_lea.vmem %s5, %s676
        %p678 = scmp.lt.s32.totalorder %s28, 1
        %s679 = scalar_select %p678, %s28, 1
        %s680 = smul.addr %s679, 16
        %s681 = smul.addr %s680, 4
        %s682 = scalar_lea.vmem %s6, %s681
        %p683 = scmp.lt.s32.totalorder %s28, 1
        %s684 = scalar_select %p683, %s28, 1
        %s685 = scalar_lea.vmem %s7, %s684
        %p686 = scmp.lt.s32.totalorder %s28, 1
        %s687 = scalar_select %p686, %s28, 1
        %s688 = scalar_lea.vmem %s8, %s687
        %p689 = scmp.lt.s32.totalorder %s28, 1
        %s690 = scalar_select %p689, %s28, 1
        %s691 = scalar_lea.vmem %s9, %s690
        %p692 = scmp.lt.s32.totalorder %s28, 1
        %s693 = scalar_select %p692, %s28, 1
        %s694 = smul.addr %s693, 64
        %s695 = smul.addr %s694, 4
        %s696 = scalar_lea.vmem %s10, %s695
        %p697 = scmp.lt.s32.totalorder %s28, 1
        %s698 = scalar_select %p697, %s28, 1
        %s699 = smul.addr %s698, 4
        %s700 = scalar_lea.vmem %s11, %s699
        %p701 = scmp.lt.s32.totalorder %s28, 1
        %s702 = scalar_select %p701, %s28, 1
        %s703 = smul.addr %s702, 64
        %s704 = smul.addr %s703, 4
        %s705 = scalar_lea.vmem %s12, %s704
        %p706 = scmp.lt.s32.totalorder %s28, 1
        %s707 = scalar_select %p706, %s28, 1
        %s708 = scalar_lea.vmem %s13, %s707
        %p710 = scmp.eq.s32.totalorder %s28, 0
        // Predicated region
        $region85: #{encoder_forward.3} parent=83 // pred_check
          %p711 = pneg %p710
        $region86: #{encoder_forward.3} parent=83 // pred_check_branch
          %713 = sbr.rel (%p711) target = $region88
        $region87: #{encoder_forward.3} parent=83 // pred_region
          %v714 = vld [vmem:[%s0] sm:$0xff]
          %v715 = vld [vmem:[%s0 + $0x8] sm:$0xff]
          %v716 = vld [vmem:[%s0 + $0x10] sm:$0xff]
          %v717 = vld [vmem:[%s0 + $0x18] sm:$0xff]
          %718 = vst [vmem:[#allocation2] sm:$0xff] %v714
          %719 = vst [vmem:[#allocation2 + $0x8] sm:$0xff] %v715
          %720 = vst [vmem:[#allocation2 + $0x10] sm:$0xff] %v716
          %721 = vst [vmem:[#allocation2 + $0x18] sm:$0xff] %v717
        $region88: #{encoder_forward.3} parent=83 // pred_fallthru
          _
        %v722 = vld [vmem:[#allocation2] sm:$0xff]
        %v723 = vld [vmem:[#allocation2 + $0x8] sm:$0xff]
        %v724 = vld [vmem:[#allocation2 + $0x10] sm:$0xff]
        %v725 = vld [vmem:[#allocation2 + $0x18] sm:$0xff]
        %v726 = vld [vmem:[%s659] sm:$0x1]
        %v727 = vld [vmem:[%s662] sm:$0x1]
        %728 = vadd.xlane.f32.xlu0 %v722
        %v729 = vpop.xlane.xlu0 %728
        %730 = vadd.xlane.f32.xlu0 %v723
        %v731 = vpop.xlane.xlu0 %730
        %732 = vadd.xlane.f32.xlu0 %v724
        %v733 = vpop.xlane.xlu0 %732
        %734 = vadd.xlane.f32.xlu0 %v725
        %v735 = vpop.xlane.xlu0 %734
        %v736 = vrcp.pop 128.0
        %v737 = vmul.f32 %v729, %v736
        %v738 = vmul.f32 %v731, %v736
        %v739 = vmul.f32 %v733, %v736
        %v740 = vmul.f32 %v735, %v736
        %v741 = vsub.f32 %v722, %v737
        %v742 = vsub.f32 %v723, %v738
        %v743 = vsub.f32 %v724, %v739
        %v744 = vsub.f32 %v725, %v740
        %v745 = vmul.f32 %v741, %v741
        %v746 = vmul.f32 %v742, %v742
        %v747 = vmul.f32 %v743, %v743
        %v748 = vmul.f32 %v744, %v744
        %749 = vadd.xlane.f32.xlu0 %v745
        %v750 = vpop.xlane.xlu0 %749
        %751 = vadd.xlane.f32.xlu0 %v746
        %v752 = vpop.xlane.xlu0 %751
        %753 = vadd.xlane.f32.xlu0 %v747
        %v754 = vpop.xlane.xlu0 %753
        %755 = vadd.xlane.f32.xlu0 %v748
        %v756 = vpop.xlane.xlu0 %755
        %v757 = vmul.f32 %v750, %v736
        %v758 = vmul.f32 %v752, %v736
        %v759 = vmul.f32 %v754, %v736
        %v760 = vmul.f32 %v756, %v736
        %v761 = vadd.f32 %v757, 1e-05
        %v762 = vadd.f32 %v758, 1e-05
        %v763 = vadd.f32 %v759, 1e-05
        %v764 = vadd.f32 %v760, 1e-05
        %v765 = vrsqrt.pop %v761
        %v766 = vrsqrt.pop %v762
        %v767 = vrsqrt.pop %v763
        %v768 = vrsqrt.pop %v764
        %v769 = vmul.f32 %v741, %v765
        %v770 = vmul.f32 %v742, %v766
        %v771 = vmul.f32 %v743, %v767
        %v772 = vmul.f32 %v744, %v768
        %v774 = vlaneseq
        %v775 = vshrl.u32 %v774, 7
        %v776 = vsub.s32 0, %v775
        %v777 = vrot.slane %v726, %v776
        %v779 = vmul.f32 %v769, %v777
        %v780 = vmul.f32 %v770, %v777
        %v781 = vmul.f32 %v771, %v777
        %v782 = vmul.f32 %v772, %v777
        %v784 = vlaneseq
        %v785 = vshrl.u32 %v784, 7
        %v786 = vsub.s32 0, %v785
        %v787 = vrot.slane %v727, %v786
        %v789 = vadd.f32 %v779, %v787
        %v790 = vadd.f32 %v780, %v787
        %v791 = vadd.f32 %v781, %v787
        %v792 = vadd.f32 %v782, %v787
        %v793 = vpack.c.bf16 %v790, %v789
        %v794 = vpack.c.bf16 %v792, %v791
        %v795 = vld [vmem:[%s667] sm:$0xf]
        %v796 = vld [vmem:[%s667 + $0x4] sm:$0xf]
        %v797 = vld [vmem:[%s667 + $0x8] sm:$0xf]
        %v798 = vld [vmem:[%s667 + $0xc] sm:$0xf]
        %v799 = vld [vmem:[%s667 + $0x10] sm:$0xf]
        %v800 = vld [vmem:[%s667 + $0x14] sm:$0xf]
        %v801 = vld [vmem:[%s667 + $0x18] sm:$0xf]
        %v802 = vld [vmem:[%s667 + $0x1c] sm:$0xf]
        %v803 = vld [vmem:[%s667 + $0x20] sm:$0xf]
        %v804 = vld [vmem:[%s667 + $0x24] sm:$0xf]
        %v805 = vld [vmem:[%s667 + $0x28] sm:$0xf]
        %v806 = vld [vmem:[%s667 + $0x2c] sm:$0xf]
        %v807 = vld [vmem:[%s667 + $0x30] sm:$0xf]
        %v808 = vld [vmem:[%s667 + $0x34] sm:$0xf]
        %v809 = vld [vmem:[%s667 + $0x38] sm:$0xf]
        %v810 = vld [vmem:[%s667 + $0x3c] sm:$0xf]
        %v827 = vunpack.c.l.b16 %v795
        %v828 = vunpack.c.l.b16 %v796
        %v829 = vunpack.c.l.b16 %v797
        %v830 = vunpack.c.l.b16 %v798
        %v831 = vunpack.c.l.b16 %v799
        %v832 = vunpack.c.l.b16 %v800
        %v833 = vunpack.c.l.b16 %v801
        %v834 = vunpack.c.l.b16 %v802
        %v835 = vunpack.c.l.b16 %v803
        %v836 = vunpack.c.l.b16 %v804
        %v837 = vunpack.c.l.b16 %v805
        %v838 = vunpack.c.l.b16 %v806
        %v839 = vunpack.c.l.b16 %v807
        %v840 = vunpack.c.l.b16 %v808
        %v841 = vunpack.c.l.b16 %v809
        %v842 = vunpack.c.l.b16 %v810
        %v843 = vpack.c.b16 %v828, %v827
        %v844 = vpack.c.b16 %v830, %v829
        %v845 = vpack.c.b16 %v832, %v831
        %v846 = vpack.c.b16 %v834, %v833
        %v847 = vpack.c.b16 %v836, %v835
        %v848 = vpack.c.b16 %v838, %v837
        %v849 = vpack.c.b16 %v840, %v839
        %v850 = vpack.c.b16 %v842, %v841
        %859 = vmatprep.subr.bf16.mxu0 0
        %860 = vmatpush1.bf16.msra.mxu0 %v843
        %861 = vmatprep.subr.bf16.mxu0 0
        %862 = vmatpush1.bf16.msra.mxu0 %v844
        %863 = vmatprep.subr.bf16.mxu0 0
        %864 = vmatpush1.bf16.msra.mxu0 %v845
        %865 = vmatprep.subr.bf16.mxu0 0
        %866 = vmatpush1.bf16.msra.mxu0 %v846
        %867 = vmatprep.subr.bf16.mxu0 0
        %868 = vmatpush1.bf16.msra.mxu0 %v847
        %869 = vmatprep.subr.bf16.mxu0 0
        %870 = vmatpush1.bf16.msra.mxu0 %v848
        %871 = vmatprep.subr.bf16.mxu0 0
        %872 = vmatpush1.bf16.msra.mxu0 %v849
        %873 = vmatprep.subr.bf16.mxu0 0
        %874 = vmatpush1.bf16.msra.mxu0 %v850
        %875 = vmatprep.subr.bf16.mxu0 0
        %876 = vmatpush1.bf16.msra.mxu0 0
        %877 = vmatprep.subr.bf16.mxu0 0
        %878 = vmatpush1.bf16.msra.mxu0 0
        %879 = vmatprep.subr.bf16.mxu0 0
        %880 = vmatpush1.bf16.msra.mxu0 0
        %881 = vmatprep.subr.bf16.mxu0 0
        %882 = vmatpush1.bf16.msra.mxu0 0
        %883 = vmatprep.subr.bf16.mxu0 0
        %884 = vmatpush1.bf16.msra.mxu0 0
        %885 = vmatprep.subr.bf16.mxu0 0
        %886 = vmatpush1.bf16.msra.mxu0 0
        %887 = vmatprep.subr.bf16.mxu0 0
        %888 = vmatpush1.bf16.msra.mxu0 0
        %889 = vmatprep.subr.bf16.mxu0 0
        %890 = vmatpush1.bf16.msra.mxu0 0
        %891 = vmatprep.mubr.bf16.mxu0 0
        %892 = vmatmul.mubr.bf16.gmra.mrb[0].mxu0 %v793
        %v893 = vpop.f32.mrb[0].mxu0
        %v894 = vadd.f32 0.0, %v893
        %v895 = vpop.f32.mrb[0].mxu0
        %v896 = vpop.f32.mrb[0].mxu0
        %v897 = vadd.f32 0.0, %v896
        %v898 = vpop.f32.mrb[0].mxu0
        %899 = vmatprep.mubr.bf16.mxu0 0
        %900 = vmatmul.mubr.bf16.gmra.mrb[0].mxu0 %v794
        %v901 = vpop.f32.mrb[0].mxu0
        %v902 = vadd.f32 0.0, %v901
        %v903 = vpop.f32.mrb[0].mxu0
        %v904 = vpop.f32.mrb[0].mxu0
        %v905 = vadd.f32 0.0, %v904
        %v906 = vpop.f32.mrb[0].mxu0
        %907 = vdwg.mxu0
        %v908 = vmul.f32 %v894, 0.17677669
        %v909 = vmul.f32 %v897, 0.17677669
        %v910 = vmul.f32 %v902, 0.17677669
        %v911 = vmul.f32 %v905, 0.17677669
        %v912 = vld [vmem:[%s672] sm:$0xf]
        %v913 = vld [vmem:[%s672 + $0x4] sm:$0xf]
        %v914 = vld [vmem:[%s672 + $0x8] sm:$0xf]
        %v915 = vld [vmem:[%s672 + $0xc] sm:$0xf]
        %v916 = vld [vmem:[%s672 + $0x10] sm:$0xf]
        %v917 = vld [vmem:[%s672 + $0x14] sm:$0xf]
        %v918 = vld [vmem:[%s672 + $0x18] sm:$0xf]
        %v919 = vld [vmem:[%s672 + $0x1c] sm:$0xf]
        %v920 = vld [vmem:[%s672 + $0x20] sm:$0xf]
        %v921 = vld [vmem:[%s672 + $0x24] sm:$0xf]
        %v922 = vld [vmem:[%s672 + $0x28] sm:$0xf]
        %v923 = vld [vmem:[%s672 + $0x2c] sm:$0xf]
        %v924 = vld [vmem:[%s672 + $0x30] sm:$0xf]
        %v925 = vld [vmem:[%s672 + $0x34] sm:$0xf]
        %v926 = vld [vmem:[%s672 + $0x38] sm:$0xf]
        %v927 = vld [vmem:[%s672 + $0x3c] sm:$0xf]
        %v944 = vunpack.c.l.b16 %v912
        %v945 = vunpack.c.l.b16 %v913
        %v946 = vunpack.c.l.b16 %v914
        %v947 = vunpack.c.l.b16 %v915
        %v948 = vunpack.c.l.b16 %v916
        %v949 = vunpack.c.l.b16 %v917
        %v950 = vunpack.c.l.b16 %v918
        %v951 = vunpack.c.l.b16 %v919
        %v952 = vunpack.c.l.b16 %v920
        %v953 = vunpack.c.l.b16 %v921
        %v954 = vunpack.c.l.b16 %v922
        %v955 = vunpack.c.l.b16 %v923
        %v956 = vunpack.c.l.b16 %v924
        %v957 = vunpack.c.l.b16 %v925
        %v958 = vunpack.c.l.b16 %v926
        %v959 = vunpack.c.l.b16 %v927
        %v960 = vpack.c.b16 %v945, %v944
        %v961 = vpack.c.b16 %v947, %v946
        %v962 = vpack.c.b16 %v949, %v948
        %v963 = vpack.c.b16 %v951, %v950
        %v964 = vpack.c.b16 %v953, %v952
        %v965 = vpack.c.b16 %v955, %v954
        %v966 = vpack.c.b16 %v957, %v956
        %v967 = vpack.c.b16 %v959, %v958
        %976 = vmatprep.subr.bf16.mxu0 0
        %977 = vmatpush1.bf16.msra.mxu0 %v960
        %978 = vmatprep.subr.bf16.mxu0 0
        %979 = vmatpush1.bf16.msra.mxu0 %v961
        %980 = vmatprep.subr.bf16.mxu0 0
        %981 = vmatpush1.bf16.msra.mxu0 %v962
        %982 = vmatprep.subr.bf16.mxu0 0
        %983 = vmatpush1.bf16.msra.mxu0 %v963
        %984 = vmatprep.subr.bf16.mxu0 0
        %985 = vmatpush1.bf16.msra.mxu0 %v964
        %986 = vmatprep.subr.bf16.mxu0 0
        %987 = vmatpush1.bf16.msra.mxu0 %v965
        %988 = vmatprep.subr.bf16.mxu0 0
        %989 = vmatpush1.bf16.msra.mxu0 %v966
        %990 = vmatprep.subr.bf16.mxu0 0
        %991 = vmatpush1.bf16.msra.mxu0 %v967
        %992 = vmatprep.subr.bf16.mxu0 0
        %993 = vmatpush1.bf16.msra.mxu0 0
        %994 = vmatprep.subr.bf16.mxu0 0
        %995 = vmatpush1.bf16.msra.mxu0 0
        %996 = vmatprep.subr.bf16.mxu0 0
        %997 = vmatpush1.bf16.msra.mxu0 0
        %998 = vmatprep.subr.bf16.mxu0 0
        %999 = vmatpush1.bf16.msra.mxu0 0
        %1000 = vmatprep.subr.bf16.mxu0 0
        %1001 = vmatpush1.bf16.msra.mxu0 0
        %1002 = vmatprep.subr.bf16.mxu0 0
        %1003 = vmatpush1.bf16.msra.mxu0 0
        %1004 = vmatprep.subr.bf16.mxu0 0
        %1005 = vmatpush1.bf16.msra.mxu0 0
        %1006 = vmatprep.subr.bf16.mxu0 0
        %1007 = vmatpush1.bf16.msra.mxu0 0
        %1008 = vmatprep.mubr.bf16.mxu0 0
        %1009 = vmatmul.mubr.bf16.gmra.mrb[0].mxu0 %v793
        %v1010 = vpop.f32.mrb[0].mxu0
        %v1011 = vadd.f32 0.0, %v1010
        %v1012 = vpop.f32.mrb[0].mxu0
        %v1013 = vpop.f32.mrb[0].mxu0
        %v1014 = vadd.f32 0.0, %v1013
        %v1015 = vpop.f32.mrb[0].mxu0
        %1016 = vmatprep.mubr.bf16.mxu0 0
        %1017 = vmatmul.mubr.bf16.gmra.mrb[0].mxu0 %v794
        %v1018 = vpop.f32.mrb[0].mxu0
        %v1019 = vadd.f32 0.0, %v1018
        %v1020 = vpop.f32.mrb[0].mxu0
        %v1021 = vpop.f32.mrb[0].mxu0
        %v1022 = vadd.f32 0.0, %v1021
        %v1023 = vpop.f32.mrb[0].mxu0
        %1024 = vdwg.mxu0
        %v1025 = vld [vmem:[%s677] sm:$0xf]
        %v1026 = vld [vmem:[%s677 + $0x4] sm:$0xf]
        %v1027 = vld [vmem:[%s677 + $0x8] sm:$0xf]
        %v1028 = vld [vmem:[%s677 + $0xc] sm:$0xf]
        %v1029 = vld [vmem:[%s677 + $0x10] sm:$0xf]
        %v1030 = vld [vmem:[%s677 + $0x14] sm:$0xf]
        %v1031 = vld [vmem:[%s677 + $0x18] sm:$0xf]
        %v1032 = vld [vmem:[%s677 + $0x1c] sm:$0xf]
        %v1033 = vld [vmem:[%s677 + $0x20] sm:$0xf]
        %v1034 = vld [vmem:[%s677 + $0x24] sm:$0xf]
        %v1035 = vld [vmem:[%s677 + $0x28] sm:$0xf]
        %v1036 = vld [vmem:[%s677 + $0x2c] sm:$0xf]
        %v1037 = vld [vmem:[%s677 + $0x30] sm:$0xf]
        %v1038 = vld [vmem:[%s677 + $0x34] sm:$0xf]
        %v1039 = vld [vmem:[%s677 + $0x38] sm:$0xf]
        %v1040 = vld [vmem:[%s677 + $0x3c] sm:$0xf]
        %v1057 = vunpack.c.l.b16 %v1025
        %v1058 = vunpack.c.l.b16 %v1026
        %v1059 = vunpack.c.l.b16 %v1027
        %v1060 = vunpack.c.l.b16 %v1028
        %v1061 = vunpack.c.l.b16 %v1029
        %v1062 = vunpack.c.l.b16 %v1030
        %v1063 = vunpack.c.l.b16 %v1031
        %v1064 = vunpack.c.l.b16 %v1032
        %v1065 = vunpack.c.l.b16 %v1033
        %v1066 = vunpack.c.l.b16 %v1034
        %v1067 = vunpack.c.l.b16 %v1035
        %v1068 = vunpack.c.l.b16 %v1036
        %v1069 = vunpack.c.l.b16 %v1037
        %v1070 = vunpack.c.l.b16 %v1038
        %v1071 = vunpack.c.l.b16 %v1039
        %v1072 = vunpack.c.l.b16 %v1040
        %v1073 = vpack.c.b16 %v1058, %v1057
        %v1074 = vpack.c.b16 %v1060, %v1059
        %v1075 = vpack.c.b16 %v1062, %v1061
        %v1076 = vpack.c.b16 %v1064, %v1063
        %v1077 = vpack.c.b16 %v1066, %v1065
        %v1078 = vpack.c.b16 %v1068, %v1067
        %v1079 = vpack.c.b16 %v1070, %v1069
        %v1080 = vpack.c.b16 %v1072, %v1071
        %1089 = vmatprep.subr.bf16.mxu0 0
        %1090 = vmatpush1.bf16.msra.mxu0 %v1073
        %1091 = vmatprep.subr.bf16.mxu0 0
        %1092 = vmatpush1.bf16.msra.mxu0 %v1074
        %1093 = vmatprep.subr.bf16.mxu0 0
        %1094 = vmatpush1.bf16.msra.mxu0 %v1075
        %1095 = vmatprep.subr.bf16.mxu0 0
        %1096 = vmatpush1.bf16.msra.mxu0 %v1076
        %1097 = vmatprep.subr.bf16.mxu0 0
        %1098 = vmatpush1.bf16.msra.mxu0 %v1077
        %1099 = vmatprep.subr.bf16.mxu0 0
        %1100 = vmatpush1.bf16.msra.mxu0 %v1078
        %1101 = vmatprep.subr.bf16.mxu0 0
        %1102 = vmatpush1.bf16.msra.mxu0 %v1079
        %1103 = vmatprep.subr.bf16.mxu0 0
        %1104 = vmatpush1.bf16.msra.mxu0 %v1080
        %1105 = vmatprep.subr.bf16.mxu0 0
        %1106 = vmatpush1.bf16.msra.mxu0 0
        %1107 = vmatprep.subr.bf16.mxu0 0
        %1108 = vmatpush1.bf16.msra.mxu0 0
        %1109 = vmatprep.subr.bf16.mxu0 0
        %1110 = vmatpush1.bf16.msra.mxu0 0
        %1111 = vmatprep.subr.bf16.mxu0 0
        %1112 = vmatpush1.bf16.msra.mxu0 0
        %1113 = vmatprep.subr.bf16.mxu0 0
        %1114 = vmatpush1.bf16.msra.mxu0 0
        %1115 = vmatprep.subr.bf16.mxu0 0
        %1116 = vmatpush1.bf16.msra.mxu0 0
        %1117 = vmatprep.subr.bf16.mxu0 0
        %1118 = vmatpush1.bf16.msra.mxu0 0
        %1119 = vmatprep.subr.bf16.mxu0 0
        %1120 = vmatpush1.bf16.msra.mxu0 0
        %1121 = vmatprep.mubr.bf16.mxu0 0
        %1122 = vmatmul.mubr.bf16.gmra.mrb[0].mxu0 %v793
        %v1123 = vpop.f32.mrb[0].mxu0
        %v1124 = vadd.f32 0.0, %v1123
        %v1125 = vpop.f32.mrb[0].mxu0
        %v1126 = vpop.f32.mrb[0].mxu0
        %v1127 = vadd.f32 0.0, %v1126
        %v1128 = vpop.f32.mrb[0].mxu0
        %1129 = vmatprep.mubr.bf16.mxu0 0
        %1130 = vmatmul.mubr.bf16.gmra.mrb[0].mxu0 %v794
        %v1131 = vpop.f32.mrb[0].mxu0
        %v1132 = vadd.f32 0.0, %v1131
        %v1133 = vpop.f32.mrb[0].mxu0
        %v1134 = vpop.f32.mrb[0].mxu0
        %v1135 = vadd.f32 0.0, %v1134
        %v1136 = vpop.f32.mrb[0].mxu0
        %1137 = vdwg.mxu0
        %vm1138 = vcmask 261120
        %v1140 = vsel %vm1138, %v908, 0
        %v1143 = vsel %vm1138, %v909, 0
        %v1146 = vsel %vm1138, %v1011, 0
        %v1149 = vsel %vm1138, %v1014, 0
        %1151 = vmatprep.subr.mxu0 0.0
        %1152 = vmatpush1.xpose.msra.mxu0 %v1146
        %1153 = vmatprep.subr.mxu0 0.0
        %1154 = vmatpush1.xpose.msra.mxu0 %v1149
        %1155 = vmatprep.subr.mxu0 0.0
        %1156 = vmatpush1.xpose.msra.mxu0 0.0
        %1157 = vmatprep.subr.mxu0 0.0
        %1158 = vmatpush1.xpose.msra.mxu0 0.0
        %1159 = vmatprep.subr.mxu0 0.0
        %1160 = vmatpush1.xpose.msra.mxu0 0.0
        %1161 = vmatprep.subr.mxu0 0.0
        %1162 = vmatpush1.xpose.msra.mxu0 0.0
        %1163 = vmatprep.subr.mxu0 0.0
        %1164 = vmatpush1.xpose.msra.mxu0 0.0
        %1165 = vmatprep.subr.mxu0 0.0
        %1166 = vmatpush1.xpose.msra.mxu0 0.0
        %1167 = vmatprep.subr.mxu0 0.0
        %1168 = vmatpush1.xpose.msra.mxu0 0.0
        %1169 = vmatprep.subr.mxu0 0.0
        %1170 = vmatpush1.xpose.msra.mxu0 0.0
        %1171 = vmatprep.subr.mxu0 0.0
        %1172 = vmatpush1.xpose.msra.mxu0 0.0
        %1173 = vmatprep.subr.mxu0 0.0
        %1174 = vmatpush1.xpose.msra.mxu0 0.0
        %1175 = vmatprep.subr.mxu0 0.0
        %1176 = vmatpush1.xpose.msra.mxu0 0.0
        %1177 = vmatprep.subr.mxu0 0.0
        %1178 = vmatpush1.xpose.msra.mxu0 0.0
        %1179 = vmatprep.subr.mxu0 0.0
        %1180 = vmatpush1.xpose.msra.mxu0 0.0
        %1181 = vmatprep.subr.mxu0 0.0
        %1182 = vmatpush1.xpose.msra.mxu0 0.0
        %1183 = vmatprep.subr.mxu0 0.0
        %1184 = vmatpush1.xpose.msra.mxu0 0.0
        %1185 = vmatprep.subr.mxu0 0.0
        %1186 = vmatpush1.xpose.msra.mxu0 0.0
        %1187 = vmatprep.subr.mxu0 0.0
        %1188 = vmatpush1.xpose.msra.mxu0 0.0
        %1189 = vmatprep.subr.mxu0 0.0
        %1190 = vmatpush1.xpose.msra.mxu0 0.0
        %1191 = vmatprep.subr.mxu0 0.0
        %1192 = vmatpush1.xpose.msra.mxu0 0.0
        %1193 = vmatprep.subr.mxu0 0.0
        %1194 = vmatpush1.xpose.msra.mxu0 0.0
        %1195 = vmatprep.subr.mxu0 0.0
        %1196 = vmatpush1.xpose.msra.mxu0 0.0
        %1197 = vmatprep.subr.mxu0 0.0
        %1198 = vmatpush1.xpose.msra.mxu0 0.0
        %1199 = vmatprep.subr.mxu0 0.0
        %1200 = vmatpush1.xpose.msra.mxu0 0.0
        %1201 = vmatprep.subr.mxu0 0.0
        %1202 = vmatpush1.xpose.msra.mxu0 0.0
        %1203 = vmatprep.subr.mxu0 0.0
        %1204 = vmatpush1.xpose.msra.mxu0 0.0
        %1205 = vmatprep.subr.mxu0 0.0
        %1206 = vmatpush1.xpose.msra.mxu0 0.0
        %1207 = vmatprep.subr.mxu0 0.0
        %1208 = vmatpush1.xpose.msra.mxu0 0.0
        %1209 = vmatprep.subr.mxu0 0.0
        %1210 = vmatpush1.xpose.msra.mxu0 0.0
        %1211 = vmatprep.subr.mxu0 0.0
        %1212 = vmatpush1.xpose.msra.mxu0 0.0
        %1213 = vmatprep.subr.mxu0 0.0
        %1214 = vmatpush1.xpose.msra.mxu0 0.0
        %1215 = vmatprep.mubr.f32.mxu0 0.0
        %1216 = vmatmul.mubr.f32.gmra.mrb[0].mxu0 %v1140
        %v1217 = vpop.f32.mrb[0].mxu0
        %v1218 = vadd.f32 0.0, %v1217
        %v1219 = vpop.f32.mrb[0].mxu0
        %1220 = vmatprep.mubr.f32.mxu0 0.0
        %1221 = vmatmul.mubr.f32.gmra.mrb[0].mxu0 %v1143
        %v1222 = vpop.f32.mrb[0].mxu0
        %v1223 = vadd.f32 0.0, %v1222
        %v1224 = vpop.f32.mrb[0].mxu0
        %1225 = vdwg.mxu0
        %v1227 = vsel %vm1138, %v910, 0
        %v1230 = vsel %vm1138, %v911, 0
        %v1233 = vsel %vm1138, %v1019, 0
        %v1236 = vsel %vm1138, %v1022, 0
        %1238 = vmatprep.subr.mxu0 0.0
        %1239 = vmatpush1.xpose.msra.mxu0 %v1233
        %1240 = vmatprep.subr.mxu0 0.0
        %1241 = vmatpush1.xpose.msra.mxu0 %v1236
        %1242 = vmatprep.subr.mxu0 0.0
        %1243 = vmatpush1.xpose.msra.mxu0 0.0
        %1244 = vmatprep.subr.mxu0 0.0
        %1245 = vmatpush1.xpose.msra.mxu0 0.0
        %1246 = vmatprep.subr.mxu0 0.0
        %1247 = vmatpush1.xpose.msra.mxu0 0.0
        %1248 = vmatprep.subr.mxu0 0.0
        %1249 = vmatpush1.xpose.msra.mxu0 0.0
        %1250 = vmatprep.subr.mxu0 0.0
        %1251 = vmatpush1.xpose.msra.mxu0 0.0
        %1252 = vmatprep.subr.mxu0 0.0
        %1253 = vmatpush1.xpose.msra.mxu0 0.0
        %1254 = vmatprep.subr.mxu0 0.0
        %1255 = vmatpush1.xpose.msra.mxu0 0.0
        %1256 = vmatprep.subr.mxu0 0.0
        %1257 = vmatpush1.xpose.msra.mxu0 0.0
        %1258 = vmatprep.subr.mxu0 0.0
        %1259 = vmatpush1.xpose.msra.mxu0 0.0
        %1260 = vmatprep.subr.mxu0 0.0
        %1261 = vmatpush1.xpose.msra.mxu0 0.0
        %1262 = vmatprep.subr.mxu0 0.0
        %1263 = vmatpush1.xpose.msra.mxu0 0.0
        %1264 = vmatprep.subr.mxu0 0.0
        %1265 = vmatpush1.xpose.msra.mxu0 0.0
        %1266 = vmatprep.subr.mxu0 0.0
        %1267 = vmatpush1.xpose.msra.mxu0 0.0
        %1268 = vmatprep.subr.mxu0 0.0
        %1269 = vmatpush1.xpose.msra.mxu0 0.0
        %1270 = vmatprep.subr.mxu0 0.0
        %1271 = vmatpush1.xpose.msra.mxu0 0.0
        %1272 = vmatprep.subr.mxu0 0.0
        %1273 = vmatpush1.xpose.msra.mxu0 0.0
        %1274 = vmatprep.subr.mxu0 0.0
        %1275 = vmatpush1.xpose.msra.mxu0 0.0
        %1276 = vmatprep.subr.mxu0 0.0
        %1277 = vmatpush1.xpose.msra.mxu0 0.0
        %1278 = vmatprep.subr.mxu0 0.0
        %1279 = vmatpush1.xpose.msra.mxu0 0.0
        %1280 = vmatprep.subr.mxu0 0.0
        %1281 = vmatpush1.xpose.msra.mxu0 0.0
        %1282 = vmatprep.subr.mxu0 0.0
        %1283 = vmatpush1.xpose.msra.mxu0 0.0
        %1284 = vmatprep.subr.mxu0 0.0
        %1285 = vmatpush1.xpose.msra.mxu0 0.0
        %1286 = vmatprep.subr.mxu0 0.0
        %1287 = vmatpush1.xpose.msra.mxu0 0.0
        %1288 = vmatprep.subr.mxu0 0.0
        %1289 = vmatpush1.xpose.msra.mxu0 0.0
        %1290 = vmatprep.subr.mxu0 0.0
        %1291 = vmatpush1.xpose.msra.mxu0 0.0
        %1292 = vmatprep.subr.mxu0 0.0
        %1293 = vmatpush1.xpose.msra.mxu0 0.0
        %1294 = vmatprep.subr.mxu0 0.0
        %1295 = vmatpush1.xpose.msra.mxu0 0.0
        %1296 = vmatprep.subr.mxu0 0.0
        %1297 = vmatpush1.xpose.msra.mxu0 0.0
        %1298 = vmatprep.subr.mxu0 0.0
        %1299 = vmatpush1.xpose.msra.mxu0 0.0
        %1300 = vmatprep.subr.mxu0 0.0
        %1301 = vmatpush1.xpose.msra.mxu0 0.0
        %1302 = vmatprep.mubr.f32.mxu0 0.0
        %1303 = vmatmul.mubr.f32.gmra.mrb[0].mxu0 %v1227
        %v1304 = vpop.f32.mrb[0].mxu0
        %v1305 = vadd.f32 0.0, %v1304
        %v1306 = vpop.f32.mrb[0].mxu0
        %1307 = vmatprep.mubr.f32.mxu0 0.0
        %1308 = vmatmul.mubr.f32.gmra.mrb[0].mxu0 %v1230
        %v1309 = vpop.f32.mrb[0].mxu0
        %v1310 = vadd.f32 0.0, %v1309
        %v1311 = vpop.f32.mrb[0].mxu0
        %1312 = vdwg.mxu0
        %vm1313 = vcmask 130048
        %v1314 = vsel %vm1313, %v1218, -inf
        %1315 = vmax.xlane.f32.xlu0 %v1314
        %v1316 = vpop.xlane.xlu0 %1315
        %v1317 = vsel %vm1313, %v1223, -inf
        %1318 = vmax.xlane.f32.xlu0 %v1317
        %v1319 = vpop.xlane.xlu0 %1318
        %v1320 = vsel %vm1313, %v1305, -inf
        %1321 = vmax.xlane.f32.xlu0 %v1320
        %v1322 = vpop.xlane.xlu0 %1321
        %v1323 = vsel %vm1313, %v1310, -inf
        %1324 = vmax.xlane.f32.xlu0 %v1323
        %v1325 = vpop.xlane.xlu0 %1324
        %v1326 = vsub.f32 %v1218, %v1316
        %v1327 = vsub.f32 %v1223, %v1319
        %v1328 = vsub.f32 %v1305, %v1322
        %v1329 = vsub.f32 %v1310, %v1325
        %v1330 = vmul.f32 %v1326, 1.442695
        %v1331 = vpow.pop %v1330
        %v1332 = vmul.f32 %v1327, 1.442695
        %v1333 = vpow.pop %v1332
        %v1334 = vmul.f32 %v1328, 1.442695
        %v1335 = vpow.pop %v1334
        %v1336 = vmul.f32 %v1329, 1.442695
        %v1337 = vpow.pop %v1336
        %v1338 = vsel %vm1313, %v1331, 0.0
        %1339 = vadd.xlane.f32.xlu0 %v1338
        %v1340 = vpop.xlane.xlu0 %1339
        %v1341 = vsel %vm1313, %v1333, 0.0
        %1342 = vadd.xlane.f32.xlu0 %v1341
        %v1343 = vpop.xlane.xlu0 %1342
        %v1344 = vsel %vm1313, %v1335, 0.0
        %1345 = vadd.xlane.f32.xlu0 %v1344
        %v1346 = vpop.xlane.xlu0 %1345
        %v1347 = vsel %vm1313, %v1337, 0.0
        %1348 = vadd.xlane.f32.xlu0 %v1347
        %v1349 = vpop.xlane.xlu0 %1348
        %v1350 = vrcp.pop %v1340
        %v1351 = vmul.f32 %v1331, %v1350
        %v1352 = vrcp.pop %v1343
        %v1353 = vmul.f32 %v1333, %v1352
        %v1354 = vrcp.pop %v1346
        %v1355 = vmul.f32 %v1335, %v1354
        %v1356 = vrcp.pop %v1349
        %v1357 = vmul.f32 %v1337, %v1356
        %v1359 = vsel %vm1313, %v1351, 0
        %v1362 = vsel %vm1313, %v1353, 0
        %1364 = vmatprep.subr.mxu0 0.0
        %1365 = vmatpush1.msra.mxu0 %v1124
        %1366 = vmatprep.subr.mxu0 0.0
        %1367 = vmatpush1.msra.mxu0 %v1127
        %1368 = vmatprep.subr.mxu0 0.0
        %1369 = vmatpush1.msra.mxu0 0.0
        %1370 = vmatprep.subr.mxu0 0.0
        %1371 = vmatpush1.msra.mxu0 0.0
        %1372 = vmatprep.subr.mxu0 0.0
        %1373 = vmatpush1.msra.mxu0 0.0
        %1374 = vmatprep.subr.mxu0 0.0
        %1375 = vmatpush1.msra.mxu0 0.0
        %1376 = vmatprep.subr.mxu0 0.0
        %1377 = vmatpush1.msra.mxu0 0.0
        %1378 = vmatprep.subr.mxu0 0.0
        %1379 = vmatpush1.msra.mxu0 0.0
        %1380 = vmatprep.subr.mxu0 0.0
        %1381 = vmatpush1.msra.mxu0 0.0
        %1382 = vmatprep.subr.mxu0 0.0
        %1383 = vmatpush1.msra.mxu0 0.0
        %1384 = vmatprep.subr.mxu0 0.0
        %1385 = vmatpush1.msra.mxu0 0.0
        %1386 = vmatprep.subr.mxu0 0.0
        %1387 = vmatpush1.msra.mxu0 0.0
        %1388 = vmatprep.subr.mxu0 0.0
        %1389 = vmatpush1.msra.mxu0 0.0
        %1390 = vmatprep.subr.mxu0 0.0
        %1391 = vmatpush1.msra.mxu0 0.0
        %1392 = vmatprep.subr.mxu0 0.0
        %1393 = vmatpush1.msra.mxu0 0.0
        %1394 = vmatprep.subr.mxu0 0.0
        %1395 = vmatpush1.msra.mxu0 0.0
        %1396 = vmatprep.subr.mxu0 0.0
        %1397 = vmatpush1.msra.mxu0 0.0
        %1398 = vmatprep.subr.mxu0 0.0
        %1399 = vmatpush1.msra.mxu0 0.0
        %1400 = vmatprep.subr.mxu0 0.0
        %1401 = vmatpush1.msra.mxu0 0.0
        %1402 = vmatprep.subr.mxu0 0.0
        %1403 = vmatpush1.msra.mxu0 0.0
        %1404 = vmatprep.subr.mxu0 0.0
        %1405 = vmatpush1.msra.mxu0 0.0
        %1406 = vmatprep.subr.mxu0 0.0
        %1407 = vmatpush1.msra.mxu0 0.0
        %1408 = vmatprep.subr.mxu0 0.0
        %1409 = vmatpush1.msra.mxu0 0.0
        %1410 = vmatprep.subr.mxu0 0.0
        %1411 = vmatpush1.msra.mxu0 0.0
        %1412 = vmatprep.subr.mxu0 0.0
        %1413 = vmatpush1.msra.mxu0 0.0
        %1414 = vmatprep.subr.mxu0 0.0
        %1415 = vmatpush1.msra.mxu0 0.0
        %1416 = vmatprep.subr.mxu0 0.0
        %1417 = vmatpush1.msra.mxu0 0.0
        %1418 = vmatprep.subr.mxu0 0.0
        %1419 = vmatpush1.msra.mxu0 0.0
        %1420 = vmatprep.subr.mxu0 0.0
        %1421 = vmatpush1.msra.mxu0 0.0
        %1422 = vmatprep.subr.mxu0 0.0
        %1423 = vmatpush1.msra.mxu0 0.0
        %1424 = vmatprep.subr.mxu0 0.0
        %1425 = vmatpush1.msra.mxu0 0.0
        %1426 = vmatprep.subr.mxu0 0.0
        %1427 = vmatpush1.msra.mxu0 0.0
        %1428 = vmatprep.mubr.f32.mxu0 0.0
        %1429 = vmatmul.mubr.f32.gmra.mrb[0].mxu0 %v1359
        %v1430 = vpop.f32.mrb[0].mxu0
        %v1431 = vadd.f32 0.0, %v1430
        %v1432 = vpop.f32.mrb[0].mxu0
        %1433 = vmatprep.mubr.f32.mxu0 0.0
        %1434 = vmatmul.mubr.f32.gmra.mrb[0].mxu0 %v1362
        %v1435 = vpop.f32.mrb[0].mxu0
        %v1436 = vadd.f32 0.0, %v1435
        %v1437 = vpop.f32.mrb[0].mxu0
        %1438 = vdwg.mxu0
        %v1440 = vsel %vm1313, %v1355, 0
        %v1443 = vsel %vm1313, %v1357, 0
        %1445 = vmatprep.subr.mxu0 0.0
        %1446 = vmatpush1.msra.mxu0 %v1132
        %1447 = vmatprep.subr.mxu0 0.0
        %1448 = vmatpush1.msra.mxu0 %v1135
        %1449 = vmatprep.subr.mxu0 0.0
        %1450 = vmatpush1.msra.mxu0 0.0
        %1451 = vmatprep.subr.mxu0 0.0
        %1452 = vmatpush1.msra.mxu0 0.0
        %1453 = vmatprep.subr.mxu0 0.0
        %1454 = vmatpush1.msra.mxu0 0.0
        %1455 = vmatprep.subr.mxu0 0.0
        %1456 = vmatpush1.msra.mxu0 0.0
        %1457 = vmatprep.subr.mxu0 0.0
        %1458 = vmatpush1.msra.mxu0 0.0
        %1459 = vmatprep.subr.mxu0 0.0
        %1460 = vmatpush1.msra.mxu0 0.0
        %1461 = vmatprep.subr.mxu0 0.0
        %1462 = vmatpush1.msra.mxu0 0.0
        %1463 = vmatprep.subr.mxu0 0.0
        %1464 = vmatpush1.msra.mxu0 0.0
        %1465 = vmatprep.subr.mxu0 0.0
        %1466 = vmatpush1.msra.mxu0 0.0
        %1467 = vmatprep.subr.mxu0 0.0
        %1468 = vmatpush1.msra.mxu0 0.0
        %1469 = vmatprep.subr.mxu0 0.0
        %1470 = vmatpush1.msra.mxu0 0.0
        %1471 = vmatprep.subr.mxu0 0.0
        %1472 = vmatpush1.msra.mxu0 0.0
        %1473 = vmatprep.subr.mxu0 0.0
        %1474 = vmatpush1.msra.mxu0 0.0
        %1475 = vmatprep.subr.mxu0 0.0
        %1476 = vmatpush1.msra.mxu0 0.0
        %1477 = vmatprep.subr.mxu0 0.0
        %1478 = vmatpush1.msra.mxu0 0.0
        %1479 = vmatprep.subr.mxu0 0.0
        %1480 = vmatpush1.msra.mxu0 0.0
        %1481 = vmatprep.subr.mxu0 0.0
        %1482 = vmatpush1.msra.mxu0 0.0
        %1483 = vmatprep.subr.mxu0 0.0
        %1484 = vmatpush1.msra.mxu0 0.0
        %1485 = vmatprep.subr.mxu0 0.0
        %1486 = vmatpush1.msra.mxu0 0.0
        %1487 = vmatprep.subr.mxu0 0.0
        %1488 = vmatpush1.msra.mxu0 0.0
        %1489 = vmatprep.subr.mxu0 0.0
        %1490 = vmatpush1.msra.mxu0 0.0
        %1491 = vmatprep.subr.mxu0 0.0
        %1492 = vmatpush1.msra.mxu0 0.0
        %1493 = vmatprep.subr.mxu0 0.0
        %1494 = vmatpush1.msra.mxu0 0.0
        %1495 = vmatprep.subr.mxu0 0.0
        %1496 = vmatpush1.msra.mxu0 0.0
        %1497 = vmatprep.subr.mxu0 0.0
        %1498 = vmatpush1.msra.mxu0 0.0
        %1499 = vmatprep.subr.mxu0 0.0
        %1500 = vmatpush1.msra.mxu0 0.0
        %1501 = vmatprep.subr.mxu0 0.0
        %1502 = vmatpush1.msra.mxu0 0.0
        %1503 = vmatprep.subr.mxu0 0.0
        %1504 = vmatpush1.msra.mxu0 0.0
        %1505 = vmatprep.subr.mxu0 0.0
        %1506 = vmatpush1.msra.mxu0 0.0
        %1507 = vmatprep.subr.mxu0 0.0
        %1508 = vmatpush1.msra.mxu0 0.0
        %1509 = vmatprep.mubr.f32.mxu0 0.0
        %1510 = vmatmul.mubr.f32.gmra.mrb[0].mxu0 %v1440
        %v1511 = vpop.f32.mrb[0].mxu0
        %v1512 = vadd.f32 0.0, %v1511
        %v1513 = vpop.f32.mrb[0].mxu0
        %1514 = vmatprep.mubr.f32.mxu0 0.0
        %1515 = vmatmul.mubr.f32.gmra.mrb[0].mxu0 %v1443
        %v1516 = vpop.f32.mrb[0].mxu0
        %v1517 = vadd.f32 0.0, %v1516
        %v1518 = vpop.f32.mrb[0].mxu0
        %1519 = vdwg.mxu0
        %v1520 = vpack.c.bf16 %v1436, %v1431
        %v1521 = vpack.c.bf16 %v1517, %v1512
        %v1522 = vld [vmem:[%s682] sm:$0xf]
        %v1523 = vld [vmem:[%s682 + $0x4] sm:$0xf]
        %v1524 = vld [vmem:[%s682 + $0x8] sm:$0xf]
        %v1525 = vld [vmem:[%s682 + $0xc] sm:$0xf]
        %s1526 = scalar_lea.vmem %s667, 64
        %v1527 = vld [vmem:[%s1526] sm:$0xf]
        %v1528 = vld [vmem:[%s1526 + $0x4] sm:$0xf]
        %v1529 = vld [vmem:[%s1526 + $0x8] sm:$0xf]
        %v1530 = vld [vmem:[%s1526 + $0xc] sm:$0xf]
        %v1531 = vld [vmem:[%s1526 + $0x10] sm:$0xf]
        %v1532 = vld [vmem:[%s1526 + $0x14] sm:$0xf]
        %v1533 = vld [vmem:[%s1526 + $0x18] sm:$0xf]
        %v1534 = vld [vmem:[%s1526 + $0x1c] sm:$0xf]
        %v1535 = vld [vmem:[%s1526 + $0x20] sm:$0xf]
        %v1536 = vld [vmem:[%s1526 + $0x24] sm:$0xf]
        %v1537 = vld [vmem:[%s1526 + $0x28] sm:$0xf]
        %v1538 = vld [vmem:[%s1526 + $0x2c] sm:$0xf]
        %v1539 = vld [vmem:[%s1526 + $0x30] sm:$0xf]
        %v1540 = vld [vmem:[%s1526 + $0x34] sm:$0xf]
        %v1541 = vld [vmem:[%s1526 + $0x38] sm:$0xf]
        %v1542 = vld [vmem:[%s1526 + $0x3c] sm:$0xf]
        %v1559 = vunpack.c.l.b16 %v1527
        %v1560 = vunpack.c.l.b16 %v1528
        %v1561 = vunpack.c.l.b16 %v1529
        %v1562 = vunpack.c.l.b16 %v1530
        %v1563 = vunpack.c.l.b16 %v1531
        %v1564 = vunpack.c.l.b16 %v1532
        %v1565 = vunpack.c.l.b16 %v1533
        %v1566 = vunpack.c.l.b16 %v1534
        %v1567 = vunpack.c.l.b16 %v1535
        %v1568 = vunpack.c.l.b16 %v1536
        %v1569 = vunpack.c.l.b16 %v1537
        %v1570 = vunpack.c.l.b16 %v1538
        %v1571 = vunpack.c.l.b16 %v1539
        %v1572 = vunpack.c.l.b16 %v1540
        %v1573 = vunpack.c.l.b16 %v1541
        %v1574 = vunpack.c.l.b16 %v1542
        %v1575 = vpack.c.b16 %v1560, %v1559
        %v1576 = vpack.c.b16 %v1562, %v1561
        %v1577 = vpack.c.b16 %v1564, %v1563
        %v1578 = vpack.c.b16 %v1566, %v1565
        %v1579 = vpack.c.b16 %v1568, %v1567
        %v1580 = vpack.c.b16 %v1570, %v1569
        %v1581 = vpack.c.b16 %v1572, %v1571
        %v1582 = vpack.c.b16 %v1574, %v1573
        %1591 = vmatprep.subr.bf16.mxu0 0
        %1592 = vmatpush1.bf16.msra.mxu0 %v1575
        %1593 = vmatprep.subr.bf16.mxu0 0
        %1594 = vmatpush1.bf16.msra.mxu0 %v1576
        %1595 = vmatprep.subr.bf16.mxu0 0
        %1596 = vmatpush1.bf16.msra.mxu0 %v1577
        %1597 = vmatprep.subr.bf16.mxu0 0
        %1598 = vmatpush1.bf16.msra.mxu0 %v1578
        %1599 = vmatprep.subr.bf16.mxu0 0
        %1600 = vmatpush1.bf16.msra.mxu0 %v1579
        %1601 = vmatprep.subr.bf16.mxu0 0
        %1602 = vmatpush1.bf16.msra.mxu0 %v1580
        %1603 = vmatprep.subr.bf16.mxu0 0
        %1604 = vmatpush1.bf16.msra.mxu0 %v1581
        %1605 = vmatprep.subr.bf16.mxu0 0
        %1606 = vmatpush1.bf16.msra.mxu0 %v1582
        %1607 = vmatprep.subr.bf16.mxu0 0
        %1608 = vmatpush1.bf16.msra.mxu0 0
        %1609 = vmatprep.subr.bf16.mxu0 0
        %1610 = vmatpush1.bf16.msra.mxu0 0
        %1611 = vmatprep.subr.bf16.mxu0 0
        %1612 = vmatpush1.bf16.msra.mxu0 0
        %1613 = vmatprep.subr.bf16.mxu0 0
        %1614 = vmatpush1.bf16.msra.mxu0 0
        %1615 = vmatprep.subr.bf16.mxu0 0
        %1616 = vmatpush1.bf16.msra.mxu0 0
        %1617 = vmatprep.subr.bf16.mxu0 0
        %1618 = vmatpush1.bf16.msra.mxu0 0
        %1619 = vmatprep.subr.bf16.mxu0 0
        %1620 = vmatpush1.bf16.msra.mxu0 0
        %1621 = vmatprep.subr.bf16.mxu0 0
        %1622 = vmatpush1.bf16.msra.mxu0 0
        %1623 = vmatprep.mubr.bf16.mxu0 0
        %1624 = vmatmul.mubr.bf16.gmra.mrb[0].mxu0 %v793
        %v1625 = vpop.f32.mrb[0].mxu0
        %v1626 = vadd.f32 0.0, %v1625
        %v1627 = vpop.f32.mrb[0].mxu0
        %v1628 = vpop.f32.mrb[0].mxu0
        %v1629 = vadd.f32 0.0, %v1628
        %v1630 = vpop.f32.mrb[0].mxu0
        %1631 = vmatprep.mubr.bf16.mxu0 0
        %1632 = vmatmul.mubr.bf16.gmra.mrb[0].mxu0 %v794
        %v1633 = vpop.f32.mrb[0].mxu0
        %v1634 = vadd.f32 0.0, %v1633
        %v1635 = vpop.f32.mrb[0].mxu0
        %v1636 = vpop.f32.mrb[0].mxu0
        %v1637 = vadd.f32 0.0, %v1636
        %v1638 = vpop.f32.mrb[0].mxu0
        %1639 = vdwg.mxu0
        %v1640 = vmul.f32 %v1626, 0.17677669
        %v1641 = vmul.f32 %v1629, 0.17677669
        %v1642 = vmul.f32 %v1634, 0.17677669
        %v1643 = vmul.f32 %v1637, 0.17677669
        %s1644 = scalar_lea.vmem %s672, 64
        %v1645 = vld [vmem:[%s1644] sm:$0xf]
        %v1646 = vld [vmem:[%s1644 + $0x4] sm:$0xf]
        %v1647 = vld [vmem:[%s1644 + $0x8] sm:$0xf]
        %v1648 = vld [vmem:[%s1644 + $0xc] sm:$0xf]
        %v1649 = vld [vmem:[%s1644 + $0x10] sm:$0xf]
        %v1650 = vld [vmem:[%s1644 + $0x14] sm:$0xf]
        %v1651 = vld [vmem:[%s1644 + $0x18] sm:$0xf]
        %v1652 = vld [vmem:[%s1644 + $0x1c] sm:$0xf]
        %v1653 = vld [vmem:[%s1644 + $0x20] sm:$0xf]
        %v1654 = vld [vmem:[%s1644 + $0x24] sm:$0xf]
        %v1655 = vld [vmem:[%s1644 + $0x28] sm:$0xf]
        %v1656 = vld [vmem:[%s1644 + $0x2c] sm:$0xf]
        %v1657 = vld [vmem:[%s1644 + $0x30] sm:$0xf]
        %v1658 = vld [vmem:[%s1644 + $0x34] sm:$0xf]
        %v1659 = vld [vmem:[%s1644 + $0x38] sm:$0xf]
        %v1660 = vld [vmem:[%s1644 + $0x3c] sm:$0xf]
        %v1677 = vunpack.c.l.b16 %v1645
        %v1678 = vunpack.c.l.b16 %v1646
        %v1679 = vunpack.c.l.b16 %v1647
        %v1680 = vunpack.c.l.b16 %v1648
        %v1681 = vunpack.c.l.b16 %v1649
        %v1682 = vunpack.c.l.b16 %v1650
        %v1683 = vunpack.c.l.b16 %v1651
        %v1684 = vunpack.c.l.b16 %v1652
        %v1685 = vunpack.c.l.b16 %v1653
        %v1686 = vunpack.c.l.b16 %v1654
        %v1687 = vunpack.c.l.b16 %v1655
        %v1688 = vunpack.c.l.b16 %v1656
        %v1689 = vunpack.c.l.b16 %v1657
        %v1690 = vunpack.c.l.b16 %v1658
        %v1691 = vunpack.c.l.b16 %v1659
        %v1692 = vunpack.c.l.b16 %v1660
        %v1693 = vpack.c.b16 %v1678, %v1677
        %v1694 = vpack.c.b16 %v1680, %v1679
        %v1695 = vpack.c.b16 %v1682, %v1681
        %v1696 = vpack.c.b16 %v1684, %v1683
        %v1697 = vpack.c.b16 %v1686, %v1685
        %v1698 = vpack.c.b16 %v1688, %v1687
        %v1699 = vpack.c.b16 %v1690, %v1689
        %v1700 = vpack.c.b16 %v1692, %v1691
        %1709 = vmatprep.subr.bf16.mxu0 0
        %1710 = vmatpush1.bf16.msra.mxu0 %v1693
        %1711 = vmatprep.subr.bf16.mxu0 0
        %1712 = vmatpush1.bf16.msra.mxu0 %v1694
        %1713 = vmatprep.subr.bf16.mxu0 0
        %1714 = vmatpush1.bf16.msra.mxu0 %v1695
        %1715 = vmatprep.subr.bf16.mxu0 0
        %1716 = vmatpush1.bf16.msra.mxu0 %v1696
        %1717 = vmatprep.subr.bf16.mxu0 0
        %1718 = vmatpush1.bf16.msra.mxu0 %v1697
        %1719 = vmatprep.subr.bf16.mxu0 0
        %1720 = vmatpush1.bf16.msra.mxu0 %v1698
        %1721 = vmatprep.subr.bf16.mxu0 0
        %1722 = vmatpush1.bf16.msra.mxu0 %v1699
        %1723 = vmatprep.subr.bf16.mxu0 0
        %1724 = vmatpush1.bf16.msra.mxu0 %v1700
        %1725 = vmatprep.subr.bf16.mxu0 0
        %1726 = vmatpush1.bf16.msra.mxu0 0
        %1727 = vmatprep.subr.bf16.mxu0 0
        %1728 = vmatpush1.bf16.msra.mxu0 0
        %1729 = vmatprep.subr.bf16.mxu0 0
        %1730 = vmatpush1.bf16.msra.mxu0 0
        %1731 = vmatprep.subr.bf16.mxu0 0
        %1732 = vmatpush1.bf16.msra.mxu0 0
        %1733 = vmatprep.subr.bf16.mxu0 0
        %1734 = vmatpush1.bf16.msra.mxu0 0
        %1735 = vmatprep.subr.bf16.mxu0 0
        %1736 = vmatpush1.bf16.msra.mxu0 0
        %1737 = vmatprep.subr.bf16.mxu0 0
        %1738 = vmatpush1.bf16.msra.mxu0 0
        %1739 = vmatprep.subr.bf16.mxu0 0
        %1740 = vmatpush1.bf16.msra.mxu0 0
        %1741 = vmatprep.mubr.bf16.mxu0 0
        %1742 = vmatmul.mubr.bf16.gmra.mrb[0].mxu0 %v793
        %v1743 = vpop.f32.mrb[0].mxu0
        %v1744 = vadd.f32 0.0, %v1743
        %v1745 = vpop.f32.mrb[0].mxu0
        %v1746 = vpop.f32.mrb[0].mxu0
        %v1747 = vadd.f32 0.0, %v1746
        %v1748 = vpop.f32.mrb[0].mxu0
        %1749 = vmatprep.mubr.bf16.mxu0 0
        %1750 = vmatmul.mubr.bf16.gmra.mrb[0].mxu0 %v794
        %v1751 = vpop.f32.mrb[0].mxu0
        %v1752 = vadd.f32 0.0, %v1751
        %v1753 = vpop.f32.mrb[0].mxu0
        %v1754 = vpop.f32.mrb[0].mxu0
        %v1755 = vadd.f32 0.0, %v1754
        %v1756 = vpop.f32.mrb[0].mxu0
        %1757 = vdwg.mxu0
        %s1758 = scalar_lea.vmem %s677, 64
        %v1759 = vld [vmem:[%s1758] sm:$0xf]
        %v1760 = vld [vmem:[%s1758 + $0x4] sm:$0xf]
        %v1761 = vld [vmem:[%s1758 + $0x8] sm:$0xf]
        %v1762 = vld [vmem:[%s1758 + $0xc] sm:$0xf]
        %v1763 = vld [vmem:[%s1758 + $0x10] sm:$0xf]
        %v1764 = vld [vmem:[%s1758 + $0x14] sm:$0xf]
        %v1765 = vld [vmem:[%s1758 + $0x18] sm:$0xf]
        %v1766 = vld [vmem:[%s1758 + $0x1c] sm:$0xf]
        %v1767 = vld [vmem:[%s1758 + $0x20] sm:$0xf]
        %v1768 = vld [vmem:[%s1758 + $0x24] sm:$0xf]
        %v1769 = vld [vmem:[%s1758 + $0x28] sm:$0xf]
        %v1770 = vld [vmem:[%s1758 + $0x2c] sm:$0xf]
        %v1771 = vld [vmem:[%s1758 + $0x30] sm:$0xf]
        %v1772 = vld [vmem:[%s1758 + $0x34] sm:$0xf]
        %v1773 = vld [vmem:[%s1758 + $0x38] sm:$0xf]
        %v1774 = vld [vmem:[%s1758 + $0x3c] sm:$0xf]
        %v1791 = vunpack.c.l.b16 %v1759
        %v1792 = vunpack.c.l.b16 %v1760
        %v1793 = vunpack.c.l.b16 %v1761
        %v1794 = vunpack.c.l.b16 %v1762
        %v1795 = vunpack.c.l.b16 %v1763
        %v1796 = vunpack.c.l.b16 %v1764
        %v1797 = vunpack.c.l.b16 %v1765
        %v1798 = vunpack.c.l.b16 %v1766
        %v1799 = vunpack.c.l.b16 %v1767
        %v1800 = vunpack.c.l.b16 %v1768
        %v1801 = vunpack.c.l.b16 %v1769
        %v1802 = vunpack.c.l.b16 %v1770
        %v1803 = vunpack.c.l.b16 %v1771
        %v1804 = vunpack.c.l.b16 %v1772
        %v1805 = vunpack.c.l.b16 %v1773
        %v1806 = vunpack.c.l.b16 %v1774
        %v1807 = vpack.c.b16 %v1792, %v1791
        %v1808 = vpack.c.b16 %v1794, %v1793
        %v1809 = vpack.c.b16 %v1796, %v1795
        %v1810 = vpack.c.b16 %v1798, %v1797
        %v1811 = vpack.c.b16 %v1800, %v1799
        %v1812 = vpack.c.b16 %v1802, %v1801
        %v1813 = vpack.c.b16 %v1804, %v1803
        %v1814 = vpack.c.b16 %v1806, %v1805
        %1823 = vmatprep.subr.bf16.mxu0 0
        %1824 = vmatpush1.bf16.msra.mxu0 %v1807
        %1825 = vmatprep.subr.bf16.mxu0 0
        %1826 = vmatpush1.bf16.msra.mxu0 %v1808
        %1827 = vmatprep.subr.bf16.mxu0 0
        %1828 = vmatpush1.bf16.msra.mxu0 %v1809
        %1829 = vmatprep.subr.bf16.mxu0 0
        %1830 = vmatpush1.bf16.msra.mxu0 %v1810
        %1831 = vmatprep.subr.bf16.mxu0 0
        %1832 = vmatpush1.bf16.msra.mxu0 %v1811
        %1833 = vmatprep.subr.bf16.mxu0 0
        %1834 = vmatpush1.bf16.msra.mxu0 %v1812
        %1835 = vmatprep.subr.bf16.mxu0 0
        %1836 = vmatpush1.bf16.msra.mxu0 %v1813
        %1837 = vmatprep.subr.bf16.mxu0 0
        %1838 = vmatpush1.bf16.msra.mxu0 %v1814
        %1839 = vmatprep.subr.bf16.mxu0 0
        %1840 = vmatpush1.bf16.msra.mxu0 0
        %1841 = vmatprep.subr.bf16.mxu0 0
        %1842 = vmatpush1.bf16.msra.mxu0 0
        %1843 = vmatprep.subr.bf16.mxu0 0
        %1844 = vmatpush1.bf16.msra.mxu0 0
        %1845 = vmatprep.subr.bf16.mxu0 0
        %1846 = vmatpush1.bf16.msra.mxu0 0
        %1847 = vmatprep.subr.bf16.mxu0 0
        %1848 = vmatpush1.bf16.msra.mxu0 0
        %1849 = vmatprep.subr.bf16.mxu0 0
        %1850 = vmatpush1.bf16.msra.mxu0 0
        %1851 = vmatprep.subr.bf16.mxu0 0
        %1852 = vmatpush1.bf16.msra.mxu0 0
        %1853 = vmatprep.subr.bf16.mxu0 0
        %1854 = vmatpush1.bf16.msra.mxu0 0
        %1855 = vmatprep.mubr.bf16.mxu0 0
        %1856 = vmatmul.mubr.bf16.gmra.mrb[0].mxu0 %v793
        %v1857 = vpop.f32.mrb[0].mxu0
        %v1858 = vadd.f32 0.0, %v1857
        %v1859 = vpop.f32.mrb[0].mxu0
        %v1860 = vpop.f32.mrb[0].mxu0
        %v1861 = vadd.f32 0.0, %v1860
        %v1862 = vpop.f32.mrb[0].mxu0
        %1863 = vmatprep.mubr.bf16.mxu0 0
        %1864 = vmatmul.mubr.bf16.gmra.mrb[0].mxu0 %v794
        %v1865 = vpop.f32.mrb[0].mxu0
        %v1866 = vadd.f32 0.0, %v1865
        %v1867 = vpop.f32.mrb[0].mxu0
        %v1868 = vpop.f32.mrb[0].mxu0
        %v1869 = vadd.f32 0.0, %v1868
        %v1870 = vpop.f32.mrb[0].mxu0
        %1871 = vdwg.mxu0
        %v1873 = vsel %vm1138, %v1640, 0
        %v1876 = vsel %vm1138, %v1641, 0
        %v1879 = vsel %vm1138, %v1744, 0
        %v1882 = vsel %vm1138, %v1747, 0
        %1884 = vmatprep.subr.mxu0 0.0
        %1885 = vmatpush1.xpose.msra.mxu0 %v1879
        %1886 = vmatprep.subr.mxu0 0.0
        %1887 = vmatpush1.xpose.msra.mxu0 %v1882
        %1888 = vmatprep.subr.mxu0 0.0
        %1889 = vmatpush1.xpose.msra.mxu0 0.0
        %1890 = vmatprep.subr.mxu0 0.0
        %1891 = vmatpush1.xpose.msra.mxu0 0.0
        %1892 = vmatprep.subr.mxu0 0.0
        %1893 = vmatpush1.xpose.msra.mxu0 0.0
        %1894 = vmatprep.subr.mxu0 0.0
        %1895 = vmatpush1.xpose.msra.mxu0 0.0
        %1896 = vmatprep.subr.mxu0 0.0
        %1897 = vmatpush1.xpose.msra.mxu0 0.0
        %1898 = vmatprep.subr.mxu0 0.0
        %1899 = vmatpush1.xpose.msra.mxu0 0.0
        %1900 = vmatprep.subr.mxu0 0.0
        %1901 = vmatpush1.xpose.msra.mxu0 0.0
        %1902 = vmatprep.subr.mxu0 0.0
        %1903 = vmatpush1.xpose.msra.mxu0 0.0
        %1904 = vmatprep.subr.mxu0 0.0
        %1905 = vmatpush1.xpose.msra.mxu0 0.0
        %1906 = vmatprep.subr.mxu0 0.0
        %1907 = vmatpush1.xpose.msra.mxu0 0.0
        %1908 = vmatprep.subr.mxu0 0.0
        %1909 = vmatpush1.xpose.msra.mxu0 0.0
        %1910 = vmatprep.subr.mxu0 0.0
        %1911 = vmatpush1.xpose.msra.mxu0 0.0
        %1912 = vmatprep.subr.mxu0 0.0
        %1913 = vmatpush1.xpose.msra.mxu0 0.0
        %1914 = vmatprep.subr.mxu0 0.0
        %1915 = vmatpush1.xpose.msra.mxu0 0.0
        %1916 = vmatprep.subr.mxu0 0.0
        %1917 = vmatpush1.xpose.msra.mxu0 0.0
        %1918 = vmatprep.subr.mxu0 0.0
        %1919 = vmatpush1.xpose.msra.mxu0 0.0
        %1920 = vmatprep.subr.mxu0 0.0
        %1921 = vmatpush1.xpose.msra.mxu0 0.0
        %1922 = vmatprep.subr.mxu0 0.0
        %1923 = vmatpush1.xpose.msra.mxu0 0.0
        %1924 = vmatprep.subr.mxu0 0.0
        %1925 = vmatpush1.xpose.msra.mxu0 0.0
        %1926 = vmatprep.subr.mxu0 0.0
        %1927 = vmatpush1.xpose.msra.mxu0 0.0
        %1928 = vmatprep.subr.mxu0 0.0
        %1929 = vmatpush1.xpose.msra.mxu0 0.0
        %1930 = vmatprep.subr.mxu0 0.0
        %1931 = vmatpush1.xpose.msra.mxu0 0.0
        %1932 = vmatprep.subr.mxu0 0.0
        %1933 = vmatpush1.xpose.msra.mxu0 0.0
        %1934 = vmatprep.subr.mxu0 0.0
        %1935 = vmatpush1.xpose.msra.mxu0 0.0
        %1936 = vmatprep.subr.mxu0 0.0
        %1937 = vmatpush1.xpose.msra.mxu0 0.0
        %1938 = vmatprep.subr.mxu0 0.0
        %1939 = vmatpush1.xpose.msra.mxu0 0.0
        %1940 = vmatprep.subr.mxu0 0.0
        %1941 = vmatpush1.xpose.msra.mxu0 0.0
        %1942 = vmatprep.subr.mxu0 0.0
        %1943 = vmatpush1.xpose.msra.mxu0 0.0
        %1944 = vmatprep.subr.mxu0 0.0
        %1945 = vmatpush1.xpose.msra.mxu0 0.0
        %1946 = vmatprep.subr.mxu0 0.0
        %1947 = vmatpush1.xpose.msra.mxu0 0.0
        %1948 = vmatprep.mubr.f32.mxu0 0.0
        %1949 = vmatmul.mubr.f32.gmra.mrb[0].mxu0 %v1873
        %v1950 = vpop.f32.mrb[0].mxu0
        %v1951 = vadd.f32 0.0, %v1950
        %v1952 = vpop.f32.mrb[0].mxu0
        %1953 = vmatprep.mubr.f32.mxu0 0.0
        %1954 = vmatmul.mubr.f32.gmra.mrb[0].mxu0 %v1876
        %v1955 = vpop.f32.mrb[0].mxu0
        %v1956 = vadd.f32 0.0, %v1955
        %v1957 = vpop.f32.mrb[0].mxu0
        %1958 = vdwg.mxu0
        %v1960 = vsel %vm1138, %v1642, 0
        %v1963 = vsel %vm1138, %v1643, 0
        %v1966 = vsel %vm1138, %v1752, 0
        %v1969 = vsel %vm1138, %v1755, 0
        %1971 = vmatprep.subr.mxu0 0.0
        %1972 = vmatpush1.xpose.msra.mxu0 %v1966
        %1973 = vmatprep.subr.mxu0 0.0
        %1974 = vmatpush1.xpose.msra.mxu0 %v1969
        %1975 = vmatprep.subr.mxu0 0.0
        %1976 = vmatpush1.xpose.msra.mxu0 0.0
        %1977 = vmatprep.subr.mxu0 0.0
        %1978 = vmatpush1.xpose.msra.mxu0 0.0
        %1979 = vmatprep.subr.mxu0 0.0
        %1980 = vmatpush1.xpose.msra.mxu0 0.0
        %1981 = vmatprep.subr.mxu0 0.0
        %1982 = vmatpush1.xpose.msra.mxu0 0.0
        %1983 = vmatprep.subr.mxu0 0.0
        %1984 = vmatpush1.xpose.msra.mxu0 0.0
        %1985 = vmatprep.subr.mxu0 0.0
        %1986 = vmatpush1.xpose.msra.mxu0 0.0
        %1987 = vmatprep.subr.mxu0 0.0
        %1988 = vmatpush1.xpose.msra.mxu0 0.0
        %1989 = vmatprep.subr.mxu0 0.0
        %1990 = vmatpush1.xpose.msra.mxu0 0.0
        %1991 = vmatprep.subr.mxu0 0.0
        %1992 = vmatpush1.xpose.msra.mxu0 0.0
        %1993 = vmatprep.subr.mxu0 0.0
        %1994 = vmatpush1.xpose.msra.mxu0 0.0
        %1995 = vmatprep.subr.mxu0 0.0
        %1996 = vmatpush1.xpose.msra.mxu0 0.0
        %1997 = vmatprep.subr.mxu0 0.0
        %1998 = vmatpush1.xpose.msra.mxu0 0.0
        %1999 = vmatprep.subr.mxu0 0.0
        %2000 = vmatpush1.xpose.msra.mxu0 0.0
        %2001 = vmatprep.subr.mxu0 0.0
        %2002 = vmatpush1.xpose.msra.mxu0 0.0
        %2003 = vmatprep.subr.mxu0 0.0
        %2004 = vmatpush1.xpose.msra.mxu0 0.0
        %2005 = vmatprep.subr.mxu0 0.0
        %2006 = vmatpush1.xpose.msra.mxu0 0.0
        %2007 = vmatprep.subr.mxu0 0.0
        %2008 = vmatpush1.xpose.msra.mxu0 0.0
        %2009 = vmatprep.subr.mxu0 0.0
        %2010 = vmatpush1.xpose.msra.mxu0 0.0
        %2011 = vmatprep.subr.mxu0 0.0
        %2012 = vmatpush1.xpose.msra.mxu0 0.0
        %2013 = vmatprep.subr.mxu0 0.0
        %2014 = vmatpush1.xpose.msra.mxu0 0.0
        %2015 = vmatprep.subr.mxu0 0.0
        %2016 = vmatpush1.xpose.msra.mxu0 0.0
        %2017 = vmatprep.subr.mxu0 0.0
        %2018 = vmatpush1.xpose.msra.mxu0 0.0
        %2019 = vmatprep.subr.mxu0 0.0
        %2020 = vmatpush1.xpose.msra.mxu0 0.0
        %2021 = vmatprep.subr.mxu0 0.0
        %2022 = vmatpush1.xpose.msra.mxu0 0.0
        %2023 = vmatprep.subr.mxu0 0.0
        %2024 = vmatpush1.xpose.msra.mxu0 0.0
        %2025 = vmatprep.subr.mxu0 0.0
        %2026 = vmatpush1.xpose.msra.mxu0 0.0
        %2027 = vmatprep.subr.mxu0 0.0
        %2028 = vmatpush1.xpose.msra.mxu0 0.0
        %2029 = vmatprep.subr.mxu0 0.0
        %2030 = vmatpush1.xpose.msra.mxu0 0.0
        %2031 = vmatprep.subr.mxu0 0.0
        %2032 = vmatpush1.xpose.msra.mxu0 0.0
        %2033 = vmatprep.subr.mxu0 0.0
        %2034 = vmatpush1.xpose.msra.mxu0 0.0
        %2035 = vmatprep.mubr.f32.mxu0 0.0
        %2036 = vmatmul.mubr.f32.gmra.mrb[0].mxu0 %v1960
        %v2037 = vpop.f32.mrb[0].mxu0
        %v2038 = vadd.f32 0.0, %v2037
        %v2039 = vpop.f32.mrb[0].mxu0
        %2040 = vmatprep.mubr.f32.mxu0 0.0
        %2041 = vmatmul.mubr.f32.gmra.mrb[0].mxu0 %v1963
        %v2042 = vpop.f32.mrb[0].mxu0
        %v2043 = vadd.f32 0.0, %v2042
        %v2044 = vpop.f32.mrb[0].mxu0
        %2045 = vdwg.mxu0
        %v2046 = vsel %vm1313, %v1951, -inf
        %2047 = vmax.xlane.f32.xlu0 %v2046
        %v2048 = vpop.xlane.xlu0 %2047
        %v2049 = vsel %vm1313, %v1956, -inf
        %2050 = vmax.xlane.f32.xlu0 %v2049
        %v2051 = vpop.xlane.xlu0 %2050
        %v2052 = vsel %vm1313, %v2038, -inf
        %2053 = vmax.xlane.f32.xlu0 %v2052
        %v2054 = vpop.xlane.xlu0 %2053
        %v2055 = vsel %vm1313, %v2043, -inf
        %2056 = vmax.xlane.f32.xlu0 %v2055
        %v2057 = vpop.xlane.xlu0 %2056
        %v2058 = vsub.f32 %v1951, %v2048
        %v2059 = vsub.f32 %v1956, %v2051
        %v2060 = vsub.f32 %v2038, %v2054
        %v2061 = vsub.f32 %v2043, %v2057
        %v2062 = vmul.f32 %v2058, 1.442695
        %v2063 = vpow.pop %v2062
        %v2064 = vmul.f32 %v2059, 1.442695
        %v2065 = vpow.pop %v2064
        %v2066 = vmul.f32 %v2060, 1.442695
        %v2067 = vpow.pop %v2066
        %v2068 = vmul.f32 %v2061, 1.442695
        %v2069 = vpow.pop %v2068
        %v2070 = vsel %vm1313, %v2063, 0.0
        %2071 = vadd.xlane.f32.xlu0 %v2070
        %v2072 = vpop.xlane.xlu0 %2071
        %v2073 = vsel %vm1313, %v2065, 0.0
        %2074 = vadd.xlane.f32.xlu0 %v2073
        %v2075 = vpop.xlane.xlu0 %2074
        %v2076 = vsel %vm1313, %v2067, 0.0
        %2077 = vadd.xlane.f32.xlu0 %v2076
        %v2078 = vpop.xlane.xlu0 %2077
        %v2079 = vsel %vm1313, %v2069, 0.0
        %2080 = vadd.xlane.f32.xlu0 %v2079
        %v2081 = vpop.xlane.xlu0 %2080
        %v2082 = vrcp.pop %v2072
        %v2083 = vmul.f32 %v2063, %v2082
        %v2084 = vrcp.pop %v2075
        %v2085 = vmul.f32 %v2065, %v2084
        %v2086 = vrcp.pop %v2078
        %v2087 = vmul.f32 %v2067, %v2086
        %v2088 = vrcp.pop %v2081
        %v2089 = vmul.f32 %v2069, %v2088
        %v2091 = vsel %vm1313, %v2083, 0
        %v2094 = vsel %vm1313, %v2085, 0
        %2096 = vmatprep.subr.mxu0 0.0
        %2097 = vmatpush1.msra.mxu0 %v1858
        %2098 = vmatprep.subr.mxu0 0.0
        %2099 = vmatpush1.msra.mxu0 %v1861
        %2100 = vmatprep.subr.mxu0 0.0
        %2101 = vmatpush1.msra.mxu0 0.0
        %2102 = vmatprep.subr.mxu0 0.0
        %2103 = vmatpush1.msra.mxu0 0.0
        %2104 = vmatprep.subr.mxu0 0.0
        %2105 = vmatpush1.msra.mxu0 0.0
        %2106 = vmatprep.subr.mxu0 0.0
        %2107 = vmatpush1.msra.mxu0 0.0
        %2108 = vmatprep.subr.mxu0 0.0
        %2109 = vmatpush1.msra.mxu0 0.0
        %2110 = vmatprep.subr.mxu0 0.0
        %2111 = vmatpush1.msra.mxu0 0.0
        %2112 = vmatprep.subr.mxu0 0.0
        %2113 = vmatpush1.msra.mxu0 0.0
        %2114 = vmatprep.subr.mxu0 0.0
        %2115 = vmatpush1.msra.mxu0 0.0
        %2116 = vmatprep.subr.mxu0 0.0
        %2117 = vmatpush1.msra.mxu0 0.0
        %2118 = vmatprep.subr.mxu0 0.0
        %2119 = vmatpush1.msra.mxu0 0.0
        %2120 = vmatprep.subr.mxu0 0.0
        %2121 = vmatpush1.msra.mxu0 0.0
        %2122 = vmatprep.subr.mxu0 0.0
        %2123 = vmatpush1.msra.mxu0 0.0
        %2124 = vmatprep.subr.mxu0 0.0
        %2125 = vmatpush1.msra.mxu0 0.0
        %2126 = vmatprep.subr.mxu0 0.0
        %2127 = vmatpush1.msra.mxu0 0.0
        %2128 = vmatprep.subr.mxu0 0.0
        %2129 = vmatpush1.msra.mxu0 0.0
        %2130 = vmatprep.subr.mxu0 0.0
        %2131 = vmatpush1.msra.mxu0 0.0
        %2132 = vmatprep.subr.mxu0 0.0
        %2133 = vmatpush1.msra.mxu0 0.0
        %2134 = vmatprep.subr.mxu0 0.0
        %2135 = vmatpush1.msra.mxu0 0.0
        %2136 = vmatprep.subr.mxu0 0.0
        %2137 = vmatpush1.msra.mxu0 0.0
        %2138 = vmatprep.subr.mxu0 0.0
        %2139 = vmatpush1.msra.mxu0 0.0
        %2140 = vmatprep.subr.mxu0 0.0
        %2141 = vmatpush1.msra.mxu0 0.0
        %2142 = vmatprep.subr.mxu0 0.0
        %2143 = vmatpush1.msra.mxu0 0.0
        %2144 = vmatprep.subr.mxu0 0.0
        %2145 = vmatpush1.msra.mxu0 0.0
        %2146 = vmatprep.subr.mxu0 0.0
        %2147 = vmatpush1.msra.mxu0 0.0
        %2148 = vmatprep.subr.mxu0 0.0
        %2149 = vmatpush1.msra.mxu0 0.0
        %2150 = vmatprep.subr.mxu0 0.0
        %2151 = vmatpush1.msra.mxu0 0.0
        %2152 = vmatprep.subr.mxu0 0.0
        %2153 = vmatpush1.msra.mxu0 0.0
        %2154 = vmatprep.subr.mxu0 0.0
        %2155 = vmatpush1.msra.mxu0 0.0
        %2156 = vmatprep.subr.mxu0 0.0
        %2157 = vmatpush1.msra.mxu0 0.0
        %2158 = vmatprep.subr.mxu0 0.0
        %2159 = vmatpush1.msra.mxu0 0.0
        %2160 = vmatprep.mubr.f32.mxu0 0.0
        %2161 = vmatmul.mubr.f32.gmra.mrb[0].mxu0 %v2091
        %v2162 = vpop.f32.mrb[0].mxu0
        %v2163 = vadd.f32 0.0, %v2162
        %v2164 = vpop.f32.mrb[0].mxu0
        %2165 = vmatprep.mubr.f32.mxu0 0.0
        %2166 = vmatmul.mubr.f32.gmra.mrb[0].mxu0 %v2094
        %v2167 = vpop.f32.mrb[0].mxu0
        %v2168 = vadd.f32 0.0, %v2167
        %v2169 = vpop.f32.mrb[0].mxu0
        %2170 = vdwg.mxu0
        %v2172 = vsel %vm1313, %v2087, 0
        %v2175 = vsel %vm1313, %v2089, 0
        %2177 = vmatprep.subr.mxu0 0.0
        %2178 = vmatpush1.msra.mxu0 %v1866
        %2179 = vmatprep.subr.mxu0 0.0
        %2180 = vmatpush1.msra.mxu0 %v1869
        %2181 = vmatprep.subr.mxu0 0.0
        %2182 = vmatpush1.msra.mxu0 0.0
        %2183 = vmatprep.subr.mxu0 0.0
        %2184 = vmatpush1.msra.mxu0 0.0
        %2185 = vmatprep.subr.mxu0 0.0
        %2186 = vmatpush1.msra.mxu0 0.0
        %2187 = vmatprep.subr.mxu0 0.0
        %2188 = vmatpush1.msra.mxu0 0.0
        %2189 = vmatprep.subr.mxu0 0.0
        %2190 = vmatpush1.msra.mxu0 0.0
        %2191 = vmatprep.subr.mxu0 0.0
        %2192 = vmatpush1.msra.mxu0 0.0
        %2193 = vmatprep.subr.mxu0 0.0
        %2194 = vmatpush1.msra.mxu0 0.0
        %2195 = vmatprep.subr.mxu0 0.0
        %2196 = vmatpush1.msra.mxu0 0.0
        %2197 = vmatprep.subr.mxu0 0.0
        %2198 = vmatpush1.msra.mxu0 0.0
        %2199 = vmatprep.subr.mxu0 0.0
        %2200 = vmatpush1.msra.mxu0 0.0
        %2201 = vmatprep.subr.mxu0 0.0
        %2202 = vmatpush1.msra.mxu0 0.0
        %2203 = vmatprep.subr.mxu0 0.0
        %2204 = vmatpush1.msra.mxu0 0.0
        %2205 = vmatprep.subr.mxu0 0.0
        %2206 = vmatpush1.msra.mxu0 0.0
        %2207 = vmatprep.subr.mxu0 0.0
        %2208 = vmatpush1.msra.mxu0 0.0
        %2209 = vmatprep.subr.mxu0 0.0
        %2210 = vmatpush1.msra.mxu0 0.0
        %2211 = vmatprep.subr.mxu0 0.0
        %2212 = vmatpush1.msra.mxu0 0.0
        %2213 = vmatprep.subr.mxu0 0.0
        %2214 = vmatpush1.msra.mxu0 0.0
        %2215 = vmatprep.subr.mxu0 0.0
        %2216 = vmatpush1.msra.mxu0 0.0
        %2217 = vmatprep.subr.mxu0 0.0
        %2218 = vmatpush1.msra.mxu0 0.0
        %2219 = vmatprep.subr.mxu0 0.0
        %2220 = vmatpush1.msra.mxu0 0.0
        %2221 = vmatprep.subr.mxu0 0.0
        %2222 = vmatpush1.msra.mxu0 0.0
        %2223 = vmatprep.subr.mxu0 0.0
        %2224 = vmatpush1.msra.mxu0 0.0
        %2225 = vmatprep.subr.mxu0 0.0
        %2226 = vmatpush1.msra.mxu0 0.0
        %2227 = vmatprep.subr.mxu0 0.0
        %2228 = vmatpush1.msra.mxu0 0.0
        %2229 = vmatprep.subr.mxu0 0.0
        %2230 = vmatpush1.msra.mxu0 0.0
        %2231 = vmatprep.subr.mxu0 0.0
        %2232 = vmatpush1.msra.mxu0 0.0
        %2233 = vmatprep.subr.mxu0 0.0
        %2234 = vmatpush1.msra.mxu0 0.0
        %2235 = vmatprep.subr.mxu0 0.0
        %2236 = vmatpush1.msra.mxu0 0.0
        %2237 = vmatprep.subr.mxu0 0.0
        %2238 = vmatpush1.msra.mxu0 0.0
        %2239 = vmatprep.subr.mxu0 0.0
        %2240 = vmatpush1.msra.mxu0 0.0
        %2241 = vmatprep.mubr.f32.mxu0 0.0
        %2242 = vmatmul.mubr.f32.gmra.mrb[0].mxu0 %v2172
        %v2243 = vpop.f32.mrb[0].mxu0
        %v2244 = vadd.f32 0.0, %v2243
        %v2245 = vpop.f32.mrb[0].mxu0
        %2246 = vmatprep.mubr.f32.mxu0 0.0
        %2247 = vmatmul.mubr.f32.gmra.mrb[0].mxu0 %v2175
        %v2248 = vpop.f32.mrb[0].mxu0
        %v2249 = vadd.f32 0.0, %v2248
        %v2250 = vpop.f32.mrb[0].mxu0
        %2251 = vdwg.mxu0
        %v2252 = vpack.c.bf16 %v2168, %v2163
        %v2253 = vpack.c.bf16 %v2249, %v2244
        %s2254 = scalar_lea.vmem %s682, 16
        %v2255 = vld [vmem:[%s2254] sm:$0xf]
        %v2256 = vld [vmem:[%s2254 + $0x4] sm:$0xf]
        %v2257 = vld [vmem:[%s2254 + $0x8] sm:$0xf]
        %v2258 = vld [vmem:[%s2254 + $0xc] sm:$0xf]
        %v2263 = vunpack.c.l.b16 %v2255
        %v2264 = vunpack.c.l.b16 %v2256
        %v2265 = vunpack.c.l.b16 %v2257
        %v2266 = vunpack.c.l.b16 %v2258
        %v2267 = vpack.c.b16 %v2264, %v2263
        %v2268 = vpack.c.b16 %v2266, %v2265
        %v2272 = vsel %vm1138, %v2252, 0
        %v2275 = vsel %vm1138, %v2253, 0
        %2277 = vmatprep.subr.bf16.mxu0 0
        %2278 = vmatpush1.bf16.msra.mxu0 %v2267
        %2279 = vmatprep.subr.bf16.mxu0 0
        %2280 = vmatpush1.bf16.msra.mxu0 %v2268
        %2281 = vmatprep.subr.bf16.mxu0 0
        %2282 = vmatpush1.bf16.msra.mxu0 0
        %2283 = vmatprep.subr.bf16.mxu0 0
        %2284 = vmatpush1.bf16.msra.mxu0 0
        %2285 = vmatprep.subr.bf16.mxu0 0
        %2286 = vmatpush1.bf16.msra.mxu0 0
        %2287 = vmatprep.subr.bf16.mxu0 0
        %2288 = vmatpush1.bf16.msra.mxu0 0
        %2289 = vmatprep.subr.bf16.mxu0 0
        %2290 = vmatpush1.bf16.msra.mxu0 0
        %2291 = vmatprep.subr.bf16.mxu0 0
        %2292 = vmatpush1.bf16.msra.mxu0 0
        %2293 = vmatprep.subr.bf16.mxu0 0
        %2294 = vmatpush1.bf16.msra.mxu0 0
        %2295 = vmatprep.subr.bf16.mxu0 0
        %2296 = vmatpush1.bf16.msra.mxu0 0
        %2297 = vmatprep.subr.bf16.mxu0 0
        %2298 = vmatpush1.bf16.msra.mxu0 0
        %2299 = vmatprep.subr.bf16.mxu0 0
        %2300 = vmatpush1.bf16.msra.mxu0 0
        %2301 = vmatprep.subr.bf16.mxu0 0
        %2302 = vmatpush1.bf16.msra.mxu0 0
        %2303 = vmatprep.subr.bf16.mxu0 0
        %2304 = vmatpush1.bf16.msra.mxu0 0
        %2305 = vmatprep.subr.bf16.mxu0 0
        %2306 = vmatpush1.bf16.msra.mxu0 0
        %2307 = vmatprep.subr.bf16.mxu0 0
        %2308 = vmatpush1.bf16.msra.mxu0 0
        %2309 = vmatprep.mubr.bf16.mxu0 0
        %2310 = vmatmul.mubr.bf16.gmra.mrb[0].mxu0 %v2272
        %v2311 = vpop.f32.mrb[0].mxu0
        %v2312 = vadd.f32 0.0, %v2311
        %v2313 = vpop.f32.mrb[0].mxu0
        %v2314 = vpop.f32.mrb[0].mxu0
        %v2315 = vadd.f32 0.0, %v2314
        %v2316 = vpop.f32.mrb[0].mxu0
        %2317 = vmatprep.mubr.bf16.mxu0 0
        %2318 = vmatmul.mubr.bf16.gmra.mrb[0].mxu0 %v2275
        %v2319 = vpop.f32.mrb[0].mxu0
        %v2320 = vadd.f32 0.0, %v2319
        %v2321 = vpop.f32.mrb[0].mxu0
        %v2322 = vpop.f32.mrb[0].mxu0
        %v2323 = vadd.f32 0.0, %v2322
        %v2324 = vpop.f32.mrb[0].mxu0
        %2325 = vdwg.mxu0
        %v2330 = vunpack.c.l.b16 %v1522
        %v2331 = vunpack.c.l.b16 %v1523
        %v2332 = vunpack.c.l.b16 %v1524
        %v2333 = vunpack.c.l.b16 %v1525
        %v2334 = vpack.c.b16 %v2331, %v2330
        %v2335 = vpack.c.b16 %v2333, %v2332
        %v2339 = vsel %vm1138, %v1520, 0
        %v2342 = vsel %vm1138, %v1521, 0
        %2344 = vmatprep.subr.bf16.mxu0 0
        %2345 = vmatpush1.bf16.msra.mxu0 %v2334
        %2346 = vmatprep.subr.bf16.mxu0 0
        %2347 = vmatpush1.bf16.msra.mxu0 %v2335
        %2348 = vmatprep.subr.bf16.mxu0 0
        %2349 = vmatpush1.bf16.msra.mxu0 0
        %2350 = vmatprep.subr.bf16.mxu0 0
        %2351 = vmatpush1.bf16.msra.mxu0 0
        %2352 = vmatprep.subr.bf16.mxu0 0
        %2353 = vmatpush1.bf16.msra.mxu0 0
        %2354 = vmatprep.subr.bf16.mxu0 0
        %2355 = vmatpush1.bf16.msra.mxu0 0
        %2356 = vmatprep.subr.bf16.mxu0 0
        %2357 = vmatpush1.bf16.msra.mxu0 0
        %2358 = vmatprep.subr.bf16.mxu0 0
        %2359 = vmatpush1.bf16.msra.mxu0 0
        %2360 = vmatprep.subr.bf16.mxu0 0
        %2361 = vmatpush1.bf16.msra.mxu0 0
        %2362 = vmatprep.subr.bf16.mxu0 0
        %2363 = vmatpush1.bf16.msra.mxu0 0
        %2364 = vmatprep.subr.bf16.mxu0 0
        %2365 = vmatpush1.bf16.msra.mxu0 0
        %2366 = vmatprep.subr.bf16.mxu0 0
        %2367 = vmatpush1.bf16.msra.mxu0 0
        %2368 = vmatprep.subr.bf16.mxu0 0
        %2369 = vmatpush1.bf16.msra.mxu0 0
        %2370 = vmatprep.subr.bf16.mxu0 0
        %2371 = vmatpush1.bf16.msra.mxu0 0
        %2372 = vmatprep.subr.bf16.mxu0 0
        %2373 = vmatpush1.bf16.msra.mxu0 0
        %2374 = vmatprep.subr.bf16.mxu0 0
        %2375 = vmatpush1.bf16.msra.mxu0 0
        %2376 = vmatprep.mubr.bf16.mxu0 0
        %2377 = vmatmul.mubr.bf16.gmra.mrb[0].mxu0 %v2339
        %v2378 = vpop.f32.mrb[0].mxu0
        %v2379 = vadd.f32 %v2312, %v2378
        %v2380 = vpop.f32.mrb[0].mxu0
        %v2381 = vpop.f32.mrb[0].mxu0
        %v2382 = vadd.f32 %v2315, %v2381
        %v2383 = vpop.f32.mrb[0].mxu0
        %2384 = vmatprep.mubr.bf16.mxu0 0
        %2385 = vmatmul.mubr.bf16.gmra.mrb[0].mxu0 %v2342
        %v2386 = vpop.f32.mrb[0].mxu0
        %v2387 = vadd.f32 %v2320, %v2386
        %v2388 = vpop.f32.mrb[0].mxu0
        %v2389 = vpop.f32.mrb[0].mxu0
        %v2390 = vadd.f32 %v2323, %v2389
        %v2391 = vpop.f32.mrb[0].mxu0
        %2392 = vdwg.mxu0
        %s2393 = scalar_lea.vmem %s667, 128
        %v2394 = vld [vmem:[%s2393] sm:$0xf]
        %v2395 = vld [vmem:[%s2393 + $0x4] sm:$0xf]
        %v2396 = vld [vmem:[%s2393 + $0x8] sm:$0xf]
        %v2397 = vld [vmem:[%s2393 + $0xc] sm:$0xf]
        %v2398 = vld [vmem:[%s2393 + $0x10] sm:$0xf]
        %v2399 = vld [vmem:[%s2393 + $0x14] sm:$0xf]
        %v2400 = vld [vmem:[%s2393 + $0x18] sm:$0xf]
        %v2401 = vld [vmem:[%s2393 + $0x1c] sm:$0xf]
        %v2402 = vld [vmem:[%s2393 + $0x20] sm:$0xf]
        %v2403 = vld [vmem:[%s2393 + $0x24] sm:$0xf]
        %v2404 = vld [vmem:[%s2393 + $0x28] sm:$0xf]
        %v2405 = vld [vmem:[%s2393 + $0x2c] sm:$0xf]
        %v2406 = vld [vmem:[%s2393 + $0x30] sm:$0xf]
        %v2407 = vld [vmem:[%s2393 + $0x34] sm:$0xf]
        %v2408 = vld [vmem:[%s2393 + $0x38] sm:$0xf]
        %v2409 = vld [vmem:[%s2393 + $0x3c] sm:$0xf]
        %v2426 = vunpack.c.l.b16 %v2394
        %v2427 = vunpack.c.l.b16 %v2395
        %v2428 = vunpack.c.l.b16 %v2396
        %v2429 = vunpack.c.l.b16 %v2397
        %v2430 = vunpack.c.l.b16 %v2398
        %v2431 = vunpack.c.l.b16 %v2399
        %v2432 = vunpack.c.l.b16 %v2400
        %v2433 = vunpack.c.l.b16 %v2401
        %v2434 = vunpack.c.l.b16 %v2402
        %v2435 = vunpack.c.l.b16 %v2403
        %v2436 = vunpack.c.l.b16 %v2404
        %v2437 = vunpack.c.l.b16 %v2405
        %v2438 = vunpack.c.l.b16 %v2406
        %v2439 = vunpack.c.l.b16 %v2407
        %v2440 = vunpack.c.l.b16 %v2408
        %v2441 = vunpack.c.l.b16 %v2409
        %v2442 = vpack.c.b16 %v2427, %v2426
        %v2443 = vpack.c.b16 %v2429, %v2428
        %v2444 = vpack.c.b16 %v2431, %v2430
        %v2445 = vpack.c.b16 %v2433, %v2432
        %v2446 = vpack.c.b16 %v2435, %v2434
        %v2447 = vpack.c.b16 %v2437, %v2436
        %v2448 = vpack.c.b16 %v2439, %v2438
        %v2449 = vpack.c.b16 %v2441, %v2440
        %2458 = vmatprep.subr.bf16.mxu0 0
        %2459 = vmatpush1.bf16.msra.mxu0 %v2442
        %2460 = vmatprep.subr.bf16.mxu0 0
        %2461 = vmatpush1.bf16.msra.mxu0 %v2443
        %2462 = vmatprep.subr.bf16.mxu0 0
        %2463 = vmatpush1.bf16.msra.mxu0 %v2444
        %2464 = vmatprep.subr.bf16.mxu0 0
        %2465 = vmatpush1.bf16.msra.mxu0 %v2445
        %2466 = vmatprep.subr.bf16.mxu0 0
        %2467 = vmatpush1.bf16.msra.mxu0 %v2446
        %2468 = vmatprep.subr.bf16.mxu0 0
        %2469 = vmatpush1.bf16.msra.mxu0 %v2447
        %2470 = vmatprep.subr.bf16.mxu0 0
        %2471 = vmatpush1.bf16.msra.mxu0 %v2448
        %2472 = vmatprep.subr.bf16.mxu0 0
        %2473 = vmatpush1.bf16.msra.mxu0 %v2449
        %2474 = vmatprep.subr.bf16.mxu0 0
        %2475 = vmatpush1.bf16.msra.mxu0 0
        %2476 = vmatprep.subr.bf16.mxu0 0
        %2477 = vmatpush1.bf16.msra.mxu0 0
        %2478 = vmatprep.subr.bf16.mxu0 0
        %2479 = vmatpush1.bf16.msra.mxu0 0
        %2480 = vmatprep.subr.bf16.mxu0 0
        %2481 = vmatpush1.bf16.msra.mxu0 0
        %2482 = vmatprep.subr.bf16.mxu0 0
        %2483 = vmatpush1.bf16.msra.mxu0 0
        %2484 = vmatprep.subr.bf16.mxu0 0
        %2485 = vmatpush1.bf16.msra.mxu0 0
        %2486 = vmatprep.subr.bf16.mxu0 0
        %2487 = vmatpush1.bf16.msra.mxu0 0
        %2488 = vmatprep.subr.bf16.mxu0 0
        %2489 = vmatpush1.bf16.msra.mxu0 0
        %2490 = vmatprep.mubr.bf16.mxu0 0
        %2491 = vmatmul.mubr.bf16.gmra.mrb[0].mxu0 %v793
        %v2492 = vpop.f32.mrb[0].mxu0
        %v2493 = vadd.f32 0.0, %v2492
        %v2494 = vpop.f32.mrb[0].mxu0
        %v2495 = vpop.f32.mrb[0].mxu0
        %v2496 = vadd.f32 0.0, %v2495
        %v2497 = vpop.f32.mrb[0].mxu0
        %2498 = vmatprep.mubr.bf16.mxu0 0
        %2499 = vmatmul.mubr.bf16.gmra.mrb[0].mxu0 %v794
        %v2500 = vpop.f32.mrb[0].mxu0
        %v2501 = vadd.f32 0.0, %v2500
        %v2502 = vpop.f32.mrb[0].mxu0
        %v2503 = vpop.f32.mrb[0].mxu0
        %v2504 = vadd.f32 0.0, %v2503
        %v2505 = vpop.f32.mrb[0].mxu0
        %2506 = vdwg.mxu0
        %v2507 = vmul.f32 %v2493, 0.17677669
        %v2508 = vmul.f32 %v2496, 0.17677669
        %v2509 = vmul.f32 %v2501, 0.17677669
        %v2510 = vmul.f32 %v2504, 0.17677669
        %s2511 = scalar_lea.vmem %s672, 128
        %v2512 = vld [vmem:[%s2511] sm:$0xf]
        %v2513 = vld [vmem:[%s2511 + $0x4] sm:$0xf]
        %v2514 = vld [vmem:[%s2511 + $0x8] sm:$0xf]
        %v2515 = vld [vmem:[%s2511 + $0xc] sm:$0xf]
        %v2516 = vld [vmem:[%s2511 + $0x10] sm:$0xf]
        %v2517 = vld [vmem:[%s2511 + $0x14] sm:$0xf]
        %v2518 = vld [vmem:[%s2511 + $0x18] sm:$0xf]
        %v2519 = vld [vmem:[%s2511 + $0x1c] sm:$0xf]
        %v2520 = vld [vmem:[%s2511 + $0x20] sm:$0xf]
        %v2521 = vld [vmem:[%s2511 + $0x24] sm:$0xf]
        %v2522 = vld [vmem:[%s2511 + $0x28] sm:$0xf]
        %v2523 = vld [vmem:[%s2511 + $0x2c] sm:$0xf]
        %v2524 = vld [vmem:[%s2511 + $0x30] sm:$0xf]
        %v2525 = vld [vmem:[%s2511 + $0x34] sm:$0xf]
        %v2526 = vld [vmem:[%s2511 + $0x38] sm:$0xf]
        %v2527 = vld [vmem:[%s2511 + $0x3c] sm:$0xf]
        %v2544 = vunpack.c.l.b16 %v2512
        %v2545 = vunpack.c.l.b16 %v2513
        %v2546 = vunpack.c.l.b16 %v2514
        %v2547 = vunpack.c.l.b16 %v2515
        %v2548 = vunpack.c.l.b16 %v2516
        %v2549 = vunpack.c.l.b16 %v2517
        %v2550 = vunpack.c.l.b16 %v2518
        %v2551 = vunpack.c.l.b16 %v2519
        %v2552 = vunpack.c.l.b16 %v2520
        %v2553 = vunpack.c.l.b16 %v2521
        %v2554 = vunpack.c.l.b16 %v2522
        %v2555 = vunpack.c.l.b16 %v2523
        %v2556 = vunpack.c.l.b16 %v2524
        %v2557 = vunpack.c.l.b16 %v2525
        %v2558 = vunpack.c.l.b16 %v2526
        %v2559 = vunpack.c.l.b16 %v2527
        %v2560 = vpack.c.b16 %v2545, %v2544
        %v2561 = vpack.c.b16 %v2547, %v2546
        %v2562 = vpack.c.b16 %v2549, %v2548
        %v2563 = vpack.c.b16 %v2551, %v2550
        %v2564 = vpack.c.b16 %v2553, %v2552
        %v2565 = vpack.c.b16 %v2555, %v2554
        %v2566 = vpack.c.b16 %v2557, %v2556
        %v2567 = vpack.c.b16 %v2559, %v2558
        %2576 = vmatprep.subr.bf16.mxu0 0
        %2577 = vmatpush1.bf16.msra.mxu0 %v2560
        %2578 = vmatprep.subr.bf16.mxu0 0
        %2579 = vmatpush1.bf16.msra.mxu0 %v2561
        %2580 = vmatprep.subr.bf16.mxu0 0
        %2581 = vmatpush1.bf16.msra.mxu0 %v2562
        %2582 = vmatprep.subr.bf16.mxu0 0
        %2583 = vmatpush1.bf16.msra.mxu0 %v2563
        %2584 = vmatprep.subr.bf16.mxu0 0
        %2585 = vmatpush1.bf16.msra.mxu0 %v2564
        %2586 = vmatprep.subr.bf16.mxu0 0
        %2587 = vmatpush1.bf16.msra.mxu0 %v2565
        %2588 = vmatprep.subr.bf16.mxu0 0
        %2589 = vmatpush1.bf16.msra.mxu0 %v2566
        %2590 = vmatprep.subr.bf16.mxu0 0
        %2591 = vmatpush1.bf16.msra.mxu0 %v2567
        %2592 = vmatprep.subr.bf16.mxu0 0
        %2593 = vmatpush1.bf16.msra.mxu0 0
        %2594 = vmatprep.subr.bf16.mxu0 0
        %2595 = vmatpush1.bf16.msra.mxu0 0
        %2596 = vmatprep.subr.bf16.mxu0 0
        %2597 = vmatpush1.bf16.msra.mxu0 0
        %2598 = vmatprep.subr.bf16.mxu0 0
        %2599 = vmatpush1.bf16.msra.mxu0 0
        %2600 = vmatprep.subr.bf16.mxu0 0
        %2601 = vmatpush1.bf16.msra.mxu0 0
        %2602 = vmatprep.subr.bf16.mxu0 0
        %2603 = vmatpush1.bf16.msra.mxu0 0
        %2604 = vmatprep.subr.bf16.mxu0 0
        %2605 = vmatpush1.bf16.msra.mxu0 0
        %2606 = vmatprep.subr.bf16.mxu0 0
        %2607 = vmatpush1.bf16.msra.mxu0 0
        %2608 = vmatprep.mubr.bf16.mxu0 0
        %2609 = vmatmul.mubr.bf16.gmra.mrb[0].mxu0 %v793
        %v2610 = vpop.f32.mrb[0].mxu0
        %v2611 = vadd.f32 0.0, %v2610
        %v2612 = vpop.f32.mrb[0].mxu0
        %v2613 = vpop.f32.mrb[0].mxu0
        %v2614 = vadd.f32 0.0, %v2613
        %v2615 = vpop.f32.mrb[0].mxu0
        %2616 = vmatprep.mubr.bf16.mxu0 0
        %2617 = vmatmul.mubr.bf16.gmra.mrb[0].mxu0 %v794
        %v2618 = vpop.f32.mrb[0].mxu0
        %v2619 = vadd.f32 0.0, %v2618
        %v2620 = vpop.f32.mrb[0].mxu0
        %v2621 = vpop.f32.mrb[0].mxu0
        %v2622 = vadd.f32 0.0, %v2621
        %v2623 = vpop.f32.mrb[0].mxu0
        %2624 = vdwg.mxu0
        %s2625 = scalar_lea.vmem %s677, 128
        %v2626 = vld [vmem:[%s2625] sm:$0xf]
        %v2627 = vld [vmem:[%s2625 + $0x4] sm:$0xf]
        %v2628 = vld [vmem:[%s2625 + $0x8] sm:$0xf]
        %v2629 = vld [vmem:[%s2625 + $0xc] sm:$0xf]
        %v2630 = vld [vmem:[%s2625 + $0x10] sm:$0xf]
        %v2631 = vld [vmem:[%s2625 + $0x14] sm:$0xf]
        %v2632 = vld [vmem:[%s2625 + $0x18] sm:$0xf]
        %v2633 = vld [vmem:[%s2625 + $0x1c] sm:$0xf]
        %v2634 = vld [vmem:[%s2625 + $0x20] sm:$0xf]
        %v2635 = vld [vmem:[%s2625 + $0x24] sm:$0xf]
        %v2636 = vld [vmem:[%s2625 + $0x28] sm:$0xf]
        %v2637 = vld [vmem:[%s2625 + $0x2c] sm:$0xf]
        %v2638 = vld [vmem:[%s2625 + $0x30] sm:$0xf]
        %v2639 = vld [vmem:[%s2625 + $0x34] sm:$0xf]
        %v2640 = vld [vmem:[%s2625 + $0x38] sm:$0xf]
        %v2641 = vld [vmem:[%s2625 + $0x3c] sm:$0xf]
        %v2658 = vunpack.c.l.b16 %v2626
        %v2659 = vunpack.c.l.b16 %v2627
        %v2660 = vunpack.c.l.b16 %v2628
        %v2661 = vunpack.c.l.b16 %v2629
        %v2662 = vunpack.c.l.b16 %v2630
        %v2663 = vunpack.c.l.b16 %v2631
        %v2664 = vunpack.c.l.b16 %v2632
        %v2665 = vunpack.c.l.b16 %v2633
        %v2666 = vunpack.c.l.b16 %v2634
        %v2667 = vunpack.c.l.b16 %v2635
        %v2668 = vunpack.c.l.b16 %v2636
        %v2669 = vunpack.c.l.b16 %v2637
        %v2670 = vunpack.c.l.b16 %v2638
        %v2671 = vunpack.c.l.b16 %v2639
        %v2672 = vunpack.c.l.b16 %v2640
        %v2673 = vunpack.c.l.b16 %v2641
        %v2674 = vpack.c.b16 %v2659, %v2658
        %v2675 = vpack.c.b16 %v2661, %v2660
        %v2676 = vpack.c.b16 %v2663, %v2662
        %v2677 = vpack.c.b16 %v2665, %v2664
        %v2678 = vpack.c.b16 %v2667, %v2666
        %v2679 = vpack.c.b16 %v2669, %v2668
        %v2680 = vpack.c.b16 %v2671, %v2670
        %v2681 = vpack.c.b16 %v2673, %v2672
        %2690 = vmatprep.subr.bf16.mxu0 0
        %2691 = vmatpush1.bf16.msra.mxu0 %v2674
        %2692 = vmatprep.subr.bf16.mxu0 0
        %2693 = vmatpush1.bf16.msra.mxu0 %v2675
        %2694 = vmatprep.subr.bf16.mxu0 0
        %2695 = vmatpush1.bf16.msra.mxu0 %v2676
        %2696 = vmatprep.subr.bf16.mxu0 0
        %2697 = vmatpush1.bf16.msra.mxu0 %v2677
        %2698 = vmatprep.subr.bf16.mxu0 0
        %2699 = vmatpush1.bf16.msra.mxu0 %v2678
        %2700 = vmatprep.subr.bf16.mxu0 0
        %2701 = vmatpush1.bf16.msra.mxu0 %v2679
        %2702 = vmatprep.subr.bf16.mxu0 0
        %2703 = vmatpush1.bf16.msra.mxu0 %v2680
        %2704 = vmatprep.subr.bf16.mxu0 0
        %2705 = vmatpush1.bf16.msra.mxu0 %v2681
        %2706 = vmatprep.subr.bf16.mxu0 0
        %2707 = vmatpush1.bf16.msra.mxu0 0
        %2708 = vmatprep.subr.bf16.mxu0 0
        %2709 = vmatpush1.bf16.msra.mxu0 0
        %2710 = vmatprep.subr.bf16.mxu0 0
        %2711 = vmatpush1.bf16.msra.mxu0 0
        %2712 = vmatprep.subr.bf16.mxu0 0
        %2713 = vmatpush1.bf16.msra.mxu0 0
        %2714 = vmatprep.subr.bf16.mxu0 0
        %2715 = vmatpush1.bf16.msra.mxu0 0
        %2716 = vmatprep.subr.bf16.mxu0 0
        %2717 = vmatpush1.bf16.msra.mxu0 0
        %2718 = vmatprep.subr.bf16.mxu0 0
        %2719 = vmatpush1.bf16.msra.mxu0 0
        %2720 = vmatprep.subr.bf16.mxu0 0
        %2721 = vmatpush1.bf16.msra.mxu0 0
        %2722 = vmatprep.mubr.bf16.mxu0 0
        %2723 = vmatmul.mubr.bf16.gmra.mrb[0].mxu0 %v793
        %v2724 = vpop.f32.mrb[0].mxu0
        %v2725 = vadd.f32 0.0, %v2724
        %v2726 = vpop.f32.mrb[0].mxu0
        %v2727 = vpop.f32.mrb[0].mxu0
        %v2728 = vadd.f32 0.0, %v2727
        %v2729 = vpop.f32.mrb[0].mxu0
        %2730 = vmatprep.mubr.bf16.mxu0 0
        %2731 = vmatmul.mubr.bf16.gmra.mrb[0].mxu0 %v794
        %v2732 = vpop.f32.mrb[0].mxu0
        %v2733 = vadd.f32 0.0, %v2732
        %v2734 = vpop.f32.mrb[0].mxu0
        %v2735 = vpop.f32.mrb[0].mxu0
        %v2736 = vadd.f32 0.0, %v2735
        %v2737 = vpop.f32.mrb[0].mxu0
        %2738 = vdwg.mxu0
        %v2740 = vsel %vm1138, %v2507, 0
        %v2743 = vsel %vm1138, %v2508, 0
        %v2746 = vsel %vm1138, %v2611, 0
        %v2749 = vsel %vm1138, %v2614, 0
        %2751 = vmatprep.subr.mxu0 0.0
        %2752 = vmatpush1.xpose.msra.mxu0 %v2746
        %2753 = vmatprep.subr.mxu0 0.0
        %2754 = vmatpush1.xpose.msra.mxu0 %v2749
        %2755 = vmatprep.subr.mxu0 0.0
        %2756 = vmatpush1.xpose.msra.mxu0 0.0
        %2757 = vmatprep.subr.mxu0 0.0
        %2758 = vmatpush1.xpose.msra.mxu0 0.0
        %2759 = vmatprep.subr.mxu0 0.0
        %2760 = vmatpush1.xpose.msra.mxu0 0.0
        %2761 = vmatprep.subr.mxu0 0.0
        %2762 = vmatpush1.xpose.msra.mxu0 0.0
        %2763 = vmatprep.subr.mxu0 0.0
        %2764 = vmatpush1.xpose.msra.mxu0 0.0
        %2765 = vmatprep.subr.mxu0 0.0
        %2766 = vmatpush1.xpose.msra.mxu0 0.0
        %2767 = vmatprep.subr.mxu0 0.0
        %2768 = vmatpush1.xpose.msra.mxu0 0.0
        %2769 = vmatprep.subr.mxu0 0.0
        %2770 = vmatpush1.xpose.msra.mxu0 0.0
        %2771 = vmatprep.subr.mxu0 0.0
        %2772 = vmatpush1.xpose.msra.mxu0 0.0
        %2773 = vmatprep.subr.mxu0 0.0
        %2774 = vmatpush1.xpose.msra.mxu0 0.0
        %2775 = vmatprep.subr.mxu0 0.0
        %2776 = vmatpush1.xpose.msra.mxu0 0.0
        %2777 = vmatprep.subr.mxu0 0.0
        %2778 = vmatpush1.xpose.msra.mxu0 0.0
        %2779 = vmatprep.subr.mxu0 0.0
        %2780 = vmatpush1.xpose.msra.mxu0 0.0
        %2781 = vmatprep.subr.mxu0 0.0
        %2782 = vmatpush1.xpose.msra.mxu0 0.0
        %2783 = vmatprep.subr.mxu0 0.0
        %2784 = vmatpush1.xpose.msra.mxu0 0.0
        %2785 = vmatprep.subr.mxu0 0.0
        %2786 = vmatpush1.xpose.msra.mxu0 0.0
        %2787 = vmatprep.subr.mxu0 0.0
        %2788 = vmatpush1.xpose.msra.mxu0 0.0
        %2789 = vmatprep.subr.mxu0 0.0
        %2790 = vmatpush1.xpose.msra.mxu0 0.0
        %2791 = vmatprep.subr.mxu0 0.0
        %2792 = vmatpush1.xpose.msra.mxu0 0.0
        %2793 = vmatprep.subr.mxu0 0.0
        %2794 = vmatpush1.xpose.msra.mxu0 0.0
        %2795 = vmatprep.subr.mxu0 0.0
        %2796 = vmatpush1.xpose.msra.mxu0 0.0
        %2797 = vmatprep.subr.mxu0 0.0
        %2798 = vmatpush1.xpose.msra.mxu0 0.0
        %2799 = vmatprep.subr.mxu0 0.0
        %2800 = vmatpush1.xpose.msra.mxu0 0.0
        %2801 = vmatprep.subr.mxu0 0.0
        %2802 = vmatpush1.xpose.msra.mxu0 0.0
        %2803 = vmatprep.subr.mxu0 0.0
        %2804 = vmatpush1.xpose.msra.mxu0 0.0
        %2805 = vmatprep.subr.mxu0 0.0
        %2806 = vmatpush1.xpose.msra.mxu0 0.0
        %2807 = vmatprep.subr.mxu0 0.0
        %2808 = vmatpush1.xpose.msra.mxu0 0.0
        %2809 = vmatprep.subr.mxu0 0.0
        %2810 = vmatpush1.xpose.msra.mxu0 0.0
        %2811 = vmatprep.subr.mxu0 0.0
        %2812 = vmatpush1.xpose.msra.mxu0 0.0
        %2813 = vmatprep.subr.mxu0 0.0
        %2814 = vmatpush1.xpose.msra.mxu0 0.0
        %2815 = vmatprep.mubr.f32.mxu0 0.0
        %2816 = vmatmul.mubr.f32.gmra.mrb[0].mxu0 %v2740
        %v2817 = vpop.f32.mrb[0].mxu0
        %v2818 = vadd.f32 0.0, %v2817
        %v2819 = vpop.f32.mrb[0].mxu0
        %2820 = vmatprep.mubr.f32.mxu0 0.0
        %2821 = vmatmul.mubr.f32.gmra.mrb[0].mxu0 %v2743
        %v2822 = vpop.f32.mrb[0].mxu0
        %v2823 = vadd.f32 0.0, %v2822
        %v2824 = vpop.f32.mrb[0].mxu0
        %2825 = vdwg.mxu0
        %v2827 = vsel %vm1138, %v2509, 0
        %v2830 = vsel %vm1138, %v2510, 0
        %v2833 = vsel %vm1138, %v2619, 0
        %v2836 = vsel %vm1138, %v2622, 0
        %2838 = vmatprep.subr.mxu0 0.0
        %2839 = vmatpush1.xpose.msra.mxu0 %v2833
        %2840 = vmatprep.subr.mxu0 0.0
        %2841 = vmatpush1.xpose.msra.mxu0 %v2836
        %2842 = vmatprep.subr.mxu0 0.0
        %2843 = vmatpush1.xpose.msra.mxu0 0.0
        %2844 = vmatprep.subr.mxu0 0.0
        %2845 = vmatpush1.xpose.msra.mxu0 0.0
        %2846 = vmatprep.subr.mxu0 0.0
        %2847 = vmatpush1.xpose.msra.mxu0 0.0
        %2848 = vmatprep.subr.mxu0 0.0
        %2849 = vmatpush1.xpose.msra.mxu0 0.0
        %2850 = vmatprep.subr.mxu0 0.0
        %2851 = vmatpush1.xpose.msra.mxu0 0.0
        %2852 = vmatprep.subr.mxu0 0.0
        %2853 = vmatpush1.xpose.msra.mxu0 0.0
        %2854 = vmatprep.subr.mxu0 0.0
        %2855 = vmatpush1.xpose.msra.mxu0 0.0
        %2856 = vmatprep.subr.mxu0 0.0
        %2857 = vmatpush1.xpose.msra.mxu0 0.0
        %2858 = vmatprep.subr.mxu0 0.0
        %2859 = vmatpush1.xpose.msra.mxu0 0.0
        %2860 = vmatprep.subr.mxu0 0.0
        %2861 = vmatpush1.xpose.msra.mxu0 0.0
        %2862 = vmatprep.subr.mxu0 0.0
        %2863 = vmatpush1.xpose.msra.mxu0 0.0
        %2864 = vmatprep.subr.mxu0 0.0
        %2865 = vmatpush1.xpose.msra.mxu0 0.0
        %2866 = vmatprep.subr.mxu0 0.0
        %2867 = vmatpush1.xpose.msra.mxu0 0.0
        %2868 = vmatprep.subr.mxu0 0.0
        %2869 = vmatpush1.xpose.msra.mxu0 0.0
        %2870 = vmatprep.subr.mxu0 0.0
        %2871 = vmatpush1.xpose.msra.mxu0 0.0
        %2872 = vmatprep.subr.mxu0 0.0
        %2873 = vmatpush1.xpose.msra.mxu0 0.0
        %2874 = vmatprep.subr.mxu0 0.0
        %2875 = vmatpush1.xpose.msra.mxu0 0.0
        %2876 = vmatprep.subr.mxu0 0.0
        %2877 = vmatpush1.xpose.msra.mxu0 0.0
        %2878 = vmatprep.subr.mxu0 0.0
        %2879 = vmatpush1.xpose.msra.mxu0 0.0
        %2880 = vmatprep.subr.mxu0 0.0
        %2881 = vmatpush1.xpose.msra.mxu0 0.0
        %2882 = vmatprep.subr.mxu0 0.0
        %2883 = vmatpush1.xpose.msra.mxu0 0.0
        %2884 = vmatprep.subr.mxu0 0.0
        %2885 = vmatpush1.xpose.msra.mxu0 0.0
        %2886 = vmatprep.subr.mxu0 0.0
        %2887 = vmatpush1.xpose.msra.mxu0 0.0
        %2888 = vmatprep.subr.mxu0 0.0
        %2889 = vmatpush1.xpose.msra.mxu0 0.0
        %2890 = vmatprep.subr.mxu0 0.0
        %2891 = vmatpush1.xpose.msra.mxu0 0.0
        %2892 = vmatprep.subr.mxu0 0.0
        %2893 = vmatpush1.xpose.msra.mxu0 0.0
        %2894 = vmatprep.subr.mxu0 0.0
        %2895 = vmatpush1.xpose.msra.mxu0 0.0
        %2896 = vmatprep.subr.mxu0 0.0
        %2897 = vmatpush1.xpose.msra.mxu0 0.0
        %2898 = vmatprep.subr.mxu0 0.0
        %2899 = vmatpush1.xpose.msra.mxu0 0.0
        %2900 = vmatprep.subr.mxu0 0.0
        %2901 = vmatpush1.xpose.msra.mxu0 0.0
        %2902 = vmatprep.mubr.f32.mxu0 0.0
        %2903 = vmatmul.mubr.f32.gmra.mrb[0].mxu0 %v2827
        %v2904 = vpop.f32.mrb[0].mxu0
        %v2905 = vadd.f32 0.0, %v2904
        %v2906 = vpop.f32.mrb[0].mxu0
        %2907 = vmatprep.mubr.f32.mxu0 0.0
        %2908 = vmatmul.mubr.f32.gmra.mrb[0].mxu0 %v2830
        %v2909 = vpop.f32.mrb[0].mxu0
        %v2910 = vadd.f32 0.0, %v2909
        %v2911 = vpop.f32.mrb[0].mxu0
        %2912 = vdwg.mxu0
        %v2913 = vsel %vm1313, %v2818, -inf
        %2914 = vmax.xlane.f32.xlu0 %v2913
        %v2915 = vpop.xlane.xlu0 %2914
        %v2916 = vsel %vm1313, %v2823, -inf
        %2917 = vmax.xlane.f32.xlu0 %v2916
        %v2918 = vpop.xlane.xlu0 %2917
        %v2919 = vsel %vm1313, %v2905, -inf
        %2920 = vmax.xlane.f32.xlu0 %v2919
        %v2921 = vpop.xlane.xlu0 %2920
        %v2922 = vsel %vm1313, %v2910, -inf
        %2923 = vmax.xlane.f32.xlu0 %v2922
        %v2924 = vpop.xlane.xlu0 %2923
        %v2925 = vsub.f32 %v2818, %v2915
        %v2926 = vsub.f32 %v2823, %v2918
        %v2927 = vsub.f32 %v2905, %v2921
        %v2928 = vsub.f32 %v2910, %v2924
        %v2929 = vmul.f32 %v2925, 1.442695
        %v2930 = vpow.pop %v2929
        %v2931 = vmul.f32 %v2926, 1.442695
        %v2932 = vpow.pop %v2931
        %v2933 = vmul.f32 %v2927, 1.442695
        %v2934 = vpow.pop %v2933
        %v2935 = vmul.f32 %v2928, 1.442695
        %v2936 = vpow.pop %v2935
        %v2937 = vsel %vm1313, %v2930, 0.0
        %2938 = vadd.xlane.f32.xlu0 %v2937
        %v2939 = vpop.xlane.xlu0 %2938
        %v2940 = vsel %vm1313, %v2932, 0.0
        %2941 = vadd.xlane.f32.xlu0 %v2940
        %v2942 = vpop.xlane.xlu0 %2941
        %v2943 = vsel %vm1313, %v2934, 0.0
        %2944 = vadd.xlane.f32.xlu0 %v2943
        %v2945 = vpop.xlane.xlu0 %2944
        %v2946 = vsel %vm1313, %v2936, 0.0
        %2947 = vadd.xlane.f32.xlu0 %v2946
        %v2948 = vpop.xlane.xlu0 %2947
        %v2949 = vrcp.pop %v2939
        %v2950 = vmul.f32 %v2930, %v2949
        %v2951 = vrcp.pop %v2942
        %v2952 = vmul.f32 %v2932, %v2951
        %v2953 = vrcp.pop %v2945
        %v2954 = vmul.f32 %v2934, %v2953
        %v2955 = vrcp.pop %v2948
        %v2956 = vmul.f32 %v2936, %v2955
        %v2958 = vsel %vm1313, %v2950, 0
        %v2961 = vsel %vm1313, %v2952, 0
        %2963 = vmatprep.subr.mxu0 0.0
        %2964 = vmatpush1.msra.mxu0 %v2725
        %2965 = vmatprep.subr.mxu0 0.0
        %2966 = vmatpush1.msra.mxu0 %v2728
        %2967 = vmatprep.subr.mxu0 0.0
        %2968 = vmatpush1.msra.mxu0 0.0
        %2969 = vmatprep.subr.mxu0 0.0
        %2970 = vmatpush1.msra.mxu0 0.0
        %2971 = vmatprep.subr.mxu0 0.0
        %2972 = vmatpush1.msra.mxu0 0.0
        %2973 = vmatprep.subr.mxu0 0.0
        %2974 = vmatpush1.msra.mxu0 0.0
        %2975 = vmatprep.subr.mxu0 0.0
        %2976 = vmatpush1.msra.mxu0 0.0
        %2977 = vmatprep.subr.mxu0 0.0
        %2978 = vmatpush1.msra.mxu0 0.0
        %2979 = vmatprep.subr.mxu0 0.0
        %2980 = vmatpush1.msra.mxu0 0.0
        %2981 = vmatprep.subr.mxu0 0.0
        %2982 = vmatpush1.msra.mxu0 0.0
        %2983 = vmatprep.subr.mxu0 0.0
        %2984 = vmatpush1.msra.mxu0 0.0
        %2985 = vmatprep.subr.mxu0 0.0
        %2986 = vmatpush1.msra.mxu0 0.0
        %2987 = vmatprep.subr.mxu0 0.0
        %2988 = vmatpush1.msra.mxu0 0.0
        %2989 = vmatprep.subr.mxu0 0.0
        %2990 = vmatpush1.msra.mxu0 0.0
        %2991 = vmatprep.subr.mxu0 0.0
        %2992 = vmatpush1.msra.mxu0 0.0
        %2993 = vmatprep.subr.mxu0 0.0
        %2994 = vmatpush1.msra.mxu0 0.0
        %2995 = vmatprep.subr.mxu0 0.0
        %2996 = vmatpush1.msra.mxu0 0.0
        %2997 = vmatprep.subr.mxu0 0.0
        %2998 = vmatpush1.msra.mxu0 0.0
        %2999 = vmatprep.subr.mxu0 0.0
        %3000 = vmatpush1.msra.mxu0 0.0
        %3001 = vmatprep.subr.mxu0 0.0
        %3002 = vmatpush1.msra.mxu0 0.0
        %3003 = vmatprep.subr.mxu0 0.0
        %3004 = vmatpush1.msra.mxu0 0.0
        %3005 = vmatprep.subr.mxu0 0.0
        %3006 = vmatpush1.msra.mxu0 0.0
        %3007 = vmatprep.subr.mxu0 0.0
        %3008 = vmatpush1.msra.mxu0 0.0
        %3009 = vmatprep.subr.mxu0 0.0
        %3010 = vmatpush1.msra.mxu0 0.0
        %3011 = vmatprep.subr.mxu0 0.0
        %3012 = vmatpush1.msra.mxu0 0.0
        %3013 = vmatprep.subr.mxu0 0.0
        %3014 = vmatpush1.msra.mxu0 0.0
        %3015 = vmatprep.subr.mxu0 0.0
        %3016 = vmatpush1.msra.mxu0 0.0
        %3017 = vmatprep.subr.mxu0 0.0
        %3018 = vmatpush1.msra.mxu0 0.0
        %3019 = vmatprep.subr.mxu0 0.0
        %3020 = vmatpush1.msra.mxu0 0.0
        %3021 = vmatprep.subr.mxu0 0.0
        %3022 = vmatpush1.msra.mxu0 0.0
        %3023 = vmatprep.subr.mxu0 0.0
        %3024 = vmatpush1.msra.mxu0 0.0
        %3025 = vmatprep.subr.mxu0 0.0
        %3026 = vmatpush1.msra.mxu0 0.0
        %3027 = vmatprep.mubr.f32.mxu0 0.0
        %3028 = vmatmul.mubr.f32.gmra.mrb[0].mxu0 %v2958
        %v3029 = vpop.f32.mrb[0].mxu0
        %v3030 = vadd.f32 0.0, %v3029
        %v3031 = vpop.f32.mrb[0].mxu0
        %3032 = vmatprep.mubr.f32.mxu0 0.0
        %3033 = vmatmul.mubr.f32.gmra.mrb[0].mxu0 %v2961
        %v3034 = vpop.f32.mrb[0].mxu0
        %v3035 = vadd.f32 0.0, %v3034
        %v3036 = vpop.f32.mrb[0].mxu0
        %3037 = vdwg.mxu0
        %v3039 = vsel %vm1313, %v2954, 0
        %v3042 = vsel %vm1313, %v2956, 0
        %3044 = vmatprep.subr.mxu0 0.0
        %3045 = vmatpush1.msra.mxu0 %v2733
        %3046 = vmatprep.subr.mxu0 0.0
        %3047 = vmatpush1.msra.mxu0 %v2736
        %3048 = vmatprep.subr.mxu0 0.0
        %3049 = vmatpush1.msra.mxu0 0.0
        %3050 = vmatprep.subr.mxu0 0.0
        %3051 = vmatpush1.msra.mxu0 0.0
        %3052 = vmatprep.subr.mxu0 0.0
        %3053 = vmatpush1.msra.mxu0 0.0
        %3054 = vmatprep.subr.mxu0 0.0
        %3055 = vmatpush1.msra.mxu0 0.0
        %3056 = vmatprep.subr.mxu0 0.0
        %3057 = vmatpush1.msra.mxu0 0.0
        %3058 = vmatprep.subr.mxu0 0.0
        %3059 = vmatpush1.msra.mxu0 0.0
        %3060 = vmatprep.subr.mxu0 0.0
        %3061 = vmatpush1.msra.mxu0 0.0
        %3062 = vmatprep.subr.mxu0 0.0
        %3063 = vmatpush1.msra.mxu0 0.0
        %3064 = vmatprep.subr.mxu0 0.0
        %3065 = vmatpush1.msra.mxu0 0.0
        %3066 = vmatprep.subr.mxu0 0.0
        %3067 = vmatpush1.msra.mxu0 0.0
        %3068 = vmatprep.subr.mxu0 0.0
        %3069 = vmatpush1.msra.mxu0 0.0
        %3070 = vmatprep.subr.mxu0 0.0
        %3071 = vmatpush1.msra.mxu0 0.0
        %3072 = vmatprep.subr.mxu0 0.0
        %3073 = vmatpush1.msra.mxu0 0.0
        %3074 = vmatprep.subr.mxu0 0.0
        %3075 = vmatpush1.msra.mxu0 0.0
        %3076 = vmatprep.subr.mxu0 0.0
        %3077 = vmatpush1.msra.mxu0 0.0
        %3078 = vmatprep.subr.mxu0 0.0
        %3079 = vmatpush1.msra.mxu0 0.0
        %3080 = vmatprep.subr.mxu0 0.0
        %3081 = vmatpush1.msra.mxu0 0.0
        %3082 = vmatprep.subr.mxu0 0.0
        %3083 = vmatpush1.msra.mxu0 0.0
        %3084 = vmatprep.subr.mxu0 0.0
        %3085 = vmatpush1.msra.mxu0 0.0
        %3086 = vmatprep.subr.mxu0 0.0
        %3087 = vmatpush1.msra.mxu0 0.0
        %3088 = vmatprep.subr.mxu0 0.0
        %3089 = vmatpush1.msra.mxu0 0.0
        %3090 = vmatprep.subr.mxu0 0.0
        %3091 = vmatpush1.msra.mxu0 0.0
        %3092 = vmatprep.subr.mxu0 0.0
        %3093 = vmatpush1.msra.mxu0 0.0
        %3094 = vmatprep.subr.mxu0 0.0
        %3095 = vmatpush1.msra.mxu0 0.0
        %3096 = vmatprep.subr.mxu0 0.0
        %3097 = vmatpush1.msra.mxu0 0.0
        %3098 = vmatprep.subr.mxu0 0.0
        %3099 = vmatpush1.msra.mxu0 0.0
        %3100 = vmatprep.subr.mxu0 0.0
        %3101 = vmatpush1.msra.mxu0 0.0
        %3102 = vmatprep.subr.mxu0 0.0
        %3103 = vmatpush1.msra.mxu0 0.0
        %3104 = vmatprep.subr.mxu0 0.0
        %3105 = vmatpush1.msra.mxu0 0.0
        %3106 = vmatprep.subr.mxu0 0.0
        %3107 = vmatpush1.msra.mxu0 0.0
        %3108 = vmatprep.mubr.f32.mxu0 0.0
        %3109 = vmatmul.mubr.f32.gmra.mrb[0].mxu0 %v3039
        %v3110 = vpop.f32.mrb[0].mxu0
        %v3111 = vadd.f32 0.0, %v3110
        %v3112 = vpop.f32.mrb[0].mxu0
        %3113 = vmatprep.mubr.f32.mxu0 0.0
        %3114 = vmatmul.mubr.f32.gmra.mrb[0].mxu0 %v3042
        %v3115 = vpop.f32.mrb[0].mxu0
        %v3116 = vadd.f32 0.0, %v3115
        %v3117 = vpop.f32.mrb[0].mxu0
        %3118 = vdwg.mxu0
        %v3119 = vpack.c.bf16 %v3035, %v3030
        %v3120 = vpack.c.bf16 %v3116, %v3111
        %s3121 = scalar_lea.vmem %s682, 32
        %v3122 = vld [vmem:[%s3121] sm:$0xf]
        %v3123 = vld [vmem:[%s3121 + $0x4] sm:$0xf]
        %v3124 = vld [vmem:[%s3121 + $0x8] sm:$0xf]
        %v3125 = vld [vmem:[%s3121 + $0xc] sm:$0xf]
        %v3130 = vunpack.c.l.b16 %v3122
        %v3131 = vunpack.c.l.b16 %v3123
        %v3132 = vunpack.c.l.b16 %v3124
        %v3133 = vunpack.c.l.b16 %v3125
        %v3134 = vpack.c.b16 %v3131, %v3130
        %v3135 = vpack.c.b16 %v3133, %v3132
        %v3139 = vsel %vm1138, %v3119, 0
        %v3142 = vsel %vm1138, %v3120, 0
        %3144 = vmatprep.subr.bf16.mxu0 0
        %3145 = vmatpush1.bf16.msra.mxu0 %v3134
        %3146 = vmatprep.subr.bf16.mxu0 0
        %3147 = vmatpush1.bf16.msra.mxu0 %v3135
        %3148 = vmatprep.subr.bf16.mxu0 0
        %3149 = vmatpush1.bf16.msra.mxu0 0
        %3150 = vmatprep.subr.bf16.mxu0 0
        %3151 = vmatpush1.bf16.msra.mxu0 0
        %3152 = vmatprep.subr.bf16.mxu0 0
        %3153 = vmatpush1.bf16.msra.mxu0 0
        %3154 = vmatprep.subr.bf16.mxu0 0
        %3155 = vmatpush1.bf16.msra.mxu0 0
        %3156 = vmatprep.subr.bf16.mxu0 0
        %3157 = vmatpush1.bf16.msra.mxu0 0
        %3158 = vmatprep.subr.bf16.mxu0 0
        %3159 = vmatpush1.bf16.msra.mxu0 0
        %3160 = vmatprep.subr.bf16.mxu0 0
        %3161 = vmatpush1.bf16.msra.mxu0 0
        %3162 = vmatprep.subr.bf16.mxu0 0
        %3163 = vmatpush1.bf16.msra.mxu0 0
        %3164 = vmatprep.subr.bf16.mxu0 0
        %3165 = vmatpush1.bf16.msra.mxu0 0
        %3166 = vmatprep.subr.bf16.mxu0 0
        %3167 = vmatpush1.bf16.msra.mxu0 0
        %3168 = vmatprep.subr.bf16.mxu0 0
        %3169 = vmatpush1.bf16.msra.mxu0 0
        %3170 = vmatprep.subr.bf16.mxu0 0
        %3171 = vmatpush1.bf16.msra.mxu0 0
        %3172 = vmatprep.subr.bf16.mxu0 0
        %3173 = vmatpush1.bf16.msra.mxu0 0
        %3174 = vmatprep.subr.bf16.mxu0 0
        %3175 = vmatpush1.bf16.msra.mxu0 0
        %3176 = vmatprep.mubr.bf16.mxu0 0
        %3177 = vmatmul.mubr.bf16.gmra.mrb[0].mxu0 %v3139
        %v3178 = vpop.f32.mrb[0].mxu0
        %v3179 = vadd.f32 0.0, %v3178
        %v3180 = vpop.f32.mrb[0].mxu0
        %v3181 = vpop.f32.mrb[0].mxu0
        %v3182 = vadd.f32 0.0, %v3181
        %v3183 = vpop.f32.mrb[0].mxu0
        %3184 = vmatprep.mubr.bf16.mxu0 0
        %3185 = vmatmul.mubr.bf16.gmra.mrb[0].mxu0 %v3142
        %v3186 = vpop.f32.mrb[0].mxu0
        %v3187 = vadd.f32 0.0, %v3186
        %v3188 = vpop.f32.mrb[0].mxu0
        %v3189 = vpop.f32.mrb[0].mxu0
        %v3190 = vadd.f32 0.0, %v3189
        %v3191 = vpop.f32.mrb[0].mxu0
        %3192 = vdwg.mxu0
        %v3193 = vadd.f32 %v2379, %v3179
        %v3194 = vadd.f32 %v2382, %v3182
        %v3195 = vadd.f32 %v2387, %v3187
        %v3196 = vadd.f32 %v2390, %v3190
        %s3197 = scalar_lea.vmem %s667, 192
        %v3198 = vld [vmem:[%s3197] sm:$0xf]
        %v3199 = vld [vmem:[%s3197 + $0x4] sm:$0xf]
        %v3200 = vld [vmem:[%s3197 + $0x8] sm:$0xf]
        %v3201 = vld [vmem:[%s3197 + $0xc] sm:$0xf]
        %v3202 = vld [vmem:[%s3197 + $0x10] sm:$0xf]
        %v3203 = vld [vmem:[%s3197 + $0x14] sm:$0xf]
        %v3204 = vld [vmem:[%s3197 + $0x18] sm:$0xf]
        %v3205 = vld [vmem:[%s3197 + $0x1c] sm:$0xf]
        %v3206 = vld [vmem:[%s3197 + $0x20] sm:$0xf]
        %v3207 = vld [vmem:[%s3197 + $0x24] sm:$0xf]
        %v3208 = vld [vmem:[%s3197 + $0x28] sm:$0xf]
        %v3209 = vld [vmem:[%s3197 + $0x2c] sm:$0xf]
        %v3210 = vld [vmem:[%s3197 + $0x30] sm:$0xf]
        %v3211 = vld [vmem:[%s3197 + $0x34] sm:$0xf]
        %v3212 = vld [vmem:[%s3197 + $0x38] sm:$0xf]
        %v3213 = vld [vmem:[%s3197 + $0x3c] sm:$0xf]
        %v3230 = vunpack.c.l.b16 %v3198
        %v3231 = vunpack.c.l.b16 %v3199
        %v3232 = vunpack.c.l.b16 %v3200
        %v3233 = vunpack.c.l.b16 %v3201
        %v3234 = vunpack.c.l.b16 %v3202
        %v3235 = vunpack.c.l.b16 %v3203
        %v3236 = vunpack.c.l.b16 %v3204
        %v3237 = vunpack.c.l.b16 %v3205
        %v3238 = vunpack.c.l.b16 %v3206
        %v3239 = vunpack.c.l.b16 %v3207
        %v3240 = vunpack.c.l.b16 %v3208
        %v3241 = vunpack.c.l.b16 %v3209
        %v3242 = vunpack.c.l.b16 %v3210
        %v3243 = vunpack.c.l.b16 %v3211
        %v3244 = vunpack.c.l.b16 %v3212
        %v3245 = vunpack.c.l.b16 %v3213
        %v3246 = vpack.c.b16 %v3231, %v3230
        %v3247 = vpack.c.b16 %v3233, %v3232
        %v3248 = vpack.c.b16 %v3235, %v3234
        %v3249 = vpack.c.b16 %v3237, %v3236
        %v3250 = vpack.c.b16 %v3239, %v3238
        %v3251 = vpack.c.b16 %v3241, %v3240
        %v3252 = vpack.c.b16 %v3243, %v3242
        %v3253 = vpack.c.b16 %v3245, %v3244
        %3262 = vmatprep.subr.bf16.mxu0 0
        %3263 = vmatpush1.bf16.msra.mxu0 %v3246
        %3264 = vmatprep.subr.bf16.mxu0 0
        %3265 = vmatpush1.bf16.msra.mxu0 %v3247
        %3266 = vmatprep.subr.bf16.mxu0 0
        %3267 = vmatpush1.bf16.msra.mxu0 %v3248
        %3268 = vmatprep.subr.bf16.mxu0 0
        %3269 = vmatpush1.bf16.msra.mxu0 %v3249
        %3270 = vmatprep.subr.bf16.mxu0 0
        %3271 = vmatpush1.bf16.msra.mxu0 %v3250
        %3272 = vmatprep.subr.bf16.mxu0 0
        %3273 = vmatpush1.bf16.msra.mxu0 %v3251
        %3274 = vmatprep.subr.bf16.mxu0 0
        %3275 = vmatpush1.bf16.msra.mxu0 %v3252
        %3276 = vmatprep.subr.bf16.mxu0 0
        %3277 = vmatpush1.bf16.msra.mxu0 %v3253
        %3278 = vmatprep.subr.bf16.mxu0 0
        %3279 = vmatpush1.bf16.msra.mxu0 0
        %3280 = vmatprep.subr.bf16.mxu0 0
        %3281 = vmatpush1.bf16.msra.mxu0 0
        %3282 = vmatprep.subr.bf16.mxu0 0
        %3283 = vmatpush1.bf16.msra.mxu0 0
        %3284 = vmatprep.subr.bf16.mxu0 0
        %3285 = vmatpush1.bf16.msra.mxu0 0
        %3286 = vmatprep.subr.bf16.mxu0 0
        %3287 = vmatpush1.bf16.msra.mxu0 0
        %3288 = vmatprep.subr.bf16.mxu0 0
        %3289 = vmatpush1.bf16.msra.mxu0 0
        %3290 = vmatprep.subr.bf16.mxu0 0
        %3291 = vmatpush1.bf16.msra.mxu0 0
        %3292 = vmatprep.subr.bf16.mxu0 0
        %3293 = vmatpush1.bf16.msra.mxu0 0
        %3294 = vmatprep.mubr.bf16.mxu0 0
        %3295 = vmatmul.mubr.bf16.gmra.mrb[0].mxu0 %v793
        %v3296 = vpop.f32.mrb[0].mxu0
        %v3297 = vadd.f32 0.0, %v3296
        %v3298 = vpop.f32.mrb[0].mxu0
        %v3299 = vpop.f32.mrb[0].mxu0
        %v3300 = vadd.f32 0.0, %v3299
        %v3301 = vpop.f32.mrb[0].mxu0
        %3302 = vmatprep.mubr.bf16.mxu0 0
        %3303 = vmatmul.mubr.bf16.gmra.mrb[0].mxu0 %v794
        %v3304 = vpop.f32.mrb[0].mxu0
        %v3305 = vadd.f32 0.0, %v3304
        %v3306 = vpop.f32.mrb[0].mxu0
        %v3307 = vpop.f32.mrb[0].mxu0
        %v3308 = vadd.f32 0.0, %v3307
        %v3309 = vpop.f32.mrb[0].mxu0
        %3310 = vdwg.mxu0
        %v3311 = vmul.f32 %v3297, 0.17677669
        %v3312 = vmul.f32 %v3300, 0.17677669
        %v3313 = vmul.f32 %v3305, 0.17677669
        %v3314 = vmul.f32 %v3308, 0.17677669
        %s3315 = scalar_lea.vmem %s672, 192
        %v3316 = vld [vmem:[%s3315] sm:$0xf]
        %v3317 = vld [vmem:[%s3315 + $0x4] sm:$0xf]
        %v3318 = vld [vmem:[%s3315 + $0x8] sm:$0xf]
        %v3319 = vld [vmem:[%s3315 + $0xc] sm:$0xf]
        %v3320 = vld [vmem:[%s3315 + $0x10] sm:$0xf]
        %v3321 = vld [vmem:[%s3315 + $0x14] sm:$0xf]
        %v3322 = vld [vmem:[%s3315 + $0x18] sm:$0xf]
        %v3323 = vld [vmem:[%s3315 + $0x1c] sm:$0xf]
        %v3324 = vld [vmem:[%s3315 + $0x20] sm:$0xf]
        %v3325 = vld [vmem:[%s3315 + $0x24] sm:$0xf]
        %v3326 = vld [vmem:[%s3315 + $0x28] sm:$0xf]
        %v3327 = vld [vmem:[%s3315 + $0x2c] sm:$0xf]
        %v3328 = vld [vmem:[%s3315 + $0x30] sm:$0xf]
        %v3329 = vld [vmem:[%s3315 + $0x34] sm:$0xf]
        %v3330 = vld [vmem:[%s3315 + $0x38] sm:$0xf]
        %v3331 = vld [vmem:[%s3315 + $0x3c] sm:$0xf]
        %v3348 = vunpack.c.l.b16 %v3316
        %v3349 = vunpack.c.l.b16 %v3317
        %v3350 = vunpack.c.l.b16 %v3318
        %v3351 = vunpack.c.l.b16 %v3319
        %v3352 = vunpack.c.l.b16 %v3320
        %v3353 = vunpack.c.l.b16 %v3321
        %v3354 = vunpack.c.l.b16 %v3322
        %v3355 = vunpack.c.l.b16 %v3323
        %v3356 = vunpack.c.l.b16 %v3324
        %v3357 = vunpack.c.l.b16 %v3325
        %v3358 = vunpack.c.l.b16 %v3326
        %v3359 = vunpack.c.l.b16 %v3327
        %v3360 = vunpack.c.l.b16 %v3328
        %v3361 = vunpack.c.l.b16 %v3329
        %v3362 = vunpack.c.l.b16 %v3330
        %v3363 = vunpack.c.l.b16 %v3331
        %v3364 = vpack.c.b16 %v3349, %v3348
        %v3365 = vpack.c.b16 %v3351, %v3350
        %v3366 = vpack.c.b16 %v3353, %v3352
        %v3367 = vpack.c.b16 %v3355, %v3354
        %v3368 = vpack.c.b16 %v3357, %v3356
        %v3369 = vpack.c.b16 %v3359, %v3358
        %v3370 = vpack.c.b16 %v3361, %v3360
        %v3371 = vpack.c.b16 %v3363, %v3362
        %3380 = vmatprep.subr.bf16.mxu0 0
        %3381 = vmatpush1.bf16.msra.mxu0 %v3364
        %3382 = vmatprep.subr.bf16.mxu0 0
        %3383 = vmatpush1.bf16.msra.mxu0 %v3365
        %3384 = vmatprep.subr.bf16.mxu0 0
        %3385 = vmatpush1.bf16.msra.mxu0 %v3366
        %3386 = vmatprep.subr.bf16.mxu0 0
        %3387 = vmatpush1.bf16.msra.mxu0 %v3367
        %3388 = vmatprep.subr.bf16.mxu0 0
        %3389 = vmatpush1.bf16.msra.mxu0 %v3368
        %3390 = vmatprep.subr.bf16.mxu0 0
        %3391 = vmatpush1.bf16.msra.mxu0 %v3369
        %3392 = vmatprep.subr.bf16.mxu0 0
        %3393 = vmatpush1.bf16.msra.mxu0 %v3370
        %3394 = vmatprep.subr.bf16.mxu0 0
        %3395 = vmatpush1.bf16.msra.mxu0 %v3371
        %3396 = vmatprep.subr.bf16.mxu0 0
        %3397 = vmatpush1.bf16.msra.mxu0 0
        %3398 = vmatprep.subr.bf16.mxu0 0
        %3399 = vmatpush1.bf16.msra.mxu0 0
        %3400 = vmatprep.subr.bf16.mxu0 0
        %3401 = vmatpush1.bf16.msra.mxu0 0
        %3402 = vmatprep.subr.bf16.mxu0 0
        %3403 = vmatpush1.bf16.msra.mxu0 0
        %3404 = vmatprep.subr.bf16.mxu0 0
        %3405 = vmatpush1.bf16.msra.mxu0 0
        %3406 = vmatprep.subr.bf16.mxu0 0
        %3407 = vmatpush1.bf16.msra.mxu0 0
        %3408 = vmatprep.subr.bf16.mxu0 0
        %3409 = vmatpush1.bf16.msra.mxu0 0
        %3410 = vmatprep.subr.bf16.mxu0 0
        %3411 = vmatpush1.bf16.msra.mxu0 0
        %3412 = vmatprep.mubr.bf16.mxu0 0
        %3413 = vmatmul.mubr.bf16.gmra.mrb[0].mxu0 %v793
        %v3414 = vpop.f32.mrb[0].mxu0
        %v3415 = vadd.f32 0.0, %v3414
        %v3416 = vpop.f32.mrb[0].mxu0
        %v3417 = vpop.f32.mrb[0].mxu0
        %v3418 = vadd.f32 0.0, %v3417
        %v3419 = vpop.f32.mrb[0].mxu0
        %3420 = vmatprep.mubr.bf16.mxu0 0
        %3421 = vmatmul.mubr.bf16.gmra.mrb[0].mxu0 %v794
        %v3422 = vpop.f32.mrb[0].mxu0
        %v3423 = vadd.f32 0.0, %v3422
        %v3424 = vpop.f32.mrb[0].mxu0
        %v3425 = vpop.f32.mrb[0].mxu0
        %v3426 = vadd.f32 0.0, %v3425
        %v3427 = vpop.f32.mrb[0].mxu0
        %3428 = vdwg.mxu0
        %s3429 = scalar_lea.vmem %s677, 192
        %v3430 = vld [vmem:[%s3429] sm:$0xf]
        %v3431 = vld [vmem:[%s3429 + $0x4] sm:$0xf]
        %v3432 = vld [vmem:[%s3429 + $0x8] sm:$0xf]
        %v3433 = vld [vmem:[%s3429 + $0xc] sm:$0xf]
        %v3434 = vld [vmem:[%s3429 + $0x10] sm:$0xf]
        %v3435 = vld [vmem:[%s3429 + $0x14] sm:$0xf]
        %v3436 = vld [vmem:[%s3429 + $0x18] sm:$0xf]
        %v3437 = vld [vmem:[%s3429 + $0x1c] sm:$0xf]
        %v3438 = vld [vmem:[%s3429 + $0x20] sm:$0xf]
        %v3439 = vld [vmem:[%s3429 + $0x24] sm:$0xf]
        %v3440 = vld [vmem:[%s3429 + $0x28] sm:$0xf]
        %v3441 = vld [vmem:[%s3429 + $0x2c] sm:$0xf]
        %v3442 = vld [vmem:[%s3429 + $0x30] sm:$0xf]
        %v3443 = vld [vmem:[%s3429 + $0x34] sm:$0xf]
        %v3444 = vld [vmem:[%s3429 + $0x38] sm:$0xf]
        %v3445 = vld [vmem:[%s3429 + $0x3c] sm:$0xf]
        %v3462 = vunpack.c.l.b16 %v3430
        %v3463 = vunpack.c.l.b16 %v3431
        %v3464 = vunpack.c.l.b16 %v3432
        %v3465 = vunpack.c.l.b16 %v3433
        %v3466 = vunpack.c.l.b16 %v3434
        %v3467 = vunpack.c.l.b16 %v3435
        %v3468 = vunpack.c.l.b16 %v3436
        %v3469 = vunpack.c.l.b16 %v3437
        %v3470 = vunpack.c.l.b16 %v3438
        %v3471 = vunpack.c.l.b16 %v3439
        %v3472 = vunpack.c.l.b16 %v3440
        %v3473 = vunpack.c.l.b16 %v3441
        %v3474 = vunpack.c.l.b16 %v3442
        %v3475 = vunpack.c.l.b16 %v3443
        %v3476 = vunpack.c.l.b16 %v3444
        %v3477 = vunpack.c.l.b16 %v3445
        %v3478 = vpack.c.b16 %v3463, %v3462
        %v3479 = vpack.c.b16 %v3465, %v3464
        %v3480 = vpack.c.b16 %v3467, %v3466
        %v3481 = vpack.c.b16 %v3469, %v3468
        %v3482 = vpack.c.b16 %v3471, %v3470
        %v3483 = vpack.c.b16 %v3473, %v3472
        %v3484 = vpack.c.b16 %v3475, %v3474
        %v3485 = vpack.c.b16 %v3477, %v3476
        %3494 = vmatprep.subr.bf16.mxu0 0
        %3495 = vmatpush1.bf16.msra.mxu0 %v3478
        %3496 = vmatprep.subr.bf16.mxu0 0
        %3497 = vmatpush1.bf16.msra.mxu0 %v3479
        %3498 = vmatprep.subr.bf16.mxu0 0
        %3499 = vmatpush1.bf16.msra.mxu0 %v3480
        %3500 = vmatprep.subr.bf16.mxu0 0
        %3501 = vmatpush1.bf16.msra.mxu0 %v3481
        %3502 = vmatprep.subr.bf16.mxu0 0
        %3503 = vmatpush1.bf16.msra.mxu0 %v3482
        %3504 = vmatprep.subr.bf16.mxu0 0
        %3505 = vmatpush1.bf16.msra.mxu0 %v3483
        %3506 = vmatprep.subr.bf16.mxu0 0
        %3507 = vmatpush1.bf16.msra.mxu0 %v3484
        %3508 = vmatprep.subr.bf16.mxu0 0
        %3509 = vmatpush1.bf16.msra.mxu0 %v3485
        %3510 = vmatprep.subr.bf16.mxu0 0
        %3511 = vmatpush1.bf16.msra.mxu0 0
        %3512 = vmatprep.subr.bf16.mxu0 0
        %3513 = vmatpush1.bf16.msra.mxu0 0
        %3514 = vmatprep.subr.bf16.mxu0 0
        %3515 = vmatpush1.bf16.msra.mxu0 0
        %3516 = vmatprep.subr.bf16.mxu0 0
        %3517 = vmatpush1.bf16.msra.mxu0 0
        %3518 = vmatprep.subr.bf16.mxu0 0
        %3519 = vmatpush1.bf16.msra.mxu0 0
        %3520 = vmatprep.subr.bf16.mxu0 0
        %3521 = vmatpush1.bf16.msra.mxu0 0
        %3522 = vmatprep.subr.bf16.mxu0 0
        %3523 = vmatpush1.bf16.msra.mxu0 0
        %3524 = vmatprep.subr.bf16.mxu0 0
        %3525 = vmatpush1.bf16.msra.mxu0 0
        %3526 = vmatprep.mubr.bf16.mxu0 0
        %3527 = vmatmul.mubr.bf16.gmra.mrb[0].mxu0 %v793
        %v3528 = vpop.f32.mrb[0].mxu0
        %v3529 = vadd.f32 0.0, %v3528
        %v3530 = vpop.f32.mrb[0].mxu0
        %v3531 = vpop.f32.mrb[0].mxu0
        %v3532 = vadd.f32 0.0, %v3531
        %v3533 = vpop.f32.mrb[0].mxu0
        %3534 = vmatprep.mubr.bf16.mxu0 0
        %3535 = vmatmul.mubr.bf16.gmra.mrb[0].mxu0 %v794
        %v3536 = vpop.f32.mrb[0].mxu0
        %v3537 = vadd.f32 0.0, %v3536
        %v3538 = vpop.f32.mrb[0].mxu0
        %v3539 = vpop.f32.mrb[0].mxu0
        %v3540 = vadd.f32 0.0, %v3539
        %v3541 = vpop.f32.mrb[0].mxu0
        %3542 = vdwg.mxu0
        %v3544 = vsel %vm1138, %v3311, 0
        %v3547 = vsel %vm1138, %v3312, 0
        %v3550 = vsel %vm1138, %v3415, 0
        %v3553 = vsel %vm1138, %v3418, 0
        %3555 = vmatprep.subr.mxu0 0.0
        %3556 = vmatpush1.xpose.msra.mxu0 %v3550
        %3557 = vmatprep.subr.mxu0 0.0
        %3558 = vmatpush1.xpose.msra.mxu0 %v3553
        %3559 = vmatprep.subr.mxu0 0.0
        %3560 = vmatpush1.xpose.msra.mxu0 0.0
        %3561 = vmatprep.subr.mxu0 0.0
        %3562 = vmatpush1.xpose.msra.mxu0 0.0
        %3563 = vmatprep.subr.mxu0 0.0
        %3564 = vmatpush1.xpose.msra.mxu0 0.0
        %3565 = vmatprep.subr.mxu0 0.0
        %3566 = vmatpush1.xpose.msra.mxu0 0.0
        %3567 = vmatprep.subr.mxu0 0.0
        %3568 = vmatpush1.xpose.msra.mxu0 0.0
        %3569 = vmatprep.subr.mxu0 0.0
        %3570 = vmatpush1.xpose.msra.mxu0 0.0
        %3571 = vmatprep.subr.mxu0 0.0
        %3572 = vmatpush1.xpose.msra.mxu0 0.0
        %3573 = vmatprep.subr.mxu0 0.0
        %3574 = vmatpush1.xpose.msra.mxu0 0.0
        %3575 = vmatprep.subr.mxu0 0.0
        %3576 = vmatpush1.xpose.msra.mxu0 0.0
        %3577 = vmatprep.subr.mxu0 0.0
        %3578 = vmatpush1.xpose.msra.mxu0 0.0
        %3579 = vmatprep.subr.mxu0 0.0
        %3580 = vmatpush1.xpose.msra.mxu0 0.0
        %3581 = vmatprep.subr.mxu0 0.0
        %3582 = vmatpush1.xpose.msra.mxu0 0.0
        %3583 = vmatprep.subr.mxu0 0.0
        %3584 = vmatpush1.xpose.msra.mxu0 0.0
        %3585 = vmatprep.subr.mxu0 0.0
        %3586 = vmatpush1.xpose.msra.mxu0 0.0
        %3587 = vmatprep.subr.mxu0 0.0
        %3588 = vmatpush1.xpose.msra.mxu0 0.0
        %3589 = vmatprep.subr.mxu0 0.0
        %3590 = vmatpush1.xpose.msra.mxu0 0.0
        %3591 = vmatprep.subr.mxu0 0.0
        %3592 = vmatpush1.xpose.msra.mxu0 0.0
        %3593 = vmatprep.subr.mxu0 0.0
        %3594 = vmatpush1.xpose.msra.mxu0 0.0
        %3595 = vmatprep.subr.mxu0 0.0
        %3596 = vmatpush1.xpose.msra.mxu0 0.0
        %3597 = vmatprep.subr.mxu0 0.0
        %3598 = vmatpush1.xpose.msra.mxu0 0.0
        %3599 = vmatprep.subr.mxu0 0.0
        %3600 = vmatpush1.xpose.msra.mxu0 0.0
        %3601 = vmatprep.subr.mxu0 0.0
        %3602 = vmatpush1.xpose.msra.mxu0 0.0
        %3603 = vmatprep.subr.mxu0 0.0
        %3604 = vmatpush1.xpose.msra.mxu0 0.0
        %3605 = vmatprep.subr.mxu0 0.0
        %3606 = vmatpush1.xpose.msra.mxu0 0.0
        %3607 = vmatprep.subr.mxu0 0.0
        %3608 = vmatpush1.xpose.msra.mxu0 0.0
        %3609 = vmatprep.subr.mxu0 0.0
        %3610 = vmatpush1.xpose.msra.mxu0 0.0
        %3611 = vmatprep.subr.mxu0 0.0
        %3612 = vmatpush1.xpose.msra.mxu0 0.0
        %3613 = vmatprep.subr.mxu0 0.0
        %3614 = vmatpush1.xpose.msra.mxu0 0.0
        %3615 = vmatprep.subr.mxu0 0.0
        %3616 = vmatpush1.xpose.msra.mxu0 0.0
        %3617 = vmatprep.subr.mxu0 0.0
        %3618 = vmatpush1.xpose.msra.mxu0 0.0
        %3619 = vmatprep.mubr.f32.mxu0 0.0
        %3620 = vmatmul.mubr.f32.gmra.mrb[0].mxu0 %v3544
        %v3621 = vpop.f32.mrb[0].mxu0
        %v3622 = vadd.f32 0.0, %v3621
        %v3623 = vpop.f32.mrb[0].mxu0
        %3624 = vmatprep.mubr.f32.mxu0 0.0
        %3625 = vmatmul.mubr.f32.gmra.mrb[0].mxu0 %v3547
        %v3626 = vpop.f32.mrb[0].mxu0
        %v3627 = vadd.f32 0.0, %v3626
        %v3628 = vpop.f32.mrb[0].mxu0
        %3629 = vdwg.mxu0
        %v3631 = vsel %vm1138, %v3313, 0
        %v3634 = vsel %vm1138, %v3314, 0
        %v3637 = vsel %vm1138, %v3423, 0
        %v3640 = vsel %vm1138, %v3426, 0
        %3642 = vmatprep.subr.mxu0 0.0
        %3643 = vmatpush1.xpose.msra.mxu0 %v3637
        %3644 = vmatprep.subr.mxu0 0.0
        %3645 = vmatpush1.xpose.msra.mxu0 %v3640
        %3646 = vmatprep.subr.mxu0 0.0
        %3647 = vmatpush1.xpose.msra.mxu0 0.0
        %3648 = vmatprep.subr.mxu0 0.0
        %3649 = vmatpush1.xpose.msra.mxu0 0.0
        %3650 = vmatprep.subr.mxu0 0.0
        %3651 = vmatpush1.xpose.msra.mxu0 0.0
        %3652 = vmatprep.subr.mxu0 0.0
        %3653 = vmatpush1.xpose.msra.mxu0 0.0
        %3654 = vmatprep.subr.mxu0 0.0
        %3655 = vmatpush1.xpose.msra.mxu0 0.0
        %3656 = vmatprep.subr.mxu0 0.0
        %3657 = vmatpush1.xpose.msra.mxu0 0.0
        %3658 = vmatprep.subr.mxu0 0.0
        %3659 = vmatpush1.xpose.msra.mxu0 0.0
        %3660 = vmatprep.subr.mxu0 0.0
        %3661 = vmatpush1.xpose.msra.mxu0 0.0
        %3662 = vmatprep.subr.mxu0 0.0
        %3663 = vmatpush1.xpose.msra.mxu0 0.0
        %3664 = vmatprep.subr.mxu0 0.0
        %3665 = vmatpush1.xpose.msra.mxu0 0.0
        %3666 = vmatprep.subr.mxu0 0.0
        %3667 = vmatpush1.xpose.msra.mxu0 0.0
        %3668 = vmatprep.subr.mxu0 0.0
        %3669 = vmatpush1.xpose.msra.mxu0 0.0
        %3670 = vmatprep.subr.mxu0 0.0
        %3671 = vmatpush1.xpose.msra.mxu0 0.0
        %3672 = vmatprep.subr.mxu0 0.0
        %3673 = vmatpush1.xpose.msra.mxu0 0.0
        %3674 = vmatprep.subr.mxu0 0.0
        %3675 = vmatpush1.xpose.msra.mxu0 0.0
        %3676 = vmatprep.subr.mxu0 0.0
        %3677 = vmatpush1.xpose.msra.mxu0 0.0
        %3678 = vmatprep.subr.mxu0 0.0
        %3679 = vmatpush1.xpose.msra.mxu0 0.0
        %3680 = vmatprep.subr.mxu0 0.0
        %3681 = vmatpush1.xpose.msra.mxu0 0.0
        %3682 = vmatprep.subr.mxu0 0.0
        %3683 = vmatpush1.xpose.msra.mxu0 0.0
        %3684 = vmatprep.subr.mxu0 0.0
        %3685 = vmatpush1.xpose.msra.mxu0 0.0
        %3686 = vmatprep.subr.mxu0 0.0
        %3687 = vmatpush1.xpose.msra.mxu0 0.0
        %3688 = vmatprep.subr.mxu0 0.0
        %3689 = vmatpush1.xpose.msra.mxu0 0.0
        %3690 = vmatprep.subr.mxu0 0.0
        %3691 = vmatpush1.xpose.msra.mxu0 0.0
        %3692 = vmatprep.subr.mxu0 0.0
        %3693 = vmatpush1.xpose.msra.mxu0 0.0
        %3694 = vmatprep.subr.mxu0 0.0
        %3695 = vmatpush1.xpose.msra.mxu0 0.0
        %3696 = vmatprep.subr.mxu0 0.0
        %3697 = vmatpush1.xpose.msra.mxu0 0.0
        %3698 = vmatprep.subr.mxu0 0.0
        %3699 = vmatpush1.xpose.msra.mxu0 0.0
        %3700 = vmatprep.subr.mxu0 0.0
        %3701 = vmatpush1.xpose.msra.mxu0 0.0
        %3702 = vmatprep.subr.mxu0 0.0
        %3703 = vmatpush1.xpose.msra.mxu0 0.0
        %3704 = vmatprep.subr.mxu0 0.0
        %3705 = vmatpush1.xpose.msra.mxu0 0.0
        %3706 = vmatprep.mubr.f32.mxu0 0.0
        %3707 = vmatmul.mubr.f32.gmra.mrb[0].mxu0 %v3631
        %v3708 = vpop.f32.mrb[0].mxu0
        %v3709 = vadd.f32 0.0, %v3708
        %v3710 = vpop.f32.mrb[0].mxu0
        %3711 = vmatprep.mubr.f32.mxu0 0.0
        %3712 = vmatmul.mubr.f32.gmra.mrb[0].mxu0 %v3634
        %v3713 = vpop.f32.mrb[0].mxu0
        %v3714 = vadd.f32 0.0, %v3713
        %v3715 = vpop.f32.mrb[0].mxu0
        %3716 = vdwg.mxu0
        %v3717 = vsel %vm1313, %v3622, -inf
        %3718 = vmax.xlane.f32.xlu0 %v3717
        %v3719 = vpop.xlane.xlu0 %3718
        %v3720 = vsel %vm1313, %v3627, -inf
        %3721 = vmax.xlane.f32.xlu0 %v3720
        %v3722 = vpop.xlane.xlu0 %3721
        %v3723 = vsel %vm1313, %v3709, -inf
        %3724 = vmax.xlane.f32.xlu0 %v3723
        %v3725 = vpop.xlane.xlu0 %3724
        %v3726 = vsel %vm1313, %v3714, -inf
        %3727 = vmax.xlane.f32.xlu0 %v3726
        %v3728 = vpop.xlane.xlu0 %3727
        %v3729 = vsub.f32 %v3622, %v3719
        %v3730 = vsub.f32 %v3627, %v3722
        %v3731 = vsub.f32 %v3709, %v3725
        %v3732 = vsub.f32 %v3714, %v3728
        %v3733 = vmul.f32 %v3729, 1.442695
        %v3734 = vpow.pop %v3733
        %v3735 = vmul.f32 %v3730, 1.442695
        %v3736 = vpow.pop %v3735
        %v3737 = vmul.f32 %v3731, 1.442695
        %v3738 = vpow.pop %v3737
        %v3739 = vmul.f32 %v3732, 1.442695
        %v3740 = vpow.pop %v3739
        %v3741 = vsel %vm1313, %v3734, 0.0
        %3742 = vadd.xlane.f32.xlu0 %v3741
        %v3743 = vpop.xlane.xlu0 %3742
        %v3744 = vsel %vm1313, %v3736, 0.0
        %3745 = vadd.xlane.f32.xlu0 %v3744
        %v3746 = vpop.xlane.xlu0 %3745
        %v3747 = vsel %vm1313, %v3738, 0.0
        %3748 = vadd.xlane.f32.xlu0 %v3747
        %v3749 = vpop.xlane.xlu0 %3748
        %v3750 = vsel %vm1313, %v3740, 0.0
        %3751 = vadd.xlane.f32.xlu0 %v3750
        %v3752 = vpop.xlane.xlu0 %3751
        %v3753 = vrcp.pop %v3743
        %v3754 = vmul.f32 %v3734, %v3753
        %v3755 = vrcp.pop %v3746
        %v3756 = vmul.f32 %v3736, %v3755
        %v3757 = vrcp.pop %v3749
        %v3758 = vmul.f32 %v3738, %v3757
        %v3759 = vrcp.pop %v3752
        %v3760 = vmul.f32 %v3740, %v3759
        %v3762 = vsel %vm1313, %v3754, 0
        %v3765 = vsel %vm1313, %v3756, 0
        %3767 = vmatprep.subr.mxu0 0.0
        %3768 = vmatpush1.msra.mxu0 %v3529
        %3769 = vmatprep.subr.mxu0 0.0
        %3770 = vmatpush1.msra.mxu0 %v3532
        %3771 = vmatprep.subr.mxu0 0.0
        %3772 = vmatpush1.msra.mxu0 0.0
        %3773 = vmatprep.subr.mxu0 0.0
        %3774 = vmatpush1.msra.mxu0 0.0
        %3775 = vmatprep.subr.mxu0 0.0
        %3776 = vmatpush1.msra.mxu0 0.0
        %3777 = vmatprep.subr.mxu0 0.0
        %3778 = vmatpush1.msra.mxu0 0.0
        %3779 = vmatprep.subr.mxu0 0.0
        %3780 = vmatpush1.msra.mxu0 0.0
        %3781 = vmatprep.subr.mxu0 0.0
        %3782 = vmatpush1.msra.mxu0 0.0
        %3783 = vmatprep.subr.mxu0 0.0
        %3784 = vmatpush1.msra.mxu0 0.0
        %3785 = vmatprep.subr.mxu0 0.0
        %3786 = vmatpush1.msra.mxu0 0.0
        %3787 = vmatprep.subr.mxu0 0.0
        %3788 = vmatpush1.msra.mxu0 0.0
        %3789 = vmatprep.subr.mxu0 0.0
        %3790 = vmatpush1.msra.mxu0 0.0
        %3791 = vmatprep.subr.mxu0 0.0
        %3792 = vmatpush1.msra.mxu0 0.0
        %3793 = vmatprep.subr.mxu0 0.0
        %3794 = vmatpush1.msra.mxu0 0.0
        %3795 = vmatprep.subr.mxu0 0.0
        %3796 = vmatpush1.msra.mxu0 0.0
        %3797 = vmatprep.subr.mxu0 0.0
        %3798 = vmatpush1.msra.mxu0 0.0
        %3799 = vmatprep.subr.mxu0 0.0
        %3800 = vmatpush1.msra.mxu0 0.0
        %3801 = vmatprep.subr.mxu0 0.0
        %3802 = vmatpush1.msra.mxu0 0.0
        %3803 = vmatprep.subr.mxu0 0.0
        %3804 = vmatpush1.msra.mxu0 0.0
        %3805 = vmatprep.subr.mxu0 0.0
        %3806 = vmatpush1.msra.mxu0 0.0
        %3807 = vmatprep.subr.mxu0 0.0
        %3808 = vmatpush1.msra.mxu0 0.0
        %3809 = vmatprep.subr.mxu0 0.0
        %3810 = vmatpush1.msra.mxu0 0.0
        %3811 = vmatprep.subr.mxu0 0.0
        %3812 = vmatpush1.msra.mxu0 0.0
        %3813 = vmatprep.subr.mxu0 0.0
        %3814 = vmatpush1.msra.mxu0 0.0
        %3815 = vmatprep.subr.mxu0 0.0
        %3816 = vmatpush1.msra.mxu0 0.0
        %3817 = vmatprep.subr.mxu0 0.0
        %3818 = vmatpush1.msra.mxu0 0.0
        %3819 = vmatprep.subr.mxu0 0.0
        %3820 = vmatpush1.msra.mxu0 0.0
        %3821 = vmatprep.subr.mxu0 0.0
        %3822 = vmatpush1.msra.mxu0 0.0
        %3823 = vmatprep.subr.mxu0 0.0
        %3824 = vmatpush1.msra.mxu0 0.0
        %3825 = vmatprep.subr.mxu0 0.0
        %3826 = vmatpush1.msra.mxu0 0.0
        %3827 = vmatprep.subr.mxu0 0.0
        %3828 = vmatpush1.msra.mxu0 0.0
        %3829 = vmatprep.subr.mxu0 0.0
        %3830 = vmatpush1.msra.mxu0 0.0
        %3831 = vmatprep.mubr.f32.mxu0 0.0
        %3832 = vmatmul.mubr.f32.gmra.mrb[0].mxu0 %v3762
        %v3833 = vpop.f32.mrb[0].mxu0
        %v3834 = vadd.f32 0.0, %v3833
        %v3835 = vpop.f32.mrb[0].mxu0
        %3836 = vmatprep.mubr.f32.mxu0 0.0
        %3837 = vmatmul.mubr.f32.gmra.mrb[0].mxu0 %v3765
        %v3838 = vpop.f32.mrb[0].mxu0
        %v3839 = vadd.f32 0.0, %v3838
        %v3840 = vpop.f32.mrb[0].mxu0
        %3841 = vdwg.mxu0
        %v3843 = vsel %vm1313, %v3758, 0
        %v3846 = vsel %vm1313, %v3760, 0
        %3848 = vmatprep.subr.mxu0 0.0
        %3849 = vmatpush1.msra.mxu0 %v3537
        %3850 = vmatprep.subr.mxu0 0.0
        %3851 = vmatpush1.msra.mxu0 %v3540
        %3852 = vmatprep.subr.mxu0 0.0
        %3853 = vmatpush1.msra.mxu0 0.0
        %3854 = vmatprep.subr.mxu0 0.0
        %3855 = vmatpush1.msra.mxu0 0.0
        %3856 = vmatprep.subr.mxu0 0.0
        %3857 = vmatpush1.msra.mxu0 0.0
        %3858 = vmatprep.subr.mxu0 0.0
        %3859 = vmatpush1.msra.mxu0 0.0
        %3860 = vmatprep.subr.mxu0 0.0
        %3861 = vmatpush1.msra.mxu0 0.0
        %3862 = vmatprep.subr.mxu0 0.0
        %3863 = vmatpush1.msra.mxu0 0.0
        %3864 = vmatprep.subr.mxu0 0.0
        %3865 = vmatpush1.msra.mxu0 0.0
        %3866 = vmatprep.subr.mxu0 0.0
        %3867 = vmatpush1.msra.mxu0 0.0
        %3868 = vmatprep.subr.mxu0 0.0
        %3869 = vmatpush1.msra.mxu0 0.0
        %3870 = vmatprep.subr.mxu0 0.0
        %3871 = vmatpush1.msra.mxu0 0.0
        %3872 = vmatprep.subr.mxu0 0.0
        %3873 = vmatpush1.msra.mxu0 0.0
        %3874 = vmatprep.subr.mxu0 0.0
        %3875 = vmatpush1.msra.mxu0 0.0
        %3876 = vmatprep.subr.mxu0 0.0
        %3877 = vmatpush1.msra.mxu0 0.0
        %3878 = vmatprep.subr.mxu0 0.0
        %3879 = vmatpush1.msra.mxu0 0.0
        %3880 = vmatprep.subr.mxu0 0.0
        %3881 = vmatpush1.msra.mxu0 0.0
        %3882 = vmatprep.subr.mxu0 0.0
        %3883 = vmatpush1.msra.mxu0 0.0
        %3884 = vmatprep.subr.mxu0 0.0
        %3885 = vmatpush1.msra.mxu0 0.0
        %3886 = vmatprep.subr.mxu0 0.0
        %3887 = vmatpush1.msra.mxu0 0.0
        %3888 = vmatprep.subr.mxu0 0.0
        %3889 = vmatpush1.msra.mxu0 0.0
        %3890 = vmatprep.subr.mxu0 0.0
        %3891 = vmatpush1.msra.mxu0 0.0
        %3892 = vmatprep.subr.mxu0 0.0
        %3893 = vmatpush1.msra.mxu0 0.0
        %3894 = vmatprep.subr.mxu0 0.0
        %3895 = vmatpush1.msra.mxu0 0.0
        %3896 = vmatprep.subr.mxu0 0.0
        %3897 = vmatpush1.msra.mxu0 0.0
        %3898 = vmatprep.subr.mxu0 0.0
        %3899 = vmatpush1.msra.mxu0 0.0
        %3900 = vmatprep.subr.mxu0 0.0
        %3901 = vmatpush1.msra.mxu0 0.0
        %3902 = vmatprep.subr.mxu0 0.0
        %3903 = vmatpush1.msra.mxu0 0.0
        %3904 = vmatprep.subr.mxu0 0.0
        %3905 = vmatpush1.msra.mxu0 0.0
        %3906 = vmatprep.subr.mxu0 0.0
        %3907 = vmatpush1.msra.mxu0 0.0
        %3908 = vmatprep.subr.mxu0 0.0
        %3909 = vmatpush1.msra.mxu0 0.0
        %3910 = vmatprep.subr.mxu0 0.0
        %3911 = vmatpush1.msra.mxu0 0.0
        %3912 = vmatprep.mubr.f32.mxu0 0.0
        %3913 = vmatmul.mubr.f32.gmra.mrb[0].mxu0 %v3843
        %v3914 = vpop.f32.mrb[0].mxu0
        %v3915 = vadd.f32 0.0, %v3914
        %v3916 = vpop.f32.mrb[0].mxu0
        %3917 = vmatprep.mubr.f32.mxu0 0.0
        %3918 = vmatmul.mubr.f32.gmra.mrb[0].mxu0 %v3846
        %v3919 = vpop.f32.mrb[0].mxu0
        %v3920 = vadd.f32 0.0, %v3919
        %v3921 = vpop.f32.mrb[0].mxu0
        %3922 = vdwg.mxu0
        %v3923 = vpack.c.bf16 %v3839, %v3834
        %v3924 = vpack.c.bf16 %v3920, %v3915
        %s3925 = scalar_lea.vmem %s682, 48
        %v3926 = vld [vmem:[%s3925] sm:$0xf]
        %v3927 = vld [vmem:[%s3925 + $0x4] sm:$0xf]
        %v3928 = vld [vmem:[%s3925 + $0x8] sm:$0xf]
        %v3929 = vld [vmem:[%s3925 + $0xc] sm:$0xf]
        %v3934 = vunpack.c.l.b16 %v3926
        %v3935 = vunpack.c.l.b16 %v3927
        %v3936 = vunpack.c.l.b16 %v3928
        %v3937 = vunpack.c.l.b16 %v3929
        %v3938 = vpack.c.b16 %v3935, %v3934
        %v3939 = vpack.c.b16 %v3937, %v3936
        %v3943 = vsel %vm1138, %v3923, 0
        %v3946 = vsel %vm1138, %v3924, 0
        %3948 = vmatprep.subr.bf16.mxu0 0
        %3949 = vmatpush1.bf16.msra.mxu0 %v3938
        %3950 = vmatprep.subr.bf16.mxu0 0
        %3951 = vmatpush1.bf16.msra.mxu0 %v3939
        %3952 = vmatprep.subr.bf16.mxu0 0
        %3953 = vmatpush1.bf16.msra.mxu0 0
        %3954 = vmatprep.subr.bf16.mxu0 0
        %3955 = vmatpush1.bf16.msra.mxu0 0
        %3956 = vmatprep.subr.bf16.mxu0 0
        %3957 = vmatpush1.bf16.msra.mxu0 0
        %3958 = vmatprep.subr.bf16.mxu0 0
        %3959 = vmatpush1.bf16.msra.mxu0 0
        %3960 = vmatprep.subr.bf16.mxu0 0
        %3961 = vmatpush1.bf16.msra.mxu0 0
        %3962 = vmatprep.subr.bf16.mxu0 0
        %3963 = vmatpush1.bf16.msra.mxu0 0
        %3964 = vmatprep.subr.bf16.mxu0 0
        %3965 = vmatpush1.bf16.msra.mxu0 0
        %3966 = vmatprep.subr.bf16.mxu0 0
        %3967 = vmatpush1.bf16.msra.mxu0 0
        %3968 = vmatprep.subr.bf16.mxu0 0
        %3969 = vmatpush1.bf16.msra.mxu0 0
        %3970 = vmatprep.subr.bf16.mxu0 0
        %3971 = vmatpush1.bf16.msra.mxu0 0
        %3972 = vmatprep.subr.bf16.mxu0 0
        %3973 = vmatpush1.bf16.msra.mxu0 0
        %3974 = vmatprep.subr.bf16.mxu0 0
        %3975 = vmatpush1.bf16.msra.mxu0 0
        %3976 = vmatprep.subr.bf16.mxu0 0
        %3977 = vmatpush1.bf16.msra.mxu0 0
        %3978 = vmatprep.subr.bf16.mxu0 0
        %3979 = vmatpush1.bf16.msra.mxu0 0
        %3980 = vmatprep.mubr.bf16.mxu0 0
        %3981 = vmatmul.mubr.bf16.gmra.mrb[0].mxu0 %v3943
        %v3982 = vpop.f32.mrb[0].mxu0
        %v3983 = vadd.f32 0.0, %v3982
        %v3984 = vpop.f32.mrb[0].mxu0
        %v3985 = vpop.f32.mrb[0].mxu0
        %v3986 = vadd.f32 0.0, %v3985
        %v3987 = vpop.f32.mrb[0].mxu0
        %3988 = vmatprep.mubr.bf16.mxu0 0
        %3989 = vmatmul.mubr.bf16.gmra.mrb[0].mxu0 %v3946
        %v3990 = vpop.f32.mrb[0].mxu0
        %v3991 = vadd.f32 0.0, %v3990
        %v3992 = vpop.f32.mrb[0].mxu0
        %v3993 = vpop.f32.mrb[0].mxu0
        %v3994 = vadd.f32 0.0, %v3993
        %v3995 = vpop.f32.mrb[0].mxu0
        %3996 = vdwg.mxu0
        %v3997 = vadd.f32 %v3193, %v3983
        %v3998 = vadd.f32 %v3194, %v3986
        %v3999 = vadd.f32 %v3195, %v3991
        %v4000 = vadd.f32 %v3196, %v3994
        %v4001 = vadd.f32 %v722, %v3997
        %v4002 = vadd.f32 %v723, %v3998
        %v4003 = vadd.f32 %v724, %v3999
        %v4004 = vadd.f32 %v725, %v4000
        %v4005 = vld [vmem:[%s685] sm:$0x1]
        %v4007 = vlaneseq
        %v4008 = vshrl.u32 %v4007, 7
        %v4009 = vsub.s32 0, %v4008
        %v4010 = vrot.slane %v4005, %v4009
        %v4012 = vadd.f32 %v4001, %v4010
        %v4013 = vadd.f32 %v4002, %v4010
        %v4014 = vadd.f32 %v4003, %v4010
        %v4015 = vadd.f32 %v4004, %v4010
        %v4016 = vld [vmem:[%s688] sm:$0x1]
        %v4017 = vld [vmem:[%s691] sm:$0x1]
        %4018 = vadd.xlane.f32.xlu0 %v4012
        %v4019 = vpop.xlane.xlu0 %4018
        %4020 = vadd.xlane.f32.xlu0 %v4013
        %v4021 = vpop.xlane.xlu0 %4020
        %4022 = vadd.xlane.f32.xlu0 %v4014
        %v4023 = vpop.xlane.xlu0 %4022
        %4024 = vadd.xlane.f32.xlu0 %v4015
        %v4025 = vpop.xlane.xlu0 %4024
        %v4026 = vmul.f32 %v4019, %v736
        %v4027 = vmul.f32 %v4021, %v736
        %v4028 = vmul.f32 %v4023, %v736
        %v4029 = vmul.f32 %v4025, %v736
        %v4030 = vsub.f32 %v4012, %v4026
        %v4031 = vsub.f32 %v4013, %v4027
        %v4032 = vsub.f32 %v4014, %v4028
        %v4033 = vsub.f32 %v4015, %v4029
        %v4034 = vmul.f32 %v4030, %v4030
        %v4035 = vmul.f32 %v4031, %v4031
        %v4036 = vmul.f32 %v4032, %v4032
        %v4037 = vmul.f32 %v4033, %v4033
        %4038 = vadd.xlane.f32.xlu0 %v4034
        %v4039 = vpop.xlane.xlu0 %4038
        %4040 = vadd.xlane.f32.xlu0 %v4035
        %v4041 = vpop.xlane.xlu0 %4040
        %4042 = vadd.xlane.f32.xlu0 %v4036
        %v4043 = vpop.xlane.xlu0 %4042
        %4044 = vadd.xlane.f32.xlu0 %v4037
        %v4045 = vpop.xlane.xlu0 %4044
        %v4046 = vmul.f32 %v4039, %v736
        %v4047 = vmul.f32 %v4041, %v736
        %v4048 = vmul.f32 %v4043, %v736
        %v4049 = vmul.f32 %v4045, %v736
        %v4050 = vadd.f32 %v4046, 1e-05
        %v4051 = vadd.f32 %v4047, 1e-05
        %v4052 = vadd.f32 %v4048, 1e-05
        %v4053 = vadd.f32 %v4049, 1e-05
        %v4054 = vrsqrt.pop %v4050
        %v4055 = vrsqrt.pop %v4051
        %v4056 = vrsqrt.pop %v4052
        %v4057 = vrsqrt.pop %v4053
        %v4058 = vmul.f32 %v4030, %v4054
        %v4059 = vmul.f32 %v4031, %v4055
        %v4060 = vmul.f32 %v4032, %v4056
        %v4061 = vmul.f32 %v4033, %v4057
        %v4063 = vlaneseq
        %v4064 = vshrl.u32 %v4063, 7
        %v4065 = vsub.s32 0, %v4064
        %v4066 = vrot.slane %v4016, %v4065
        %v4068 = vmul.f32 %v4058, %v4066
        %v4069 = vmul.f32 %v4059, %v4066
        %v4070 = vmul.f32 %v4060, %v4066
        %v4071 = vmul.f32 %v4061, %v4066
        %v4073 = vlaneseq
        %v4074 = vshrl.u32 %v4073, 7
        %v4075 = vsub.s32 0, %v4074
        %v4076 = vrot.slane %v4017, %v4075
        %v4078 = vadd.f32 %v4068, %v4076
        %v4079 = vadd.f32 %v4069, %v4076
        %v4080 = vadd.f32 %v4070, %v4076
        %v4081 = vadd.f32 %v4071, %v4076
        %v4082 = vpack.c.bf16 %v4079, %v4078
        %v4083 = vpack.c.bf16 %v4081, %v4080
        %v4084 = vld [vmem:[%s696] sm:$0xff]
        %v4085 = vld [vmem:[%s696 + $0x8] sm:$0xff]
        %v4086 = vld [vmem:[%s696 + $0x10] sm:$0xff]
        %v4087 = vld [vmem:[%s696 + $0x18] sm:$0xff]
        %v4088 = vld [vmem:[%s696 + $0x20] sm:$0xff]
        %v4089 = vld [vmem:[%s696 + $0x28] sm:$0xff]
        %v4090 = vld [vmem:[%s696 + $0x30] sm:$0xff]
        %v4091 = vld [vmem:[%s696 + $0x38] sm:$0xff]
        %v4092 = vld [vmem:[%s696 + $0x40] sm:$0xff]
        %v4093 = vld [vmem:[%s696 + $0x48] sm:$0xff]
        %v4094 = vld [vmem:[%s696 + $0x50] sm:$0xff]
        %v4095 = vld [vmem:[%s696 + $0x58] sm:$0xff]
        %v4096 = vld [vmem:[%s696 + $0x60] sm:$0xff]
        %v4097 = vld [vmem:[%s696 + $0x68] sm:$0xff]
        %v4098 = vld [vmem:[%s696 + $0x70] sm:$0xff]
        %v4099 = vld [vmem:[%s696 + $0x78] sm:$0xff]
        %v4100 = vld [vmem:[%s696 + $0x80] sm:$0xff]
        %v4101 = vld [vmem:[%s696 + $0x88] sm:$0xff]
        %v4102 = vld [vmem:[%s696 + $0x90] sm:$0xff]
        %v4103 = vld [vmem:[%s696 + $0x98] sm:$0xff]
        %v4104 = vld [vmem:[%s696 + $0xa0] sm:$0xff]
        %v4105 = vld [vmem:[%s696 + $0xa8] sm:$0xff]
        %v4106 = vld [vmem:[%s696 + $0xb0] sm:$0xff]
        %v4107 = vld [vmem:[%s696 + $0xb8] sm:$0xff]
        %v4108 = vld [vmem:[%s696 + $0xc0] sm:$0xff]
        %v4109 = vld [vmem:[%s696 + $0xc8] sm:$0xff]
        %v4110 = vld [vmem:[%s696 + $0xd0] sm:$0xff]
        %v4111 = vld [vmem:[%s696 + $0xd8] sm:$0xff]
        %v4112 = vld [vmem:[%s696 + $0xe0] sm:$0xff]
        %v4113 = vld [vmem:[%s696 + $0xe8] sm:$0xff]
        %v4114 = vld [vmem:[%s696 + $0xf0] sm:$0xff]
        %v4115 = vld [vmem:[%s696 + $0xf8] sm:$0xff]
        %v4116 = vld [vmem:[%s700] sm:$0xf]
        %v4118 = vlaneseq
        %v4119 = vshrl.u32 %v4118, 7
        %v4120 = vsub.s32 0, %v4119
        %v4121 = vrot.slane %v4116, %v4120
        %v4122 = vlaneseq
        %v4123 = vshrl.u32 %v4122, 7
        %v4124 = vsub.s32 1, %v4123
        %v4125 = vrot.slane %v4116, %v4124
        %v4126 = vlaneseq
        %v4127 = vshrl.u32 %v4126, 7
        %v4128 = vsub.s32 2, %v4127
        %v4129 = vrot.slane %v4116, %v4128
        %v4130 = vlaneseq
        %v4131 = vshrl.u32 %v4130, 7
        %v4132 = vsub.s32 3, %v4131
        %v4133 = vrot.slane %v4116, %v4132
        %v4170 = vunpack.c.l.b16 %v4084
        %v4171 = vunpack.c.h.b16 %v4084
        %v4172 = vunpack.c.l.b16 %v4085
        %v4173 = vunpack.c.h.b16 %v4085
        %v4174 = vunpack.c.l.b16 %v4086
        %v4175 = vunpack.c.h.b16 %v4086
        %v4176 = vunpack.c.l.b16 %v4087
        %v4177 = vunpack.c.h.b16 %v4087
        %v4178 = vunpack.c.l.b16 %v4088
        %v4179 = vunpack.c.h.b16 %v4088
        %v4180 = vunpack.c.l.b16 %v4089
        %v4181 = vunpack.c.h.b16 %v4089
        %v4182 = vunpack.c.l.b16 %v4090
        %v4183 = vunpack.c.h.b16 %v4090
        %v4184 = vunpack.c.l.b16 %v4091
        %v4185 = vunpack.c.h.b16 %v4091
        %v4186 = vunpack.c.l.b16 %v4092
        %v4187 = vunpack.c.h.b16 %v4092
        %v4188 = vunpack.c.l.b16 %v4093
        %v4189 = vunpack.c.h.b16 %v4093
        %v4190 = vunpack.c.l.b16 %v4094
        %v4191 = vunpack.c.h.b16 %v4094
        %v4192 = vunpack.c.l.b16 %v4095
        %v4193 = vunpack.c.h.b16 %v4095
        %v4194 = vunpack.c.l.b16 %v4096
        %v4195 = vunpack.c.h.b16 %v4096
        %v4196 = vunpack.c.l.b16 %v4097
        %v4197 = vunpack.c.h.b16 %v4097
        %v4198 = vunpack.c.l.b16 %v4098
        %v4199 = vunpack.c.h.b16 %v4098
        %v4200 = vunpack.c.l.b16 %v4099
        %v4201 = vunpack.c.h.b16 %v4099
        %v4202 = vunpack.c.l.b16 %v4100
        %v4203 = vunpack.c.h.b16 %v4100
        %v4204 = vunpack.c.l.b16 %v4101
        %v4205 = vunpack.c.h.b16 %v4101
        %v4206 = vunpack.c.l.b16 %v4102
        %v4207 = vunpack.c.h.b16 %v4102
        %v4208 = vunpack.c.l.b16 %v4103
        %v4209 = vunpack.c.h.b16 %v4103
        %v4210 = vunpack.c.l.b16 %v4104
        %v4211 = vunpack.c.h.b16 %v4104
        %v4212 = vunpack.c.l.b16 %v4105
        %v4213 = vunpack.c.h.b16 %v4105
        %v4214 = vunpack.c.l.b16 %v4106
        %v4215 = vunpack.c.h.b16 %v4106
        %v4216 = vunpack.c.l.b16 %v4107
        %v4217 = vunpack.c.h.b16 %v4107
        %v4218 = vunpack.c.l.b16 %v4108
        %v4219 = vunpack.c.h.b16 %v4108
        %v4220 = vunpack.c.l.b16 %v4109
        %v4221 = vunpack.c.h.b16 %v4109
        %v4222 = vunpack.c.l.b16 %v4110
        %v4223 = vunpack.c.h.b16 %v4110
        %v4224 = vunpack.c.l.b16 %v4111
        %v4225 = vunpack.c.h.b16 %v4111
        %v4226 = vunpack.c.l.b16 %v4112
        %v4227 = vunpack.c.h.b16 %v4112
        %v4228 = vunpack.c.l.b16 %v4113
        %v4229 = vunpack.c.h.b16 %v4113
        %v4230 = vunpack.c.l.b16 %v4114
        %v4231 = vunpack.c.h.b16 %v4114
        %v4232 = vunpack.c.l.b16 %v4115
        %v4233 = vunpack.c.h.b16 %v4115
        %v4234 = vpack.c.b16 %v4174, %v4170
        %v4235 = vpack.c.b16 %v4175, %v4171
        %v4236 = vpack.c.b16 %v4176, %v4172
        %v4237 = vpack.c.b16 %v4177, %v4173
        %v4238 = vpack.c.b16 %v4182, %v4178
        %v4239 = vpack.c.b16 %v4183, %v4179
        %v4240 = vpack.c.b16 %v4184, %v4180
        %v4241 = vpack.c.b16 %v4185, %v4181
        %v4242 = vpack.c.b16 %v4190, %v4186
        %v4243 = vpack.c.b16 %v4191, %v4187
        %v4244 = vpack.c.b16 %v4192, %v4188
        %v4245 = vpack.c.b16 %v4193, %v4189
        %v4246 = vpack.c.b16 %v4198, %v4194
        %v4247 = vpack.c.b16 %v4199, %v4195
        %v4248 = vpack.c.b16 %v4200, %v4196
        %v4249 = vpack.c.b16 %v4201, %v4197
        %v4250 = vpack.c.b16 %v4206, %v4202
        %v4251 = vpack.c.b16 %v4207, %v4203
        %v4252 = vpack.c.b16 %v4208, %v4204
        %v4253 = vpack.c.b16 %v4209, %v4205
        %v4254 = vpack.c.b16 %v4214, %v4210
        %v4255 = vpack.c.b16 %v4215, %v4211
        %v4256 = vpack.c.b16 %v4216, %v4212
        %v4257 = vpack.c.b16 %v4217, %v4213
        %v4258 = vpack.c.b16 %v4222, %v4218
        %v4259 = vpack.c.b16 %v4223, %v4219
        %v4260 = vpack.c.b16 %v4224, %v4220
        %v4261 = vpack.c.b16 %v4225, %v4221
        %v4262 = vpack.c.b16 %v4230, %v4226
        %v4263 = vpack.c.b16 %v4231, %v4227
        %v4264 = vpack.c.b16 %v4232, %v4228
        %v4265 = vpack.c.b16 %v4233, %v4229
        %4298 = vmatprep.subr.bf16.mxu0 %v4235
        %4299 = vmatpush1.bf16.msra.mxu0 %v4234
        %4300 = vmatprep.subr.bf16.mxu0 %v4239
        %4301 = vmatpush1.bf16.msra.mxu0 %v4238
        %4302 = vmatprep.subr.bf16.mxu0 %v4243
        %4303 = vmatpush1.bf16.msra.mxu0 %v4242
        %4304 = vmatprep.subr.bf16.mxu0 %v4247
        %4305 = vmatpush1.bf16.msra.mxu0 %v4246
        %4306 = vmatprep.subr.bf16.mxu0 %v4251
        %4307 = vmatpush1.bf16.msra.mxu0 %v4250
        %4308 = vmatprep.subr.bf16.mxu0 %v4255
        %4309 = vmatpush1.bf16.msra.mxu0 %v4254
        %4310 = vmatprep.subr.bf16.mxu0 %v4259
        %4311 = vmatpush1.bf16.msra.mxu0 %v4258
        %4312 = vmatprep.subr.bf16.mxu0 %v4263
        %4313 = vmatpush1.bf16.msra.mxu0 %v4262
        %4314 = vmatprep.subr.bf16.mxu0 0
        %4315 = vmatpush1.bf16.msra.mxu0 0
        %4316 = vmatprep.subr.bf16.mxu0 0
        %4317 = vmatpush1.bf16.msra.mxu0 0
        %4318 = vmatprep.subr.bf16.mxu0 0
        %4319 = vmatpush1.bf16.msra.mxu0 0
        %4320 = vmatprep.subr.bf16.mxu0 0
        %4321 = vmatpush1.bf16.msra.mxu0 0
        %4322 = vmatprep.subr.bf16.mxu0 0
        %4323 = vmatpush1.bf16.msra.mxu0 0
        %4324 = vmatprep.subr.bf16.mxu0 0
        %4325 = vmatpush1.bf16.msra.mxu0 0
        %4326 = vmatprep.subr.bf16.mxu0 0
        %4327 = vmatpush1.bf16.msra.mxu0 0
        %4328 = vmatprep.subr.bf16.mxu0 0
        %4329 = vmatpush1.bf16.msra.mxu0 0
        %4330 = vmatprep.mubr.bf16.mxu0 0
        %4331 = vmatmul.mubr.bf16.gmra.mrb[0].mxu0 %v4082
        %v4332 = vpop.f32.mrb[0].mxu0
        %v4333 = vadd.f32 %v4121, %v4332
        %v4334 = vpop.f32.mrb[0].mxu0
        %v4335 = vadd.f32 %v4125, %v4334
        %v4336 = vpop.f32.mrb[0].mxu0
        %v4337 = vadd.f32 %v4121, %v4336
        %v4338 = vpop.f32.mrb[0].mxu0
        %v4339 = vadd.f32 %v4125, %v4338
        %4340 = vmatprep.mubr.bf16.mxu0 0
        %4341 = vmatmul.mubr.bf16.gmra.mrb[0].mxu0 %v4083
        %v4342 = vpop.f32.mrb[0].mxu0
        %v4343 = vadd.f32 %v4121, %v4342
        %v4344 = vpop.f32.mrb[0].mxu0
        %v4345 = vadd.f32 %v4125, %v4344
        %v4346 = vpop.f32.mrb[0].mxu0
        %v4347 = vadd.f32 %v4121, %v4346
        %v4348 = vpop.f32.mrb[0].mxu0
        %v4349 = vadd.f32 %v4125, %v4348
        %4350 = vdwg.mxu0
        %4351 = vmatprep.subr.bf16.mxu0 %v4237
        %4352 = vmatpush1.bf16.msra.mxu0 %v4236
        %4353 = vmatprep.subr.bf16.mxu0 %v4241
        %4354 = vmatpush1.bf16.msra.mxu0 %v4240
        %4355 = vmatprep.subr.bf16.mxu0 %v4245
        %4356 = vmatpush1.bf16.msra.mxu0 %v4244
        %4357 = vmatprep.subr.bf16.mxu0 %v4249
        %4358 = vmatpush1.bf16.msra.mxu0 %v4248
        %4359 = vmatprep.subr.bf16.mxu0 %v4253
        %4360 = vmatpush1.bf16.msra.mxu0 %v4252
        %4361 = vmatprep.subr.bf16.mxu0 %v4257
        %4362 = vmatpush1.bf16.msra.mxu0 %v4256
        %4363 = vmatprep.subr.bf16.mxu0 %v4261
        %4364 = vmatpush1.bf16.msra.mxu0 %v4260
        %4365 = vmatprep.subr.bf16.mxu0 %v4265
        %4366 = vmatpush1.bf16.msra.mxu0 %v4264
        %4367 = vmatprep.subr.bf16.mxu0 0
        %4368 = vmatpush1.bf16.msra.mxu0 0
        %4369 = vmatprep.subr.bf16.mxu0 0
        %4370 = vmatpush1.bf16.msra.mxu0 0
        %4371 = vmatprep.subr.bf16.mxu0 0
        %4372 = vmatpush1.bf16.msra.mxu0 0
        %4373 = vmatprep.subr.bf16.mxu0 0
        %4374 = vmatpush1.bf16.msra.mxu0 0
        %4375 = vmatprep.subr.bf16.mxu0 0
        %4376 = vmatpush1.bf16.msra.mxu0 0
        %4377 = vmatprep.subr.bf16.mxu0 0
        %4378 = vmatpush1.bf16.msra.mxu0 0
        %4379 = vmatprep.subr.bf16.mxu0 0
        %4380 = vmatpush1.bf16.msra.mxu0 0
        %4381 = vmatprep.subr.bf16.mxu0 0
        %4382 = vmatpush1.bf16.msra.mxu0 0
        %4383 = vmatprep.mubr.bf16.mxu0 0
        %4384 = vmatmul.mubr.bf16.gmra.mrb[0].mxu0 %v4082
        %v4385 = vpop.f32.mrb[0].mxu0
        %v4386 = vadd.f32 %v4129, %v4385
        %v4387 = vpop.f32.mrb[0].mxu0
        %v4388 = vadd.f32 %v4133, %v4387
        %v4389 = vpop.f32.mrb[0].mxu0
        %v4390 = vadd.f32 %v4129, %v4389
        %v4391 = vpop.f32.mrb[0].mxu0
        %v4392 = vadd.f32 %v4133, %v4391
        %4393 = vmatprep.mubr.bf16.mxu0 0
        %4394 = vmatmul.mubr.bf16.gmra.mrb[0].mxu0 %v4083
        %v4395 = vpop.f32.mrb[0].mxu0
        %v4396 = vadd.f32 %v4129, %v4395
        %v4397 = vpop.f32.mrb[0].mxu0
        %v4398 = vadd.f32 %v4133, %v4397
        %v4399 = vpop.f32.mrb[0].mxu0
        %v4400 = vadd.f32 %v4129, %v4399
        %v4401 = vpop.f32.mrb[0].mxu0
        %v4402 = vadd.f32 %v4133, %v4401
        %4403 = vdwg.mxu0
        %v4404 = vmul.f32 %v4333, %v4333
        %v4405 = vmul.f32 %v4335, %v4335
        %v4406 = vmul.f32 %v4386, %v4386
        %v4407 = vmul.f32 %v4388, %v4388
        %v4408 = vmul.f32 %v4337, %v4337
        %v4409 = vmul.f32 %v4339, %v4339
        %v4410 = vmul.f32 %v4390, %v4390
        %v4411 = vmul.f32 %v4392, %v4392
        %v4412 = vmul.f32 %v4343, %v4343
        %v4413 = vmul.f32 %v4345, %v4345
        %v4414 = vmul.f32 %v4396, %v4396
        %v4415 = vmul.f32 %v4398, %v4398
        %v4416 = vmul.f32 %v4347, %v4347
        %v4417 = vmul.f32 %v4349, %v4349
        %v4418 = vmul.f32 %v4400, %v4400
        %v4419 = vmul.f32 %v4402, %v4402
        %v4420 = vmul.f32 %v4333, %v4404
        %v4421 = vmul.f32 %v4335, %v4405
        %v4422 = vmul.f32 %v4386, %v4406
        %v4423 = vmul.f32 %v4388, %v4407
        %v4424 = vmul.f32 %v4337, %v4408
        %v4425 = vmul.f32 %v4339, %v4409
        %v4426 = vmul.f32 %v4390, %v4410
        %v4427 = vmul.f32 %v4392, %v4411
        %v4428 = vmul.f32 %v4343, %v4412
        %v4429 = vmul.f32 %v4345, %v4413
        %v4430 = vmul.f32 %v4396, %v4414
        %v4431 = vmul.f32 %v4398, %v4415
        %v4432 = vmul.f32 %v4347, %v4416
        %v4433 = vmul.f32 %v4349, %v4417
        %v4434 = vmul.f32 %v4400, %v4418
        %v4435 = vmul.f32 %v4402, %v4419
        %v4436 = vmul.f32 %v4420, 0.044715
        %v4437 = vmul.f32 %v4421, 0.044715
        %v4438 = vmul.f32 %v4422, 0.044715
        %v4439 = vmul.f32 %v4423, 0.044715
        %v4440 = vmul.f32 %v4424, 0.044715
        %v4441 = vmul.f32 %v4425, 0.044715
        %v4442 = vmul.f32 %v4426, 0.044715
        %v4443 = vmul.f32 %v4427, 0.044715
        %v4444 = vmul.f32 %v4428, 0.044715
        %v4445 = vmul.f32 %v4429, 0.044715
        %v4446 = vmul.f32 %v4430, 0.044715
        %v4447 = vmul.f32 %v4431, 0.044715
        %v4448 = vmul.f32 %v4432, 0.044715
        %v4449 = vmul.f32 %v4433, 0.044715
        %v4450 = vmul.f32 %v4434, 0.044715
        %v4451 = vmul.f32 %v4435, 0.044715
        %v4452 = vadd.f32 %v4333, %v4436
        %v4453 = vadd.f32 %v4335, %v4437
        %v4454 = vadd.f32 %v4386, %v4438
        %v4455 = vadd.f32 %v4388, %v4439
        %v4456 = vadd.f32 %v4337, %v4440
        %v4457 = vadd.f32 %v4339, %v4441
        %v4458 = vadd.f32 %v4390, %v4442
        %v4459 = vadd.f32 %v4392, %v4443
        %v4460 = vadd.f32 %v4343, %v4444
        %v4461 = vadd.f32 %v4345, %v4445
        %v4462 = vadd.f32 %v4396, %v4446
        %v4463 = vadd.f32 %v4398, %v4447
        %v4464 = vadd.f32 %v4347, %v4448
        %v4465 = vadd.f32 %v4349, %v4449
        %v4466 = vadd.f32 %v4400, %v4450
        %v4467 = vadd.f32 %v4402, %v4451
        %v4468 = vmul.f32 %v4452, 0.7978846
        %v4469 = vmul.f32 %v4453, 0.7978846
        %v4470 = vmul.f32 %v4454, 0.7978846
        %v4471 = vmul.f32 %v4455, 0.7978846
        %v4472 = vmul.f32 %v4456, 0.7978846
        %v4473 = vmul.f32 %v4457, 0.7978846
        %v4474 = vmul.f32 %v4458, 0.7978846
        %v4475 = vmul.f32 %v4459, 0.7978846
        %v4476 = vmul.f32 %v4460, 0.7978846
        %v4477 = vmul.f32 %v4461, 0.7978846
        %v4478 = vmul.f32 %v4462, 0.7978846
        %v4479 = vmul.f32 %v4463, 0.7978846
        %v4480 = vmul.f32 %v4464, 0.7978846
        %v4481 = vmul.f32 %v4465, 0.7978846
        %v4482 = vmul.f32 %v4466, 0.7978846
        %v4483 = vmul.f32 %v4467, 0.7978846
        %v4484 = vtanh.pop %v4468
        %v4485 = vtanh.pop %v4469
        %v4486 = vtanh.pop %v4470
        %v4487 = vtanh.pop %v4471
        %v4488 = vtanh.pop %v4472
        %v4489 = vtanh.pop %v4473
        %v4490 = vtanh.pop %v4474
        %v4491 = vtanh.pop %v4475
        %v4492 = vtanh.pop %v4476
        %v4493 = vtanh.pop %v4477
        %v4494 = vtanh.pop %v4478
        %v4495 = vtanh.pop %v4479
        %v4496 = vtanh.pop %v4480
        %v4497 = vtanh.pop %v4481
        %v4498 = vtanh.pop %v4482
        %v4499 = vtanh.pop %v4483
        %v4500 = vadd.f32 %v4484, 1.0
        %v4501 = vadd.f32 %v4485, 1.0
        %v4502 = vadd.f32 %v4486, 1.0
        %v4503 = vadd.f32 %v4487, 1.0
        %v4504 = vadd.f32 %v4488, 1.0
        %v4505 = vadd.f32 %v4489, 1.0
        %v4506 = vadd.f32 %v4490, 1.0
        %v4507 = vadd.f32 %v4491, 1.0
        %v4508 = vadd.f32 %v4492, 1.0
        %v4509 = vadd.f32 %v4493, 1.0
        %v4510 = vadd.f32 %v4494, 1.0
        %v4511 = vadd.f32 %v4495, 1.0
        %v4512 = vadd.f32 %v4496, 1.0
        %v4513 = vadd.f32 %v4497, 1.0
        %v4514 = vadd.f32 %v4498, 1.0
        %v4515 = vadd.f32 %v4499, 1.0
        %v4516 = vmul.f32 %v4500, 0.5
        %v4517 = vmul.f32 %v4501, 0.5
        %v4518 = vmul.f32 %v4502, 0.5
        %v4519 = vmul.f32 %v4503, 0.5
        %v4520 = vmul.f32 %v4504, 0.5
        %v4521 = vmul.f32 %v4505, 0.5
        %v4522 = vmul.f32 %v4506, 0.5
        %v4523 = vmul.f32 %v4507, 0.5
        %v4524 = vmul.f32 %v4508, 0.5
        %v4525 = vmul.f32 %v4509, 0.5
        %v4526 = vmul.f32 %v4510, 0.5
        %v4527 = vmul.f32 %v4511, 0.5
        %v4528 = vmul.f32 %v4512, 0.5
        %v4529 = vmul.f32 %v4513, 0.5
        %v4530 = vmul.f32 %v4514, 0.5
        %v4531 = vmul.f32 %v4515, 0.5
        %v4532 = vmul.f32 %v4333, %v4516
        %v4533 = vmul.f32 %v4335, %v4517
        %v4534 = vmul.f32 %v4386, %v4518
        %v4535 = vmul.f32 %v4388, %v4519
        %v4536 = vmul.f32 %v4337, %v4520
        %v4537 = vmul.f32 %v4339, %v4521
        %v4538 = vmul.f32 %v4390, %v4522
        %v4539 = vmul.f32 %v4392, %v4523
        %v4540 = vmul.f32 %v4343, %v4524
        %v4541 = vmul.f32 %v4345, %v4525
        %v4542 = vmul.f32 %v4396, %v4526
        %v4543 = vmul.f32 %v4398, %v4527
        %v4544 = vmul.f32 %v4347, %v4528
        %v4545 = vmul.f32 %v4349, %v4529
        %v4546 = vmul.f32 %v4400, %v4530
        %v4547 = vmul.f32 %v4402, %v4531
        %v4548 = vpack.c.bf16 %v4536, %v4532
        %v4549 = vpack.c.bf16 %v4537, %v4533
        %v4550 = vpack.c.bf16 %v4538, %v4534
        %v4551 = vpack.c.bf16 %v4539, %v4535
        %v4552 = vpack.c.bf16 %v4544, %v4540
        %v4553 = vpack.c.bf16 %v4545, %v4541
        %v4554 = vpack.c.bf16 %v4546, %v4542
        %v4555 = vpack.c.bf16 %v4547, %v4543
        %v4556 = vld [vmem:[%s705] sm:$0xf]
        %v4557 = vld [vmem:[%s705 + $0x4] sm:$0xf]
        %v4558 = vld [vmem:[%s705 + $0x8] sm:$0xf]
        %v4559 = vld [vmem:[%s705 + $0xc] sm:$0xf]
        %v4560 = vld [vmem:[%s705 + $0x10] sm:$0xf]
        %v4561 = vld [vmem:[%s705 + $0x14] sm:$0xf]
        %v4562 = vld [vmem:[%s705 + $0x18] sm:$0xf]
        %v4563 = vld [vmem:[%s705 + $0x1c] sm:$0xf]
        %v4564 = vld [vmem:[%s705 + $0x20] sm:$0xf]
        %v4565 = vld [vmem:[%s705 + $0x24] sm:$0xf]
        %v4566 = vld [vmem:[%s705 + $0x28] sm:$0xf]
        %v4567 = vld [vmem:[%s705 + $0x2c] sm:$0xf]
        %v4568 = vld [vmem:[%s705 + $0x30] sm:$0xf]
        %v4569 = vld [vmem:[%s705 + $0x34] sm:$0xf]
        %v4570 = vld [vmem:[%s705 + $0x38] sm:$0xf]
        %v4571 = vld [vmem:[%s705 + $0x3c] sm:$0xf]
        %v4572 = vld [vmem:[%s705 + $0x40] sm:$0xf]
        %v4573 = vld [vmem:[%s705 + $0x44] sm:$0xf]
        %v4574 = vld [vmem:[%s705 + $0x48] sm:$0xf]
        %v4575 = vld [vmem:[%s705 + $0x4c] sm:$0xf]
        %v4576 = vld [vmem:[%s705 + $0x50] sm:$0xf]
        %v4577 = vld [vmem:[%s705 + $0x54] sm:$0xf]
        %v4578 = vld [vmem:[%s705 + $0x58] sm:$0xf]
        %v4579 = vld [vmem:[%s705 + $0x5c] sm:$0xf]
        %v4580 = vld [vmem:[%s705 + $0x60] sm:$0xf]
        %v4581 = vld [vmem:[%s705 + $0x64] sm:$0xf]
        %v4582 = vld [vmem:[%s705 + $0x68] sm:$0xf]
        %v4583 = vld [vmem:[%s705 + $0x6c] sm:$0xf]
        %v4584 = vld [vmem:[%s705 + $0x70] sm:$0xf]
        %v4585 = vld [vmem:[%s705 + $0x74] sm:$0xf]
        %v4586 = vld [vmem:[%s705 + $0x78] sm:$0xf]
        %v4587 = vld [vmem:[%s705 + $0x7c] sm:$0xf]
        %v4588 = vld [vmem:[%s705 + $0x80] sm:$0xf]
        %v4589 = vld [vmem:[%s705 + $0x84] sm:$0xf]
        %v4590 = vld [vmem:[%s705 + $0x88] sm:$0xf]
        %v4591 = vld [vmem:[%s705 + $0x8c] sm:$0xf]
        %v4592 = vld [vmem:[%s705 + $0x90] sm:$0xf]
        %v4593 = vld [vmem:[%s705 + $0x94] sm:$0xf]
        %v4594 = vld [vmem:[%s705 + $0x98] sm:$0xf]
        %v4595 = vld [vmem:[%s705 + $0x9c] sm:$0xf]
        %v4596 = vld [vmem:[%s705 + $0xa0] sm:$0xf]
        %v4597 = vld [vmem:[%s705 + $0xa4] sm:$0xf]
        %v4598 = vld [vmem:[%s705 + $0xa8] sm:$0xf]
        %v4599 = vld [vmem:[%s705 + $0xac] sm:$0xf]
        %v4600 = vld [vmem:[%s705 + $0xb0] sm:$0xf]
        %v4601 = vld [vmem:[%s705 + $0xb4] sm:$0xf]
        %v4602 = vld [vmem:[%s705 + $0xb8] sm:$0xf]
        %v4603 = vld [vmem:[%s705 + $0xbc] sm:$0xf]
        %v4604 = vld [vmem:[%s705 + $0xc0] sm:$0xf]
        %v4605 = vld [vmem:[%s705 + $0xc4] sm:$0xf]
        %v4606 = vld [vmem:[%s705 + $0xc8] sm:$0xf]
        %v4607 = vld [vmem:[%s705 + $0xcc] sm:$0xf]
        %v4608 = vld [vmem:[%s705 + $0xd0] sm:$0xf]
        %v4609 = vld [vmem:[%s705 + $0xd4] sm:$0xf]
        %v4610 = vld [vmem:[%s705 + $0xd8] sm:$0xf]
        %v4611 = vld [vmem:[%s705 + $0xdc] sm:$0xf]
        %v4612 = vld [vmem:[%s705 + $0xe0] sm:$0xf]
        %v4613 = vld [vmem:[%s705 + $0xe4] sm:$0xf]
        %v4614 = vld [vmem:[%s705 + $0xe8] sm:$0xf]
        %v4615 = vld [vmem:[%s705 + $0xec] sm:$0xf]
        %v4616 = vld [vmem:[%s705 + $0xf0] sm:$0xf]
        %v4617 = vld [vmem:[%s705 + $0xf4] sm:$0xf]
        %v4618 = vld [vmem:[%s705 + $0xf8] sm:$0xf]
        %v4619 = vld [vmem:[%s705 + $0xfc] sm:$0xf]
        %v4620 = vld [vmem:[%s708] sm:$0x1]
        %v4622 = vlaneseq
        %v4623 = vshrl.u32 %v4622, 7
        %v4624 = vsub.s32 0, %v4623
        %v4625 = vrot.slane %v4620, %v4624
        %v4691 = vunpack.c.l.b16 %v4556
        %v4692 = vunpack.c.l.b16 %v4557
        %v4693 = vunpack.c.l.b16 %v4558
        %v4694 = vunpack.c.l.b16 %v4559
        %v4695 = vunpack.c.l.b16 %v4560
        %v4696 = vunpack.c.l.b16 %v4561
        %v4697 = vunpack.c.l.b16 %v4562
        %v4698 = vunpack.c.l.b16 %v4563
        %v4699 = vunpack.c.l.b16 %v4564
        %v4700 = vunpack.c.l.b16 %v4565
        %v4701 = vunpack.c.l.b16 %v4566
        %v4702 = vunpack.c.l.b16 %v4567
        %v4703 = vunpack.c.l.b16 %v4568
        %v4704 = vunpack.c.l.b16 %v4569
        %v4705 = vunpack.c.l.b16 %v4570
        %v4706 = vunpack.c.l.b16 %v4571
        %v4707 = vunpack.c.l.b16 %v4572
        %v4708 = vunpack.c.l.b16 %v4573
        %v4709 = vunpack.c.l.b16 %v4574
        %v4710 = vunpack.c.l.b16 %v4575
        %v4711 = vunpack.c.l.b16 %v4576
        %v4712 = vunpack.c.l.b16 %v4577
        %v4713 = vunpack.c.l.b16 %v4578
        %v4714 = vunpack.c.l.b16 %v4579
        %v4715 = vunpack.c.l.b16 %v4580
        %v4716 = vunpack.c.l.b16 %v4581
        %v4717 = vunpack.c.l.b16 %v4582
        %v4718 = vunpack.c.l.b16 %v4583
        %v4719 = vunpack.c.l.b16 %v4584
        %v4720 = vunpack.c.l.b16 %v4585
        %v4721 = vunpack.c.l.b16 %v4586
        %v4722 = vunpack.c.l.b16 %v4587
        %v4723 = vunpack.c.l.b16 %v4588
        %v4724 = vunpack.c.l.b16 %v4589
        %v4725 = vunpack.c.l.b16 %v4590
        %v4726 = vunpack.c.l.b16 %v4591
        %v4727 = vunpack.c.l.b16 %v4592
        %v4728 = vunpack.c.l.b16 %v4593
        %v4729 = vunpack.c.l.b16 %v4594
        %v4730 = vunpack.c.l.b16 %v4595
        %v4731 = vunpack.c.l.b16 %v4596
        %v4732 = vunpack.c.l.b16 %v4597
        %v4733 = vunpack.c.l.b16 %v4598
        %v4734 = vunpack.c.l.b16 %v4599
        %v4735 = vunpack.c.l.b16 %v4600
        %v4736 = vunpack.c.l.b16 %v4601
        %v4737 = vunpack.c.l.b16 %v4602
        %v4738 = vunpack.c.l.b16 %v4603
        %v4739 = vunpack.c.l.b16 %v4604
        %v4740 = vunpack.c.l.b16 %v4605
        %v4741 = vunpack.c.l.b16 %v4606
        %v4742 = vunpack.c.l.b16 %v4607
        %v4743 = vunpack.c.l.b16 %v4608
        %v4744 = vunpack.c.l.b16 %v4609
        %v4745 = vunpack.c.l.b16 %v4610
        %v4746 = vunpack.c.l.b16 %v4611
        %v4747 = vunpack.c.l.b16 %v4612
        %v4748 = vunpack.c.l.b16 %v4613
        %v4749 = vunpack.c.l.b16 %v4614
        %v4750 = vunpack.c.l.b16 %v4615
        %v4751 = vunpack.c.l.b16 %v4616
        %v4752 = vunpack.c.l.b16 %v4617
        %v4753 = vunpack.c.l.b16 %v4618
        %v4754 = vunpack.c.l.b16 %v4619
        %v4755 = vpack.c.b16 %v4692, %v4691
        %v4756 = vpack.c.b16 %v4694, %v4693
        %v4757 = vpack.c.b16 %v4696, %v4695
        %v4758 = vpack.c.b16 %v4698, %v4697
        %v4759 = vpack.c.b16 %v4700, %v4699
        %v4760 = vpack.c.b16 %v4702, %v4701
        %v4761 = vpack.c.b16 %v4704, %v4703
        %v4762 = vpack.c.b16 %v4706, %v4705
        %v4763 = vpack.c.b16 %v4708, %v4707
        %v4764 = vpack.c.b16 %v4710, %v4709
        %v4765 = vpack.c.b16 %v4712, %v4711
        %v4766 = vpack.c.b16 %v4714, %v4713
        %v4767 = vpack.c.b16 %v4716, %v4715
        %v4768 = vpack.c.b16 %v4718, %v4717
        %v4769 = vpack.c.b16 %v4720, %v4719
        %v4770 = vpack.c.b16 %v4722, %v4721
        %v4771 = vpack.c.b16 %v4724, %v4723
        %v4772 = vpack.c.b16 %v4726, %v4725
        %v4773 = vpack.c.b16 %v4728, %v4727
        %v4774 = vpack.c.b16 %v4730, %v4729
        %v4775 = vpack.c.b16 %v4732, %v4731
        %v4776 = vpack.c.b16 %v4734, %v4733
        %v4777 = vpack.c.b16 %v4736, %v4735
        %v4778 = vpack.c.b16 %v4738, %v4737
        %v4779 = vpack.c.b16 %v4740, %v4739
        %v4780 = vpack.c.b16 %v4742, %v4741
        %v4781 = vpack.c.b16 %v4744, %v4743
        %v4782 = vpack.c.b16 %v4746, %v4745
        %v4783 = vpack.c.b16 %v4748, %v4747
        %v4784 = vpack.c.b16 %v4750, %v4749
        %v4785 = vpack.c.b16 %v4752, %v4751
        %v4786 = vpack.c.b16 %v4754, %v4753
        %4819 = vmatprep.subr.bf16.mxu0 0
        %4820 = vmatpush1.bf16.msra.mxu0 %v4755
        %4821 = vmatprep.subr.bf16.mxu0 0
        %4822 = vmatpush1.bf16.msra.mxu0 %v4756
        %4823 = vmatprep.subr.bf16.mxu0 0
        %4824 = vmatpush1.bf16.msra.mxu0 %v4757
        %4825 = vmatprep.subr.bf16.mxu0 0
        %4826 = vmatpush1.bf16.msra.mxu0 %v4758
        %4827 = vmatprep.subr.bf16.mxu0 0
        %4828 = vmatpush1.bf16.msra.mxu0 %v4759
        %4829 = vmatprep.subr.bf16.mxu0 0
        %4830 = vmatpush1.bf16.msra.mxu0 %v4760
        %4831 = vmatprep.subr.bf16.mxu0 0
        %4832 = vmatpush1.bf16.msra.mxu0 %v4761
        %4833 = vmatprep.subr.bf16.mxu0 0
        %4834 = vmatpush1.bf16.msra.mxu0 %v4762
        %4835 = vmatprep.subr.bf16.mxu0 0
        %4836 = vmatpush1.bf16.msra.mxu0 %v4763
        %4837 = vmatprep.subr.bf16.mxu0 0
        %4838 = vmatpush1.bf16.msra.mxu0 %v4764
        %4839 = vmatprep.subr.bf16.mxu0 0
        %4840 = vmatpush1.bf16.msra.mxu0 %v4765
        %4841 = vmatprep.subr.bf16.mxu0 0
        %4842 = vmatpush1.bf16.msra.mxu0 %v4766
        %4843 = vmatprep.subr.bf16.mxu0 0
        %4844 = vmatpush1.bf16.msra.mxu0 %v4767
        %4845 = vmatprep.subr.bf16.mxu0 0
        %4846 = vmatpush1.bf16.msra.mxu0 %v4768
        %4847 = vmatprep.subr.bf16.mxu0 0
        %4848 = vmatpush1.bf16.msra.mxu0 %v4769
        %4849 = vmatprep.subr.bf16.mxu0 0
        %4850 = vmatpush1.bf16.msra.mxu0 %v4770
        %4851 = vmatprep.mubr.bf16.mxu0 %v4549
        %4852 = vmatmul.mubr.bf16.gmra.mrb[0].mxu0 %v4548
        %v4853 = vpop.f32.mrb[0].mxu0
        %v4854 = vadd.f32 %v4625, %v4853
        %v4855 = vpop.f32.mrb[0].mxu0
        %v4856 = vpop.f32.mrb[0].mxu0
        %v4857 = vadd.f32 %v4625, %v4856
        %v4858 = vpop.f32.mrb[0].mxu0
        %4859 = vmatprep.mubr.bf16.mxu0 %v4553
        %4860 = vmatmul.mubr.bf16.gmra.mrb[0].mxu0 %v4552
        %v4861 = vpop.f32.mrb[0].mxu0
        %v4862 = vadd.f32 %v4625, %v4861
        %v4863 = vpop.f32.mrb[0].mxu0
        %v4864 = vpop.f32.mrb[0].mxu0
        %v4865 = vadd.f32 %v4625, %v4864
        %v4866 = vpop.f32.mrb[0].mxu0
        %4867 = vdwg.mxu0
        %4868 = vmatprep.subr.bf16.mxu0 0
        %4869 = vmatpush1.bf16.msra.mxu0 %v4771
        %4870 = vmatprep.subr.bf16.mxu0 0
        %4871 = vmatpush1.bf16.msra.mxu0 %v4772
        %4872 = vmatprep.subr.bf16.mxu0 0
        %4873 = vmatpush1.bf16.msra.mxu0 %v4773
        %4874 = vmatprep.subr.bf16.mxu0 0
        %4875 = vmatpush1.bf16.msra.mxu0 %v4774
        %4876 = vmatprep.subr.bf16.mxu0 0
        %4877 = vmatpush1.bf16.msra.mxu0 %v4775
        %4878 = vmatprep.subr.bf16.mxu0 0
        %4879 = vmatpush1.bf16.msra.mxu0 %v4776
        %4880 = vmatprep.subr.bf16.mxu0 0
        %4881 = vmatpush1.bf16.msra.mxu0 %v4777
        %4882 = vmatprep.subr.bf16.mxu0 0
        %4883 = vmatpush1.bf16.msra.mxu0 %v4778
        %4884 = vmatprep.subr.bf16.mxu0 0
        %4885 = vmatpush1.bf16.msra.mxu0 %v4779
        %4886 = vmatprep.subr.bf16.mxu0 0
        %4887 = vmatpush1.bf16.msra.mxu0 %v4780
        %4888 = vmatprep.subr.bf16.mxu0 0
        %4889 = vmatpush1.bf16.msra.mxu0 %v4781
        %4890 = vmatprep.subr.bf16.mxu0 0
        %4891 = vmatpush1.bf16.msra.mxu0 %v4782
        %4892 = vmatprep.subr.bf16.mxu0 0
        %4893 = vmatpush1.bf16.msra.mxu0 %v4783
        %4894 = vmatprep.subr.bf16.mxu0 0
        %4895 = vmatpush1.bf16.msra.mxu0 %v4784
        %4896 = vmatprep.subr.bf16.mxu0 0
        %4897 = vmatpush1.bf16.msra.mxu0 %v4785
        %4898 = vmatprep.subr.bf16.mxu0 0
        %4899 = vmatpush1.bf16.msra.mxu0 %v4786
        %4900 = vmatprep.mubr.bf16.mxu0 %v4551
        %4901 = vmatmul.mubr.bf16.gmra.mrb[0].mxu0 %v4550
        %v4902 = vpop.f32.mrb[0].mxu0
        %v4903 = vadd.f32 %v4854, %v4902
        %v4904 = vpop.f32.mrb[0].mxu0
        %v4905 = vpop.f32.mrb[0].mxu0
        %v4906 = vadd.f32 %v4857, %v4905
        %v4907 = vpop.f32.mrb[0].mxu0
        %4908 = vmatprep.mubr.bf16.mxu0 %v4555
        %4909 = vmatmul.mubr.bf16.gmra.mrb[0].mxu0 %v4554
        %v4910 = vpop.f32.mrb[0].mxu0
        %v4911 = vadd.f32 %v4862, %v4910
        %v4912 = vpop.f32.mrb[0].mxu0
        %v4913 = vpop.f32.mrb[0].mxu0
        %v4914 = vadd.f32 %v4865, %v4913
        %v4915 = vpop.f32.mrb[0].mxu0
        %4916 = vdwg.mxu0
        %v4917 = vadd.f32 %v4012, %v4903
        %v4918 = vadd.f32 %v4013, %v4906
        %v4919 = vadd.f32 %v4014, %v4911
        %v4920 = vadd.f32 %v4015, %v4914
        %p4921 = scmp.eq.s32.totalorder %s28, 1
        // Predicated region
        $region89: #{encoder_forward.3} parent=83 // pred_check
          %p4922 = pneg %p4921
        $region90: #{encoder_forward.3} parent=83 // pred_check_branch
          %4924 = sbr.rel (%p4922) target = $region92
        $region91: #{encoder_forward.3} parent=83 // pred_region
          %v4925 = vld [vmem:[%s14] sm:$0x1]
          %v4926 = vld [vmem:[%s15] sm:$0x1]
          %4927 = vadd.xlane.f32.xlu0 %v4917
          %v4928 = vpop.xlane.xlu0 %4927
          %4929 = vadd.xlane.f32.xlu0 %v4918
          %v4930 = vpop.xlane.xlu0 %4929
          %4931 = vadd.xlane.f32.xlu0 %v4919
          %v4932 = vpop.xlane.xlu0 %4931
          %4933 = vadd.xlane.f32.xlu0 %v4920
          %v4934 = vpop.xlane.xlu0 %4933
          %v4935 = vmul.f32 %v4928, %v736
          %v4936 = vmul.f32 %v4930, %v736
          %v4937 = vmul.f32 %v4932, %v736
          %v4938 = vmul.f32 %v4934, %v736
          %v4939 = vsub.f32 %v4917, %v4935
          %v4940 = vsub.f32 %v4918, %v4936
          %v4941 = vsub.f32 %v4919, %v4937
          %v4942 = vsub.f32 %v4920, %v4938
          %v4943 = vmul.f32 %v4939, %v4939
          %v4944 = vmul.f32 %v4940, %v4940
          %v4945 = vmul.f32 %v4941, %v4941
          %v4946 = vmul.f32 %v4942, %v4942
          %4947 = vadd.xlane.f32.xlu0 %v4943
          %v4948 = vpop.xlane.xlu0 %4947
          %4949 = vadd.xlane.f32.xlu0 %v4944
          %v4950 = vpop.xlane.xlu0 %4949
          %4951 = vadd.xlane.f32.xlu0 %v4945
          %v4952 = vpop.xlane.xlu0 %4951
          %4953 = vadd.xlane.f32.xlu0 %v4946
          %v4954 = vpop.xlane.xlu0 %4953
          %v4955 = vmul.f32 %v4948, %v736
          %v4956 = vmul.f32 %v4950, %v736
          %v4957 = vmul.f32 %v4952, %v736
          %v4958 = vmul.f32 %v4954, %v736
          %v4959 = vadd.f32 %v4955, 1e-05
          %v4960 = vadd.f32 %v4956, 1e-05
          %v4961 = vadd.f32 %v4957, 1e-05
          %v4962 = vadd.f32 %v4958, 1e-05
          %v4963 = vrsqrt.pop %v4959
          %v4964 = vrsqrt.pop %v4960
          %v4965 = vrsqrt.pop %v4961
          %v4966 = vrsqrt.pop %v4962
          %v4967 = vmul.f32 %v4939, %v4963
          %v4968 = vmul.f32 %v4940, %v4964
          %v4969 = vmul.f32 %v4941, %v4965
          %v4970 = vmul.f32 %v4942, %v4966
          %v4972 = vlaneseq
          %v4973 = vshrl.u32 %v4972, 7
          %v4974 = vsub.s32 0, %v4973
          %v4975 = vrot.slane %v4925, %v4974
          %v4977 = vmul.f32 %v4967, %v4975
          %v4978 = vmul.f32 %v4968, %v4975
          %v4979 = vmul.f32 %v4969, %v4975
          %v4980 = vmul.f32 %v4970, %v4975
          %v4982 = vlaneseq
          %v4983 = vshrl.u32 %v4982, 7
          %v4984 = vsub.s32 0, %v4983
          %v4985 = vrot.slane %v4926, %v4984
          %v4987 = vadd.f32 %v4977, %v4985
          %v4988 = vadd.f32 %v4978, %v4985
          %v4989 = vadd.f32 %v4979, %v4985
          %v4990 = vadd.f32 %v4980, %v4985
          %4991 = vst [vmem:[#allocation2] sm:$0xff] %v4987
          %4992 = vst [vmem:[#allocation2 + $0x8] sm:$0xff] %v4988
          %4993 = vst [vmem:[#allocation2 + $0x10] sm:$0xff] %v4989
          %4994 = vst [vmem:[#allocation2 + $0x18] sm:$0xff] %v4990
        $region92: #{encoder_forward.3} parent=83 // pred_fallthru
          _
        %p4995 = scmp.lt.s32.totalorder %s28, 1
        // Predicated region
        $region93: #{encoder_forward.3} parent=83 // pred_check
          %p4996 = pneg %p4995
        $region94: #{encoder_forward.3} parent=83 // pred_check_branch
          %4998 = sbr.rel (%p4996) target = $region96
        $region95: #{encoder_forward.3} parent=83 // pred_region
          %4999 = vst [vmem:[#allocation2] sm:$0xff] %v4917
          %5000 = vst [vmem:[#allocation2 + $0x8] sm:$0xff] %v4918
          %5001 = vst [vmem:[#allocation2 + $0x10] sm:$0xff] %v4919
          %5002 = vst [vmem:[#allocation2 + $0x18] sm:$0xff] %v4920
        $region96: #{encoder_forward.3} parent=83 // pred_fallthru
          _
        // Predicated region
        $region97: #{encoder_forward.3} parent=83 // pred_check
          %p5003 = pneg %p442
        $region98: #{encoder_forward.3} parent=83 // pred_check_branch
          %5005 = sbr.rel (%p5003) target = $region100
        $region99: #{encoder_forward.3} parent=83 // pred_region
          %s5007 = ssub.s32 512, 512
          %5008 = vsyncadd [#allocation3], %s5007
          %s5009 = sshll.u32 [#allocation2], 4
          %s5010 = int_to_ptr.vmem [resolvable:$true] %s5009
          %5015 = dma.vmem_to_hbm [thread:$0]  %s5010, 512, %s16, [#allocation3], 128, 128, 8
        $region100: #{encoder_forward.3} parent=83 // pred_fallthru
          _
        // Predicated region
        $region101: #{encoder_forward.3} parent=83 // pred_check
          %p5016 = pneg %p442
        $region102: #{encoder_forward.3} parent=83 // pred_check_branch
          %5018 = sbr.rel (%p5016) target = $region104
        $region103: #{encoder_forward.3} parent=83 // pred_region
          %5019 = dma.done [#allocation3], 512
        $region104: #{encoder_forward.3} parent=83 // pred_fallthru
          _
      $region84: #{encoder_forward.3} parent=5 // pred_fallthru
        _
      %p5020 = scmp.le.s32.totalorder 2, %s23
      // Predicated region
      $region105: #{encoder_forward.3} parent=5 // pred_check
        %p5021 = pneg %p5020
      $region106: #{encoder_forward.3} parent=5 // pred_check_branch
        %5023 = sbr.rel (%p5021) target = $region108
      $region107: #{encoder_forward.3} parent=5 // pred_region
        %s5024 = ssub.s32 %s23, 2
      $region108: #{encoder_forward.3} parent=5 // pred_fallthru
        _
    $region6: #{encoder_forward.3} parent=1 // loop_footer
      %s27 = sadd.s32 1, %s23
    $region7: #{encoder_forward.3} parent=1 // loop_footer_branch
      %22 = sbr.rel target = $region3
    $region8: #{encoder_forward.3} parent=1 // loop_exit
      _
    %5025 = vsyncpa [#allocation3], 1
    %s5026 = scalar_lea.sflag [#allocation3], 1
    %5027 = vsyncpa %s5026, 1

</llo_original>
